<compile_context>
chip_gen: v5e
topology: v5e:2x2
jax: 0.10.0
libtpu: 0.0.40
codegen_flags: <defaults>
</compile_context>

<pallas_src>
import jax
import jax.numpy as jnp
from jax.experimental import pallas as pl
from jax.experimental.pallas import tpu as pltpu

_VMEM_LIMIT = 48 * 1024 * 1024  # leave headroom on v7x (64 MiB physical per TC)


# ---------------------------------------------------------------------------
# Encoder: PointNetFeat (Conv1d k=1 stacks + folded BN + global max-pool)
# ---------------------------------------------------------------------------
def _encoder_kernel(x_ref, w1, b1, w2, b2, w3, b3, g_ref):
    f32 = jnp.float32
    bf16 = jnp.bfloat16

    x = x_ref[0]                                   # [TN, 3]  (points x xyz), f32
    w1v = w1[...]                                  # [3, 64]  f32

    # mlp64: K=3 contraction on the VPU as broadcast FMAs (MXU would pad K=3 -> 128/256).
    h = (x[:, 0:1] * w1v[0:1, :]
         + x[:, 1:2] * w1v[1:2, :]
         + x[:, 2:3] * w1v[2:3, :]
         + b1[...])                                # [TN, 64] f32
    h = jnp.maximum(h, 0.0)

    # mlp128, mlp1024: bf16 MXU matmuls, f32 accumulation / bias / ReLU.
    # (No ReLU after mlp1024, matching the reference module.)
    h = jnp.dot(h.astype(bf16), w2[...], preferred_element_type=f32) + b2[...]   # [TN, 128]
    h = jnp.maximum(h, 0.0)
    h = jnp.dot(h.astype(bf16), w3[...], preferred_element_type=f32) + b3[...]   # [TN, 1024]

    chunk_max = jnp.max(h, axis=0, keepdims=True)                                # [1, 1024]

    # Running max across the N-chunks (output block is resident across the n axis).
    @pl.when(pl.program_id(1) == 0)
    def _init():
        g_ref[...] = jnp.full(g_ref.shape, -jnp.inf, dtype=g_ref.dtype)

    g_ref[...] = jnp.maximum(g_ref[...], chunk_max[None])


# ---------------------------------------------------------------------------
# Decoder: mlp1..mlp3 computed once into scratch; mlp4 streamed by output column tile.
# ---------------------------------------------------------------------------
def _decoder_kernel(g_ref, wd1, bd1, wd2, bd2, wd3, bd3, wd4, bd4, out_ref, d3_ref):
    f32 = jnp.float32
    bf16 = jnp.bfloat16

    @pl.when(pl.program_id(0) == 0)
    def _trunk():
        # bf16 weights on the MXU, f32 accumulation, f32 elementwise (bias / ReLU).
        d = g_ref[...]                                                           # [B, 1024]
        d = jnp.maximum(
            jnp.dot(d.astype(bf16), wd1[...], preferred_element_type=f32) + bd1[...], 0.0)
        d = jnp.maximum(
            jnp.dot(d.astype(bf16), wd2[...], preferred_element_type=f32) + bd2[...], 0.0)
        d = jnp.maximum(
            jnp.dot(d.astype(bf16), wd3[...], preferred_element_type=f32) + bd3[...], 0.0)
        d3_ref[...] = d.astype(bf16)                                             # [B, P]

    # mlp4 (no BN, no ReLU): one lane-dense column tile of the output per grid step.
    out_ref[...] = (jnp.dot(d3_ref[...], wd4[...], preferred_element_type=f32)
                    + bd4[...])


# ---------------------------------------------------------------------------
# Tiling helpers
# ---------------------------------------------------------------------------
def _round_up(x, m):
    return ((x + m - 1) // m) * m


def _pick_n_tile(n_pad):
    # n_pad is a multiple of 256, so this always succeeds (prefer larger tiles).
    for t in (2048, 1024, 512, 256):
        if n_pad % t == 0:
            return t
    return 256


def _pick_col_tile(out_dim):
    for t in (1024, 768, 512, 384, 256, 128):
        if out_dim % t == 0:
            return t
    return out_dim  # fallback: single full-width block (always legal)


# ---------------------------------------------------------------------------
# Wrapper
# ---------------------------------------------------------------------------
@jax.jit
def pointnet_autoencoder(pointcloud, params):
    """pointcloud: [B, N, 3] float32 -> reconstructed pointcloud [B, num_points, 3]."""
    B, N, _ = pointcloud.shape
    P = params["wd4"].shape[0]
    out_dim = params["wd4"].shape[1]               # 3 * num_points

    # Pad N to a multiple of 256 by replicating the last point: duplicates of a real
    # point can never change the global max-pool, so this is exact.
    N_pad = _round_up(N, 256)
    if N_pad != N:
        pointcloud = jnp.pad(pointcloud, ((0, 0), (0, N_pad - N), (0, 0)), mode="edge")
    TN = _pick_n_tile(N_pad)

    # ---- encoder: grid over (batch, N-chunks) ----
    enc_w = [params[k] for k in ("w1", "b1", "w2", "b2", "w3", "b3")]
    enc_specs = [pl.BlockSpec(w.shape, lambda b, n: (0, 0)) for w in enc_w]
    enc_flops = 2 * B * N_pad * (3 * 64 + 64 * 128 + 128 * 1024)
    enc_bytes = (B * N_pad * 3 * 4
                 + sum(int(w.size) * w.dtype.itemsize for w in enc_w)
                 + B * 1024 * 4)

    # NOTE: the [1, TN, 3] input block is lane-sparse (3/128 lanes) but only 6-24 KiB/step;
    # the six weight/bias blocks have constant index maps (resident, tiny).
    g = pl.pallas_call(
        _encoder_kernel,
        out_shape=jax.ShapeDtypeStruct((B, 1, 1024), jnp.float32),
        grid_spec=pltpu.PrefetchScalarGridSpec(
            num_scalar_prefetch=0,
            grid=(B, N_pad // TN),
            in_specs=[pl.BlockSpec((1, TN, 3), lambda b, n: (b, n, 0))] + enc_specs,
            out_specs=pl.BlockSpec((1, 1, 1024), lambda b, n: (b, 0, 0)),
        ),
        compiler_params=pltpu.CompilerParams(
            dimension_semantics=("parallel", "arbitrary"),
            vmem_limit_bytes=_VMEM_LIMIT,
        ),
        cost_estimate=pl.CostEstimate(
            flops=int(enc_flops), transcendentals=0, bytes_accessed=int(enc_bytes)),
    )(pointcloud, *enc_w)

    g = g.reshape(B, 1024)

    # ---- decoder: column-tiled final layer, resident trunk weights ----
    TC = _pick_col_tile(out_dim)
    dec_w = [params[k] for k in ("wd1", "bd1", "wd2", "bd2", "wd3", "bd3", "wd4", "bd4")]
    wd1, bd1, wd2, bd2, wd3, bd3, wd4, bd4 = dec_w
    dec_flops = 2 * B * (1024 * (P // 4) + (P // 4) * (P // 2) + (P // 2) * P + P * out_dim)
    dec_bytes = (g.size * 4 + sum(int(w.size) * w.dtype.itemsize for w in dec_w)
                 + B * out_dim * 4)

    dec_in_specs = [
        pl.BlockSpec((B, 1024), lambda j: (0, 0)),     # g            (resident)
        pl.BlockSpec(wd1.shape, lambda j: (0, 0)),     # wd1..bd3     (resident)
        pl.BlockSpec(bd1.shape, lambda j: (0, 0)),
        pl.BlockSpec(wd2.shape, lambda j: (0, 0)),
        pl.BlockSpec(bd2.shape, lambda j: (0, 0)),
        pl.BlockSpec(wd3.shape, lambda j: (0, 0)),
        pl.BlockSpec(bd3.shape, lambda j: (0, 0)),
        pl.BlockSpec((P, TC), lambda j: (0, j)),       # wd4 column tile (streamed)
        pl.BlockSpec((1, TC), lambda j: (0, j)),       # bd4 column tile
    ]

    out = pl.pallas_call(
        _decoder_kernel,
        out_shape=jax.ShapeDtypeStruct((B, out_dim), jnp.float32),
        grid_spec=pltpu.PrefetchScalarGridSpec(
            num_scalar_prefetch=0,
            grid=(out_dim // TC,),
            in_specs=dec_in_specs,
            out_specs=pl.BlockSpec((B, TC), lambda j: (0, j)),
            scratch_shapes=[pltpu.VMEM((B, P), jnp.bfloat16)],   # d3 (mlp3 output)
        ),
        compiler_params=pltpu.CompilerParams(
            # "arbitrary": the d3 scratch is filled at j==0 and reused by later steps.
            dimension_semantics=("arbitrary",),
            vmem_limit_bytes=_VMEM_LIMIT,
        ),
        cost_estimate=pl.CostEstimate(
            flops=int(dec_flops), transcendentals=0, bytes_accessed=int(dec_bytes)),
    )(g, *dec_w)

    return out.reshape(B, P, 3)


# ---------------------------------------------------------------------------
# Params / reference
# ---------------------------------------------------------------------------
def init_params(key, num_points):
    """Deterministic init; BatchNorm (default eval stats) folded into weights.

    Encoder: w1/b1 f32 (VPU path), w2/w3 bf16 (MXU path), biases f32.
    Decoder: weights bf16, biases f32.
    """
    P = num_points
    bn_scale = 1.0 / jnp.sqrt(1.0 + 1e-5)          # gamma=1, var=1, mean=0, beta=0

    def make(k, cin, cout, fold_bn):
        k1, k2 = jax.random.split(k)
        w = jax.random.normal(k1, (cin, cout), jnp.float32) * (1.0 / jnp.sqrt(cin))
        b = jax.random.normal(k2, (cout,), jnp.float32) * 0.01
        if fold_bn:
            w = w * bn_scale
            b = b * bn_scale
        return w, b.reshape(1, cout)

    params = {}
    # encoder
    for (cin, cout), nm in zip([(3, 64), (64, 128), (128, 1024)], ["1", "2", "3"]):
        key, sub = jax.random.split(key)
        w, b = make(sub, cin, cout, True)
        params["w" + nm] = w if nm == "1" else w.astype(jnp.bfloat16)
        params["b" + nm] = b
    # decoder
    dec_dims = [(1024, P // 4), (P // 4, P // 2), (P // 2, P), (P, 3 * P)]
    for (cin, cout), nm, fold in zip(dec_dims, ["d1", "d2", "d3", "d4"],
                                     [True, True, True, False]):
        key, sub = jax.random.split(key)
        w, b = make(sub, cin, cout, fold)
        params["w" + nm] = w.astype(jnp.bfloat16)
        params["b" + nm] = b
    return params


def ref_forward(pointcloud, p):
    """Pure-JAX reference (same folded-BN eval semantics and bf16 matmul inputs)."""
    f32 = jnp.float32
    bf16 = jnp.bfloat16

    h = jax.nn.relu(jnp.einsum("bnc,cd->bnd", pointcloud, p["w1"]) + p["b1"])
    h = jax.nn.relu(jnp.einsum("bnc,cd->bnd", h.astype(bf16), p["w2"],
                               preferred_element_type=f32) + p["b2"])
    h = jnp.einsum("bnc,cd->bnd", h.astype(bf16), p["w3"],
                   preferred_element_type=f32) + p["b3"]
    g = jnp.max(h, axis=1)                                             # [B, 1024]

    def dec(d, w, b, relu=True):
        y = jnp.dot(d.astype(bf16), w, preferred_element_type=f32) + b
        return jax.nn.relu(y) if relu else y

    d = dec(g, p["wd1"], p["bd1"])
    d = dec(d, p["wd2"], p["bd2"])
    d = dec(d, p["wd3"], p["bd3"])
    d = dec(d, p["wd4"], p["bd4"], relu=False)
    return d.reshape(pointcloud.shape[0], -1, 3)


if __name__ == "__main__":
    B = 2
    num_points = 512          # decoder dims 128 / 256 / 512 / 1536; TC = 768 (2 column tiles)
    N = 1500                  # not a multiple of 256 -> exercises edge-padding + running max

    key = jax.random.PRNGKey(0)
    kp, kx = jax.random.split(key)
    params = init_params(kp, num_points)
    pointcloud = jax.random.normal(kx, (B, N, 3), jnp.float32)

    out = jax.block_until_ready(pointnet_autoencoder(pointcloud, params))
    ref = ref_forward(pointcloud, params)

    assert out.shape == (B, num_points, 3), out.shape
    max_err = float(jnp.max(jnp.abs(out - ref)))
    assert jnp.allclose(out, ref, atol=1e-2, rtol=1e-2), max_err

    print("KERNEL_OK")
</pallas_src>

<mosaic_0001>
module attributes {stable_mosaic.version = 11 : i64} {
  func.func @_encoder_kernel(%arg0: i32, %arg1: i32, %arg2: memref<1x512x3xf32, #tpu.memory_space<vmem>>, %arg3: memref<3x64xf32, #tpu.memory_space<vmem>>, %arg4: memref<1x64xf32, #tpu.memory_space<vmem>>, %arg5: memref<64x128xbf16, #tpu.memory_space<vmem>>, %arg6: memref<1x128xf32, #tpu.memory_space<vmem>>, %arg7: memref<128x1024xbf16, #tpu.memory_space<vmem>>, %arg8: memref<1x1024xf32, #tpu.memory_space<vmem>>, %arg9: memref<1x1x1024xf32, #tpu.memory_space<vmem>>) attributes {dimension_semantics = [#tpu.dimension_semantics<parallel>, #tpu.dimension_semantics<arbitrary>], iteration_bounds = array<i64: 2, 3>, scalar_prefetch = 0 : i64, scratch_operands = 0 : i64, tpu.core_type = #tpu.core_type<tc>, window_params = [{transform_indices = @transform_0, window_bounds = array<i64: 1, 512, 3>}, {pipeline_mode = #tpu.pipeline_mode<synchronous>, transform_indices = @transform_1, window_bounds = array<i64: 3, 64>}, {pipeline_mode = #tpu.pipeline_mode<synchronous>, transform_indices = @transform_2, window_bounds = array<i64: 1, 64>}, {pipeline_mode = #tpu.pipeline_mode<synchronous>, transform_indices = @transform_3, window_bounds = array<i64: 64, 128>}, {pipeline_mode = #tpu.pipeline_mode<synchronous>, transform_indices = @transform_4, window_bounds = array<i64: 1, 128>}, {pipeline_mode = #tpu.pipeline_mode<synchronous>, transform_indices = @transform_5, window_bounds = array<i64: 128, 1024>}, {pipeline_mode = #tpu.pipeline_mode<synchronous>, transform_indices = @transform_6, window_bounds = array<i64: 1, 1024>}, {transform_indices = @transform_7, window_bounds = array<i64: 1, 1, 1024>}]} {
    %c0 = arith.constant 0 : index
    %c0_0 = arith.constant 0 : index
    %c0_1 = arith.constant 0 : index
    %0 = vector.load %arg2[%c0, %c0_0, %c0_1] : memref<1x512x3xf32, #tpu.memory_space<vmem>>, vector<1x512x3xf32>
    %1 = vector.shape_cast %0 : vector<1x512x3xf32> to vector<512x3xf32>
    %c0_2 = arith.constant 0 : index
    %c0_3 = arith.constant 0 : index
    %2 = vector.load %arg3[%c0_2, %c0_3] : memref<3x64xf32, #tpu.memory_space<vmem>>, vector<3x64xf32>
    %3 = vector.extract_strided_slice %1 {offsets = [0, 0], sizes = [512, 1], strides = [1, 1]} : vector<512x3xf32> to vector<512x1xf32>
    %4 = vector.extract_strided_slice %2 {offsets = [0, 0], sizes = [1, 64], strides = [1, 1]} : vector<3x64xf32> to vector<1x64xf32>
    %5 = vector.broadcast %3 : vector<512x1xf32> to vector<512x64xf32>
    %6 = vector.broadcast %4 : vector<1x64xf32> to vector<512x64xf32>
    %7 = arith.mulf %5, %6 : vector<512x64xf32>
    %8 = vector.extract_strided_slice %1 {offsets = [0, 1], sizes = [512, 1], strides = [1, 1]} : vector<512x3xf32> to vector<512x1xf32>
    %9 = vector.extract_strided_slice %2 {offsets = [1, 0], sizes = [1, 64], strides = [1, 1]} : vector<3x64xf32> to vector<1x64xf32>
    %10 = vector.broadcast %8 : vector<512x1xf32> to vector<512x64xf32>
    %11 = vector.broadcast %9 : vector<1x64xf32> to vector<512x64xf32>
    %12 = arith.mulf %10, %11 : vector<512x64xf32>
    %13 = arith.addf %7, %12 : vector<512x64xf32>
    %14 = vector.extract_strided_slice %1 {offsets = [0, 2], sizes = [512, 1], strides = [1, 1]} : vector<512x3xf32> to vector<512x1xf32>
    %15 = vector.extract_strided_slice %2 {offsets = [2, 0], sizes = [1, 64], strides = [1, 1]} : vector<3x64xf32> to vector<1x64xf32>
    %16 = vector.broadcast %14 : vector<512x1xf32> to vector<512x64xf32>
    %17 = vector.broadcast %15 : vector<1x64xf32> to vector<512x64xf32>
    %18 = arith.mulf %16, %17 : vector<512x64xf32>
    %19 = arith.addf %13, %18 : vector<512x64xf32>
    %c0_4 = arith.constant 0 : index
    %c0_5 = arith.constant 0 : index
    %20 = vector.load %arg4[%c0_4, %c0_5] : memref<1x64xf32, #tpu.memory_space<vmem>>, vector<1x64xf32>
    %21 = vector.broadcast %20 : vector<1x64xf32> to vector<512x64xf32>
    %22 = arith.addf %19, %21 : vector<512x64xf32>
    %cst = arith.constant 0.000000e+00 : f32
    %23 = vector.broadcast %cst : f32 to vector<512x64xf32>
    %24 = arith.maximumf %22, %23 : vector<512x64xf32>
    %25 = arith.truncf %24 : vector<512x64xf32> to vector<512x64xbf16>
    %c0_6 = arith.constant 0 : index
    %c0_7 = arith.constant 0 : index
    %26 = vector.load %arg5[%c0_6, %c0_7] : memref<64x128xbf16, #tpu.memory_space<vmem>>, vector<64x128xbf16>
    %cst_8 = arith.constant dense<0.000000e+00> : vector<512x128xf32>
    %27 = tpu.matmul %25, %26, %cst_8 {dimension_numbers = #tpu.dot_dimension_numbers<[1], [0], [0], [1], [0, 0, 1, 1], [], []>} : vector<512x64xbf16>, vector<64x128xbf16>, vector<512x128xf32> -> vector<512x128xf32>
    %c0_9 = arith.constant 0 : index
    %c0_10 = arith.constant 0 : index
    %28 = vector.load %arg6[%c0_9, %c0_10] : memref<1x128xf32, #tpu.memory_space<vmem>>, vector<1x128xf32>
    %29 = vector.broadcast %28 : vector<1x128xf32> to vector<512x128xf32>
    %30 = arith.addf %27, %29 : vector<512x128xf32>
    %cst_11 = arith.constant 0.000000e+00 : f32
    %31 = vector.broadcast %cst_11 : f32 to vector<512x128xf32>
    %32 = arith.maximumf %30, %31 : vector<512x128xf32>
    %33 = arith.truncf %32 : vector<512x128xf32> to vector<512x128xbf16>
    %c0_12 = arith.constant 0 : index
    %c0_13 = arith.constant 0 : index
    %34 = vector.load %arg7[%c0_12, %c0_13] : memref<128x1024xbf16, #tpu.memory_space<vmem>>, vector<128x1024xbf16>
    %cst_14 = arith.constant dense<0.000000e+00> : vector<512x1024xf32>
    %35 = tpu.matmul %33, %34, %cst_14 {dimension_numbers = #tpu.dot_dimension_numbers<[1], [0], [0], [1], [0, 0, 1, 1], [], []>} : vector<512x128xbf16>, vector<128x1024xbf16>, vector<512x1024xf32> -> vector<512x1024xf32>
    %c0_15 = arith.constant 0 : index
    %c0_16 = arith.constant 0 : index
    %36 = vector.load %arg8[%c0_15, %c0_16] : memref<1x1024xf32, #tpu.memory_space<vmem>>, vector<1x1024xf32>
    %37 = vector.broadcast %36 : vector<1x1024xf32> to vector<512x1024xf32>
    %38 = arith.addf %35, %37 : vector<512x1024xf32>
    %cst_17 = arith.constant dense<0xFF800000> : vector<1024xf32>
    %39 = vector.multi_reduction <maximumf>, %38, %cst_17 [0] : vector<512x1024xf32> to vector<1024xf32>
    %40 = vector.shape_cast %39 : vector<1024xf32> to vector<1x1024xf32>
    %c0_i32 = arith.constant 0 : i32
    %41 = arith.cmpi eq, %arg1, %c0_i32 : i32
    %42 = arith.extui %41 : i1 to i32
    %c0_i32_18 = arith.constant 0 : i32
    %43 = arith.cmpi ne, %42, %c0_i32_18 : i32
    scf.if %43 {
      %cst_25 = arith.constant 0xFF800000 : f32
      %48 = vector.broadcast %cst_25 : f32 to vector<1x1x1024xf32>
      %c0_26 = arith.constant 0 : index
      %c0_27 = arith.constant 0 : index
      %c0_28 = arith.constant 0 : index
      %49 = vector.load %arg9[%c0_26, %c0_27, %c0_28] : memref<1x1x1024xf32, #tpu.memory_space<vmem>>, vector<1x1x1024xf32>
      tpu.vector_store %arg9[%c0_26, %c0_27, %c0_28], %48 {strides = array<i32>} : memref<1x1x1024xf32, #tpu.memory_space<vmem>>, vector<1x1x1024xf32>,
    } else {
    }
    %c0_19 = arith.constant 0 : index
    %c0_20 = arith.constant 0 : index
    %c0_21 = arith.constant 0 : index
    %44 = vector.load %arg9[%c0_19, %c0_20, %c0_21] : memref<1x1x1024xf32, #tpu.memory_space<vmem>>, vector<1x1x1024xf32>
    %45 = vector.shape_cast %40 : vector<1x1024xf32> to vector<1x1x1024xf32>
    %46 = arith.maximumf %44, %45 : vector<1x1x1024xf32>
    %c0_22 = arith.constant 0 : index
    %c0_23 = arith.constant 0 : index
    %c0_24 = arith.constant 0 : index
    %47 = vector.load %arg9[%c0_22, %c0_23, %c0_24] : memref<1x1x1024xf32, #tpu.memory_space<vmem>>, vector<1x1x1024xf32>
    tpu.vector_store %arg9[%c0_22, %c0_23, %c0_24], %46 {strides = array<i32>} : memref<1x1x1024xf32, #tpu.memory_space<vmem>>, vector<1x1x1024xf32>,
    return
  }
  func.func @transform_0(%arg0: i32, %arg1: i32) -> (i32, i32, i32) {
    %c0_i32 = arith.constant 0 : i32
    %c0_i32_0 = arith.constant 0 : i32
    return %arg0, %arg1, %c0_i32 : i32, i32, i32
  }
  func.func @transform_1(%arg0: i32, %arg1: i32) -> (i32, i32) {
    %c0_i32 = arith.constant 0 : i32
    %c0_i32_0 = arith.constant 0 : i32
    %c0_i32_1 = arith.constant 0 : i32
    return %c0_i32, %c0_i32_0 : i32, i32
  }
  func.func @transform_2(%arg0: i32, %arg1: i32) -> (i32, i32) {
    %c0_i32 = arith.constant 0 : i32
    %c0_i32_0 = arith.constant 0 : i32
    %c0_i32_1 = arith.constant 0 : i32
    return %c0_i32, %c0_i32_0 : i32, i32
  }
  func.func @transform_3(%arg0: i32, %arg1: i32) -> (i32, i32) {
    %c0_i32 = arith.constant 0 : i32
    %c0_i32_0 = arith.constant 0 : i32
    %c0_i32_1 = arith.constant 0 : i32
    return %c0_i32, %c0_i32_0 : i32, i32
  }
  func.func @transform_4(%arg0: i32, %arg1: i32) -> (i32, i32) {
    %c0_i32 = arith.constant 0 : i32
    %c0_i32_0 = arith.constant 0 : i32
    %c0_i32_1 = arith.constant 0 : i32
    return %c0_i32, %c0_i32_0 : i32, i32
  }
  func.func @transform_5(%arg0: i32, %arg1: i32) -> (i32, i32) {
    %c0_i32 = arith.constant 0 : i32
    %c0_i32_0 = arith.constant 0 : i32
    %c0_i32_1 = arith.constant 0 : i32
    return %c0_i32, %c0_i32_0 : i32, i32
  }
  func.func @transform_6(%arg0: i32, %arg1: i32) -> (i32, i32) {
    %c0_i32 = arith.constant 0 : i32
    %c0_i32_0 = arith.constant 0 : i32
    %c0_i32_1 = arith.constant 0 : i32
    return %c0_i32, %c0_i32_0 : i32, i32
  }
  func.func @transform_7(%arg0: i32, %arg1: i32) -> (i32, i32, i32) {
    %c0_i32 = arith.constant 0 : i32
    %c0_i32_0 = arith.constant 0 : i32
    %c0_i32_1 = arith.constant 0 : i32
    return %arg0, %c0_i32, %c0_i32_0 : i32, i32, i32
  }
}

module attributes {stable_mosaic.version = 11 : i64} {
  func.func @_decoder_kernel(%arg0: i32, %arg1: memref<2x1024xf32, #tpu.memory_space<vmem>>, %arg2: memref<1024x128xbf16, #tpu.memory_space<vmem>>, %arg3: memref<1x128xf32, #tpu.memory_space<vmem>>, %arg4: memref<128x256xbf16, #tpu.memory_space<vmem>>, %arg5: memref<1x256xf32, #tpu.memory_space<vmem>>, %arg6: memref<256x512xbf16, #tpu.memory_space<vmem>>, %arg7: memref<1x512xf32, #tpu.memory_space<vmem>>, %arg8: memref<512x768xbf16, #tpu.memory_space<vmem>>, %arg9: memref<1x768xf32, #tpu.memory_space<vmem>>, %arg10: memref<2x768xf32, #tpu.memory_space<vmem>>, %arg11: memref<2x512xbf16, #tpu.memory_space<vmem>>) attributes {dimension_semantics = [#tpu.dimension_semantics<arbitrary>], iteration_bounds = array<i64: 2>, scalar_prefetch = 0 : i64, scratch_operands = 1 : i64, tpu.core_type = #tpu.core_type<tc>, window_params = [{pipeline_mode = #tpu.pipeline_mode<synchronous>, transform_indices = @transform_0, window_bounds = array<i64: 2, 1024>}, {pipeline_mode = #tpu.pipeline_mode<synchronous>, transform_indices = @transform_1, window_bounds = array<i64: 1024, 128>}, {pipeline_mode = #tpu.pipeline_mode<synchronous>, transform_indices = @transform_2, window_bounds = array<i64: 1, 128>}, {pipeline_mode = #tpu.pipeline_mode<synchronous>, transform_indices = @transform_3, window_bounds = array<i64: 128, 256>}, {pipeline_mode = #tpu.pipeline_mode<synchronous>, transform_indices = @transform_4, window_bounds = array<i64: 1, 256>}, {pipeline_mode = #tpu.pipeline_mode<synchronous>, transform_indices = @transform_5, window_bounds = array<i64: 256, 512>}, {pipeline_mode = #tpu.pipeline_mode<synchronous>, transform_indices = @transform_6, window_bounds = array<i64: 1, 512>}, {transform_indices = @transform_7, window_bounds = array<i64: 512, 768>}, {transform_indices = @transform_8, window_bounds = array<i64: 1, 768>}, {transform_indices = @transform_9, window_bounds = array<i64: 2, 768>}]} {
    %c0_i32 = arith.constant 0 : i32
    %0 = arith.cmpi eq, %arg0, %c0_i32 : i32
    %1 = arith.extui %0 : i1 to i32
    %c0_i32_0 = arith.constant 0 : i32
    %2 = arith.cmpi ne, %1, %c0_i32_0 : i32
    scf.if %2 {
      %c0_8 = arith.constant 0 : index
      %c0_9 = arith.constant 0 : index
      %10 = vector.load %arg1[%c0_8, %c0_9] : memref<2x1024xf32, #tpu.memory_space<vmem>>, vector<2x1024xf32>
      %11 = arith.truncf %10 : vector<2x1024xf32> to vector<2x1024xbf16>
      %c0_10 = arith.constant 0 : index
      %c0_11 = arith.constant 0 : index
      %12 = vector.load %arg2[%c0_10, %c0_11] : memref<1024x128xbf16, #tpu.memory_space<vmem>>, vector<1024x128xbf16>
      %cst_12 = arith.constant dense<0.000000e+00> : vector<2x128xf32>
      %13 = tpu.matmul %11, %12, %cst_12 {dimension_numbers = #tpu.dot_dimension_numbers<[1], [0], [0], [1], [0, 0, 1, 1], [], []>} : vector<2x1024xbf16>, vector<1024x128xbf16>, vector<2x128xf32> -> vector<2x128xf32>
      %c0_13 = arith.constant 0 : index
      %c0_14 = arith.constant 0 : index
      %14 = vector.load %arg3[%c0_13, %c0_14] : memref<1x128xf32, #tpu.memory_space<vmem>>, vector<1x128xf32>
      %15 = vector.broadcast %14 : vector<1x128xf32> to vector<2x128xf32>
      %16 = arith.addf %13, %15 : vector<2x128xf32>
      %cst_15 = arith.constant 0.000000e+00 : f32
      %17 = vector.broadcast %cst_15 : f32 to vector<2x128xf32>
      %18 = arith.maximumf %16, %17 : vector<2x128xf32>
      %19 = arith.truncf %18 : vector<2x128xf32> to vector<2x128xbf16>
      %c0_16 = arith.constant 0 : index
      %c0_17 = arith.constant 0 : index
      %20 = vector.load %arg4[%c0_16, %c0_17] : memref<128x256xbf16, #tpu.memory_space<vmem>>, vector<128x256xbf16>
      %cst_18 = arith.constant dense<0.000000e+00> : vector<2x256xf32>
      %21 = tpu.matmul %19, %20, %cst_18 {dimension_numbers = #tpu.dot_dimension_numbers<[1], [0], [0], [1], [0, 0, 1, 1], [], []>} : vector<2x128xbf16>, vector<128x256xbf16>, vector<2x256xf32> -> vector<2x256xf32>
      %c0_19 = arith.constant 0 : index
      %c0_20 = arith.constant 0 : index
      %22 = vector.load %arg5[%c0_19, %c0_20] : memref<1x256xf32, #tpu.memory_space<vmem>>, vector<1x256xf32>
      %23 = vector.broadcast %22 : vector<1x256xf32> to vector<2x256xf32>
      %24 = arith.addf %21, %23 : vector<2x256xf32>
      %cst_21 = arith.constant 0.000000e+00 : f32
      %25 = vector.broadcast %cst_21 : f32 to vector<2x256xf32>
      %26 = arith.maximumf %24, %25 : vector<2x256xf32>
      %27 = arith.truncf %26 : vector<2x256xf32> to vector<2x256xbf16>
      %c0_22 = arith.constant 0 : index
      %c0_23 = arith.constant 0 : index
      %28 = vector.load %arg6[%c0_22, %c0_23] : memref<256x512xbf16, #tpu.memory_space<vmem>>, vector<256x512xbf16>
      %cst_24 = arith.constant dense<0.000000e+00> : vector<2x512xf32>
      %29 = tpu.matmul %27, %28, %cst_24 {dimension_numbers = #tpu.dot_dimension_numbers<[1], [0], [0], [1], [0, 0, 1, 1], [], []>} : vector<2x256xbf16>, vector<256x512xbf16>, vector<2x512xf32> -> vector<2x512xf32>
      %c0_25 = arith.constant 0 : index
      %c0_26 = arith.constant 0 : index
      %30 = vector.load %arg7[%c0_25, %c0_26] : memref<1x512xf32, #tpu.memory_space<vmem>>, vector<1x512xf32>
      %31 = vector.broadcast %30 : vector<1x512xf32> to vector<2x512xf32>
      %32 = arith.addf %29, %31 : vector<2x512xf32>
      %cst_27 = arith.constant 0.000000e+00 : f32
      %33 = vector.broadcast %cst_27 : f32 to vector<2x512xf32>
      %34 = arith.maximumf %32, %33 : vector<2x512xf32>
      %35 = arith.truncf %34 : vector<2x512xf32> to vector<2x512xbf16>
      %c0_28 = arith.constant 0 : index
      %c0_29 = arith.constant 0 : index
      %36 = vector.load %arg11[%c0_28, %c0_29] : memref<2x512xbf16, #tpu.memory_space<vmem>>, vector<2x512xbf16>
      tpu.vector_store %arg11[%c0_28, %c0_29], %35 {strides = array<i32>} : memref<2x512xbf16, #tpu.memory_space<vmem>>, vector<2x512xbf16>,
    } else {
    }
    %c0 = arith.constant 0 : index
    %c0_1 = arith.constant 0 : index
    %3 = vector.load %arg11[%c0, %c0_1] : memref<2x512xbf16, #tpu.memory_space<vmem>>, vector<2x512xbf16>
    %c0_2 = arith.constant 0 : index
    %c0_3 = arith.constant 0 : index
    %4 = vector.load %arg8[%c0_2, %c0_3] : memref<512x768xbf16, #tpu.memory_space<vmem>>, vector<512x768xbf16>
    %cst = arith.constant dense<0.000000e+00> : vector<2x768xf32>
    %5 = tpu.matmul %3, %4, %cst {dimension_numbers = #tpu.dot_dimension_numbers<[1], [0], [0], [1], [0, 0, 1, 1], [], []>} : vector<2x512xbf16>, vector<512x768xbf16>, vector<2x768xf32> -> vector<2x768xf32>
    %c0_4 = arith.constant 0 : index
    %c0_5 = arith.constant 0 : index
    %6 = vector.load %arg9[%c0_4, %c0_5] : memref<1x768xf32, #tpu.memory_space<vmem>>, vector<1x768xf32>
    %7 = vector.broadcast %6 : vector<1x768xf32> to vector<2x768xf32>
    %8 = arith.addf %5, %7 : vector<2x768xf32>
    %c0_6 = arith.constant 0 : index
    %c0_7 = arith.constant 0 : index
    %9 = vector.load %arg10[%c0_6, %c0_7] : memref<2x768xf32, #tpu.memory_space<vmem>>, vector<2x768xf32>
    tpu.vector_store %arg10[%c0_6, %c0_7], %8 {strides = array<i32>} : memref<2x768xf32, #tpu.memory_space<vmem>>, vector<2x768xf32>,
    return
  }
  func.func @transform_0(%arg0: i32) -> (i32, i32) {
    %c0_i32 = arith.constant 0 : i32
    %c0_i32_0 = arith.constant 0 : i32
    %c0_i32_1 = arith.constant 0 : i32
    return %c0_i32, %c0_i32_0 : i32, i32
  }
  func.func @transform_1(%arg0: i32) -> (i32, i32) {
    %c0_i32 = arith.constant 0 : i32
    %c0_i32_0 = arith.constant 0 : i32
    %c0_i32_1 = arith.constant 0 : i32
    return %c0_i32, %c0_i32_0 : i32, i32
  }
  func.func @transform_2(%arg0: i32) -> (i32, i32) {
    %c0_i32 = arith.constant 0 : i32
    %c0_i32_0 = arith.constant 0 : i32
    %c0_i32_1 = arith.constant 0 : i32
    return %c0_i32, %c0_i32_0 : i32, i32
  }
  func.func @transform_3(%arg0: i32) -> (i32, i32) {
    %c0_i32 = arith.constant 0 : i32
    %c0_i32_0 = arith.constant 0 : i32
    %c0_i32_1 = arith.constant 0 : i32
    return %c0_i32, %c0_i32_0 : i32, i32
  }
  func.func @transform_4(%arg0: i32) -> (i32, i32) {
    %c0_i32 = arith.constant 0 : i32
    %c0_i32_0 = arith.constant 0 : i32
    %c0_i32_1 = arith.constant 0 : i32
    return %c0_i32, %c0_i32_0 : i32, i32
  }
  func.func @transform_5(%arg0: i32) -> (i32, i32) {
    %c0_i32 = arith.constant 0 : i32
    %c0_i32_0 = arith.constant 0 : i32
    %c0_i32_1 = arith.constant 0 : i32
    return %c0_i32, %c0_i32_0 : i32, i32
  }
  func.func @transform_6(%arg0: i32) -> (i32, i32) {
    %c0_i32 = arith.constant 0 : i32
    %c0_i32_0 = arith.constant 0 : i32
    %c0_i32_1 = arith.constant 0 : i32
    return %c0_i32, %c0_i32_0 : i32, i32
  }
  func.func @transform_7(%arg0: i32) -> (i32, i32) {
    %c0_i32 = arith.constant 0 : i32
    %c0_i32_0 = arith.constant 0 : i32
    return %c0_i32, %arg0 : i32, i32
  }
  func.func @transform_8(%arg0: i32) -> (i32, i32) {
    %c0_i32 = arith.constant 0 : i32
    %c0_i32_0 = arith.constant 0 : i32
    return %c0_i32, %arg0 : i32, i32
  }
  func.func @transform_9(%arg0: i32) -> (i32, i32) {
    %c0_i32 = arith.constant 0 : i32
    %c0_i32_0 = arith.constant 0 : i32
    return %c0_i32, %arg0 : i32, i32
  }
}

</mosaic_0001>

<llo_original>
// kernel: pointnet_autoencoder.2
$region0: #{pointnet_autoencoder.2}
  #allocation0 [shape = 'u32[]', space=smem, size = 0x4, offset = 0x4, fixed_abs, tag = 'smem constant byte address 0x4 - core index']
  #allocation1 [shape = 'u32[72,128]{1,0:T(1,128)}', space=vmem, size = 0x9000, scoped, tag = 'internal scratch']
  %s0 = inlined_call_operand.vmem [shape: f32[2,1536,3], index: 0, kind: input, shape index: {}]
  %s1 = inlined_call_operand.vmem [shape: f32[3,64], index: 1, kind: input, shape index: {}]
  %s2 = inlined_call_operand.vmem [shape: f32[1,64], index: 2, kind: input, shape index: {}]
  %s3 = inlined_call_operand.vmem [shape: bf16[64,128], index: 3, kind: input, shape index: {}]
  %s4 = inlined_call_operand.vmem [shape: f32[1,128], index: 4, kind: input, shape index: {}]
  %s5 = inlined_call_operand.vmem [shape: bf16[128,1024], index: 5, kind: input, shape index: {}]
  %s6 = inlined_call_operand.vmem [shape: f32[1,1024], index: 6, kind: input, shape index: {}]
  %s7 = inlined_call_operand.vmem [shape: f32[2,1,1024], index: 7, kind: output, shape index: {}]
  %s8 = sld [smem:[#allocation0]]
  $region65: #{pointnet_autoencoder.2} parent=0
    _
  %s10 = ssub.s32 1, %s8
  %s11 = scalar_select 0, %s10, %s8
  loop: start=0, step=1, limit=8
  $region2: #{pointnet_autoencoder.2} parent=0 // loop_pre_header
    _
  $region3: #{pointnet_autoencoder.2} parent=0 // loop_header
    %s13 = sphi 0, %s17
    %p14 = scmp.ge.s32.totalorder %s13, 8
    %s20 = sphi 0, %s32
    %s21 = sphi 0, %s28
    %s22 = sphi 0, %s20
    %s23 = sphi 0, %s21
    %s24 = sphi 0, %s22
    %s25 = sphi 0, %s23
    %s37 = sphi 0, %s39
    %s40 = sphi 0, %s37
    %s41 = sphi 0, %s40
    %s57 = sphi 0, %s41
    %s61 = sphi 0, %s61
    %s63 = sphi 0, %s61
    %s64 = sphi 0, %s63
    %s78 = sphi 0, %s64
    %s82 = sphi 0, %s82
    %s84 = sphi 0, %s82
    %s85 = sphi 0, %s84
    %s99 = sphi 0, %s85
    %s103 = sphi 0, %s103
    %s105 = sphi 0, %s103
    %s106 = sphi 0, %s105
    %s120 = sphi 0, %s106
    %s124 = sphi 0, %s124
    %s126 = sphi 0, %s124
    %s127 = sphi 0, %s126
    %s141 = sphi 0, %s127
    %s145 = sphi 0, %s145
    %s147 = sphi 0, %s145
    %s148 = sphi 0, %s147
    %s162 = sphi 0, %s148
    %s166 = sphi 0, %s166
    %s168 = sphi 0, %s166
    %s169 = sphi 0, %s168
    %s183 = sphi 0, %s169
    %s189 = sphi 0, %s191
    %s192 = sphi 0, %s189
    %s193 = sphi 0, %s192
    %s209 = sphi 0, %s193
  $region4: #{pointnet_autoencoder.2} parent=0 // loop_header_branch
    %16 = sbr.rel (%p14) target = $region8
  $region5: #{pointnet_autoencoder.2} parent=0 // loop_body
    %s18 = ssub.s32 %s13, 1
    %s19 = ssub.s32 %s13, 2
    %s26 = sadd.s32 1, %s21
    %p27 = scmp.ge.s32.totalorder %s26, 3
    %s28 = scalar_select %p27, 0, %s26
    %s29 = sadd.s32 1, %s20
    %s30 = scalar_select %p27, %s29, %s20
    %p31 = scmp.ge.s32.totalorder %s30, 2
    %s32 = scalar_select %p31, 0, %s30
    %s33 = ssub.s32 %s20, %s32
    %s34 = ssub.s32 %s21, %s28
    %s35 = sor.u32 %s33, %s34
    %p36 = scmp.eq.s32.totalorder %s35, 0
    %s38 = sadd.s32 %s37, 1
    %s39 = scalar_select %p36, %s37, %s38
    %p42 = pneg %p36
    %p43 = scmp.eq.s32.totalorder %s13, 5
    %p44 = por %p42, %p43
    %p45 = scmp.ne.s32.totalorder %s37, %s40
    %p46 = scmp.eq.s32.totalorder %s13, 0
    %p47 = por %p45, %p46
    %p48 = scmp.ne.s32.totalorder %s37, %s40
    %p49 = scmp.eq.s32.totalorder %s18, 5
    %p50 = por %p48, %p49
    %p51 = scmp.ne.s32.totalorder %s40, %s41
    %p52 = scmp.eq.s32.totalorder %s18, 0
    %p53 = por %p51, %p52
    %p54 = scmp.ne.s32.totalorder %s40, %s41
    %p55 = scmp.eq.s32.totalorder %s19, 5
    %p56 = por %p54, %p55
    %p58 = scmp.ne.s32.totalorder %s41, %s57
    %p59 = scmp.eq.s32.totalorder %s19, 0
    %p60 = por %p58, %p59
    %s62 = sadd.s32 %s61, 1
    %p65 = scmp.eq.s32.totalorder %s13, 5
    %p66 = scmp.ne.s32.totalorder %s61, %s63
    %p67 = scmp.eq.s32.totalorder %s13, 0
    %p68 = por %p66, %p67
    %p69 = scmp.ne.s32.totalorder %s61, %s63
    %p70 = scmp.eq.s32.totalorder %s18, 5
    %p71 = por %p69, %p70
    %p72 = scmp.ne.s32.totalorder %s63, %s64
    %p73 = scmp.eq.s32.totalorder %s18, 0
    %p74 = por %p72, %p73
    %p75 = scmp.ne.s32.totalorder %s63, %s64
    %p76 = scmp.eq.s32.totalorder %s19, 5
    %p77 = por %p75, %p76
    %p79 = scmp.ne.s32.totalorder %s64, %s78
    %p80 = scmp.eq.s32.totalorder %s19, 0
    %p81 = por %p79, %p80
    %s83 = sadd.s32 %s82, 1
    %p86 = scmp.eq.s32.totalorder %s13, 5
    %p87 = scmp.ne.s32.totalorder %s82, %s84
    %p88 = scmp.eq.s32.totalorder %s13, 0
    %p89 = por %p87, %p88
    %p90 = scmp.ne.s32.totalorder %s82, %s84
    %p91 = scmp.eq.s32.totalorder %s18, 5
    %p92 = por %p90, %p91
    %p93 = scmp.ne.s32.totalorder %s84, %s85
    %p94 = scmp.eq.s32.totalorder %s18, 0
    %p95 = por %p93, %p94
    %p96 = scmp.ne.s32.totalorder %s84, %s85
    %p97 = scmp.eq.s32.totalorder %s19, 5
    %p98 = por %p96, %p97
    %p100 = scmp.ne.s32.totalorder %s85, %s99
    %p101 = scmp.eq.s32.totalorder %s19, 0
    %p102 = por %p100, %p101
    %s104 = sadd.s32 %s103, 1
    %p107 = scmp.eq.s32.totalorder %s13, 5
    %p108 = scmp.ne.s32.totalorder %s103, %s105
    %p109 = scmp.eq.s32.totalorder %s13, 0
    %p110 = por %p108, %p109
    %p111 = scmp.ne.s32.totalorder %s103, %s105
    %p112 = scmp.eq.s32.totalorder %s18, 5
    %p113 = por %p111, %p112
    %p114 = scmp.ne.s32.totalorder %s105, %s106
    %p115 = scmp.eq.s32.totalorder %s18, 0
    %p116 = por %p114, %p115
    %p117 = scmp.ne.s32.totalorder %s105, %s106
    %p118 = scmp.eq.s32.totalorder %s19, 5
    %p119 = por %p117, %p118
    %p121 = scmp.ne.s32.totalorder %s106, %s120
    %p122 = scmp.eq.s32.totalorder %s19, 0
    %p123 = por %p121, %p122
    %s125 = sadd.s32 %s124, 1
    %p128 = scmp.eq.s32.totalorder %s13, 5
    %p129 = scmp.ne.s32.totalorder %s124, %s126
    %p130 = scmp.eq.s32.totalorder %s13, 0
    %p131 = por %p129, %p130
    %p132 = scmp.ne.s32.totalorder %s124, %s126
    %p133 = scmp.eq.s32.totalorder %s18, 5
    %p134 = por %p132, %p133
    %p135 = scmp.ne.s32.totalorder %s126, %s127
    %p136 = scmp.eq.s32.totalorder %s18, 0
    %p137 = por %p135, %p136
    %p138 = scmp.ne.s32.totalorder %s126, %s127
    %p139 = scmp.eq.s32.totalorder %s19, 5
    %p140 = por %p138, %p139
    %p142 = scmp.ne.s32.totalorder %s127, %s141
    %p143 = scmp.eq.s32.totalorder %s19, 0
    %p144 = por %p142, %p143
    %s146 = sadd.s32 %s145, 1
    %p149 = scmp.eq.s32.totalorder %s13, 5
    %p150 = scmp.ne.s32.totalorder %s145, %s147
    %p151 = scmp.eq.s32.totalorder %s13, 0
    %p152 = por %p150, %p151
    %p153 = scmp.ne.s32.totalorder %s145, %s147
    %p154 = scmp.eq.s32.totalorder %s18, 5
    %p155 = por %p153, %p154
    %p156 = scmp.ne.s32.totalorder %s147, %s148
    %p157 = scmp.eq.s32.totalorder %s18, 0
    %p158 = por %p156, %p157
    %p159 = scmp.ne.s32.totalorder %s147, %s148
    %p160 = scmp.eq.s32.totalorder %s19, 5
    %p161 = por %p159, %p160
    %p163 = scmp.ne.s32.totalorder %s148, %s162
    %p164 = scmp.eq.s32.totalorder %s19, 0
    %p165 = por %p163, %p164
    %s167 = sadd.s32 %s166, 1
    %p170 = scmp.eq.s32.totalorder %s13, 5
    %p171 = scmp.ne.s32.totalorder %s166, %s168
    %p172 = scmp.eq.s32.totalorder %s13, 0
    %p173 = por %p171, %p172
    %p174 = scmp.ne.s32.totalorder %s166, %s168
    %p175 = scmp.eq.s32.totalorder %s18, 5
    %p176 = por %p174, %p175
    %p177 = scmp.ne.s32.totalorder %s168, %s169
    %p178 = scmp.eq.s32.totalorder %s18, 0
    %p179 = por %p177, %p178
    %p180 = scmp.ne.s32.totalorder %s168, %s169
    %p181 = scmp.eq.s32.totalorder %s19, 5
    %p182 = por %p180, %p181
    %p184 = scmp.ne.s32.totalorder %s169, %s183
    %p185 = scmp.eq.s32.totalorder %s19, 0
    %p186 = por %p184, %p185
    %s187 = ssub.s32 %s20, %s32
    %p188 = scmp.eq.s32.totalorder %s187, 0
    %s190 = sadd.s32 %s189, 1
    %s191 = scalar_select %p188, %s189, %s190
    %p194 = pneg %p188
    %p195 = scmp.eq.s32.totalorder %s13, 5
    %p196 = por %p194, %p195
    %p197 = scmp.ne.s32.totalorder %s189, %s192
    %p198 = scmp.eq.s32.totalorder %s13, 0
    %p199 = por %p197, %p198
    %p200 = scmp.ne.s32.totalorder %s189, %s192
    %p201 = scmp.eq.s32.totalorder %s18, 5
    %p202 = por %p200, %p201
    %p203 = scmp.ne.s32.totalorder %s192, %s193
    %p204 = scmp.eq.s32.totalorder %s18, 0
    %p205 = por %p203, %p204
    %p206 = scmp.ne.s32.totalorder %s192, %s193
    %p207 = scmp.eq.s32.totalorder %s19, 5
    %p208 = por %p206, %p207
    %p210 = scmp.ne.s32.totalorder %s193, %s209
    %p211 = scmp.eq.s32.totalorder %s19, 0
    %p212 = por %p210, %p211
    %p213 = scmp.le.s32.totalorder 1, %s13
    %p214 = scmp.lt.s32.totalorder %s13, 7
    %p215 = pnand %p213, %p214
    %p216 = pneg %p215
    // Predicated region
    $region9: #{pointnet_autoencoder.2} parent=5 // pred_check
      _
    $region10: #{pointnet_autoencoder.2} parent=5 // pred_check_branch
      %218 = sbr.rel (%p215) target = $region12
    $region11: #{pointnet_autoencoder.2} parent=5 // pred_region
      %s219 = ssub.s32 %s13, 1
      // Predicated region
      $region13: #{pointnet_autoencoder.2} parent=11 // pred_check
        %p220 = pneg %p74
      $region14: #{pointnet_autoencoder.2} parent=11 // pred_check_branch
        %222 = sbr.rel (%p220) target = $region16
      $region15: #{pointnet_autoencoder.2} parent=11 // pred_region
        _
      $region16: #{pointnet_autoencoder.2} parent=11 // pred_fallthru
        _
      // Predicated region
      $region17: #{pointnet_autoencoder.2} parent=11 // pred_check
        %p223 = pneg %p95
      $region18: #{pointnet_autoencoder.2} parent=11 // pred_check_branch
        %225 = sbr.rel (%p223) target = $region20
      $region19: #{pointnet_autoencoder.2} parent=11 // pred_region
        _
      $region20: #{pointnet_autoencoder.2} parent=11 // pred_fallthru
        _
      // Predicated region
      $region21: #{pointnet_autoencoder.2} parent=11 // pred_check
        %p226 = pneg %p116
      $region22: #{pointnet_autoencoder.2} parent=11 // pred_check_branch
        %228 = sbr.rel (%p226) target = $region24
      $region23: #{pointnet_autoencoder.2} parent=11 // pred_region
        _
      $region24: #{pointnet_autoencoder.2} parent=11 // pred_fallthru
        _
      // Predicated region
      $region25: #{pointnet_autoencoder.2} parent=11 // pred_check
        %p229 = pneg %p137
      $region26: #{pointnet_autoencoder.2} parent=11 // pred_check_branch
        %231 = sbr.rel (%p229) target = $region28
      $region27: #{pointnet_autoencoder.2} parent=11 // pred_region
        _
      $region28: #{pointnet_autoencoder.2} parent=11 // pred_fallthru
        _
      // Predicated region
      $region29: #{pointnet_autoencoder.2} parent=11 // pred_check
        %p232 = pneg %p158
      $region30: #{pointnet_autoencoder.2} parent=11 // pred_check_branch
        %234 = sbr.rel (%p232) target = $region32
      $region31: #{pointnet_autoencoder.2} parent=11 // pred_region
        _
      $region32: #{pointnet_autoencoder.2} parent=11 // pred_fallthru
        _
      // Predicated region
      $region33: #{pointnet_autoencoder.2} parent=11 // pred_check
        %p235 = pneg %p179
      $region34: #{pointnet_autoencoder.2} parent=11 // pred_check_branch
        %237 = sbr.rel (%p235) target = $region36
      $region35: #{pointnet_autoencoder.2} parent=11 // pred_region
        _
      $region36: #{pointnet_autoencoder.2} parent=11 // pred_fallthru
        _
    $region12: #{pointnet_autoencoder.2} parent=5 // pred_fallthru
      _
    %p238 = scmp.lt.s32.totalorder %s13, 6
    // Predicated region
    $region37: #{pointnet_autoencoder.2} parent=5 // pred_check
      %p239 = pneg %p238
    $region38: #{pointnet_autoencoder.2} parent=5 // pred_check_branch
      %241 = sbr.rel (%p239) target = $region40
    $region39: #{pointnet_autoencoder.2} parent=5 // pred_region
      // Predicated region
      $region41: #{pointnet_autoencoder.2} parent=39 // pred_check
        %p242 = pneg %p47
      $region42: #{pointnet_autoencoder.2} parent=39 // pred_check_branch
        %244 = sbr.rel (%p242) target = $region44
      $region43: #{pointnet_autoencoder.2} parent=39 // pred_region
        %s245 = smul.u32 64, %s21
        %p246 = scmp.lt.s32.totalorder %s20, 1
        %s247 = scalar_select %p246, %s20, 1
        %p248 = scmp.lt.s32.totalorder %s245, 191
        %s249 = scalar_select %p248, %s245, 191
        %s250 = smul.addr %s247, 192
        %s251 = sadd.s32 %s249, %s250
        %s252 = smul.addr %s251, 8
        %s253 = scalar_lea.vmem %s0, %s252
        %s254 = smul.u32 64, %s21
      $region44: #{pointnet_autoencoder.2} parent=39 // pred_fallthru
        _
    $region40: #{pointnet_autoencoder.2} parent=5 // pred_fallthru
      _
    %p255 = scmp.le.s32.totalorder 1, %s13
    %p256 = scmp.lt.s32.totalorder %s13, 7
    %p257 = pnand %p255, %p256
    %p258 = pneg %p257
    // Predicated region
    $region45: #{pointnet_autoencoder.2} parent=5 // pred_check
      _
    $region46: #{pointnet_autoencoder.2} parent=5 // pred_check_branch
      %260 = sbr.rel (%p257) target = $region48
    $region47: #{pointnet_autoencoder.2} parent=5 // pred_region
      %s261 = ssub.s32 %s13, 1
      %s262 = smul.u32 64, %s23
      %p263 = scmp.lt.s32.totalorder %s22, 1
      %s264 = scalar_select %p263, %s22, 1
      %p265 = scmp.lt.s32.totalorder %s262, 191
      %s266 = scalar_select %p265, %s262, 191
      %s267 = smul.addr %s264, 192
      %s268 = sadd.s32 %s266, %s267
      %s269 = smul.addr %s268, 8
      %s270 = scalar_lea.vmem %s0, %s269
      %p271 = pneg %p53
      %p272 = pneg %p50
      %p273 = pneg %p74
      %p274 = pneg %p71
      %p275 = pneg %p95
      %p276 = pneg %p92
      %p277 = pneg %p116
      %p278 = pneg %p113
      %p279 = pneg %p137
      %p280 = pneg %p134
      %p281 = pneg %p158
      %p282 = pneg %p155
      %p283 = pneg %p179
      %p284 = pneg %p176
      %p285 = pneg %p205
      %p286 = pneg %p202
      %p287 = scmp.lt.s32.totalorder %s22, 1
      %s288 = scalar_select %p287, %s22, 1
      %s289 = smul.addr %s288, 8
      %s290 = scalar_lea.vmem %s7, %s289
      %s291 = smul.u32 64, %s23
      %p292 = scmp.lt.s32.totalorder %s22, 1
      %s293 = scalar_select %p292, %s22, 1
      %p294 = scmp.lt.s32.totalorder %s291, 191
      %s295 = scalar_select %p294, %s291, 191
      %s296 = smul.addr %s293, 192
      %s297 = sadd.s32 %s295, %s296
      %s298 = smul.addr %s297, 8
      %s299 = scalar_lea.vmem %s0, %s298
      %s300 = smul.u32 64, %s23
      %p301 = scmp.lt.s32.totalorder %s22, 1
      %s302 = scalar_select %p301, %s22, 1
      %s303 = smul.addr %s302, 8
      %s304 = scalar_lea.vmem %s7, %s303
      %v306 = vld [vmem:[%s299] sm:$0xff]
      %v307 = vld [vmem:[%s299 + $0x8] sm:$0xff]
      %v308 = vld [vmem:[%s299 + $0x10] sm:$0xff]
      %v309 = vld [vmem:[%s299 + $0x18] sm:$0xff]
      %v310 = vld [vmem:[%s299 + $0x20] sm:$0xff]
      %v311 = vld [vmem:[%s299 + $0x28] sm:$0xff]
      %v312 = vld [vmem:[%s299 + $0x30] sm:$0xff]
      %v313 = vld [vmem:[%s299 + $0x38] sm:$0xff]
      %v314 = vld [vmem:[%s299 + $0x40] sm:$0xff]
      %v315 = vld [vmem:[%s299 + $0x48] sm:$0xff]
      %v316 = vld [vmem:[%s299 + $0x50] sm:$0xff]
      %v317 = vld [vmem:[%s299 + $0x58] sm:$0xff]
      %v318 = vld [vmem:[%s299 + $0x60] sm:$0xff]
      %v319 = vld [vmem:[%s299 + $0x68] sm:$0xff]
      %v320 = vld [vmem:[%s299 + $0x70] sm:$0xff]
      %v321 = vld [vmem:[%s299 + $0x78] sm:$0xff]
      %v322 = vld [vmem:[%s299 + $0x80] sm:$0xff]
      %v323 = vld [vmem:[%s299 + $0x88] sm:$0xff]
      %v324 = vld [vmem:[%s299 + $0x90] sm:$0xff]
      %v325 = vld [vmem:[%s299 + $0x98] sm:$0xff]
      %v326 = vld [vmem:[%s299 + $0xa0] sm:$0xff]
      %v327 = vld [vmem:[%s299 + $0xa8] sm:$0xff]
      %v328 = vld [vmem:[%s299 + $0xb0] sm:$0xff]
      %v329 = vld [vmem:[%s299 + $0xb8] sm:$0xff]
      %v330 = vld [vmem:[%s299 + $0xc0] sm:$0xff]
      %v331 = vld [vmem:[%s299 + $0xc8] sm:$0xff]
      %v332 = vld [vmem:[%s299 + $0xd0] sm:$0xff]
      %v333 = vld [vmem:[%s299 + $0xd8] sm:$0xff]
      %v334 = vld [vmem:[%s299 + $0xe0] sm:$0xff]
      %v335 = vld [vmem:[%s299 + $0xe8] sm:$0xff]
      %v336 = vld [vmem:[%s299 + $0xf0] sm:$0xff]
      %v337 = vld [vmem:[%s299 + $0xf8] sm:$0xff]
      %v338 = vld [vmem:[%s299 + $0x100] sm:$0xff]
      %v339 = vld [vmem:[%s299 + $0x108] sm:$0xff]
      %v340 = vld [vmem:[%s299 + $0x110] sm:$0xff]
      %v341 = vld [vmem:[%s299 + $0x118] sm:$0xff]
      %v342 = vld [vmem:[%s299 + $0x120] sm:$0xff]
      %v343 = vld [vmem:[%s299 + $0x128] sm:$0xff]
      %v344 = vld [vmem:[%s299 + $0x130] sm:$0xff]
      %v345 = vld [vmem:[%s299 + $0x138] sm:$0xff]
      %v346 = vld [vmem:[%s299 + $0x140] sm:$0xff]
      %v347 = vld [vmem:[%s299 + $0x148] sm:$0xff]
      %v348 = vld [vmem:[%s299 + $0x150] sm:$0xff]
      %v349 = vld [vmem:[%s299 + $0x158] sm:$0xff]
      %v350 = vld [vmem:[%s299 + $0x160] sm:$0xff]
      %v351 = vld [vmem:[%s299 + $0x168] sm:$0xff]
      %v352 = vld [vmem:[%s299 + $0x170] sm:$0xff]
      %v353 = vld [vmem:[%s299 + $0x178] sm:$0xff]
      %v354 = vld [vmem:[%s299 + $0x180] sm:$0xff]
      %v355 = vld [vmem:[%s299 + $0x188] sm:$0xff]
      %v356 = vld [vmem:[%s299 + $0x190] sm:$0xff]
      %v357 = vld [vmem:[%s299 + $0x198] sm:$0xff]
      %v358 = vld [vmem:[%s299 + $0x1a0] sm:$0xff]
      %v359 = vld [vmem:[%s299 + $0x1a8] sm:$0xff]
      %v360 = vld [vmem:[%s299 + $0x1b0] sm:$0xff]
      %v361 = vld [vmem:[%s299 + $0x1b8] sm:$0xff]
      %v362 = vld [vmem:[%s299 + $0x1c0] sm:$0xff]
      %v363 = vld [vmem:[%s299 + $0x1c8] sm:$0xff]
      %v364 = vld [vmem:[%s299 + $0x1d0] sm:$0xff]
      %v365 = vld [vmem:[%s299 + $0x1d8] sm:$0xff]
      %v366 = vld [vmem:[%s299 + $0x1e0] sm:$0xff]
      %v367 = vld [vmem:[%s299 + $0x1e8] sm:$0xff]
      %v368 = vld [vmem:[%s299 + $0x1f0] sm:$0xff]
      %v369 = vld [vmem:[%s299 + $0x1f8] sm:$0xff]
      %v370 = vld [vmem:[%s1] sm:$0x7]
      %372 = vset.pattern.permute.xlu0 0
      %373 = vperm.xlu0 %372, %v306
      %v374 = vpop.permute.xlu0 %373
      %377 = vset.pattern.permute.xlu0 0
      %378 = vperm.xlu0 %377, %v307
      %v379 = vpop.permute.xlu0 %378
      %382 = vset.pattern.permute.xlu0 0
      %383 = vperm.xlu0 %382, %v308
      %v384 = vpop.permute.xlu0 %383
      %387 = vset.pattern.permute.xlu0 0
      %388 = vperm.xlu0 %387, %v309
      %v389 = vpop.permute.xlu0 %388
      %392 = vset.pattern.permute.xlu0 0
      %393 = vperm.xlu0 %392, %v310
      %v394 = vpop.permute.xlu0 %393
      %397 = vset.pattern.permute.xlu0 0
      %398 = vperm.xlu0 %397, %v311
      %v399 = vpop.permute.xlu0 %398
      %402 = vset.pattern.permute.xlu0 0
      %403 = vperm.xlu0 %402, %v312
      %v404 = vpop.permute.xlu0 %403
      %407 = vset.pattern.permute.xlu0 0
      %408 = vperm.xlu0 %407, %v313
      %v409 = vpop.permute.xlu0 %408
      %412 = vset.pattern.permute.xlu0 0
      %413 = vperm.xlu0 %412, %v314
      %v414 = vpop.permute.xlu0 %413
      %417 = vset.pattern.permute.xlu0 0
      %418 = vperm.xlu0 %417, %v315
      %v419 = vpop.permute.xlu0 %418
      %422 = vset.pattern.permute.xlu0 0
      %423 = vperm.xlu0 %422, %v316
      %v424 = vpop.permute.xlu0 %423
      %427 = vset.pattern.permute.xlu0 0
      %428 = vperm.xlu0 %427, %v317
      %v429 = vpop.permute.xlu0 %428
      %432 = vset.pattern.permute.xlu0 0
      %433 = vperm.xlu0 %432, %v318
      %v434 = vpop.permute.xlu0 %433
      %437 = vset.pattern.permute.xlu0 0
      %438 = vperm.xlu0 %437, %v319
      %v439 = vpop.permute.xlu0 %438
      %442 = vset.pattern.permute.xlu0 0
      %443 = vperm.xlu0 %442, %v320
      %v444 = vpop.permute.xlu0 %443
      %447 = vset.pattern.permute.xlu0 0
      %448 = vperm.xlu0 %447, %v321
      %v449 = vpop.permute.xlu0 %448
      %452 = vset.pattern.permute.xlu0 0
      %453 = vperm.xlu0 %452, %v322
      %v454 = vpop.permute.xlu0 %453
      %457 = vset.pattern.permute.xlu0 0
      %458 = vperm.xlu0 %457, %v323
      %v459 = vpop.permute.xlu0 %458
      %462 = vset.pattern.permute.xlu0 0
      %463 = vperm.xlu0 %462, %v324
      %v464 = vpop.permute.xlu0 %463
      %467 = vset.pattern.permute.xlu0 0
      %468 = vperm.xlu0 %467, %v325
      %v469 = vpop.permute.xlu0 %468
      %472 = vset.pattern.permute.xlu0 0
      %473 = vperm.xlu0 %472, %v326
      %v474 = vpop.permute.xlu0 %473
      %477 = vset.pattern.permute.xlu0 0
      %478 = vperm.xlu0 %477, %v327
      %v479 = vpop.permute.xlu0 %478
      %482 = vset.pattern.permute.xlu0 0
      %483 = vperm.xlu0 %482, %v328
      %v484 = vpop.permute.xlu0 %483
      %487 = vset.pattern.permute.xlu0 0
      %488 = vperm.xlu0 %487, %v329
      %v489 = vpop.permute.xlu0 %488
      %492 = vset.pattern.permute.xlu0 0
      %493 = vperm.xlu0 %492, %v330
      %v494 = vpop.permute.xlu0 %493
      %497 = vset.pattern.permute.xlu0 0
      %498 = vperm.xlu0 %497, %v331
      %v499 = vpop.permute.xlu0 %498
      %502 = vset.pattern.permute.xlu0 0
      %503 = vperm.xlu0 %502, %v332
      %v504 = vpop.permute.xlu0 %503
      %507 = vset.pattern.permute.xlu0 0
      %508 = vperm.xlu0 %507, %v333
      %v509 = vpop.permute.xlu0 %508
      %512 = vset.pattern.permute.xlu0 0
      %513 = vperm.xlu0 %512, %v334
      %v514 = vpop.permute.xlu0 %513
      %517 = vset.pattern.permute.xlu0 0
      %518 = vperm.xlu0 %517, %v335
      %v519 = vpop.permute.xlu0 %518
      %522 = vset.pattern.permute.xlu0 0
      %523 = vperm.xlu0 %522, %v336
      %v524 = vpop.permute.xlu0 %523
      %527 = vset.pattern.permute.xlu0 0
      %528 = vperm.xlu0 %527, %v337
      %v529 = vpop.permute.xlu0 %528
      %532 = vset.pattern.permute.xlu0 0
      %533 = vperm.xlu0 %532, %v338
      %v534 = vpop.permute.xlu0 %533
      %537 = vset.pattern.permute.xlu0 0
      %538 = vperm.xlu0 %537, %v339
      %v539 = vpop.permute.xlu0 %538
      %542 = vset.pattern.permute.xlu0 0
      %543 = vperm.xlu0 %542, %v340
      %v544 = vpop.permute.xlu0 %543
      %547 = vset.pattern.permute.xlu0 0
      %548 = vperm.xlu0 %547, %v341
      %v549 = vpop.permute.xlu0 %548
      %552 = vset.pattern.permute.xlu0 0
      %553 = vperm.xlu0 %552, %v342
      %v554 = vpop.permute.xlu0 %553
      %557 = vset.pattern.permute.xlu0 0
      %558 = vperm.xlu0 %557, %v343
      %v559 = vpop.permute.xlu0 %558
      %562 = vset.pattern.permute.xlu0 0
      %563 = vperm.xlu0 %562, %v344
      %v564 = vpop.permute.xlu0 %563
      %567 = vset.pattern.permute.xlu0 0
      %568 = vperm.xlu0 %567, %v345
      %v569 = vpop.permute.xlu0 %568
      %572 = vset.pattern.permute.xlu0 0
      %573 = vperm.xlu0 %572, %v346
      %v574 = vpop.permute.xlu0 %573
      %577 = vset.pattern.permute.xlu0 0
      %578 = vperm.xlu0 %577, %v347
      %v579 = vpop.permute.xlu0 %578
      %582 = vset.pattern.permute.xlu0 0
      %583 = vperm.xlu0 %582, %v348
      %v584 = vpop.permute.xlu0 %583
      %587 = vset.pattern.permute.xlu0 0
      %588 = vperm.xlu0 %587, %v349
      %v589 = vpop.permute.xlu0 %588
      %592 = vset.pattern.permute.xlu0 0
      %593 = vperm.xlu0 %592, %v350
      %v594 = vpop.permute.xlu0 %593
      %597 = vset.pattern.permute.xlu0 0
      %598 = vperm.xlu0 %597, %v351
      %v599 = vpop.permute.xlu0 %598
      %602 = vset.pattern.permute.xlu0 0
      %603 = vperm.xlu0 %602, %v352
      %v604 = vpop.permute.xlu0 %603
      %607 = vset.pattern.permute.xlu0 0
      %608 = vperm.xlu0 %607, %v353
      %v609 = vpop.permute.xlu0 %608
      %612 = vset.pattern.permute.xlu0 0
      %613 = vperm.xlu0 %612, %v354
      %v614 = vpop.permute.xlu0 %613
      %617 = vset.pattern.permute.xlu0 0
      %618 = vperm.xlu0 %617, %v355
      %v619 = vpop.permute.xlu0 %618
      %622 = vset.pattern.permute.xlu0 0
      %623 = vperm.xlu0 %622, %v356
      %v624 = vpop.permute.xlu0 %623
      %627 = vset.pattern.permute.xlu0 0
      %628 = vperm.xlu0 %627, %v357
      %v629 = vpop.permute.xlu0 %628
      %632 = vset.pattern.permute.xlu0 0
      %633 = vperm.xlu0 %632, %v358
      %v634 = vpop.permute.xlu0 %633
      %637 = vset.pattern.permute.xlu0 0
      %638 = vperm.xlu0 %637, %v359
      %v639 = vpop.permute.xlu0 %638
      %642 = vset.pattern.permute.xlu0 0
      %643 = vperm.xlu0 %642, %v360
      %v644 = vpop.permute.xlu0 %643
      %647 = vset.pattern.permute.xlu0 0
      %648 = vperm.xlu0 %647, %v361
      %v649 = vpop.permute.xlu0 %648
      %652 = vset.pattern.permute.xlu0 0
      %653 = vperm.xlu0 %652, %v362
      %v654 = vpop.permute.xlu0 %653
      %657 = vset.pattern.permute.xlu0 0
      %658 = vperm.xlu0 %657, %v363
      %v659 = vpop.permute.xlu0 %658
      %662 = vset.pattern.permute.xlu0 0
      %663 = vperm.xlu0 %662, %v364
      %v664 = vpop.permute.xlu0 %663
      %667 = vset.pattern.permute.xlu0 0
      %668 = vperm.xlu0 %667, %v365
      %v669 = vpop.permute.xlu0 %668
      %672 = vset.pattern.permute.xlu0 0
      %673 = vperm.xlu0 %672, %v366
      %v674 = vpop.permute.xlu0 %673
      %677 = vset.pattern.permute.xlu0 0
      %678 = vperm.xlu0 %677, %v367
      %v679 = vpop.permute.xlu0 %678
      %682 = vset.pattern.permute.xlu0 0
      %683 = vperm.xlu0 %682, %v368
      %v684 = vpop.permute.xlu0 %683
      %687 = vset.pattern.permute.xlu0 0
      %688 = vperm.xlu0 %687, %v369
      %v689 = vpop.permute.xlu0 %688
      %v691 = vperm.slane %v370, 0
      %v692 = vmul.f32 %v374, %v691
      %v693 = vmul.f32 %v379, %v691
      %v694 = vmul.f32 %v384, %v691
      %v695 = vmul.f32 %v389, %v691
      %v696 = vmul.f32 %v394, %v691
      %v697 = vmul.f32 %v399, %v691
      %v698 = vmul.f32 %v404, %v691
      %v699 = vmul.f32 %v409, %v691
      %v700 = vmul.f32 %v414, %v691
      %v701 = vmul.f32 %v419, %v691
      %v702 = vmul.f32 %v424, %v691
      %v703 = vmul.f32 %v429, %v691
      %v704 = vmul.f32 %v434, %v691
      %v705 = vmul.f32 %v439, %v691
      %v706 = vmul.f32 %v444, %v691
      %v707 = vmul.f32 %v449, %v691
      %v708 = vmul.f32 %v454, %v691
      %v709 = vmul.f32 %v459, %v691
      %v710 = vmul.f32 %v464, %v691
      %v711 = vmul.f32 %v469, %v691
      %v712 = vmul.f32 %v474, %v691
      %v713 = vmul.f32 %v479, %v691
      %v714 = vmul.f32 %v484, %v691
      %v715 = vmul.f32 %v489, %v691
      %v716 = vmul.f32 %v494, %v691
      %v717 = vmul.f32 %v499, %v691
      %v718 = vmul.f32 %v504, %v691
      %v719 = vmul.f32 %v509, %v691
      %v720 = vmul.f32 %v514, %v691
      %v721 = vmul.f32 %v519, %v691
      %v722 = vmul.f32 %v524, %v691
      %v723 = vmul.f32 %v529, %v691
      %v724 = vmul.f32 %v534, %v691
      %v725 = vmul.f32 %v539, %v691
      %v726 = vmul.f32 %v544, %v691
      %v727 = vmul.f32 %v549, %v691
      %v728 = vmul.f32 %v554, %v691
      %v729 = vmul.f32 %v559, %v691
      %v730 = vmul.f32 %v564, %v691
      %v731 = vmul.f32 %v569, %v691
      %v732 = vmul.f32 %v574, %v691
      %v733 = vmul.f32 %v579, %v691
      %v734 = vmul.f32 %v584, %v691
      %v735 = vmul.f32 %v589, %v691
      %v736 = vmul.f32 %v594, %v691
      %v737 = vmul.f32 %v599, %v691
      %v738 = vmul.f32 %v604, %v691
      %v739 = vmul.f32 %v609, %v691
      %v740 = vmul.f32 %v614, %v691
      %v741 = vmul.f32 %v619, %v691
      %v742 = vmul.f32 %v624, %v691
      %v743 = vmul.f32 %v629, %v691
      %v744 = vmul.f32 %v634, %v691
      %v745 = vmul.f32 %v639, %v691
      %v746 = vmul.f32 %v644, %v691
      %v747 = vmul.f32 %v649, %v691
      %v748 = vmul.f32 %v654, %v691
      %v749 = vmul.f32 %v659, %v691
      %v750 = vmul.f32 %v664, %v691
      %v751 = vmul.f32 %v669, %v691
      %v752 = vmul.f32 %v674, %v691
      %v753 = vmul.f32 %v679, %v691
      %v754 = vmul.f32 %v684, %v691
      %v755 = vmul.f32 %v689, %v691
      %756 = vset.pattern.permute.xlu0 1
      %757 = vperm.xlu0 %756, %v306
      %v758 = vpop.permute.xlu0 %757
      %760 = vset.pattern.permute.xlu0 1
      %761 = vperm.xlu0 %760, %v307
      %v762 = vpop.permute.xlu0 %761
      %764 = vset.pattern.permute.xlu0 1
      %765 = vperm.xlu0 %764, %v308
      %v766 = vpop.permute.xlu0 %765
      %768 = vset.pattern.permute.xlu0 1
      %769 = vperm.xlu0 %768, %v309
      %v770 = vpop.permute.xlu0 %769
      %772 = vset.pattern.permute.xlu0 1
      %773 = vperm.xlu0 %772, %v310
      %v774 = vpop.permute.xlu0 %773
      %776 = vset.pattern.permute.xlu0 1
      %777 = vperm.xlu0 %776, %v311
      %v778 = vpop.permute.xlu0 %777
      %780 = vset.pattern.permute.xlu0 1
      %781 = vperm.xlu0 %780, %v312
      %v782 = vpop.permute.xlu0 %781
      %784 = vset.pattern.permute.xlu0 1
      %785 = vperm.xlu0 %784, %v313
      %v786 = vpop.permute.xlu0 %785
      %788 = vset.pattern.permute.xlu0 1
      %789 = vperm.xlu0 %788, %v314
      %v790 = vpop.permute.xlu0 %789
      %792 = vset.pattern.permute.xlu0 1
      %793 = vperm.xlu0 %792, %v315
      %v794 = vpop.permute.xlu0 %793
      %796 = vset.pattern.permute.xlu0 1
      %797 = vperm.xlu0 %796, %v316
      %v798 = vpop.permute.xlu0 %797
      %800 = vset.pattern.permute.xlu0 1
      %801 = vperm.xlu0 %800, %v317
      %v802 = vpop.permute.xlu0 %801
      %804 = vset.pattern.permute.xlu0 1
      %805 = vperm.xlu0 %804, %v318
      %v806 = vpop.permute.xlu0 %805
      %808 = vset.pattern.permute.xlu0 1
      %809 = vperm.xlu0 %808, %v319
      %v810 = vpop.permute.xlu0 %809
      %812 = vset.pattern.permute.xlu0 1
      %813 = vperm.xlu0 %812, %v320
      %v814 = vpop.permute.xlu0 %813
      %816 = vset.pattern.permute.xlu0 1
      %817 = vperm.xlu0 %816, %v321
      %v818 = vpop.permute.xlu0 %817
      %820 = vset.pattern.permute.xlu0 1
      %821 = vperm.xlu0 %820, %v322
      %v822 = vpop.permute.xlu0 %821
      %824 = vset.pattern.permute.xlu0 1
      %825 = vperm.xlu0 %824, %v323
      %v826 = vpop.permute.xlu0 %825
      %828 = vset.pattern.permute.xlu0 1
      %829 = vperm.xlu0 %828, %v324
      %v830 = vpop.permute.xlu0 %829
      %832 = vset.pattern.permute.xlu0 1
      %833 = vperm.xlu0 %832, %v325
      %v834 = vpop.permute.xlu0 %833
      %836 = vset.pattern.permute.xlu0 1
      %837 = vperm.xlu0 %836, %v326
      %v838 = vpop.permute.xlu0 %837
      %840 = vset.pattern.permute.xlu0 1
      %841 = vperm.xlu0 %840, %v327
      %v842 = vpop.permute.xlu0 %841
      %844 = vset.pattern.permute.xlu0 1
      %845 = vperm.xlu0 %844, %v328
      %v846 = vpop.permute.xlu0 %845
      %848 = vset.pattern.permute.xlu0 1
      %849 = vperm.xlu0 %848, %v329
      %v850 = vpop.permute.xlu0 %849
      %852 = vset.pattern.permute.xlu0 1
      %853 = vperm.xlu0 %852, %v330
      %v854 = vpop.permute.xlu0 %853
      %856 = vset.pattern.permute.xlu0 1
      %857 = vperm.xlu0 %856, %v331
      %v858 = vpop.permute.xlu0 %857
      %860 = vset.pattern.permute.xlu0 1
      %861 = vperm.xlu0 %860, %v332
      %v862 = vpop.permute.xlu0 %861
      %864 = vset.pattern.permute.xlu0 1
      %865 = vperm.xlu0 %864, %v333
      %v866 = vpop.permute.xlu0 %865
      %868 = vset.pattern.permute.xlu0 1
      %869 = vperm.xlu0 %868, %v334
      %v870 = vpop.permute.xlu0 %869
      %872 = vset.pattern.permute.xlu0 1
      %873 = vperm.xlu0 %872, %v335
      %v874 = vpop.permute.xlu0 %873
      %876 = vset.pattern.permute.xlu0 1
      %877 = vperm.xlu0 %876, %v336
      %v878 = vpop.permute.xlu0 %877
      %880 = vset.pattern.permute.xlu0 1
      %881 = vperm.xlu0 %880, %v337
      %v882 = vpop.permute.xlu0 %881
      %884 = vset.pattern.permute.xlu0 1
      %885 = vperm.xlu0 %884, %v338
      %v886 = vpop.permute.xlu0 %885
      %888 = vset.pattern.permute.xlu0 1
      %889 = vperm.xlu0 %888, %v339
      %v890 = vpop.permute.xlu0 %889
      %892 = vset.pattern.permute.xlu0 1
      %893 = vperm.xlu0 %892, %v340
      %v894 = vpop.permute.xlu0 %893
      %896 = vset.pattern.permute.xlu0 1
      %897 = vperm.xlu0 %896, %v341
      %v898 = vpop.permute.xlu0 %897
      %900 = vset.pattern.permute.xlu0 1
      %901 = vperm.xlu0 %900, %v342
      %v902 = vpop.permute.xlu0 %901
      %904 = vset.pattern.permute.xlu0 1
      %905 = vperm.xlu0 %904, %v343
      %v906 = vpop.permute.xlu0 %905
      %908 = vset.pattern.permute.xlu0 1
      %909 = vperm.xlu0 %908, %v344
      %v910 = vpop.permute.xlu0 %909
      %912 = vset.pattern.permute.xlu0 1
      %913 = vperm.xlu0 %912, %v345
      %v914 = vpop.permute.xlu0 %913
      %916 = vset.pattern.permute.xlu0 1
      %917 = vperm.xlu0 %916, %v346
      %v918 = vpop.permute.xlu0 %917
      %920 = vset.pattern.permute.xlu0 1
      %921 = vperm.xlu0 %920, %v347
      %v922 = vpop.permute.xlu0 %921
      %924 = vset.pattern.permute.xlu0 1
      %925 = vperm.xlu0 %924, %v348
      %v926 = vpop.permute.xlu0 %925
      %928 = vset.pattern.permute.xlu0 1
      %929 = vperm.xlu0 %928, %v349
      %v930 = vpop.permute.xlu0 %929
      %932 = vset.pattern.permute.xlu0 1
      %933 = vperm.xlu0 %932, %v350
      %v934 = vpop.permute.xlu0 %933
      %936 = vset.pattern.permute.xlu0 1
      %937 = vperm.xlu0 %936, %v351
      %v938 = vpop.permute.xlu0 %937
      %940 = vset.pattern.permute.xlu0 1
      %941 = vperm.xlu0 %940, %v352
      %v942 = vpop.permute.xlu0 %941
      %944 = vset.pattern.permute.xlu0 1
      %945 = vperm.xlu0 %944, %v353
      %v946 = vpop.permute.xlu0 %945
      %948 = vset.pattern.permute.xlu0 1
      %949 = vperm.xlu0 %948, %v354
      %v950 = vpop.permute.xlu0 %949
      %952 = vset.pattern.permute.xlu0 1
      %953 = vperm.xlu0 %952, %v355
      %v954 = vpop.permute.xlu0 %953
      %956 = vset.pattern.permute.xlu0 1
      %957 = vperm.xlu0 %956, %v356
      %v958 = vpop.permute.xlu0 %957
      %960 = vset.pattern.permute.xlu0 1
      %961 = vperm.xlu0 %960, %v357
      %v962 = vpop.permute.xlu0 %961
      %964 = vset.pattern.permute.xlu0 1
      %965 = vperm.xlu0 %964, %v358
      %v966 = vpop.permute.xlu0 %965
      %968 = vset.pattern.permute.xlu0 1
      %969 = vperm.xlu0 %968, %v359
      %v970 = vpop.permute.xlu0 %969
      %972 = vset.pattern.permute.xlu0 1
      %973 = vperm.xlu0 %972, %v360
      %v974 = vpop.permute.xlu0 %973
      %976 = vset.pattern.permute.xlu0 1
      %977 = vperm.xlu0 %976, %v361
      %v978 = vpop.permute.xlu0 %977
      %980 = vset.pattern.permute.xlu0 1
      %981 = vperm.xlu0 %980, %v362
      %v982 = vpop.permute.xlu0 %981
      %984 = vset.pattern.permute.xlu0 1
      %985 = vperm.xlu0 %984, %v363
      %v986 = vpop.permute.xlu0 %985
      %988 = vset.pattern.permute.xlu0 1
      %989 = vperm.xlu0 %988, %v364
      %v990 = vpop.permute.xlu0 %989
      %992 = vset.pattern.permute.xlu0 1
      %993 = vperm.xlu0 %992, %v365
      %v994 = vpop.permute.xlu0 %993
      %996 = vset.pattern.permute.xlu0 1
      %997 = vperm.xlu0 %996, %v366
      %v998 = vpop.permute.xlu0 %997
      %1000 = vset.pattern.permute.xlu0 1
      %1001 = vperm.xlu0 %1000, %v367
      %v1002 = vpop.permute.xlu0 %1001
      %1004 = vset.pattern.permute.xlu0 1
      %1005 = vperm.xlu0 %1004, %v368
      %v1006 = vpop.permute.xlu0 %1005
      %1008 = vset.pattern.permute.xlu0 1
      %1009 = vperm.xlu0 %1008, %v369
      %v1010 = vpop.permute.xlu0 %1009
      %v1012 = vperm.slane %v370, 1
      %v1013 = vmul.f32 %v758, %v1012
      %v1014 = vmul.f32 %v762, %v1012
      %v1015 = vmul.f32 %v766, %v1012
      %v1016 = vmul.f32 %v770, %v1012
      %v1017 = vmul.f32 %v774, %v1012
      %v1018 = vmul.f32 %v778, %v1012
      %v1019 = vmul.f32 %v782, %v1012
      %v1020 = vmul.f32 %v786, %v1012
      %v1021 = vmul.f32 %v790, %v1012
      %v1022 = vmul.f32 %v794, %v1012
      %v1023 = vmul.f32 %v798, %v1012
      %v1024 = vmul.f32 %v802, %v1012
      %v1025 = vmul.f32 %v806, %v1012
      %v1026 = vmul.f32 %v810, %v1012
      %v1027 = vmul.f32 %v814, %v1012
      %v1028 = vmul.f32 %v818, %v1012
      %v1029 = vmul.f32 %v822, %v1012
      %v1030 = vmul.f32 %v826, %v1012
      %v1031 = vmul.f32 %v830, %v1012
      %v1032 = vmul.f32 %v834, %v1012
      %v1033 = vmul.f32 %v838, %v1012
      %v1034 = vmul.f32 %v842, %v1012
      %v1035 = vmul.f32 %v846, %v1012
      %v1036 = vmul.f32 %v850, %v1012
      %v1037 = vmul.f32 %v854, %v1012
      %v1038 = vmul.f32 %v858, %v1012
      %v1039 = vmul.f32 %v862, %v1012
      %v1040 = vmul.f32 %v866, %v1012
      %v1041 = vmul.f32 %v870, %v1012
      %v1042 = vmul.f32 %v874, %v1012
      %v1043 = vmul.f32 %v878, %v1012
      %v1044 = vmul.f32 %v882, %v1012
      %v1045 = vmul.f32 %v886, %v1012
      %v1046 = vmul.f32 %v890, %v1012
      %v1047 = vmul.f32 %v894, %v1012
      %v1048 = vmul.f32 %v898, %v1012
      %v1049 = vmul.f32 %v902, %v1012
      %v1050 = vmul.f32 %v906, %v1012
      %v1051 = vmul.f32 %v910, %v1012
      %v1052 = vmul.f32 %v914, %v1012
      %v1053 = vmul.f32 %v918, %v1012
      %v1054 = vmul.f32 %v922, %v1012
      %v1055 = vmul.f32 %v926, %v1012
      %v1056 = vmul.f32 %v930, %v1012
      %v1057 = vmul.f32 %v934, %v1012
      %v1058 = vmul.f32 %v938, %v1012
      %v1059 = vmul.f32 %v942, %v1012
      %v1060 = vmul.f32 %v946, %v1012
      %v1061 = vmul.f32 %v950, %v1012
      %v1062 = vmul.f32 %v954, %v1012
      %v1063 = vmul.f32 %v958, %v1012
      %v1064 = vmul.f32 %v962, %v1012
      %v1065 = vmul.f32 %v966, %v1012
      %v1066 = vmul.f32 %v970, %v1012
      %v1067 = vmul.f32 %v974, %v1012
      %v1068 = vmul.f32 %v978, %v1012
      %v1069 = vmul.f32 %v982, %v1012
      %v1070 = vmul.f32 %v986, %v1012
      %v1071 = vmul.f32 %v990, %v1012
      %v1072 = vmul.f32 %v994, %v1012
      %v1073 = vmul.f32 %v998, %v1012
      %v1074 = vmul.f32 %v1002, %v1012
      %v1075 = vmul.f32 %v1006, %v1012
      %v1076 = vmul.f32 %v1010, %v1012
      %v1077 = vadd.f32 %v692, %v1013
      %v1078 = vadd.f32 %v693, %v1014
      %v1079 = vadd.f32 %v694, %v1015
      %v1080 = vadd.f32 %v695, %v1016
      %v1081 = vadd.f32 %v696, %v1017
      %v1082 = vadd.f32 %v697, %v1018
      %v1083 = vadd.f32 %v698, %v1019
      %v1084 = vadd.f32 %v699, %v1020
      %v1085 = vadd.f32 %v700, %v1021
      %v1086 = vadd.f32 %v701, %v1022
      %v1087 = vadd.f32 %v702, %v1023
      %v1088 = vadd.f32 %v703, %v1024
      %v1089 = vadd.f32 %v704, %v1025
      %v1090 = vadd.f32 %v705, %v1026
      %v1091 = vadd.f32 %v706, %v1027
      %v1092 = vadd.f32 %v707, %v1028
      %v1093 = vadd.f32 %v708, %v1029
      %v1094 = vadd.f32 %v709, %v1030
      %v1095 = vadd.f32 %v710, %v1031
      %v1096 = vadd.f32 %v711, %v1032
      %v1097 = vadd.f32 %v712, %v1033
      %v1098 = vadd.f32 %v713, %v1034
      %v1099 = vadd.f32 %v714, %v1035
      %v1100 = vadd.f32 %v715, %v1036
      %v1101 = vadd.f32 %v716, %v1037
      %v1102 = vadd.f32 %v717, %v1038
      %v1103 = vadd.f32 %v718, %v1039
      %v1104 = vadd.f32 %v719, %v1040
      %v1105 = vadd.f32 %v720, %v1041
      %v1106 = vadd.f32 %v721, %v1042
      %v1107 = vadd.f32 %v722, %v1043
      %v1108 = vadd.f32 %v723, %v1044
      %v1109 = vadd.f32 %v724, %v1045
      %v1110 = vadd.f32 %v725, %v1046
      %v1111 = vadd.f32 %v726, %v1047
      %v1112 = vadd.f32 %v727, %v1048
      %v1113 = vadd.f32 %v728, %v1049
      %v1114 = vadd.f32 %v729, %v1050
      %v1115 = vadd.f32 %v730, %v1051
      %v1116 = vadd.f32 %v731, %v1052
      %v1117 = vadd.f32 %v732, %v1053
      %v1118 = vadd.f32 %v733, %v1054
      %v1119 = vadd.f32 %v734, %v1055
      %v1120 = vadd.f32 %v735, %v1056
      %v1121 = vadd.f32 %v736, %v1057
      %v1122 = vadd.f32 %v737, %v1058
      %v1123 = vadd.f32 %v738, %v1059
      %v1124 = vadd.f32 %v739, %v1060
      %v1125 = vadd.f32 %v740, %v1061
      %v1126 = vadd.f32 %v741, %v1062
      %v1127 = vadd.f32 %v742, %v1063
      %v1128 = vadd.f32 %v743, %v1064
      %v1129 = vadd.f32 %v744, %v1065
      %v1130 = vadd.f32 %v745, %v1066
      %v1131 = vadd.f32 %v746, %v1067
      %v1132 = vadd.f32 %v747, %v1068
      %v1133 = vadd.f32 %v748, %v1069
      %v1134 = vadd.f32 %v749, %v1070
      %v1135 = vadd.f32 %v750, %v1071
      %v1136 = vadd.f32 %v751, %v1072
      %v1137 = vadd.f32 %v752, %v1073
      %v1138 = vadd.f32 %v753, %v1074
      %v1139 = vadd.f32 %v754, %v1075
      %v1140 = vadd.f32 %v755, %v1076
      %1141 = vset.pattern.permute.xlu0 2
      %1142 = vperm.xlu0 %1141, %v306
      %v1143 = vpop.permute.xlu0 %1142
      %1145 = vset.pattern.permute.xlu0 2
      %1146 = vperm.xlu0 %1145, %v307
      %v1147 = vpop.permute.xlu0 %1146
      %1149 = vset.pattern.permute.xlu0 2
      %1150 = vperm.xlu0 %1149, %v308
      %v1151 = vpop.permute.xlu0 %1150
      %1153 = vset.pattern.permute.xlu0 2
      %1154 = vperm.xlu0 %1153, %v309
      %v1155 = vpop.permute.xlu0 %1154
      %1157 = vset.pattern.permute.xlu0 2
      %1158 = vperm.xlu0 %1157, %v310
      %v1159 = vpop.permute.xlu0 %1158
      %1161 = vset.pattern.permute.xlu0 2
      %1162 = vperm.xlu0 %1161, %v311
      %v1163 = vpop.permute.xlu0 %1162
      %1165 = vset.pattern.permute.xlu0 2
      %1166 = vperm.xlu0 %1165, %v312
      %v1167 = vpop.permute.xlu0 %1166
      %1169 = vset.pattern.permute.xlu0 2
      %1170 = vperm.xlu0 %1169, %v313
      %v1171 = vpop.permute.xlu0 %1170
      %1173 = vset.pattern.permute.xlu0 2
      %1174 = vperm.xlu0 %1173, %v314
      %v1175 = vpop.permute.xlu0 %1174
      %1177 = vset.pattern.permute.xlu0 2
      %1178 = vperm.xlu0 %1177, %v315
      %v1179 = vpop.permute.xlu0 %1178
      %1181 = vset.pattern.permute.xlu0 2
      %1182 = vperm.xlu0 %1181, %v316
      %v1183 = vpop.permute.xlu0 %1182
      %1185 = vset.pattern.permute.xlu0 2
      %1186 = vperm.xlu0 %1185, %v317
      %v1187 = vpop.permute.xlu0 %1186
      %1189 = vset.pattern.permute.xlu0 2
      %1190 = vperm.xlu0 %1189, %v318
      %v1191 = vpop.permute.xlu0 %1190
      %1193 = vset.pattern.permute.xlu0 2
      %1194 = vperm.xlu0 %1193, %v319
      %v1195 = vpop.permute.xlu0 %1194
      %1197 = vset.pattern.permute.xlu0 2
      %1198 = vperm.xlu0 %1197, %v320
      %v1199 = vpop.permute.xlu0 %1198
      %1201 = vset.pattern.permute.xlu0 2
      %1202 = vperm.xlu0 %1201, %v321
      %v1203 = vpop.permute.xlu0 %1202
      %1205 = vset.pattern.permute.xlu0 2
      %1206 = vperm.xlu0 %1205, %v322
      %v1207 = vpop.permute.xlu0 %1206
      %1209 = vset.pattern.permute.xlu0 2
      %1210 = vperm.xlu0 %1209, %v323
      %v1211 = vpop.permute.xlu0 %1210
      %1213 = vset.pattern.permute.xlu0 2
      %1214 = vperm.xlu0 %1213, %v324
      %v1215 = vpop.permute.xlu0 %1214
      %1217 = vset.pattern.permute.xlu0 2
      %1218 = vperm.xlu0 %1217, %v325
      %v1219 = vpop.permute.xlu0 %1218
      %1221 = vset.pattern.permute.xlu0 2
      %1222 = vperm.xlu0 %1221, %v326
      %v1223 = vpop.permute.xlu0 %1222
      %1225 = vset.pattern.permute.xlu0 2
      %1226 = vperm.xlu0 %1225, %v327
      %v1227 = vpop.permute.xlu0 %1226
      %1229 = vset.pattern.permute.xlu0 2
      %1230 = vperm.xlu0 %1229, %v328
      %v1231 = vpop.permute.xlu0 %1230
      %1233 = vset.pattern.permute.xlu0 2
      %1234 = vperm.xlu0 %1233, %v329
      %v1235 = vpop.permute.xlu0 %1234
      %1237 = vset.pattern.permute.xlu0 2
      %1238 = vperm.xlu0 %1237, %v330
      %v1239 = vpop.permute.xlu0 %1238
      %1241 = vset.pattern.permute.xlu0 2
      %1242 = vperm.xlu0 %1241, %v331
      %v1243 = vpop.permute.xlu0 %1242
      %1245 = vset.pattern.permute.xlu0 2
      %1246 = vperm.xlu0 %1245, %v332
      %v1247 = vpop.permute.xlu0 %1246
      %1249 = vset.pattern.permute.xlu0 2
      %1250 = vperm.xlu0 %1249, %v333
      %v1251 = vpop.permute.xlu0 %1250
      %1253 = vset.pattern.permute.xlu0 2
      %1254 = vperm.xlu0 %1253, %v334
      %v1255 = vpop.permute.xlu0 %1254
      %1257 = vset.pattern.permute.xlu0 2
      %1258 = vperm.xlu0 %1257, %v335
      %v1259 = vpop.permute.xlu0 %1258
      %1261 = vset.pattern.permute.xlu0 2
      %1262 = vperm.xlu0 %1261, %v336
      %v1263 = vpop.permute.xlu0 %1262
      %1265 = vset.pattern.permute.xlu0 2
      %1266 = vperm.xlu0 %1265, %v337
      %v1267 = vpop.permute.xlu0 %1266
      %1269 = vset.pattern.permute.xlu0 2
      %1270 = vperm.xlu0 %1269, %v338
      %v1271 = vpop.permute.xlu0 %1270
      %1273 = vset.pattern.permute.xlu0 2
      %1274 = vperm.xlu0 %1273, %v339
      %v1275 = vpop.permute.xlu0 %1274
      %1277 = vset.pattern.permute.xlu0 2
      %1278 = vperm.xlu0 %1277, %v340
      %v1279 = vpop.permute.xlu0 %1278
      %1281 = vset.pattern.permute.xlu0 2
      %1282 = vperm.xlu0 %1281, %v341
      %v1283 = vpop.permute.xlu0 %1282
      %1285 = vset.pattern.permute.xlu0 2
      %1286 = vperm.xlu0 %1285, %v342
      %v1287 = vpop.permute.xlu0 %1286
      %1289 = vset.pattern.permute.xlu0 2
      %1290 = vperm.xlu0 %1289, %v343
      %v1291 = vpop.permute.xlu0 %1290
      %1293 = vset.pattern.permute.xlu0 2
      %1294 = vperm.xlu0 %1293, %v344
      %v1295 = vpop.permute.xlu0 %1294
      %1297 = vset.pattern.permute.xlu0 2
      %1298 = vperm.xlu0 %1297, %v345
      %v1299 = vpop.permute.xlu0 %1298
      %1301 = vset.pattern.permute.xlu0 2
      %1302 = vperm.xlu0 %1301, %v346
      %v1303 = vpop.permute.xlu0 %1302
      %1305 = vset.pattern.permute.xlu0 2
      %1306 = vperm.xlu0 %1305, %v347
      %v1307 = vpop.permute.xlu0 %1306
      %1309 = vset.pattern.permute.xlu0 2
      %1310 = vperm.xlu0 %1309, %v348
      %v1311 = vpop.permute.xlu0 %1310
      %1313 = vset.pattern.permute.xlu0 2
      %1314 = vperm.xlu0 %1313, %v349
      %v1315 = vpop.permute.xlu0 %1314
      %1317 = vset.pattern.permute.xlu0 2
      %1318 = vperm.xlu0 %1317, %v350
      %v1319 = vpop.permute.xlu0 %1318
      %1321 = vset.pattern.permute.xlu0 2
      %1322 = vperm.xlu0 %1321, %v351
      %v1323 = vpop.permute.xlu0 %1322
      %1325 = vset.pattern.permute.xlu0 2
      %1326 = vperm.xlu0 %1325, %v352
      %v1327 = vpop.permute.xlu0 %1326
      %1329 = vset.pattern.permute.xlu0 2
      %1330 = vperm.xlu0 %1329, %v353
      %v1331 = vpop.permute.xlu0 %1330
      %1333 = vset.pattern.permute.xlu0 2
      %1334 = vperm.xlu0 %1333, %v354
      %v1335 = vpop.permute.xlu0 %1334
      %1337 = vset.pattern.permute.xlu0 2
      %1338 = vperm.xlu0 %1337, %v355
      %v1339 = vpop.permute.xlu0 %1338
      %1341 = vset.pattern.permute.xlu0 2
      %1342 = vperm.xlu0 %1341, %v356
      %v1343 = vpop.permute.xlu0 %1342
      %1345 = vset.pattern.permute.xlu0 2
      %1346 = vperm.xlu0 %1345, %v357
      %v1347 = vpop.permute.xlu0 %1346
      %1349 = vset.pattern.permute.xlu0 2
      %1350 = vperm.xlu0 %1349, %v358
      %v1351 = vpop.permute.xlu0 %1350
      %1353 = vset.pattern.permute.xlu0 2
      %1354 = vperm.xlu0 %1353, %v359
      %v1355 = vpop.permute.xlu0 %1354
      %1357 = vset.pattern.permute.xlu0 2
      %1358 = vperm.xlu0 %1357, %v360
      %v1359 = vpop.permute.xlu0 %1358
      %1361 = vset.pattern.permute.xlu0 2
      %1362 = vperm.xlu0 %1361, %v361
      %v1363 = vpop.permute.xlu0 %1362
      %1365 = vset.pattern.permute.xlu0 2
      %1366 = vperm.xlu0 %1365, %v362
      %v1367 = vpop.permute.xlu0 %1366
      %1369 = vset.pattern.permute.xlu0 2
      %1370 = vperm.xlu0 %1369, %v363
      %v1371 = vpop.permute.xlu0 %1370
      %1373 = vset.pattern.permute.xlu0 2
      %1374 = vperm.xlu0 %1373, %v364
      %v1375 = vpop.permute.xlu0 %1374
      %1377 = vset.pattern.permute.xlu0 2
      %1378 = vperm.xlu0 %1377, %v365
      %v1379 = vpop.permute.xlu0 %1378
      %1381 = vset.pattern.permute.xlu0 2
      %1382 = vperm.xlu0 %1381, %v366
      %v1383 = vpop.permute.xlu0 %1382
      %1385 = vset.pattern.permute.xlu0 2
      %1386 = vperm.xlu0 %1385, %v367
      %v1387 = vpop.permute.xlu0 %1386
      %1389 = vset.pattern.permute.xlu0 2
      %1390 = vperm.xlu0 %1389, %v368
      %v1391 = vpop.permute.xlu0 %1390
      %1393 = vset.pattern.permute.xlu0 2
      %1394 = vperm.xlu0 %1393, %v369
      %v1395 = vpop.permute.xlu0 %1394
      %v1397 = vperm.slane %v370, 2
      %v1398 = vmul.f32 %v1143, %v1397
      %v1399 = vmul.f32 %v1147, %v1397
      %v1400 = vmul.f32 %v1151, %v1397
      %v1401 = vmul.f32 %v1155, %v1397
      %v1402 = vmul.f32 %v1159, %v1397
      %v1403 = vmul.f32 %v1163, %v1397
      %v1404 = vmul.f32 %v1167, %v1397
      %v1405 = vmul.f32 %v1171, %v1397
      %v1406 = vmul.f32 %v1175, %v1397
      %v1407 = vmul.f32 %v1179, %v1397
      %v1408 = vmul.f32 %v1183, %v1397
      %v1409 = vmul.f32 %v1187, %v1397
      %v1410 = vmul.f32 %v1191, %v1397
      %v1411 = vmul.f32 %v1195, %v1397
      %v1412 = vmul.f32 %v1199, %v1397
      %v1413 = vmul.f32 %v1203, %v1397
      %v1414 = vmul.f32 %v1207, %v1397
      %v1415 = vmul.f32 %v1211, %v1397
      %v1416 = vmul.f32 %v1215, %v1397
      %v1417 = vmul.f32 %v1219, %v1397
      %v1418 = vmul.f32 %v1223, %v1397
      %v1419 = vmul.f32 %v1227, %v1397
      %v1420 = vmul.f32 %v1231, %v1397
      %v1421 = vmul.f32 %v1235, %v1397
      %v1422 = vmul.f32 %v1239, %v1397
      %v1423 = vmul.f32 %v1243, %v1397
      %v1424 = vmul.f32 %v1247, %v1397
      %v1425 = vmul.f32 %v1251, %v1397
      %v1426 = vmul.f32 %v1255, %v1397
      %v1427 = vmul.f32 %v1259, %v1397
      %v1428 = vmul.f32 %v1263, %v1397
      %v1429 = vmul.f32 %v1267, %v1397
      %v1430 = vmul.f32 %v1271, %v1397
      %v1431 = vmul.f32 %v1275, %v1397
      %v1432 = vmul.f32 %v1279, %v1397
      %v1433 = vmul.f32 %v1283, %v1397
      %v1434 = vmul.f32 %v1287, %v1397
      %v1435 = vmul.f32 %v1291, %v1397
      %v1436 = vmul.f32 %v1295, %v1397
      %v1437 = vmul.f32 %v1299, %v1397
      %v1438 = vmul.f32 %v1303, %v1397
      %v1439 = vmul.f32 %v1307, %v1397
      %v1440 = vmul.f32 %v1311, %v1397
      %v1441 = vmul.f32 %v1315, %v1397
      %v1442 = vmul.f32 %v1319, %v1397
      %v1443 = vmul.f32 %v1323, %v1397
      %v1444 = vmul.f32 %v1327, %v1397
      %v1445 = vmul.f32 %v1331, %v1397
      %v1446 = vmul.f32 %v1335, %v1397
      %v1447 = vmul.f32 %v1339, %v1397
      %v1448 = vmul.f32 %v1343, %v1397
      %v1449 = vmul.f32 %v1347, %v1397
      %v1450 = vmul.f32 %v1351, %v1397
      %v1451 = vmul.f32 %v1355, %v1397
      %v1452 = vmul.f32 %v1359, %v1397
      %v1453 = vmul.f32 %v1363, %v1397
      %v1454 = vmul.f32 %v1367, %v1397
      %v1455 = vmul.f32 %v1371, %v1397
      %v1456 = vmul.f32 %v1375, %v1397
      %v1457 = vmul.f32 %v1379, %v1397
      %v1458 = vmul.f32 %v1383, %v1397
      %v1459 = vmul.f32 %v1387, %v1397
      %v1460 = vmul.f32 %v1391, %v1397
      %v1461 = vmul.f32 %v1395, %v1397
      %v1462 = vadd.f32 %v1077, %v1398
      %v1463 = vadd.f32 %v1078, %v1399
      %v1464 = vadd.f32 %v1079, %v1400
      %v1465 = vadd.f32 %v1080, %v1401
      %v1466 = vadd.f32 %v1081, %v1402
      %v1467 = vadd.f32 %v1082, %v1403
      %v1468 = vadd.f32 %v1083, %v1404
      %v1469 = vadd.f32 %v1084, %v1405
      %v1470 = vadd.f32 %v1085, %v1406
      %v1471 = vadd.f32 %v1086, %v1407
      %v1472 = vadd.f32 %v1087, %v1408
      %v1473 = vadd.f32 %v1088, %v1409
      %v1474 = vadd.f32 %v1089, %v1410
      %v1475 = vadd.f32 %v1090, %v1411
      %v1476 = vadd.f32 %v1091, %v1412
      %v1477 = vadd.f32 %v1092, %v1413
      %v1478 = vadd.f32 %v1093, %v1414
      %v1479 = vadd.f32 %v1094, %v1415
      %v1480 = vadd.f32 %v1095, %v1416
      %v1481 = vadd.f32 %v1096, %v1417
      %v1482 = vadd.f32 %v1097, %v1418
      %v1483 = vadd.f32 %v1098, %v1419
      %v1484 = vadd.f32 %v1099, %v1420
      %v1485 = vadd.f32 %v1100, %v1421
      %v1486 = vadd.f32 %v1101, %v1422
      %v1487 = vadd.f32 %v1102, %v1423
      %v1488 = vadd.f32 %v1103, %v1424
      %v1489 = vadd.f32 %v1104, %v1425
      %v1490 = vadd.f32 %v1105, %v1426
      %v1491 = vadd.f32 %v1106, %v1427
      %v1492 = vadd.f32 %v1107, %v1428
      %v1493 = vadd.f32 %v1108, %v1429
      %v1494 = vadd.f32 %v1109, %v1430
      %v1495 = vadd.f32 %v1110, %v1431
      %v1496 = vadd.f32 %v1111, %v1432
      %v1497 = vadd.f32 %v1112, %v1433
      %v1498 = vadd.f32 %v1113, %v1434
      %v1499 = vadd.f32 %v1114, %v1435
      %v1500 = vadd.f32 %v1115, %v1436
      %v1501 = vadd.f32 %v1116, %v1437
      %v1502 = vadd.f32 %v1117, %v1438
      %v1503 = vadd.f32 %v1118, %v1439
      %v1504 = vadd.f32 %v1119, %v1440
      %v1505 = vadd.f32 %v1120, %v1441
      %v1506 = vadd.f32 %v1121, %v1442
      %v1507 = vadd.f32 %v1122, %v1443
      %v1508 = vadd.f32 %v1123, %v1444
      %v1509 = vadd.f32 %v1124, %v1445
      %v1510 = vadd.f32 %v1125, %v1446
      %v1511 = vadd.f32 %v1126, %v1447
      %v1512 = vadd.f32 %v1127, %v1448
      %v1513 = vadd.f32 %v1128, %v1449
      %v1514 = vadd.f32 %v1129, %v1450
      %v1515 = vadd.f32 %v1130, %v1451
      %v1516 = vadd.f32 %v1131, %v1452
      %v1517 = vadd.f32 %v1132, %v1453
      %v1518 = vadd.f32 %v1133, %v1454
      %v1519 = vadd.f32 %v1134, %v1455
      %v1520 = vadd.f32 %v1135, %v1456
      %v1521 = vadd.f32 %v1136, %v1457
      %v1522 = vadd.f32 %v1137, %v1458
      %v1523 = vadd.f32 %v1138, %v1459
      %v1524 = vadd.f32 %v1139, %v1460
      %v1525 = vadd.f32 %v1140, %v1461
      %v1526 = vld [vmem:[%s2] sm:$0x1]
      %v1528 = vperm.slane %v1526, 0
      %v1530 = vadd.f32 %v1462, %v1528
      %v1531 = vadd.f32 %v1463, %v1528
      %v1532 = vadd.f32 %v1464, %v1528
      %v1533 = vadd.f32 %v1465, %v1528
      %v1534 = vadd.f32 %v1466, %v1528
      %v1535 = vadd.f32 %v1467, %v1528
      %v1536 = vadd.f32 %v1468, %v1528
      %v1537 = vadd.f32 %v1469, %v1528
      %v1538 = vadd.f32 %v1470, %v1528
      %v1539 = vadd.f32 %v1471, %v1528
      %v1540 = vadd.f32 %v1472, %v1528
      %v1541 = vadd.f32 %v1473, %v1528
      %v1542 = vadd.f32 %v1474, %v1528
      %v1543 = vadd.f32 %v1475, %v1528
      %v1544 = vadd.f32 %v1476, %v1528
      %v1545 = vadd.f32 %v1477, %v1528
      %v1546 = vadd.f32 %v1478, %v1528
      %v1547 = vadd.f32 %v1479, %v1528
      %v1548 = vadd.f32 %v1480, %v1528
      %v1549 = vadd.f32 %v1481, %v1528
      %v1550 = vadd.f32 %v1482, %v1528
      %v1551 = vadd.f32 %v1483, %v1528
      %v1552 = vadd.f32 %v1484, %v1528
      %v1553 = vadd.f32 %v1485, %v1528
      %v1554 = vadd.f32 %v1486, %v1528
      %v1555 = vadd.f32 %v1487, %v1528
      %v1556 = vadd.f32 %v1488, %v1528
      %v1557 = vadd.f32 %v1489, %v1528
      %v1558 = vadd.f32 %v1490, %v1528
      %v1559 = vadd.f32 %v1491, %v1528
      %v1560 = vadd.f32 %v1492, %v1528
      %v1561 = vadd.f32 %v1493, %v1528
      %v1562 = vadd.f32 %v1494, %v1528
      %v1563 = vadd.f32 %v1495, %v1528
      %v1564 = vadd.f32 %v1496, %v1528
      %v1565 = vadd.f32 %v1497, %v1528
      %v1566 = vadd.f32 %v1498, %v1528
      %v1567 = vadd.f32 %v1499, %v1528
      %v1568 = vadd.f32 %v1500, %v1528
      %v1569 = vadd.f32 %v1501, %v1528
      %v1570 = vadd.f32 %v1502, %v1528
      %v1571 = vadd.f32 %v1503, %v1528
      %v1572 = vadd.f32 %v1504, %v1528
      %v1573 = vadd.f32 %v1505, %v1528
      %v1574 = vadd.f32 %v1506, %v1528
      %v1575 = vadd.f32 %v1507, %v1528
      %v1576 = vadd.f32 %v1508, %v1528
      %v1577 = vadd.f32 %v1509, %v1528
      %v1578 = vadd.f32 %v1510, %v1528
      %v1579 = vadd.f32 %v1511, %v1528
      %v1580 = vadd.f32 %v1512, %v1528
      %v1581 = vadd.f32 %v1513, %v1528
      %v1582 = vadd.f32 %v1514, %v1528
      %v1583 = vadd.f32 %v1515, %v1528
      %v1584 = vadd.f32 %v1516, %v1528
      %v1585 = vadd.f32 %v1517, %v1528
      %v1586 = vadd.f32 %v1518, %v1528
      %v1587 = vadd.f32 %v1519, %v1528
      %v1588 = vadd.f32 %v1520, %v1528
      %v1589 = vadd.f32 %v1521, %v1528
      %v1590 = vadd.f32 %v1522, %v1528
      %v1591 = vadd.f32 %v1523, %v1528
      %v1592 = vadd.f32 %v1524, %v1528
      %v1593 = vadd.f32 %v1525, %v1528
      %v1594 = vmax.f32 %v1530, 0.0
      %v1595 = vmax.f32 %v1531, 0.0
      %v1596 = vmax.f32 %v1532, 0.0
      %v1597 = vmax.f32 %v1533, 0.0
      %v1598 = vmax.f32 %v1534, 0.0
      %v1599 = vmax.f32 %v1535, 0.0
      %v1600 = vmax.f32 %v1536, 0.0
      %v1601 = vmax.f32 %v1537, 0.0
      %v1602 = vmax.f32 %v1538, 0.0
      %v1603 = vmax.f32 %v1539, 0.0
      %v1604 = vmax.f32 %v1540, 0.0
      %v1605 = vmax.f32 %v1541, 0.0
      %v1606 = vmax.f32 %v1542, 0.0
      %v1607 = vmax.f32 %v1543, 0.0
      %v1608 = vmax.f32 %v1544, 0.0
      %v1609 = vmax.f32 %v1545, 0.0
      %v1610 = vmax.f32 %v1546, 0.0
      %v1611 = vmax.f32 %v1547, 0.0
      %v1612 = vmax.f32 %v1548, 0.0
      %v1613 = vmax.f32 %v1549, 0.0
      %v1614 = vmax.f32 %v1550, 0.0
      %v1615 = vmax.f32 %v1551, 0.0
      %v1616 = vmax.f32 %v1552, 0.0
      %v1617 = vmax.f32 %v1553, 0.0
      %v1618 = vmax.f32 %v1554, 0.0
      %v1619 = vmax.f32 %v1555, 0.0
      %v1620 = vmax.f32 %v1556, 0.0
      %v1621 = vmax.f32 %v1557, 0.0
      %v1622 = vmax.f32 %v1558, 0.0
      %v1623 = vmax.f32 %v1559, 0.0
      %v1624 = vmax.f32 %v1560, 0.0
      %v1625 = vmax.f32 %v1561, 0.0
      %v1626 = vmax.f32 %v1562, 0.0
      %v1627 = vmax.f32 %v1563, 0.0
      %v1628 = vmax.f32 %v1564, 0.0
      %v1629 = vmax.f32 %v1565, 0.0
      %v1630 = vmax.f32 %v1566, 0.0
      %v1631 = vmax.f32 %v1567, 0.0
      %v1632 = vmax.f32 %v1568, 0.0
      %v1633 = vmax.f32 %v1569, 0.0
      %v1634 = vmax.f32 %v1570, 0.0
      %v1635 = vmax.f32 %v1571, 0.0
      %v1636 = vmax.f32 %v1572, 0.0
      %v1637 = vmax.f32 %v1573, 0.0
      %v1638 = vmax.f32 %v1574, 0.0
      %v1639 = vmax.f32 %v1575, 0.0
      %v1640 = vmax.f32 %v1576, 0.0
      %v1641 = vmax.f32 %v1577, 0.0
      %v1642 = vmax.f32 %v1578, 0.0
      %v1643 = vmax.f32 %v1579, 0.0
      %v1644 = vmax.f32 %v1580, 0.0
      %v1645 = vmax.f32 %v1581, 0.0
      %v1646 = vmax.f32 %v1582, 0.0
      %v1647 = vmax.f32 %v1583, 0.0
      %v1648 = vmax.f32 %v1584, 0.0
      %v1649 = vmax.f32 %v1585, 0.0
      %v1650 = vmax.f32 %v1586, 0.0
      %v1651 = vmax.f32 %v1587, 0.0
      %v1652 = vmax.f32 %v1588, 0.0
      %v1653 = vmax.f32 %v1589, 0.0
      %v1654 = vmax.f32 %v1590, 0.0
      %v1655 = vmax.f32 %v1591, 0.0
      %v1656 = vmax.f32 %v1592, 0.0
      %v1657 = vmax.f32 %v1593, 0.0
      %v1658 = vpack.c.bf16 %v1595, %v1594
      %v1659 = vpack.c.bf16 %v1597, %v1596
      %v1660 = vpack.c.bf16 %v1599, %v1598
      %v1661 = vpack.c.bf16 %v1601, %v1600
      %v1662 = vpack.c.bf16 %v1603, %v1602
      %v1663 = vpack.c.bf16 %v1605, %v1604
      %v1664 = vpack.c.bf16 %v1607, %v1606
      %v1665 = vpack.c.bf16 %v1609, %v1608
      %v1666 = vpack.c.bf16 %v1611, %v1610
      %v1667 = vpack.c.bf16 %v1613, %v1612
      %v1668 = vpack.c.bf16 %v1615, %v1614
      %v1669 = vpack.c.bf16 %v1617, %v1616
      %v1670 = vpack.c.bf16 %v1619, %v1618
      %v1671 = vpack.c.bf16 %v1621, %v1620
      %v1672 = vpack.c.bf16 %v1623, %v1622
      %v1673 = vpack.c.bf16 %v1625, %v1624
      %v1674 = vpack.c.bf16 %v1627, %v1626
      %v1675 = vpack.c.bf16 %v1629, %v1628
      %v1676 = vpack.c.bf16 %v1631, %v1630
      %v1677 = vpack.c.bf16 %v1633, %v1632
      %v1678 = vpack.c.bf16 %v1635, %v1634
      %v1679 = vpack.c.bf16 %v1637, %v1636
      %v1680 = vpack.c.bf16 %v1639, %v1638
      %v1681 = vpack.c.bf16 %v1641, %v1640
      %v1682 = vpack.c.bf16 %v1643, %v1642
      %v1683 = vpack.c.bf16 %v1645, %v1644
      %v1684 = vpack.c.bf16 %v1647, %v1646
      %v1685 = vpack.c.bf16 %v1649, %v1648
      %v1686 = vpack.c.bf16 %v1651, %v1650
      %v1687 = vpack.c.bf16 %v1653, %v1652
      %v1688 = vpack.c.bf16 %v1655, %v1654
      %v1689 = vpack.c.bf16 %v1657, %v1656
      %v1690 = vld [vmem:[%s3] sm:$0xf]
      %v1691 = vld [vmem:[%s3 + $0x4] sm:$0xf]
      %v1692 = vld [vmem:[%s3 + $0x8] sm:$0xf]
      %v1693 = vld [vmem:[%s3 + $0xc] sm:$0xf]
      %v1694 = vld [vmem:[%s3 + $0x10] sm:$0xf]
      %v1695 = vld [vmem:[%s3 + $0x14] sm:$0xf]
      %v1696 = vld [vmem:[%s3 + $0x18] sm:$0xf]
      %v1697 = vld [vmem:[%s3 + $0x1c] sm:$0xf]
      %v1698 = vld [vmem:[%s4] sm:$0x1]
      %v1700 = vperm.slane %v1698, 0
      %v1710 = vunpack.c.l.b16 %v1690
      %v1711 = vunpack.c.l.b16 %v1691
      %v1712 = vunpack.c.l.b16 %v1692
      %v1713 = vunpack.c.l.b16 %v1693
      %v1714 = vunpack.c.l.b16 %v1694
      %v1715 = vunpack.c.l.b16 %v1695
      %v1716 = vunpack.c.l.b16 %v1696
      %v1717 = vunpack.c.l.b16 %v1697
      %v1718 = vpack.c.b16 %v1711, %v1710
      %v1719 = vpack.c.b16 %v1713, %v1712
      %v1720 = vpack.c.b16 %v1715, %v1714
      %v1721 = vpack.c.b16 %v1717, %v1716
      %vm1726 = vcmask 523264
      %v1728 = vsel %vm1726, %v1658, 0
      %v1731 = vsel %vm1726, %v1659, 0
      %v1734 = vsel %vm1726, %v1660, 0
      %v1737 = vsel %vm1726, %v1661, 0
      %v1740 = vsel %vm1726, %v1662, 0
      %v1743 = vsel %vm1726, %v1663, 0
      %v1746 = vsel %vm1726, %v1664, 0
      %v1749 = vsel %vm1726, %v1665, 0
      %v1752 = vsel %vm1726, %v1666, 0
      %v1755 = vsel %vm1726, %v1667, 0
      %v1758 = vsel %vm1726, %v1668, 0
      %v1761 = vsel %vm1726, %v1669, 0
      %v1764 = vsel %vm1726, %v1670, 0
      %v1767 = vsel %vm1726, %v1671, 0
      %v1770 = vsel %vm1726, %v1672, 0
      %v1773 = vsel %vm1726, %v1673, 0
      %v1776 = vsel %vm1726, %v1674, 0
      %v1779 = vsel %vm1726, %v1675, 0
      %v1782 = vsel %vm1726, %v1676, 0
      %v1785 = vsel %vm1726, %v1677, 0
      %v1788 = vsel %vm1726, %v1678, 0
      %v1791 = vsel %vm1726, %v1679, 0
      %v1794 = vsel %vm1726, %v1680, 0
      %v1797 = vsel %vm1726, %v1681, 0
      %v1800 = vsel %vm1726, %v1682, 0
      %v1803 = vsel %vm1726, %v1683, 0
      %v1806 = vsel %vm1726, %v1684, 0
      %v1809 = vsel %vm1726, %v1685, 0
      %v1812 = vsel %vm1726, %v1686, 0
      %v1815 = vsel %vm1726, %v1687, 0
      %v1818 = vsel %vm1726, %v1688, 0
      %v1821 = vsel %vm1726, %v1689, 0
      %1823 = vmatpush.bf16.msra.mxu0 0
      %1824 = vmatpush.bf16.msra.mxu0 0
      %1825 = vmatpush.bf16.msra.mxu0 0
      %1826 = vmatpush.bf16.msra.mxu0 0
      %1827 = vmatpush.bf16.msra.mxu0 %v1721
      %1828 = vmatpush.bf16.msra.mxu0 %v1720
      %1829 = vmatpush.bf16.msra.mxu0 %v1719
      %1830 = vmatpush.bf16.msra.mxu0 %v1718
      %1831 = vmatmul.bf16.gmra.mxu0 %v1728
      %v1832 = vpop.f32.mrf.mxu0
      %v1833 = vadd.f32 %v1700, %v1832
      %v1834 = vpop.f32.mrf.mxu0
      %v1835 = vadd.f32 %v1700, %v1834
      %1836 = vmatmul.bf16.gmra.mxu0 %v1731
      %v1837 = vpop.f32.mrf.mxu0
      %v1838 = vadd.f32 %v1700, %v1837
      %v1839 = vpop.f32.mrf.mxu0
      %v1840 = vadd.f32 %v1700, %v1839
      %1841 = vmatmul.bf16.gmra.mxu0 %v1734
      %v1842 = vpop.f32.mrf.mxu0
      %v1843 = vadd.f32 %v1700, %v1842
      %v1844 = vpop.f32.mrf.mxu0
      %v1845 = vadd.f32 %v1700, %v1844
      %1846 = vmatmul.bf16.gmra.mxu0 %v1737
      %v1847 = vpop.f32.mrf.mxu0
      %v1848 = vadd.f32 %v1700, %v1847
      %v1849 = vpop.f32.mrf.mxu0
      %v1850 = vadd.f32 %v1700, %v1849
      %1851 = vmatmul.bf16.gmra.mxu0 %v1740
      %v1852 = vpop.f32.mrf.mxu0
      %v1853 = vadd.f32 %v1700, %v1852
      %v1854 = vpop.f32.mrf.mxu0
      %v1855 = vadd.f32 %v1700, %v1854
      %1856 = vmatmul.bf16.gmra.mxu0 %v1743
      %v1857 = vpop.f32.mrf.mxu0
      %v1858 = vadd.f32 %v1700, %v1857
      %v1859 = vpop.f32.mrf.mxu0
      %v1860 = vadd.f32 %v1700, %v1859
      %1861 = vmatmul.bf16.gmra.mxu0 %v1746
      %v1862 = vpop.f32.mrf.mxu0
      %v1863 = vadd.f32 %v1700, %v1862
      %v1864 = vpop.f32.mrf.mxu0
      %v1865 = vadd.f32 %v1700, %v1864
      %1866 = vmatmul.bf16.gmra.mxu0 %v1749
      %v1867 = vpop.f32.mrf.mxu0
      %v1868 = vadd.f32 %v1700, %v1867
      %v1869 = vpop.f32.mrf.mxu0
      %v1870 = vadd.f32 %v1700, %v1869
      %1871 = vmatmul.bf16.gmra.mxu0 %v1752
      %v1872 = vpop.f32.mrf.mxu0
      %v1873 = vadd.f32 %v1700, %v1872
      %v1874 = vpop.f32.mrf.mxu0
      %v1875 = vadd.f32 %v1700, %v1874
      %1876 = vmatmul.bf16.gmra.mxu0 %v1755
      %v1877 = vpop.f32.mrf.mxu0
      %v1878 = vadd.f32 %v1700, %v1877
      %v1879 = vpop.f32.mrf.mxu0
      %v1880 = vadd.f32 %v1700, %v1879
      %1881 = vmatmul.bf16.gmra.mxu0 %v1758
      %v1882 = vpop.f32.mrf.mxu0
      %v1883 = vadd.f32 %v1700, %v1882
      %v1884 = vpop.f32.mrf.mxu0
      %v1885 = vadd.f32 %v1700, %v1884
      %1886 = vmatmul.bf16.gmra.mxu0 %v1761
      %v1887 = vpop.f32.mrf.mxu0
      %v1888 = vadd.f32 %v1700, %v1887
      %v1889 = vpop.f32.mrf.mxu0
      %v1890 = vadd.f32 %v1700, %v1889
      %1891 = vmatmul.bf16.gmra.mxu0 %v1764
      %v1892 = vpop.f32.mrf.mxu0
      %v1893 = vadd.f32 %v1700, %v1892
      %v1894 = vpop.f32.mrf.mxu0
      %v1895 = vadd.f32 %v1700, %v1894
      %1896 = vmatmul.bf16.gmra.mxu0 %v1767
      %v1897 = vpop.f32.mrf.mxu0
      %v1898 = vadd.f32 %v1700, %v1897
      %v1899 = vpop.f32.mrf.mxu0
      %v1900 = vadd.f32 %v1700, %v1899
      %1901 = vmatmul.bf16.gmra.mxu0 %v1770
      %v1902 = vpop.f32.mrf.mxu0
      %v1903 = vadd.f32 %v1700, %v1902
      %v1904 = vpop.f32.mrf.mxu0
      %v1905 = vadd.f32 %v1700, %v1904
      %1906 = vmatmul.bf16.gmra.mxu0 %v1773
      %v1907 = vpop.f32.mrf.mxu0
      %v1908 = vadd.f32 %v1700, %v1907
      %v1909 = vpop.f32.mrf.mxu0
      %v1910 = vadd.f32 %v1700, %v1909
      %1911 = vmatmul.bf16.gmra.mxu0 %v1776
      %v1912 = vpop.f32.mrf.mxu0
      %v1913 = vadd.f32 %v1700, %v1912
      %v1914 = vpop.f32.mrf.mxu0
      %v1915 = vadd.f32 %v1700, %v1914
      %1916 = vmatmul.bf16.gmra.mxu0 %v1779
      %v1917 = vpop.f32.mrf.mxu0
      %v1918 = vadd.f32 %v1700, %v1917
      %v1919 = vpop.f32.mrf.mxu0
      %v1920 = vadd.f32 %v1700, %v1919
      %1921 = vmatmul.bf16.gmra.mxu0 %v1782
      %v1922 = vpop.f32.mrf.mxu0
      %v1923 = vadd.f32 %v1700, %v1922
      %v1924 = vpop.f32.mrf.mxu0
      %v1925 = vadd.f32 %v1700, %v1924
      %1926 = vmatmul.bf16.gmra.mxu0 %v1785
      %v1927 = vpop.f32.mrf.mxu0
      %v1928 = vadd.f32 %v1700, %v1927
      %v1929 = vpop.f32.mrf.mxu0
      %v1930 = vadd.f32 %v1700, %v1929
      %1931 = vmatmul.bf16.gmra.mxu0 %v1788
      %v1932 = vpop.f32.mrf.mxu0
      %v1933 = vadd.f32 %v1700, %v1932
      %v1934 = vpop.f32.mrf.mxu0
      %v1935 = vadd.f32 %v1700, %v1934
      %1936 = vmatmul.bf16.gmra.mxu0 %v1791
      %v1937 = vpop.f32.mrf.mxu0
      %v1938 = vadd.f32 %v1700, %v1937
      %v1939 = vpop.f32.mrf.mxu0
      %v1940 = vadd.f32 %v1700, %v1939
      %1941 = vmatmul.bf16.gmra.mxu0 %v1794
      %v1942 = vpop.f32.mrf.mxu0
      %v1943 = vadd.f32 %v1700, %v1942
      %v1944 = vpop.f32.mrf.mxu0
      %v1945 = vadd.f32 %v1700, %v1944
      %1946 = vmatmul.bf16.gmra.mxu0 %v1797
      %v1947 = vpop.f32.mrf.mxu0
      %v1948 = vadd.f32 %v1700, %v1947
      %v1949 = vpop.f32.mrf.mxu0
      %v1950 = vadd.f32 %v1700, %v1949
      %1951 = vmatmul.bf16.gmra.mxu0 %v1800
      %v1952 = vpop.f32.mrf.mxu0
      %v1953 = vadd.f32 %v1700, %v1952
      %v1954 = vpop.f32.mrf.mxu0
      %v1955 = vadd.f32 %v1700, %v1954
      %1956 = vmatmul.bf16.gmra.mxu0 %v1803
      %v1957 = vpop.f32.mrf.mxu0
      %v1958 = vadd.f32 %v1700, %v1957
      %v1959 = vpop.f32.mrf.mxu0
      %v1960 = vadd.f32 %v1700, %v1959
      %1961 = vmatmul.bf16.gmra.mxu0 %v1806
      %v1962 = vpop.f32.mrf.mxu0
      %v1963 = vadd.f32 %v1700, %v1962
      %v1964 = vpop.f32.mrf.mxu0
      %v1965 = vadd.f32 %v1700, %v1964
      %1966 = vmatmul.bf16.gmra.mxu0 %v1809
      %v1967 = vpop.f32.mrf.mxu0
      %v1968 = vadd.f32 %v1700, %v1967
      %v1969 = vpop.f32.mrf.mxu0
      %v1970 = vadd.f32 %v1700, %v1969
      %1971 = vmatmul.bf16.gmra.mxu0 %v1812
      %v1972 = vpop.f32.mrf.mxu0
      %v1973 = vadd.f32 %v1700, %v1972
      %v1974 = vpop.f32.mrf.mxu0
      %v1975 = vadd.f32 %v1700, %v1974
      %1976 = vmatmul.bf16.gmra.mxu0 %v1815
      %v1977 = vpop.f32.mrf.mxu0
      %v1978 = vadd.f32 %v1700, %v1977
      %v1979 = vpop.f32.mrf.mxu0
      %v1980 = vadd.f32 %v1700, %v1979
      %1981 = vmatmul.bf16.gmra.mxu0 %v1818
      %v1982 = vpop.f32.mrf.mxu0
      %v1983 = vadd.f32 %v1700, %v1982
      %v1984 = vpop.f32.mrf.mxu0
      %v1985 = vadd.f32 %v1700, %v1984
      %1986 = vmatmul.bf16.gmra.mxu0 %v1821
      %v1987 = vpop.f32.mrf.mxu0
      %v1988 = vadd.f32 %v1700, %v1987
      %v1989 = vpop.f32.mrf.mxu0
      %v1990 = vadd.f32 %v1700, %v1989
      %1991 = vdwg.mxu0
      %v1992 = vmax.f32 %v1833, 0.0
      %v1993 = vmax.f32 %v1835, 0.0
      %v1994 = vmax.f32 %v1838, 0.0
      %v1995 = vmax.f32 %v1840, 0.0
      %v1996 = vmax.f32 %v1843, 0.0
      %v1997 = vmax.f32 %v1845, 0.0
      %v1998 = vmax.f32 %v1848, 0.0
      %v1999 = vmax.f32 %v1850, 0.0
      %v2000 = vmax.f32 %v1853, 0.0
      %v2001 = vmax.f32 %v1855, 0.0
      %v2002 = vmax.f32 %v1858, 0.0
      %v2003 = vmax.f32 %v1860, 0.0
      %v2004 = vmax.f32 %v1863, 0.0
      %v2005 = vmax.f32 %v1865, 0.0
      %v2006 = vmax.f32 %v1868, 0.0
      %v2007 = vmax.f32 %v1870, 0.0
      %v2008 = vmax.f32 %v1873, 0.0
      %v2009 = vmax.f32 %v1875, 0.0
      %v2010 = vmax.f32 %v1878, 0.0
      %v2011 = vmax.f32 %v1880, 0.0
      %v2012 = vmax.f32 %v1883, 0.0
      %v2013 = vmax.f32 %v1885, 0.0
      %v2014 = vmax.f32 %v1888, 0.0
      %v2015 = vmax.f32 %v1890, 0.0
      %v2016 = vmax.f32 %v1893, 0.0
      %v2017 = vmax.f32 %v1895, 0.0
      %v2018 = vmax.f32 %v1898, 0.0
      %v2019 = vmax.f32 %v1900, 0.0
      %v2020 = vmax.f32 %v1903, 0.0
      %v2021 = vmax.f32 %v1905, 0.0
      %v2022 = vmax.f32 %v1908, 0.0
      %v2023 = vmax.f32 %v1910, 0.0
      %v2024 = vmax.f32 %v1913, 0.0
      %v2025 = vmax.f32 %v1915, 0.0
      %v2026 = vmax.f32 %v1918, 0.0
      %v2027 = vmax.f32 %v1920, 0.0
      %v2028 = vmax.f32 %v1923, 0.0
      %v2029 = vmax.f32 %v1925, 0.0
      %v2030 = vmax.f32 %v1928, 0.0
      %v2031 = vmax.f32 %v1930, 0.0
      %v2032 = vmax.f32 %v1933, 0.0
      %v2033 = vmax.f32 %v1935, 0.0
      %v2034 = vmax.f32 %v1938, 0.0
      %v2035 = vmax.f32 %v1940, 0.0
      %v2036 = vmax.f32 %v1943, 0.0
      %v2037 = vmax.f32 %v1945, 0.0
      %v2038 = vmax.f32 %v1948, 0.0
      %v2039 = vmax.f32 %v1950, 0.0
      %v2040 = vmax.f32 %v1953, 0.0
      %v2041 = vmax.f32 %v1955, 0.0
      %v2042 = vmax.f32 %v1958, 0.0
      %v2043 = vmax.f32 %v1960, 0.0
      %v2044 = vmax.f32 %v1963, 0.0
      %v2045 = vmax.f32 %v1965, 0.0
      %v2046 = vmax.f32 %v1968, 0.0
      %v2047 = vmax.f32 %v1970, 0.0
      %v2048 = vmax.f32 %v1973, 0.0
      %v2049 = vmax.f32 %v1975, 0.0
      %v2050 = vmax.f32 %v1978, 0.0
      %v2051 = vmax.f32 %v1980, 0.0
      %v2052 = vmax.f32 %v1983, 0.0
      %v2053 = vmax.f32 %v1985, 0.0
      %v2054 = vmax.f32 %v1988, 0.0
      %v2055 = vmax.f32 %v1990, 0.0
      %v2056 = vpack.c.bf16 %v1993, %v1992
      %v2057 = vpack.c.bf16 %v1995, %v1994
      %v2058 = vpack.c.bf16 %v1997, %v1996
      %v2059 = vpack.c.bf16 %v1999, %v1998
      %v2060 = vpack.c.bf16 %v2001, %v2000
      %v2061 = vpack.c.bf16 %v2003, %v2002
      %v2062 = vpack.c.bf16 %v2005, %v2004
      %v2063 = vpack.c.bf16 %v2007, %v2006
      %v2064 = vpack.c.bf16 %v2009, %v2008
      %v2065 = vpack.c.bf16 %v2011, %v2010
      %v2066 = vpack.c.bf16 %v2013, %v2012
      %v2067 = vpack.c.bf16 %v2015, %v2014
      %v2068 = vpack.c.bf16 %v2017, %v2016
      %v2069 = vpack.c.bf16 %v2019, %v2018
      %v2070 = vpack.c.bf16 %v2021, %v2020
      %v2071 = vpack.c.bf16 %v2023, %v2022
      %v2072 = vpack.c.bf16 %v2025, %v2024
      %v2073 = vpack.c.bf16 %v2027, %v2026
      %v2074 = vpack.c.bf16 %v2029, %v2028
      %v2075 = vpack.c.bf16 %v2031, %v2030
      %v2076 = vpack.c.bf16 %v2033, %v2032
      %v2077 = vpack.c.bf16 %v2035, %v2034
      %v2078 = vpack.c.bf16 %v2037, %v2036
      %v2079 = vpack.c.bf16 %v2039, %v2038
      %v2080 = vpack.c.bf16 %v2041, %v2040
      %v2081 = vpack.c.bf16 %v2043, %v2042
      %v2082 = vpack.c.bf16 %v2045, %v2044
      %v2083 = vpack.c.bf16 %v2047, %v2046
      %v2084 = vpack.c.bf16 %v2049, %v2048
      %v2085 = vpack.c.bf16 %v2051, %v2050
      %v2086 = vpack.c.bf16 %v2053, %v2052
      %v2087 = vpack.c.bf16 %v2055, %v2054
      %v2088 = vld [vmem:[%s5] sm:$0xff]
      %v2089 = vld [vmem:[%s5 + $0x8] sm:$0xff]
      %v2090 = vld [vmem:[%s5 + $0x10] sm:$0xff]
      %v2091 = vld [vmem:[%s5 + $0x18] sm:$0xff]
      %v2092 = vld [vmem:[%s5 + $0x20] sm:$0xff]
      %v2093 = vld [vmem:[%s5 + $0x28] sm:$0xff]
      %v2094 = vld [vmem:[%s5 + $0x30] sm:$0xff]
      %v2095 = vld [vmem:[%s5 + $0x38] sm:$0xff]
      %v2096 = vld [vmem:[%s5 + $0x40] sm:$0xff]
      %v2097 = vld [vmem:[%s5 + $0x48] sm:$0xff]
      %v2098 = vld [vmem:[%s5 + $0x50] sm:$0xff]
      %v2099 = vld [vmem:[%s5 + $0x58] sm:$0xff]
      %v2100 = vld [vmem:[%s5 + $0x60] sm:$0xff]
      %v2101 = vld [vmem:[%s5 + $0x68] sm:$0xff]
      %v2102 = vld [vmem:[%s5 + $0x70] sm:$0xff]
      %v2103 = vld [vmem:[%s5 + $0x78] sm:$0xff]
      %v2104 = vld [vmem:[%s5 + $0x80] sm:$0xff]
      %v2105 = vld [vmem:[%s5 + $0x88] sm:$0xff]
      %v2106 = vld [vmem:[%s5 + $0x90] sm:$0xff]
      %v2107 = vld [vmem:[%s5 + $0x98] sm:$0xff]
      %v2108 = vld [vmem:[%s5 + $0xa0] sm:$0xff]
      %v2109 = vld [vmem:[%s5 + $0xa8] sm:$0xff]
      %v2110 = vld [vmem:[%s5 + $0xb0] sm:$0xff]
      %v2111 = vld [vmem:[%s5 + $0xb8] sm:$0xff]
      %v2112 = vld [vmem:[%s5 + $0xc0] sm:$0xff]
      %v2113 = vld [vmem:[%s5 + $0xc8] sm:$0xff]
      %v2114 = vld [vmem:[%s5 + $0xd0] sm:$0xff]
      %v2115 = vld [vmem:[%s5 + $0xd8] sm:$0xff]
      %v2116 = vld [vmem:[%s5 + $0xe0] sm:$0xff]
      %v2117 = vld [vmem:[%s5 + $0xe8] sm:$0xff]
      %v2118 = vld [vmem:[%s5 + $0xf0] sm:$0xff]
      %v2119 = vld [vmem:[%s5 + $0xf8] sm:$0xff]
      %v2120 = vld [vmem:[%s5 + $0x100] sm:$0xff]
      %v2121 = vld [vmem:[%s5 + $0x108] sm:$0xff]
      %v2122 = vld [vmem:[%s5 + $0x110] sm:$0xff]
      %v2123 = vld [vmem:[%s5 + $0x118] sm:$0xff]
      %v2124 = vld [vmem:[%s5 + $0x120] sm:$0xff]
      %v2125 = vld [vmem:[%s5 + $0x128] sm:$0xff]
      %v2126 = vld [vmem:[%s5 + $0x130] sm:$0xff]
      %v2127 = vld [vmem:[%s5 + $0x138] sm:$0xff]
      %v2128 = vld [vmem:[%s5 + $0x140] sm:$0xff]
      %v2129 = vld [vmem:[%s5 + $0x148] sm:$0xff]
      %v2130 = vld [vmem:[%s5 + $0x150] sm:$0xff]
      %v2131 = vld [vmem:[%s5 + $0x158] sm:$0xff]
      %v2132 = vld [vmem:[%s5 + $0x160] sm:$0xff]
      %v2133 = vld [vmem:[%s5 + $0x168] sm:$0xff]
      %v2134 = vld [vmem:[%s5 + $0x170] sm:$0xff]
      %v2135 = vld [vmem:[%s5 + $0x178] sm:$0xff]
      %v2136 = vld [vmem:[%s5 + $0x180] sm:$0xff]
      %v2137 = vld [vmem:[%s5 + $0x188] sm:$0xff]
      %v2138 = vld [vmem:[%s5 + $0x190] sm:$0xff]
      %v2139 = vld [vmem:[%s5 + $0x198] sm:$0xff]
      %v2140 = vld [vmem:[%s5 + $0x1a0] sm:$0xff]
      %v2141 = vld [vmem:[%s5 + $0x1a8] sm:$0xff]
      %v2142 = vld [vmem:[%s5 + $0x1b0] sm:$0xff]
      %v2143 = vld [vmem:[%s5 + $0x1b8] sm:$0xff]
      %v2144 = vld [vmem:[%s5 + $0x1c0] sm:$0xff]
      %v2145 = vld [vmem:[%s5 + $0x1c8] sm:$0xff]
      %v2146 = vld [vmem:[%s5 + $0x1d0] sm:$0xff]
      %v2147 = vld [vmem:[%s5 + $0x1d8] sm:$0xff]
      %v2148 = vld [vmem:[%s5 + $0x1e0] sm:$0xff]
      %v2149 = vld [vmem:[%s5 + $0x1e8] sm:$0xff]
      %v2150 = vld [vmem:[%s5 + $0x1f0] sm:$0xff]
      %v2151 = vld [vmem:[%s5 + $0x1f8] sm:$0xff]
      %v2152 = vld [vmem:[%s6] sm:$0xff]
      %v2154 = vperm.slane %v2152, 0
      %v2155 = vperm.slane %v2152, 1
      %v2156 = vperm.slane %v2152, 2
      %v2157 = vperm.slane %v2152, 3
      %v2158 = vperm.slane %v2152, 4
      %v2159 = vperm.slane %v2152, 5
      %v2160 = vperm.slane %v2152, 6
      %v2161 = vperm.slane %v2152, 7
      %v2234 = vunpack.c.l.b16 %v2088
      %v2235 = vunpack.c.h.b16 %v2088
      %v2236 = vunpack.c.l.b16 %v2089
      %v2237 = vunpack.c.h.b16 %v2089
      %v2238 = vunpack.c.l.b16 %v2090
      %v2239 = vunpack.c.h.b16 %v2090
      %v2240 = vunpack.c.l.b16 %v2091
      %v2241 = vunpack.c.h.b16 %v2091
      %v2242 = vunpack.c.l.b16 %v2092
      %v2243 = vunpack.c.h.b16 %v2092
      %v2244 = vunpack.c.l.b16 %v2093
      %v2245 = vunpack.c.h.b16 %v2093
      %v2246 = vunpack.c.l.b16 %v2094
      %v2247 = vunpack.c.h.b16 %v2094
      %v2248 = vunpack.c.l.b16 %v2095
      %v2249 = vunpack.c.h.b16 %v2095
      %v2250 = vunpack.c.l.b16 %v2096
      %v2251 = vunpack.c.h.b16 %v2096
      %v2252 = vunpack.c.l.b16 %v2097
      %v2253 = vunpack.c.h.b16 %v2097
      %v2254 = vunpack.c.l.b16 %v2098
      %v2255 = vunpack.c.h.b16 %v2098
      %v2256 = vunpack.c.l.b16 %v2099
      %v2257 = vunpack.c.h.b16 %v2099
      %v2258 = vunpack.c.l.b16 %v2100
      %v2259 = vunpack.c.h.b16 %v2100
      %v2260 = vunpack.c.l.b16 %v2101
      %v2261 = vunpack.c.h.b16 %v2101
      %v2262 = vunpack.c.l.b16 %v2102
      %v2263 = vunpack.c.h.b16 %v2102
      %v2264 = vunpack.c.l.b16 %v2103
      %v2265 = vunpack.c.h.b16 %v2103
      %v2266 = vunpack.c.l.b16 %v2104
      %v2267 = vunpack.c.h.b16 %v2104
      %v2268 = vunpack.c.l.b16 %v2105
      %v2269 = vunpack.c.h.b16 %v2105
      %v2270 = vunpack.c.l.b16 %v2106
      %v2271 = vunpack.c.h.b16 %v2106
      %v2272 = vunpack.c.l.b16 %v2107
      %v2273 = vunpack.c.h.b16 %v2107
      %v2274 = vunpack.c.l.b16 %v2108
      %v2275 = vunpack.c.h.b16 %v2108
      %v2276 = vunpack.c.l.b16 %v2109
      %v2277 = vunpack.c.h.b16 %v2109
      %v2278 = vunpack.c.l.b16 %v2110
      %v2279 = vunpack.c.h.b16 %v2110
      %v2280 = vunpack.c.l.b16 %v2111
      %v2281 = vunpack.c.h.b16 %v2111
      %v2282 = vunpack.c.l.b16 %v2112
      %v2283 = vunpack.c.h.b16 %v2112
      %v2284 = vunpack.c.l.b16 %v2113
      %v2285 = vunpack.c.h.b16 %v2113
      %v2286 = vunpack.c.l.b16 %v2114
      %v2287 = vunpack.c.h.b16 %v2114
      %v2288 = vunpack.c.l.b16 %v2115
      %v2289 = vunpack.c.h.b16 %v2115
      %v2290 = vunpack.c.l.b16 %v2116
      %v2291 = vunpack.c.h.b16 %v2116
      %v2292 = vunpack.c.l.b16 %v2117
      %v2293 = vunpack.c.h.b16 %v2117
      %v2294 = vunpack.c.l.b16 %v2118
      %v2295 = vunpack.c.h.b16 %v2118
      %v2296 = vunpack.c.l.b16 %v2119
      %v2297 = vunpack.c.h.b16 %v2119
      %v2298 = vunpack.c.l.b16 %v2120
      %v2299 = vunpack.c.h.b16 %v2120
      %v2300 = vunpack.c.l.b16 %v2121
      %v2301 = vunpack.c.h.b16 %v2121
      %v2302 = vunpack.c.l.b16 %v2122
      %v2303 = vunpack.c.h.b16 %v2122
      %v2304 = vunpack.c.l.b16 %v2123
      %v2305 = vunpack.c.h.b16 %v2123
      %v2306 = vunpack.c.l.b16 %v2124
      %v2307 = vunpack.c.h.b16 %v2124
      %v2308 = vunpack.c.l.b16 %v2125
      %v2309 = vunpack.c.h.b16 %v2125
      %v2310 = vunpack.c.l.b16 %v2126
      %v2311 = vunpack.c.h.b16 %v2126
      %v2312 = vunpack.c.l.b16 %v2127
      %v2313 = vunpack.c.h.b16 %v2127
      %v2314 = vunpack.c.l.b16 %v2128
      %v2315 = vunpack.c.h.b16 %v2128
      %v2316 = vunpack.c.l.b16 %v2129
      %v2317 = vunpack.c.h.b16 %v2129
      %v2318 = vunpack.c.l.b16 %v2130
      %v2319 = vunpack.c.h.b16 %v2130
      %v2320 = vunpack.c.l.b16 %v2131
      %v2321 = vunpack.c.h.b16 %v2131
      %v2322 = vunpack.c.l.b16 %v2132
      %v2323 = vunpack.c.h.b16 %v2132
      %v2324 = vunpack.c.l.b16 %v2133
      %v2325 = vunpack.c.h.b16 %v2133
      %v2326 = vunpack.c.l.b16 %v2134
      %v2327 = vunpack.c.h.b16 %v2134
      %v2328 = vunpack.c.l.b16 %v2135
      %v2329 = vunpack.c.h.b16 %v2135
      %v2330 = vunpack.c.l.b16 %v2136
      %v2331 = vunpack.c.h.b16 %v2136
      %v2332 = vunpack.c.l.b16 %v2137
      %v2333 = vunpack.c.h.b16 %v2137
      %v2334 = vunpack.c.l.b16 %v2138
      %v2335 = vunpack.c.h.b16 %v2138
      %v2336 = vunpack.c.l.b16 %v2139
      %v2337 = vunpack.c.h.b16 %v2139
      %v2338 = vunpack.c.l.b16 %v2140
      %v2339 = vunpack.c.h.b16 %v2140
      %v2340 = vunpack.c.l.b16 %v2141
      %v2341 = vunpack.c.h.b16 %v2141
      %v2342 = vunpack.c.l.b16 %v2142
      %v2343 = vunpack.c.h.b16 %v2142
      %v2344 = vunpack.c.l.b16 %v2143
      %v2345 = vunpack.c.h.b16 %v2143
      %v2346 = vunpack.c.l.b16 %v2144
      %v2347 = vunpack.c.h.b16 %v2144
      %v2348 = vunpack.c.l.b16 %v2145
      %v2349 = vunpack.c.h.b16 %v2145
      %v2350 = vunpack.c.l.b16 %v2146
      %v2351 = vunpack.c.h.b16 %v2146
      %v2352 = vunpack.c.l.b16 %v2147
      %v2353 = vunpack.c.h.b16 %v2147
      %v2354 = vunpack.c.l.b16 %v2148
      %v2355 = vunpack.c.h.b16 %v2148
      %v2356 = vunpack.c.l.b16 %v2149
      %v2357 = vunpack.c.h.b16 %v2149
      %v2358 = vunpack.c.l.b16 %v2150
      %v2359 = vunpack.c.h.b16 %v2150
      %v2360 = vunpack.c.l.b16 %v2151
      %v2361 = vunpack.c.h.b16 %v2151
      %v2362 = vpack.c.b16 %v2242, %v2234
      %v2363 = vpack.c.b16 %v2243, %v2235
      %v2364 = vpack.c.b16 %v2244, %v2236
      %v2365 = vpack.c.b16 %v2245, %v2237
      %v2366 = vpack.c.b16 %v2246, %v2238
      %v2367 = vpack.c.b16 %v2247, %v2239
      %v2368 = vpack.c.b16 %v2248, %v2240
      %v2369 = vpack.c.b16 %v2249, %v2241
      %v2370 = vpack.c.b16 %v2258, %v2250
      %v2371 = vpack.c.b16 %v2259, %v2251
      %v2372 = vpack.c.b16 %v2260, %v2252
      %v2373 = vpack.c.b16 %v2261, %v2253
      %v2374 = vpack.c.b16 %v2262, %v2254
      %v2375 = vpack.c.b16 %v2263, %v2255
      %v2376 = vpack.c.b16 %v2264, %v2256
      %v2377 = vpack.c.b16 %v2265, %v2257
      %v2378 = vpack.c.b16 %v2274, %v2266
      %v2379 = vpack.c.b16 %v2275, %v2267
      %v2380 = vpack.c.b16 %v2276, %v2268
      %v2381 = vpack.c.b16 %v2277, %v2269
      %v2382 = vpack.c.b16 %v2278, %v2270
      %v2383 = vpack.c.b16 %v2279, %v2271
      %v2384 = vpack.c.b16 %v2280, %v2272
      %v2385 = vpack.c.b16 %v2281, %v2273
      %v2386 = vpack.c.b16 %v2290, %v2282
      %v2387 = vpack.c.b16 %v2291, %v2283
      %v2388 = vpack.c.b16 %v2292, %v2284
      %v2389 = vpack.c.b16 %v2293, %v2285
      %v2390 = vpack.c.b16 %v2294, %v2286
      %v2391 = vpack.c.b16 %v2295, %v2287
      %v2392 = vpack.c.b16 %v2296, %v2288
      %v2393 = vpack.c.b16 %v2297, %v2289
      %v2394 = vpack.c.b16 %v2306, %v2298
      %v2395 = vpack.c.b16 %v2307, %v2299
      %v2396 = vpack.c.b16 %v2308, %v2300
      %v2397 = vpack.c.b16 %v2309, %v2301
      %v2398 = vpack.c.b16 %v2310, %v2302
      %v2399 = vpack.c.b16 %v2311, %v2303
      %v2400 = vpack.c.b16 %v2312, %v2304
      %v2401 = vpack.c.b16 %v2313, %v2305
      %v2402 = vpack.c.b16 %v2322, %v2314
      %v2403 = vpack.c.b16 %v2323, %v2315
      %v2404 = vpack.c.b16 %v2324, %v2316
      %v2405 = vpack.c.b16 %v2325, %v2317
      %v2406 = vpack.c.b16 %v2326, %v2318
      %v2407 = vpack.c.b16 %v2327, %v2319
      %v2408 = vpack.c.b16 %v2328, %v2320
      %v2409 = vpack.c.b16 %v2329, %v2321
      %v2410 = vpack.c.b16 %v2338, %v2330
      %v2411 = vpack.c.b16 %v2339, %v2331
      %v2412 = vpack.c.b16 %v2340, %v2332
      %v2413 = vpack.c.b16 %v2341, %v2333
      %v2414 = vpack.c.b16 %v2342, %v2334
      %v2415 = vpack.c.b16 %v2343, %v2335
      %v2416 = vpack.c.b16 %v2344, %v2336
      %v2417 = vpack.c.b16 %v2345, %v2337
      %v2418 = vpack.c.b16 %v2354, %v2346
      %v2419 = vpack.c.b16 %v2355, %v2347
      %v2420 = vpack.c.b16 %v2356, %v2348
      %v2421 = vpack.c.b16 %v2357, %v2349
      %v2422 = vpack.c.b16 %v2358, %v2350
      %v2423 = vpack.c.b16 %v2359, %v2351
      %v2424 = vpack.c.b16 %v2360, %v2352
      %v2425 = vpack.c.b16 %v2361, %v2353
      %2490 = vmatpush.bf16.msra.mxu0 %v2418
      %2491 = vmatpush.bf16.msra.mxu0 %v2410
      %2492 = vmatpush.bf16.msra.mxu0 %v2402
      %2493 = vmatpush.bf16.msra.mxu0 %v2394
      %2494 = vmatpush.bf16.msra.mxu0 %v2386
      %2495 = vmatpush.bf16.msra.mxu0 %v2378
      %2496 = vmatpush.bf16.msra.mxu0 %v2370
      %2497 = vmatpush.bf16.msra.mxu0 %v2362
      %2498 = vmatmul.bf16.gmra.mxu0 %v2056
      %v2499 = vpop.f32.mrf.mxu0
      %v2500 = vadd.f32 %v2154, %v2499
      %v2501 = vpop.f32.mrf.mxu0
      %v2502 = vadd.f32 %v2154, %v2501
      %2503 = vmatmul.bf16.gmra.mxu0 %v2057
      %v2504 = vpop.f32.mrf.mxu0
      %v2505 = vadd.f32 %v2154, %v2504
      %v2506 = vpop.f32.mrf.mxu0
      %v2507 = vadd.f32 %v2154, %v2506
      %2508 = vmatmul.bf16.gmra.mxu0 %v2058
      %v2509 = vpop.f32.mrf.mxu0
      %v2510 = vadd.f32 %v2154, %v2509
      %v2511 = vpop.f32.mrf.mxu0
      %v2512 = vadd.f32 %v2154, %v2511
      %2513 = vmatmul.bf16.gmra.mxu0 %v2059
      %v2514 = vpop.f32.mrf.mxu0
      %v2515 = vadd.f32 %v2154, %v2514
      %v2516 = vpop.f32.mrf.mxu0
      %v2517 = vadd.f32 %v2154, %v2516
      %2518 = vmatmul.bf16.gmra.mxu0 %v2060
      %v2519 = vpop.f32.mrf.mxu0
      %v2520 = vadd.f32 %v2154, %v2519
      %v2521 = vpop.f32.mrf.mxu0
      %v2522 = vadd.f32 %v2154, %v2521
      %2523 = vmatmul.bf16.gmra.mxu0 %v2061
      %v2524 = vpop.f32.mrf.mxu0
      %v2525 = vadd.f32 %v2154, %v2524
      %v2526 = vpop.f32.mrf.mxu0
      %v2527 = vadd.f32 %v2154, %v2526
      %2528 = vmatmul.bf16.gmra.mxu0 %v2062
      %v2529 = vpop.f32.mrf.mxu0
      %v2530 = vadd.f32 %v2154, %v2529
      %v2531 = vpop.f32.mrf.mxu0
      %v2532 = vadd.f32 %v2154, %v2531
      %2533 = vmatmul.bf16.gmra.mxu0 %v2063
      %v2534 = vpop.f32.mrf.mxu0
      %v2535 = vadd.f32 %v2154, %v2534
      %v2536 = vpop.f32.mrf.mxu0
      %v2537 = vadd.f32 %v2154, %v2536
      %2538 = vmatmul.bf16.gmra.mxu0 %v2064
      %v2539 = vpop.f32.mrf.mxu0
      %v2540 = vadd.f32 %v2154, %v2539
      %v2541 = vpop.f32.mrf.mxu0
      %v2542 = vadd.f32 %v2154, %v2541
      %2543 = vmatmul.bf16.gmra.mxu0 %v2065
      %v2544 = vpop.f32.mrf.mxu0
      %v2545 = vadd.f32 %v2154, %v2544
      %v2546 = vpop.f32.mrf.mxu0
      %v2547 = vadd.f32 %v2154, %v2546
      %2548 = vmatmul.bf16.gmra.mxu0 %v2066
      %v2549 = vpop.f32.mrf.mxu0
      %v2550 = vadd.f32 %v2154, %v2549
      %v2551 = vpop.f32.mrf.mxu0
      %v2552 = vadd.f32 %v2154, %v2551
      %2553 = vmatmul.bf16.gmra.mxu0 %v2067
      %v2554 = vpop.f32.mrf.mxu0
      %v2555 = vadd.f32 %v2154, %v2554
      %v2556 = vpop.f32.mrf.mxu0
      %v2557 = vadd.f32 %v2154, %v2556
      %2558 = vmatmul.bf16.gmra.mxu0 %v2068
      %v2559 = vpop.f32.mrf.mxu0
      %v2560 = vadd.f32 %v2154, %v2559
      %v2561 = vpop.f32.mrf.mxu0
      %v2562 = vadd.f32 %v2154, %v2561
      %2563 = vmatmul.bf16.gmra.mxu0 %v2069
      %v2564 = vpop.f32.mrf.mxu0
      %v2565 = vadd.f32 %v2154, %v2564
      %v2566 = vpop.f32.mrf.mxu0
      %v2567 = vadd.f32 %v2154, %v2566
      %2568 = vmatmul.bf16.gmra.mxu0 %v2070
      %v2569 = vpop.f32.mrf.mxu0
      %v2570 = vadd.f32 %v2154, %v2569
      %v2571 = vpop.f32.mrf.mxu0
      %v2572 = vadd.f32 %v2154, %v2571
      %2573 = vmatmul.bf16.gmra.mxu0 %v2071
      %v2574 = vpop.f32.mrf.mxu0
      %v2575 = vadd.f32 %v2154, %v2574
      %v2576 = vpop.f32.mrf.mxu0
      %v2577 = vadd.f32 %v2154, %v2576
      %2578 = vmatmul.bf16.gmra.mxu0 %v2072
      %v2579 = vpop.f32.mrf.mxu0
      %v2580 = vadd.f32 %v2154, %v2579
      %v2581 = vpop.f32.mrf.mxu0
      %v2582 = vadd.f32 %v2154, %v2581
      %2583 = vmatmul.bf16.gmra.mxu0 %v2073
      %v2584 = vpop.f32.mrf.mxu0
      %v2585 = vadd.f32 %v2154, %v2584
      %v2586 = vpop.f32.mrf.mxu0
      %v2587 = vadd.f32 %v2154, %v2586
      %2588 = vmatmul.bf16.gmra.mxu0 %v2074
      %v2589 = vpop.f32.mrf.mxu0
      %v2590 = vadd.f32 %v2154, %v2589
      %v2591 = vpop.f32.mrf.mxu0
      %v2592 = vadd.f32 %v2154, %v2591
      %2593 = vmatmul.bf16.gmra.mxu0 %v2075
      %v2594 = vpop.f32.mrf.mxu0
      %v2595 = vadd.f32 %v2154, %v2594
      %v2596 = vpop.f32.mrf.mxu0
      %v2597 = vadd.f32 %v2154, %v2596
      %2598 = vmatmul.bf16.gmra.mxu0 %v2076
      %v2599 = vpop.f32.mrf.mxu0
      %v2600 = vadd.f32 %v2154, %v2599
      %v2601 = vpop.f32.mrf.mxu0
      %v2602 = vadd.f32 %v2154, %v2601
      %2603 = vmatmul.bf16.gmra.mxu0 %v2077
      %v2604 = vpop.f32.mrf.mxu0
      %v2605 = vadd.f32 %v2154, %v2604
      %v2606 = vpop.f32.mrf.mxu0
      %v2607 = vadd.f32 %v2154, %v2606
      %2608 = vmatmul.bf16.gmra.mxu0 %v2078
      %v2609 = vpop.f32.mrf.mxu0
      %v2610 = vadd.f32 %v2154, %v2609
      %v2611 = vpop.f32.mrf.mxu0
      %v2612 = vadd.f32 %v2154, %v2611
      %2613 = vmatmul.bf16.gmra.mxu0 %v2079
      %v2614 = vpop.f32.mrf.mxu0
      %v2615 = vadd.f32 %v2154, %v2614
      %v2616 = vpop.f32.mrf.mxu0
      %v2617 = vadd.f32 %v2154, %v2616
      %2618 = vmatmul.bf16.gmra.mxu0 %v2080
      %v2619 = vpop.f32.mrf.mxu0
      %v2620 = vadd.f32 %v2154, %v2619
      %v2621 = vpop.f32.mrf.mxu0
      %v2622 = vadd.f32 %v2154, %v2621
      %2623 = vmatmul.bf16.gmra.mxu0 %v2081
      %v2624 = vpop.f32.mrf.mxu0
      %v2625 = vadd.f32 %v2154, %v2624
      %v2626 = vpop.f32.mrf.mxu0
      %v2627 = vadd.f32 %v2154, %v2626
      %2628 = vmatmul.bf16.gmra.mxu0 %v2082
      %v2629 = vpop.f32.mrf.mxu0
      %v2630 = vadd.f32 %v2154, %v2629
      %v2631 = vpop.f32.mrf.mxu0
      %v2632 = vadd.f32 %v2154, %v2631
      %2633 = vmatmul.bf16.gmra.mxu0 %v2083
      %v2634 = vpop.f32.mrf.mxu0
      %v2635 = vadd.f32 %v2154, %v2634
      %v2636 = vpop.f32.mrf.mxu0
      %v2637 = vadd.f32 %v2154, %v2636
      %2638 = vmatmul.bf16.gmra.mxu0 %v2084
      %v2639 = vpop.f32.mrf.mxu0
      %v2640 = vadd.f32 %v2154, %v2639
      %v2641 = vpop.f32.mrf.mxu0
      %v2642 = vadd.f32 %v2154, %v2641
      %2643 = vmatmul.bf16.gmra.mxu0 %v2085
      %v2644 = vpop.f32.mrf.mxu0
      %v2645 = vadd.f32 %v2154, %v2644
      %v2646 = vpop.f32.mrf.mxu0
      %v2647 = vadd.f32 %v2154, %v2646
      %2648 = vmatmul.bf16.gmra.mxu0 %v2086
      %v2649 = vpop.f32.mrf.mxu0
      %v2650 = vadd.f32 %v2154, %v2649
      %v2651 = vpop.f32.mrf.mxu0
      %v2652 = vadd.f32 %v2154, %v2651
      %2653 = vmatmul.bf16.gmra.mxu0 %v2087
      %v2654 = vpop.f32.mrf.mxu0
      %v2655 = vadd.f32 %v2154, %v2654
      %v2656 = vpop.f32.mrf.mxu0
      %v2657 = vadd.f32 %v2154, %v2656
      %2658 = vdwg.mxu0
      %2659 = vmatpush.bf16.msra.mxu0 %v2419
      %2660 = vmatpush.bf16.msra.mxu0 %v2411
      %2661 = vmatpush.bf16.msra.mxu0 %v2403
      %2662 = vmatpush.bf16.msra.mxu0 %v2395
      %2663 = vmatpush.bf16.msra.mxu0 %v2387
      %2664 = vmatpush.bf16.msra.mxu0 %v2379
      %2665 = vmatpush.bf16.msra.mxu0 %v2371
      %2666 = vmatpush.bf16.msra.mxu0 %v2363
      %2667 = vmatmul.bf16.gmra.mxu0 %v2056
      %v2668 = vpop.f32.mrf.mxu0
      %v2669 = vadd.f32 %v2155, %v2668
      %v2670 = vpop.f32.mrf.mxu0
      %v2671 = vadd.f32 %v2155, %v2670
      %2672 = vmatmul.bf16.gmra.mxu0 %v2057
      %v2673 = vpop.f32.mrf.mxu0
      %v2674 = vadd.f32 %v2155, %v2673
      %v2675 = vpop.f32.mrf.mxu0
      %v2676 = vadd.f32 %v2155, %v2675
      %2677 = vmatmul.bf16.gmra.mxu0 %v2058
      %v2678 = vpop.f32.mrf.mxu0
      %v2679 = vadd.f32 %v2155, %v2678
      %v2680 = vpop.f32.mrf.mxu0
      %v2681 = vadd.f32 %v2155, %v2680
      %2682 = vmatmul.bf16.gmra.mxu0 %v2059
      %v2683 = vpop.f32.mrf.mxu0
      %v2684 = vadd.f32 %v2155, %v2683
      %v2685 = vpop.f32.mrf.mxu0
      %v2686 = vadd.f32 %v2155, %v2685
      %2687 = vmatmul.bf16.gmra.mxu0 %v2060
      %v2688 = vpop.f32.mrf.mxu0
      %v2689 = vadd.f32 %v2155, %v2688
      %v2690 = vpop.f32.mrf.mxu0
      %v2691 = vadd.f32 %v2155, %v2690
      %2692 = vmatmul.bf16.gmra.mxu0 %v2061
      %v2693 = vpop.f32.mrf.mxu0
      %v2694 = vadd.f32 %v2155, %v2693
      %v2695 = vpop.f32.mrf.mxu0
      %v2696 = vadd.f32 %v2155, %v2695
      %2697 = vmatmul.bf16.gmra.mxu0 %v2062
      %v2698 = vpop.f32.mrf.mxu0
      %v2699 = vadd.f32 %v2155, %v2698
      %v2700 = vpop.f32.mrf.mxu0
      %v2701 = vadd.f32 %v2155, %v2700
      %2702 = vmatmul.bf16.gmra.mxu0 %v2063
      %v2703 = vpop.f32.mrf.mxu0
      %v2704 = vadd.f32 %v2155, %v2703
      %v2705 = vpop.f32.mrf.mxu0
      %v2706 = vadd.f32 %v2155, %v2705
      %2707 = vmatmul.bf16.gmra.mxu0 %v2064
      %v2708 = vpop.f32.mrf.mxu0
      %v2709 = vadd.f32 %v2155, %v2708
      %v2710 = vpop.f32.mrf.mxu0
      %v2711 = vadd.f32 %v2155, %v2710
      %2712 = vmatmul.bf16.gmra.mxu0 %v2065
      %v2713 = vpop.f32.mrf.mxu0
      %v2714 = vadd.f32 %v2155, %v2713
      %v2715 = vpop.f32.mrf.mxu0
      %v2716 = vadd.f32 %v2155, %v2715
      %2717 = vmatmul.bf16.gmra.mxu0 %v2066
      %v2718 = vpop.f32.mrf.mxu0
      %v2719 = vadd.f32 %v2155, %v2718
      %v2720 = vpop.f32.mrf.mxu0
      %v2721 = vadd.f32 %v2155, %v2720
      %2722 = vmatmul.bf16.gmra.mxu0 %v2067
      %v2723 = vpop.f32.mrf.mxu0
      %v2724 = vadd.f32 %v2155, %v2723
      %v2725 = vpop.f32.mrf.mxu0
      %v2726 = vadd.f32 %v2155, %v2725
      %2727 = vmatmul.bf16.gmra.mxu0 %v2068
      %v2728 = vpop.f32.mrf.mxu0
      %v2729 = vadd.f32 %v2155, %v2728
      %v2730 = vpop.f32.mrf.mxu0
      %v2731 = vadd.f32 %v2155, %v2730
      %2732 = vmatmul.bf16.gmra.mxu0 %v2069
      %v2733 = vpop.f32.mrf.mxu0
      %v2734 = vadd.f32 %v2155, %v2733
      %v2735 = vpop.f32.mrf.mxu0
      %v2736 = vadd.f32 %v2155, %v2735
      %2737 = vmatmul.bf16.gmra.mxu0 %v2070
      %v2738 = vpop.f32.mrf.mxu0
      %v2739 = vadd.f32 %v2155, %v2738
      %v2740 = vpop.f32.mrf.mxu0
      %v2741 = vadd.f32 %v2155, %v2740
      %2742 = vmatmul.bf16.gmra.mxu0 %v2071
      %v2743 = vpop.f32.mrf.mxu0
      %v2744 = vadd.f32 %v2155, %v2743
      %v2745 = vpop.f32.mrf.mxu0
      %v2746 = vadd.f32 %v2155, %v2745
      %2747 = vmatmul.bf16.gmra.mxu0 %v2072
      %v2748 = vpop.f32.mrf.mxu0
      %v2749 = vadd.f32 %v2155, %v2748
      %v2750 = vpop.f32.mrf.mxu0
      %v2751 = vadd.f32 %v2155, %v2750
      %2752 = vmatmul.bf16.gmra.mxu0 %v2073
      %v2753 = vpop.f32.mrf.mxu0
      %v2754 = vadd.f32 %v2155, %v2753
      %v2755 = vpop.f32.mrf.mxu0
      %v2756 = vadd.f32 %v2155, %v2755
      %2757 = vmatmul.bf16.gmra.mxu0 %v2074
      %v2758 = vpop.f32.mrf.mxu0
      %v2759 = vadd.f32 %v2155, %v2758
      %v2760 = vpop.f32.mrf.mxu0
      %v2761 = vadd.f32 %v2155, %v2760
      %2762 = vmatmul.bf16.gmra.mxu0 %v2075
      %v2763 = vpop.f32.mrf.mxu0
      %v2764 = vadd.f32 %v2155, %v2763
      %v2765 = vpop.f32.mrf.mxu0
      %v2766 = vadd.f32 %v2155, %v2765
      %2767 = vmatmul.bf16.gmra.mxu0 %v2076
      %v2768 = vpop.f32.mrf.mxu0
      %v2769 = vadd.f32 %v2155, %v2768
      %v2770 = vpop.f32.mrf.mxu0
      %v2771 = vadd.f32 %v2155, %v2770
      %2772 = vmatmul.bf16.gmra.mxu0 %v2077
      %v2773 = vpop.f32.mrf.mxu0
      %v2774 = vadd.f32 %v2155, %v2773
      %v2775 = vpop.f32.mrf.mxu0
      %v2776 = vadd.f32 %v2155, %v2775
      %2777 = vmatmul.bf16.gmra.mxu0 %v2078
      %v2778 = vpop.f32.mrf.mxu0
      %v2779 = vadd.f32 %v2155, %v2778
      %v2780 = vpop.f32.mrf.mxu0
      %v2781 = vadd.f32 %v2155, %v2780
      %2782 = vmatmul.bf16.gmra.mxu0 %v2079
      %v2783 = vpop.f32.mrf.mxu0
      %v2784 = vadd.f32 %v2155, %v2783
      %v2785 = vpop.f32.mrf.mxu0
      %v2786 = vadd.f32 %v2155, %v2785
      %2787 = vmatmul.bf16.gmra.mxu0 %v2080
      %v2788 = vpop.f32.mrf.mxu0
      %v2789 = vadd.f32 %v2155, %v2788
      %v2790 = vpop.f32.mrf.mxu0
      %v2791 = vadd.f32 %v2155, %v2790
      %2792 = vmatmul.bf16.gmra.mxu0 %v2081
      %v2793 = vpop.f32.mrf.mxu0
      %v2794 = vadd.f32 %v2155, %v2793
      %v2795 = vpop.f32.mrf.mxu0
      %v2796 = vadd.f32 %v2155, %v2795
      %2797 = vmatmul.bf16.gmra.mxu0 %v2082
      %v2798 = vpop.f32.mrf.mxu0
      %v2799 = vadd.f32 %v2155, %v2798
      %v2800 = vpop.f32.mrf.mxu0
      %v2801 = vadd.f32 %v2155, %v2800
      %2802 = vmatmul.bf16.gmra.mxu0 %v2083
      %v2803 = vpop.f32.mrf.mxu0
      %v2804 = vadd.f32 %v2155, %v2803
      %v2805 = vpop.f32.mrf.mxu0
      %v2806 = vadd.f32 %v2155, %v2805
      %2807 = vmatmul.bf16.gmra.mxu0 %v2084
      %v2808 = vpop.f32.mrf.mxu0
      %v2809 = vadd.f32 %v2155, %v2808
      %v2810 = vpop.f32.mrf.mxu0
      %v2811 = vadd.f32 %v2155, %v2810
      %2812 = vmatmul.bf16.gmra.mxu0 %v2085
      %v2813 = vpop.f32.mrf.mxu0
      %v2814 = vadd.f32 %v2155, %v2813
      %v2815 = vpop.f32.mrf.mxu0
      %v2816 = vadd.f32 %v2155, %v2815
      %2817 = vmatmul.bf16.gmra.mxu0 %v2086
      %v2818 = vpop.f32.mrf.mxu0
      %v2819 = vadd.f32 %v2155, %v2818
      %v2820 = vpop.f32.mrf.mxu0
      %v2821 = vadd.f32 %v2155, %v2820
      %2822 = vmatmul.bf16.gmra.mxu0 %v2087
      %v2823 = vpop.f32.mrf.mxu0
      %v2824 = vadd.f32 %v2155, %v2823
      %v2825 = vpop.f32.mrf.mxu0
      %v2826 = vadd.f32 %v2155, %v2825
      %2827 = vdwg.mxu0
      %2828 = vmatpush.bf16.msra.mxu0 %v2420
      %2829 = vmatpush.bf16.msra.mxu0 %v2412
      %2830 = vmatpush.bf16.msra.mxu0 %v2404
      %2831 = vmatpush.bf16.msra.mxu0 %v2396
      %2832 = vmatpush.bf16.msra.mxu0 %v2388
      %2833 = vmatpush.bf16.msra.mxu0 %v2380
      %2834 = vmatpush.bf16.msra.mxu0 %v2372
      %2835 = vmatpush.bf16.msra.mxu0 %v2364
      %2836 = vmatmul.bf16.gmra.mxu0 %v2056
      %v2837 = vpop.f32.mrf.mxu0
      %v2838 = vadd.f32 %v2156, %v2837
      %v2839 = vpop.f32.mrf.mxu0
      %v2840 = vadd.f32 %v2156, %v2839
      %2841 = vmatmul.bf16.gmra.mxu0 %v2057
      %v2842 = vpop.f32.mrf.mxu0
      %v2843 = vadd.f32 %v2156, %v2842
      %v2844 = vpop.f32.mrf.mxu0
      %v2845 = vadd.f32 %v2156, %v2844
      %2846 = vmatmul.bf16.gmra.mxu0 %v2058
      %v2847 = vpop.f32.mrf.mxu0
      %v2848 = vadd.f32 %v2156, %v2847
      %v2849 = vpop.f32.mrf.mxu0
      %v2850 = vadd.f32 %v2156, %v2849
      %2851 = vmatmul.bf16.gmra.mxu0 %v2059
      %v2852 = vpop.f32.mrf.mxu0
      %v2853 = vadd.f32 %v2156, %v2852
      %v2854 = vpop.f32.mrf.mxu0
      %v2855 = vadd.f32 %v2156, %v2854
      %2856 = vmatmul.bf16.gmra.mxu0 %v2060
      %v2857 = vpop.f32.mrf.mxu0
      %v2858 = vadd.f32 %v2156, %v2857
      %v2859 = vpop.f32.mrf.mxu0
      %v2860 = vadd.f32 %v2156, %v2859
      %2861 = vmatmul.bf16.gmra.mxu0 %v2061
      %v2862 = vpop.f32.mrf.mxu0
      %v2863 = vadd.f32 %v2156, %v2862
      %v2864 = vpop.f32.mrf.mxu0
      %v2865 = vadd.f32 %v2156, %v2864
      %2866 = vmatmul.bf16.gmra.mxu0 %v2062
      %v2867 = vpop.f32.mrf.mxu0
      %v2868 = vadd.f32 %v2156, %v2867
      %v2869 = vpop.f32.mrf.mxu0
      %v2870 = vadd.f32 %v2156, %v2869
      %2871 = vmatmul.bf16.gmra.mxu0 %v2063
      %v2872 = vpop.f32.mrf.mxu0
      %v2873 = vadd.f32 %v2156, %v2872
      %v2874 = vpop.f32.mrf.mxu0
      %v2875 = vadd.f32 %v2156, %v2874
      %2876 = vmatmul.bf16.gmra.mxu0 %v2064
      %v2877 = vpop.f32.mrf.mxu0
      %v2878 = vadd.f32 %v2156, %v2877
      %v2879 = vpop.f32.mrf.mxu0
      %v2880 = vadd.f32 %v2156, %v2879
      %2881 = vmatmul.bf16.gmra.mxu0 %v2065
      %v2882 = vpop.f32.mrf.mxu0
      %v2883 = vadd.f32 %v2156, %v2882
      %v2884 = vpop.f32.mrf.mxu0
      %v2885 = vadd.f32 %v2156, %v2884
      %2886 = vmatmul.bf16.gmra.mxu0 %v2066
      %v2887 = vpop.f32.mrf.mxu0
      %v2888 = vadd.f32 %v2156, %v2887
      %v2889 = vpop.f32.mrf.mxu0
      %v2890 = vadd.f32 %v2156, %v2889
      %2891 = vmatmul.bf16.gmra.mxu0 %v2067
      %v2892 = vpop.f32.mrf.mxu0
      %v2893 = vadd.f32 %v2156, %v2892
      %v2894 = vpop.f32.mrf.mxu0
      %v2895 = vadd.f32 %v2156, %v2894
      %2896 = vmatmul.bf16.gmra.mxu0 %v2068
      %v2897 = vpop.f32.mrf.mxu0
      %v2898 = vadd.f32 %v2156, %v2897
      %v2899 = vpop.f32.mrf.mxu0
      %v2900 = vadd.f32 %v2156, %v2899
      %2901 = vmatmul.bf16.gmra.mxu0 %v2069
      %v2902 = vpop.f32.mrf.mxu0
      %v2903 = vadd.f32 %v2156, %v2902
      %v2904 = vpop.f32.mrf.mxu0
      %v2905 = vadd.f32 %v2156, %v2904
      %2906 = vmatmul.bf16.gmra.mxu0 %v2070
      %v2907 = vpop.f32.mrf.mxu0
      %v2908 = vadd.f32 %v2156, %v2907
      %v2909 = vpop.f32.mrf.mxu0
      %v2910 = vadd.f32 %v2156, %v2909
      %2911 = vmatmul.bf16.gmra.mxu0 %v2071
      %v2912 = vpop.f32.mrf.mxu0
      %v2913 = vadd.f32 %v2156, %v2912
      %v2914 = vpop.f32.mrf.mxu0
      %v2915 = vadd.f32 %v2156, %v2914
      %2916 = vmatmul.bf16.gmra.mxu0 %v2072
      %v2917 = vpop.f32.mrf.mxu0
      %v2918 = vadd.f32 %v2156, %v2917
      %v2919 = vpop.f32.mrf.mxu0
      %v2920 = vadd.f32 %v2156, %v2919
      %2921 = vmatmul.bf16.gmra.mxu0 %v2073
      %v2922 = vpop.f32.mrf.mxu0
      %v2923 = vadd.f32 %v2156, %v2922
      %v2924 = vpop.f32.mrf.mxu0
      %v2925 = vadd.f32 %v2156, %v2924
      %2926 = vmatmul.bf16.gmra.mxu0 %v2074
      %v2927 = vpop.f32.mrf.mxu0
      %v2928 = vadd.f32 %v2156, %v2927
      %v2929 = vpop.f32.mrf.mxu0
      %v2930 = vadd.f32 %v2156, %v2929
      %2931 = vmatmul.bf16.gmra.mxu0 %v2075
      %v2932 = vpop.f32.mrf.mxu0
      %v2933 = vadd.f32 %v2156, %v2932
      %v2934 = vpop.f32.mrf.mxu0
      %v2935 = vadd.f32 %v2156, %v2934
      %2936 = vmatmul.bf16.gmra.mxu0 %v2076
      %v2937 = vpop.f32.mrf.mxu0
      %v2938 = vadd.f32 %v2156, %v2937
      %v2939 = vpop.f32.mrf.mxu0
      %v2940 = vadd.f32 %v2156, %v2939
      %2941 = vmatmul.bf16.gmra.mxu0 %v2077
      %v2942 = vpop.f32.mrf.mxu0
      %v2943 = vadd.f32 %v2156, %v2942
      %v2944 = vpop.f32.mrf.mxu0
      %v2945 = vadd.f32 %v2156, %v2944
      %2946 = vmatmul.bf16.gmra.mxu0 %v2078
      %v2947 = vpop.f32.mrf.mxu0
      %v2948 = vadd.f32 %v2156, %v2947
      %v2949 = vpop.f32.mrf.mxu0
      %v2950 = vadd.f32 %v2156, %v2949
      %2951 = vmatmul.bf16.gmra.mxu0 %v2079
      %v2952 = vpop.f32.mrf.mxu0
      %v2953 = vadd.f32 %v2156, %v2952
      %v2954 = vpop.f32.mrf.mxu0
      %v2955 = vadd.f32 %v2156, %v2954
      %2956 = vmatmul.bf16.gmra.mxu0 %v2080
      %v2957 = vpop.f32.mrf.mxu0
      %v2958 = vadd.f32 %v2156, %v2957
      %v2959 = vpop.f32.mrf.mxu0
      %v2960 = vadd.f32 %v2156, %v2959
      %2961 = vmatmul.bf16.gmra.mxu0 %v2081
      %v2962 = vpop.f32.mrf.mxu0
      %v2963 = vadd.f32 %v2156, %v2962
      %v2964 = vpop.f32.mrf.mxu0
      %v2965 = vadd.f32 %v2156, %v2964
      %2966 = vmatmul.bf16.gmra.mxu0 %v2082
      %v2967 = vpop.f32.mrf.mxu0
      %v2968 = vadd.f32 %v2156, %v2967
      %v2969 = vpop.f32.mrf.mxu0
      %v2970 = vadd.f32 %v2156, %v2969
      %2971 = vmatmul.bf16.gmra.mxu0 %v2083
      %v2972 = vpop.f32.mrf.mxu0
      %v2973 = vadd.f32 %v2156, %v2972
      %v2974 = vpop.f32.mrf.mxu0
      %v2975 = vadd.f32 %v2156, %v2974
      %2976 = vmatmul.bf16.gmra.mxu0 %v2084
      %v2977 = vpop.f32.mrf.mxu0
      %v2978 = vadd.f32 %v2156, %v2977
      %v2979 = vpop.f32.mrf.mxu0
      %v2980 = vadd.f32 %v2156, %v2979
      %2981 = vmatmul.bf16.gmra.mxu0 %v2085
      %v2982 = vpop.f32.mrf.mxu0
      %v2983 = vadd.f32 %v2156, %v2982
      %v2984 = vpop.f32.mrf.mxu0
      %v2985 = vadd.f32 %v2156, %v2984
      %2986 = vmatmul.bf16.gmra.mxu0 %v2086
      %v2987 = vpop.f32.mrf.mxu0
      %v2988 = vadd.f32 %v2156, %v2987
      %v2989 = vpop.f32.mrf.mxu0
      %v2990 = vadd.f32 %v2156, %v2989
      %2991 = vmatmul.bf16.gmra.mxu0 %v2087
      %v2992 = vpop.f32.mrf.mxu0
      %v2993 = vadd.f32 %v2156, %v2992
      %v2994 = vpop.f32.mrf.mxu0
      %v2995 = vadd.f32 %v2156, %v2994
      %2996 = vdwg.mxu0
      %2997 = vmatpush.bf16.msra.mxu0 %v2421
      %2998 = vmatpush.bf16.msra.mxu0 %v2413
      %2999 = vmatpush.bf16.msra.mxu0 %v2405
      %3000 = vmatpush.bf16.msra.mxu0 %v2397
      %3001 = vmatpush.bf16.msra.mxu0 %v2389
      %3002 = vmatpush.bf16.msra.mxu0 %v2381
      %3003 = vmatpush.bf16.msra.mxu0 %v2373
      %3004 = vmatpush.bf16.msra.mxu0 %v2365
      %3005 = vmatmul.bf16.gmra.mxu0 %v2056
      %v3006 = vpop.f32.mrf.mxu0
      %v3007 = vadd.f32 %v2157, %v3006
      %v3008 = vpop.f32.mrf.mxu0
      %v3009 = vadd.f32 %v2157, %v3008
      %3010 = vmatmul.bf16.gmra.mxu0 %v2057
      %v3011 = vpop.f32.mrf.mxu0
      %v3012 = vadd.f32 %v2157, %v3011
      %v3013 = vpop.f32.mrf.mxu0
      %v3014 = vadd.f32 %v2157, %v3013
      %3015 = vmatmul.bf16.gmra.mxu0 %v2058
      %v3016 = vpop.f32.mrf.mxu0
      %v3017 = vadd.f32 %v2157, %v3016
      %v3018 = vpop.f32.mrf.mxu0
      %v3019 = vadd.f32 %v2157, %v3018
      %3020 = vmatmul.bf16.gmra.mxu0 %v2059
      %v3021 = vpop.f32.mrf.mxu0
      %v3022 = vadd.f32 %v2157, %v3021
      %v3023 = vpop.f32.mrf.mxu0
      %v3024 = vadd.f32 %v2157, %v3023
      %3025 = vmatmul.bf16.gmra.mxu0 %v2060
      %v3026 = vpop.f32.mrf.mxu0
      %v3027 = vadd.f32 %v2157, %v3026
      %v3028 = vpop.f32.mrf.mxu0
      %v3029 = vadd.f32 %v2157, %v3028
      %3030 = vmatmul.bf16.gmra.mxu0 %v2061
      %v3031 = vpop.f32.mrf.mxu0
      %v3032 = vadd.f32 %v2157, %v3031
      %v3033 = vpop.f32.mrf.mxu0
      %v3034 = vadd.f32 %v2157, %v3033
      %3035 = vmatmul.bf16.gmra.mxu0 %v2062
      %v3036 = vpop.f32.mrf.mxu0
      %v3037 = vadd.f32 %v2157, %v3036
      %v3038 = vpop.f32.mrf.mxu0
      %v3039 = vadd.f32 %v2157, %v3038
      %3040 = vmatmul.bf16.gmra.mxu0 %v2063
      %v3041 = vpop.f32.mrf.mxu0
      %v3042 = vadd.f32 %v2157, %v3041
      %v3043 = vpop.f32.mrf.mxu0
      %v3044 = vadd.f32 %v2157, %v3043
      %3045 = vmatmul.bf16.gmra.mxu0 %v2064
      %v3046 = vpop.f32.mrf.mxu0
      %v3047 = vadd.f32 %v2157, %v3046
      %v3048 = vpop.f32.mrf.mxu0
      %v3049 = vadd.f32 %v2157, %v3048
      %3050 = vmatmul.bf16.gmra.mxu0 %v2065
      %v3051 = vpop.f32.mrf.mxu0
      %v3052 = vadd.f32 %v2157, %v3051
      %v3053 = vpop.f32.mrf.mxu0
      %v3054 = vadd.f32 %v2157, %v3053
      %3055 = vmatmul.bf16.gmra.mxu0 %v2066
      %v3056 = vpop.f32.mrf.mxu0
      %v3057 = vadd.f32 %v2157, %v3056
      %v3058 = vpop.f32.mrf.mxu0
      %v3059 = vadd.f32 %v2157, %v3058
      %3060 = vmatmul.bf16.gmra.mxu0 %v2067
      %v3061 = vpop.f32.mrf.mxu0
      %v3062 = vadd.f32 %v2157, %v3061
      %v3063 = vpop.f32.mrf.mxu0
      %v3064 = vadd.f32 %v2157, %v3063
      %3065 = vmatmul.bf16.gmra.mxu0 %v2068
      %v3066 = vpop.f32.mrf.mxu0
      %v3067 = vadd.f32 %v2157, %v3066
      %v3068 = vpop.f32.mrf.mxu0
      %v3069 = vadd.f32 %v2157, %v3068
      %3070 = vmatmul.bf16.gmra.mxu0 %v2069
      %v3071 = vpop.f32.mrf.mxu0
      %v3072 = vadd.f32 %v2157, %v3071
      %v3073 = vpop.f32.mrf.mxu0
      %v3074 = vadd.f32 %v2157, %v3073
      %3075 = vmatmul.bf16.gmra.mxu0 %v2070
      %v3076 = vpop.f32.mrf.mxu0
      %v3077 = vadd.f32 %v2157, %v3076
      %v3078 = vpop.f32.mrf.mxu0
      %v3079 = vadd.f32 %v2157, %v3078
      %3080 = vmatmul.bf16.gmra.mxu0 %v2071
      %v3081 = vpop.f32.mrf.mxu0
      %v3082 = vadd.f32 %v2157, %v3081
      %v3083 = vpop.f32.mrf.mxu0
      %v3084 = vadd.f32 %v2157, %v3083
      %3085 = vmatmul.bf16.gmra.mxu0 %v2072
      %v3086 = vpop.f32.mrf.mxu0
      %v3087 = vadd.f32 %v2157, %v3086
      %v3088 = vpop.f32.mrf.mxu0
      %v3089 = vadd.f32 %v2157, %v3088
      %3090 = vmatmul.bf16.gmra.mxu0 %v2073
      %v3091 = vpop.f32.mrf.mxu0
      %v3092 = vadd.f32 %v2157, %v3091
      %v3093 = vpop.f32.mrf.mxu0
      %v3094 = vadd.f32 %v2157, %v3093
      %3095 = vmatmul.bf16.gmra.mxu0 %v2074
      %v3096 = vpop.f32.mrf.mxu0
      %v3097 = vadd.f32 %v2157, %v3096
      %v3098 = vpop.f32.mrf.mxu0
      %v3099 = vadd.f32 %v2157, %v3098
      %3100 = vmatmul.bf16.gmra.mxu0 %v2075
      %v3101 = vpop.f32.mrf.mxu0
      %v3102 = vadd.f32 %v2157, %v3101
      %v3103 = vpop.f32.mrf.mxu0
      %v3104 = vadd.f32 %v2157, %v3103
      %3105 = vmatmul.bf16.gmra.mxu0 %v2076
      %v3106 = vpop.f32.mrf.mxu0
      %v3107 = vadd.f32 %v2157, %v3106
      %v3108 = vpop.f32.mrf.mxu0
      %v3109 = vadd.f32 %v2157, %v3108
      %3110 = vmatmul.bf16.gmra.mxu0 %v2077
      %v3111 = vpop.f32.mrf.mxu0
      %v3112 = vadd.f32 %v2157, %v3111
      %v3113 = vpop.f32.mrf.mxu0
      %v3114 = vadd.f32 %v2157, %v3113
      %3115 = vmatmul.bf16.gmra.mxu0 %v2078
      %v3116 = vpop.f32.mrf.mxu0
      %v3117 = vadd.f32 %v2157, %v3116
      %v3118 = vpop.f32.mrf.mxu0
      %v3119 = vadd.f32 %v2157, %v3118
      %3120 = vmatmul.bf16.gmra.mxu0 %v2079
      %v3121 = vpop.f32.mrf.mxu0
      %v3122 = vadd.f32 %v2157, %v3121
      %v3123 = vpop.f32.mrf.mxu0
      %v3124 = vadd.f32 %v2157, %v3123
      %3125 = vmatmul.bf16.gmra.mxu0 %v2080
      %v3126 = vpop.f32.mrf.mxu0
      %v3127 = vadd.f32 %v2157, %v3126
      %v3128 = vpop.f32.mrf.mxu0
      %v3129 = vadd.f32 %v2157, %v3128
      %3130 = vmatmul.bf16.gmra.mxu0 %v2081
      %v3131 = vpop.f32.mrf.mxu0
      %v3132 = vadd.f32 %v2157, %v3131
      %v3133 = vpop.f32.mrf.mxu0
      %v3134 = vadd.f32 %v2157, %v3133
      %3135 = vmatmul.bf16.gmra.mxu0 %v2082
      %v3136 = vpop.f32.mrf.mxu0
      %v3137 = vadd.f32 %v2157, %v3136
      %v3138 = vpop.f32.mrf.mxu0
      %v3139 = vadd.f32 %v2157, %v3138
      %3140 = vmatmul.bf16.gmra.mxu0 %v2083
      %v3141 = vpop.f32.mrf.mxu0
      %v3142 = vadd.f32 %v2157, %v3141
      %v3143 = vpop.f32.mrf.mxu0
      %v3144 = vadd.f32 %v2157, %v3143
      %3145 = vmatmul.bf16.gmra.mxu0 %v2084
      %v3146 = vpop.f32.mrf.mxu0
      %v3147 = vadd.f32 %v2157, %v3146
      %v3148 = vpop.f32.mrf.mxu0
      %v3149 = vadd.f32 %v2157, %v3148
      %3150 = vmatmul.bf16.gmra.mxu0 %v2085
      %v3151 = vpop.f32.mrf.mxu0
      %v3152 = vadd.f32 %v2157, %v3151
      %v3153 = vpop.f32.mrf.mxu0
      %v3154 = vadd.f32 %v2157, %v3153
      %3155 = vmatmul.bf16.gmra.mxu0 %v2086
      %v3156 = vpop.f32.mrf.mxu0
      %v3157 = vadd.f32 %v2157, %v3156
      %v3158 = vpop.f32.mrf.mxu0
      %v3159 = vadd.f32 %v2157, %v3158
      %3160 = vmatmul.bf16.gmra.mxu0 %v2087
      %v3161 = vpop.f32.mrf.mxu0
      %v3162 = vadd.f32 %v2157, %v3161
      %v3163 = vpop.f32.mrf.mxu0
      %v3164 = vadd.f32 %v2157, %v3163
      %3165 = vdwg.mxu0
      %3166 = vmatpush.bf16.msra.mxu0 %v2422
      %3167 = vmatpush.bf16.msra.mxu0 %v2414
      %3168 = vmatpush.bf16.msra.mxu0 %v2406
      %3169 = vmatpush.bf16.msra.mxu0 %v2398
      %3170 = vmatpush.bf16.msra.mxu0 %v2390
      %3171 = vmatpush.bf16.msra.mxu0 %v2382
      %3172 = vmatpush.bf16.msra.mxu0 %v2374
      %3173 = vmatpush.bf16.msra.mxu0 %v2366
      %3174 = vmatmul.bf16.gmra.mxu0 %v2056
      %v3175 = vpop.f32.mrf.mxu0
      %v3176 = vadd.f32 %v2158, %v3175
      %v3177 = vpop.f32.mrf.mxu0
      %v3178 = vadd.f32 %v2158, %v3177
      %3179 = vmatmul.bf16.gmra.mxu0 %v2057
      %v3180 = vpop.f32.mrf.mxu0
      %v3181 = vadd.f32 %v2158, %v3180
      %v3182 = vpop.f32.mrf.mxu0
      %v3183 = vadd.f32 %v2158, %v3182
      %3184 = vmatmul.bf16.gmra.mxu0 %v2058
      %v3185 = vpop.f32.mrf.mxu0
      %v3186 = vadd.f32 %v2158, %v3185
      %v3187 = vpop.f32.mrf.mxu0
      %v3188 = vadd.f32 %v2158, %v3187
      %3189 = vmatmul.bf16.gmra.mxu0 %v2059
      %v3190 = vpop.f32.mrf.mxu0
      %v3191 = vadd.f32 %v2158, %v3190
      %v3192 = vpop.f32.mrf.mxu0
      %v3193 = vadd.f32 %v2158, %v3192
      %3194 = vmatmul.bf16.gmra.mxu0 %v2060
      %v3195 = vpop.f32.mrf.mxu0
      %v3196 = vadd.f32 %v2158, %v3195
      %v3197 = vpop.f32.mrf.mxu0
      %v3198 = vadd.f32 %v2158, %v3197
      %3199 = vmatmul.bf16.gmra.mxu0 %v2061
      %v3200 = vpop.f32.mrf.mxu0
      %v3201 = vadd.f32 %v2158, %v3200
      %v3202 = vpop.f32.mrf.mxu0
      %v3203 = vadd.f32 %v2158, %v3202
      %3204 = vmatmul.bf16.gmra.mxu0 %v2062
      %v3205 = vpop.f32.mrf.mxu0
      %v3206 = vadd.f32 %v2158, %v3205
      %v3207 = vpop.f32.mrf.mxu0
      %v3208 = vadd.f32 %v2158, %v3207
      %3209 = vmatmul.bf16.gmra.mxu0 %v2063
      %v3210 = vpop.f32.mrf.mxu0
      %v3211 = vadd.f32 %v2158, %v3210
      %v3212 = vpop.f32.mrf.mxu0
      %v3213 = vadd.f32 %v2158, %v3212
      %3214 = vmatmul.bf16.gmra.mxu0 %v2064
      %v3215 = vpop.f32.mrf.mxu0
      %v3216 = vadd.f32 %v2158, %v3215
      %v3217 = vpop.f32.mrf.mxu0
      %v3218 = vadd.f32 %v2158, %v3217
      %3219 = vmatmul.bf16.gmra.mxu0 %v2065
      %v3220 = vpop.f32.mrf.mxu0
      %v3221 = vadd.f32 %v2158, %v3220
      %v3222 = vpop.f32.mrf.mxu0
      %v3223 = vadd.f32 %v2158, %v3222
      %3224 = vmatmul.bf16.gmra.mxu0 %v2066
      %v3225 = vpop.f32.mrf.mxu0
      %v3226 = vadd.f32 %v2158, %v3225
      %v3227 = vpop.f32.mrf.mxu0
      %v3228 = vadd.f32 %v2158, %v3227
      %3229 = vmatmul.bf16.gmra.mxu0 %v2067
      %v3230 = vpop.f32.mrf.mxu0
      %v3231 = vadd.f32 %v2158, %v3230
      %v3232 = vpop.f32.mrf.mxu0
      %v3233 = vadd.f32 %v2158, %v3232
      %3234 = vmatmul.bf16.gmra.mxu0 %v2068
      %v3235 = vpop.f32.mrf.mxu0
      %v3236 = vadd.f32 %v2158, %v3235
      %v3237 = vpop.f32.mrf.mxu0
      %v3238 = vadd.f32 %v2158, %v3237
      %3239 = vmatmul.bf16.gmra.mxu0 %v2069
      %v3240 = vpop.f32.mrf.mxu0
      %v3241 = vadd.f32 %v2158, %v3240
      %v3242 = vpop.f32.mrf.mxu0
      %v3243 = vadd.f32 %v2158, %v3242
      %3244 = vmatmul.bf16.gmra.mxu0 %v2070
      %v3245 = vpop.f32.mrf.mxu0
      %v3246 = vadd.f32 %v2158, %v3245
      %v3247 = vpop.f32.mrf.mxu0
      %v3248 = vadd.f32 %v2158, %v3247
      %3249 = vmatmul.bf16.gmra.mxu0 %v2071
      %v3250 = vpop.f32.mrf.mxu0
      %v3251 = vadd.f32 %v2158, %v3250
      %v3252 = vpop.f32.mrf.mxu0
      %v3253 = vadd.f32 %v2158, %v3252
      %3254 = vmatmul.bf16.gmra.mxu0 %v2072
      %v3255 = vpop.f32.mrf.mxu0
      %v3256 = vadd.f32 %v2158, %v3255
      %v3257 = vpop.f32.mrf.mxu0
      %v3258 = vadd.f32 %v2158, %v3257
      %3259 = vmatmul.bf16.gmra.mxu0 %v2073
      %v3260 = vpop.f32.mrf.mxu0
      %v3261 = vadd.f32 %v2158, %v3260
      %v3262 = vpop.f32.mrf.mxu0
      %v3263 = vadd.f32 %v2158, %v3262
      %3264 = vmatmul.bf16.gmra.mxu0 %v2074
      %v3265 = vpop.f32.mrf.mxu0
      %v3266 = vadd.f32 %v2158, %v3265
      %v3267 = vpop.f32.mrf.mxu0
      %v3268 = vadd.f32 %v2158, %v3267
      %3269 = vmatmul.bf16.gmra.mxu0 %v2075
      %v3270 = vpop.f32.mrf.mxu0
      %v3271 = vadd.f32 %v2158, %v3270
      %v3272 = vpop.f32.mrf.mxu0
      %v3273 = vadd.f32 %v2158, %v3272
      %3274 = vmatmul.bf16.gmra.mxu0 %v2076
      %v3275 = vpop.f32.mrf.mxu0
      %v3276 = vadd.f32 %v2158, %v3275
      %v3277 = vpop.f32.mrf.mxu0
      %v3278 = vadd.f32 %v2158, %v3277
      %3279 = vmatmul.bf16.gmra.mxu0 %v2077
      %v3280 = vpop.f32.mrf.mxu0
      %v3281 = vadd.f32 %v2158, %v3280
      %v3282 = vpop.f32.mrf.mxu0
      %v3283 = vadd.f32 %v2158, %v3282
      %3284 = vmatmul.bf16.gmra.mxu0 %v2078
      %v3285 = vpop.f32.mrf.mxu0
      %v3286 = vadd.f32 %v2158, %v3285
      %v3287 = vpop.f32.mrf.mxu0
      %v3288 = vadd.f32 %v2158, %v3287
      %3289 = vmatmul.bf16.gmra.mxu0 %v2079
      %v3290 = vpop.f32.mrf.mxu0
      %v3291 = vadd.f32 %v2158, %v3290
      %v3292 = vpop.f32.mrf.mxu0
      %v3293 = vadd.f32 %v2158, %v3292
      %3294 = vmatmul.bf16.gmra.mxu0 %v2080
      %v3295 = vpop.f32.mrf.mxu0
      %v3296 = vadd.f32 %v2158, %v3295
      %v3297 = vpop.f32.mrf.mxu0
      %v3298 = vadd.f32 %v2158, %v3297
      %3299 = vmatmul.bf16.gmra.mxu0 %v2081
      %v3300 = vpop.f32.mrf.mxu0
      %v3301 = vadd.f32 %v2158, %v3300
      %v3302 = vpop.f32.mrf.mxu0
      %v3303 = vadd.f32 %v2158, %v3302
      %3304 = vmatmul.bf16.gmra.mxu0 %v2082
      %v3305 = vpop.f32.mrf.mxu0
      %v3306 = vadd.f32 %v2158, %v3305
      %v3307 = vpop.f32.mrf.mxu0
      %v3308 = vadd.f32 %v2158, %v3307
      %3309 = vmatmul.bf16.gmra.mxu0 %v2083
      %v3310 = vpop.f32.mrf.mxu0
      %v3311 = vadd.f32 %v2158, %v3310
      %v3312 = vpop.f32.mrf.mxu0
      %v3313 = vadd.f32 %v2158, %v3312
      %3314 = vmatmul.bf16.gmra.mxu0 %v2084
      %v3315 = vpop.f32.mrf.mxu0
      %v3316 = vadd.f32 %v2158, %v3315
      %v3317 = vpop.f32.mrf.mxu0
      %v3318 = vadd.f32 %v2158, %v3317
      %3319 = vmatmul.bf16.gmra.mxu0 %v2085
      %v3320 = vpop.f32.mrf.mxu0
      %v3321 = vadd.f32 %v2158, %v3320
      %v3322 = vpop.f32.mrf.mxu0
      %v3323 = vadd.f32 %v2158, %v3322
      %3324 = vmatmul.bf16.gmra.mxu0 %v2086
      %v3325 = vpop.f32.mrf.mxu0
      %v3326 = vadd.f32 %v2158, %v3325
      %v3327 = vpop.f32.mrf.mxu0
      %v3328 = vadd.f32 %v2158, %v3327
      %3329 = vmatmul.bf16.gmra.mxu0 %v2087
      %v3330 = vpop.f32.mrf.mxu0
      %v3331 = vadd.f32 %v2158, %v3330
      %v3332 = vpop.f32.mrf.mxu0
      %v3333 = vadd.f32 %v2158, %v3332
      %3334 = vdwg.mxu0
      %3335 = vmatpush.bf16.msra.mxu0 %v2423
      %3336 = vmatpush.bf16.msra.mxu0 %v2415
      %3337 = vmatpush.bf16.msra.mxu0 %v2407
      %3338 = vmatpush.bf16.msra.mxu0 %v2399
      %3339 = vmatpush.bf16.msra.mxu0 %v2391
      %3340 = vmatpush.bf16.msra.mxu0 %v2383
      %3341 = vmatpush.bf16.msra.mxu0 %v2375
      %3342 = vmatpush.bf16.msra.mxu0 %v2367
      %3343 = vmatmul.bf16.gmra.mxu0 %v2056
      %v3344 = vpop.f32.mrf.mxu0
      %v3345 = vadd.f32 %v2159, %v3344
      %v3346 = vpop.f32.mrf.mxu0
      %v3347 = vadd.f32 %v2159, %v3346
      %3348 = vmatmul.bf16.gmra.mxu0 %v2057
      %v3349 = vpop.f32.mrf.mxu0
      %v3350 = vadd.f32 %v2159, %v3349
      %v3351 = vpop.f32.mrf.mxu0
      %v3352 = vadd.f32 %v2159, %v3351
      %3353 = vmatmul.bf16.gmra.mxu0 %v2058
      %v3354 = vpop.f32.mrf.mxu0
      %v3355 = vadd.f32 %v2159, %v3354
      %v3356 = vpop.f32.mrf.mxu0
      %v3357 = vadd.f32 %v2159, %v3356
      %3358 = vmatmul.bf16.gmra.mxu0 %v2059
      %v3359 = vpop.f32.mrf.mxu0
      %v3360 = vadd.f32 %v2159, %v3359
      %v3361 = vpop.f32.mrf.mxu0
      %v3362 = vadd.f32 %v2159, %v3361
      %3363 = vmatmul.bf16.gmra.mxu0 %v2060
      %v3364 = vpop.f32.mrf.mxu0
      %v3365 = vadd.f32 %v2159, %v3364
      %v3366 = vpop.f32.mrf.mxu0
      %v3367 = vadd.f32 %v2159, %v3366
      %3368 = vmatmul.bf16.gmra.mxu0 %v2061
      %v3369 = vpop.f32.mrf.mxu0
      %v3370 = vadd.f32 %v2159, %v3369
      %v3371 = vpop.f32.mrf.mxu0
      %v3372 = vadd.f32 %v2159, %v3371
      %3373 = vmatmul.bf16.gmra.mxu0 %v2062
      %v3374 = vpop.f32.mrf.mxu0
      %v3375 = vadd.f32 %v2159, %v3374
      %v3376 = vpop.f32.mrf.mxu0
      %v3377 = vadd.f32 %v2159, %v3376
      %3378 = vmatmul.bf16.gmra.mxu0 %v2063
      %v3379 = vpop.f32.mrf.mxu0
      %v3380 = vadd.f32 %v2159, %v3379
      %v3381 = vpop.f32.mrf.mxu0
      %v3382 = vadd.f32 %v2159, %v3381
      %3383 = vmatmul.bf16.gmra.mxu0 %v2064
      %v3384 = vpop.f32.mrf.mxu0
      %v3385 = vadd.f32 %v2159, %v3384
      %v3386 = vpop.f32.mrf.mxu0
      %v3387 = vadd.f32 %v2159, %v3386
      %3388 = vmatmul.bf16.gmra.mxu0 %v2065
      %v3389 = vpop.f32.mrf.mxu0
      %v3390 = vadd.f32 %v2159, %v3389
      %v3391 = vpop.f32.mrf.mxu0
      %v3392 = vadd.f32 %v2159, %v3391
      %3393 = vmatmul.bf16.gmra.mxu0 %v2066
      %v3394 = vpop.f32.mrf.mxu0
      %v3395 = vadd.f32 %v2159, %v3394
      %v3396 = vpop.f32.mrf.mxu0
      %v3397 = vadd.f32 %v2159, %v3396
      %3398 = vmatmul.bf16.gmra.mxu0 %v2067
      %v3399 = vpop.f32.mrf.mxu0
      %v3400 = vadd.f32 %v2159, %v3399
      %v3401 = vpop.f32.mrf.mxu0
      %v3402 = vadd.f32 %v2159, %v3401
      %3403 = vmatmul.bf16.gmra.mxu0 %v2068
      %v3404 = vpop.f32.mrf.mxu0
      %v3405 = vadd.f32 %v2159, %v3404
      %v3406 = vpop.f32.mrf.mxu0
      %v3407 = vadd.f32 %v2159, %v3406
      %3408 = vmatmul.bf16.gmra.mxu0 %v2069
      %v3409 = vpop.f32.mrf.mxu0
      %v3410 = vadd.f32 %v2159, %v3409
      %v3411 = vpop.f32.mrf.mxu0
      %v3412 = vadd.f32 %v2159, %v3411
      %3413 = vmatmul.bf16.gmra.mxu0 %v2070
      %v3414 = vpop.f32.mrf.mxu0
      %v3415 = vadd.f32 %v2159, %v3414
      %v3416 = vpop.f32.mrf.mxu0
      %v3417 = vadd.f32 %v2159, %v3416
      %3418 = vmatmul.bf16.gmra.mxu0 %v2071
      %v3419 = vpop.f32.mrf.mxu0
      %v3420 = vadd.f32 %v2159, %v3419
      %v3421 = vpop.f32.mrf.mxu0
      %v3422 = vadd.f32 %v2159, %v3421
      %3423 = vmatmul.bf16.gmra.mxu0 %v2072
      %v3424 = vpop.f32.mrf.mxu0
      %v3425 = vadd.f32 %v2159, %v3424
      %v3426 = vpop.f32.mrf.mxu0
      %v3427 = vadd.f32 %v2159, %v3426
      %3428 = vmatmul.bf16.gmra.mxu0 %v2073
      %v3429 = vpop.f32.mrf.mxu0
      %v3430 = vadd.f32 %v2159, %v3429
      %v3431 = vpop.f32.mrf.mxu0
      %v3432 = vadd.f32 %v2159, %v3431
      %3433 = vmatmul.bf16.gmra.mxu0 %v2074
      %v3434 = vpop.f32.mrf.mxu0
      %v3435 = vadd.f32 %v2159, %v3434
      %v3436 = vpop.f32.mrf.mxu0
      %v3437 = vadd.f32 %v2159, %v3436
      %3438 = vmatmul.bf16.gmra.mxu0 %v2075
      %v3439 = vpop.f32.mrf.mxu0
      %v3440 = vadd.f32 %v2159, %v3439
      %v3441 = vpop.f32.mrf.mxu0
      %v3442 = vadd.f32 %v2159, %v3441
      %3443 = vmatmul.bf16.gmra.mxu0 %v2076
      %v3444 = vpop.f32.mrf.mxu0
      %v3445 = vadd.f32 %v2159, %v3444
      %v3446 = vpop.f32.mrf.mxu0
      %v3447 = vadd.f32 %v2159, %v3446
      %3448 = vmatmul.bf16.gmra.mxu0 %v2077
      %v3449 = vpop.f32.mrf.mxu0
      %v3450 = vadd.f32 %v2159, %v3449
      %v3451 = vpop.f32.mrf.mxu0
      %v3452 = vadd.f32 %v2159, %v3451
      %3453 = vmatmul.bf16.gmra.mxu0 %v2078
      %v3454 = vpop.f32.mrf.mxu0
      %v3455 = vadd.f32 %v2159, %v3454
      %v3456 = vpop.f32.mrf.mxu0
      %v3457 = vadd.f32 %v2159, %v3456
      %3458 = vmatmul.bf16.gmra.mxu0 %v2079
      %v3459 = vpop.f32.mrf.mxu0
      %v3460 = vadd.f32 %v2159, %v3459
      %v3461 = vpop.f32.mrf.mxu0
      %v3462 = vadd.f32 %v2159, %v3461
      %3463 = vmatmul.bf16.gmra.mxu0 %v2080
      %v3464 = vpop.f32.mrf.mxu0
      %v3465 = vadd.f32 %v2159, %v3464
      %v3466 = vpop.f32.mrf.mxu0
      %v3467 = vadd.f32 %v2159, %v3466
      %3468 = vmatmul.bf16.gmra.mxu0 %v2081
      %v3469 = vpop.f32.mrf.mxu0
      %v3470 = vadd.f32 %v2159, %v3469
      %v3471 = vpop.f32.mrf.mxu0
      %v3472 = vadd.f32 %v2159, %v3471
      %3473 = vmatmul.bf16.gmra.mxu0 %v2082
      %v3474 = vpop.f32.mrf.mxu0
      %v3475 = vadd.f32 %v2159, %v3474
      %v3476 = vpop.f32.mrf.mxu0
      %v3477 = vadd.f32 %v2159, %v3476
      %3478 = vmatmul.bf16.gmra.mxu0 %v2083
      %v3479 = vpop.f32.mrf.mxu0
      %v3480 = vadd.f32 %v2159, %v3479
      %v3481 = vpop.f32.mrf.mxu0
      %v3482 = vadd.f32 %v2159, %v3481
      %3483 = vmatmul.bf16.gmra.mxu0 %v2084
      %v3484 = vpop.f32.mrf.mxu0
      %v3485 = vadd.f32 %v2159, %v3484
      %v3486 = vpop.f32.mrf.mxu0
      %v3487 = vadd.f32 %v2159, %v3486
      %3488 = vmatmul.bf16.gmra.mxu0 %v2085
      %v3489 = vpop.f32.mrf.mxu0
      %v3490 = vadd.f32 %v2159, %v3489
      %v3491 = vpop.f32.mrf.mxu0
      %v3492 = vadd.f32 %v2159, %v3491
      %3493 = vmatmul.bf16.gmra.mxu0 %v2086
      %v3494 = vpop.f32.mrf.mxu0
      %v3495 = vadd.f32 %v2159, %v3494
      %v3496 = vpop.f32.mrf.mxu0
      %v3497 = vadd.f32 %v2159, %v3496
      %3498 = vmatmul.bf16.gmra.mxu0 %v2087
      %v3499 = vpop.f32.mrf.mxu0
      %v3500 = vadd.f32 %v2159, %v3499
      %v3501 = vpop.f32.mrf.mxu0
      %v3502 = vadd.f32 %v2159, %v3501
      %3503 = vdwg.mxu0
      %3504 = vmatpush.bf16.msra.mxu0 %v2424
      %3505 = vmatpush.bf16.msra.mxu0 %v2416
      %3506 = vmatpush.bf16.msra.mxu0 %v2408
      %3507 = vmatpush.bf16.msra.mxu0 %v2400
      %3508 = vmatpush.bf16.msra.mxu0 %v2392
      %3509 = vmatpush.bf16.msra.mxu0 %v2384
      %3510 = vmatpush.bf16.msra.mxu0 %v2376
      %3511 = vmatpush.bf16.msra.mxu0 %v2368
      %3512 = vmatmul.bf16.gmra.mxu0 %v2056
      %v3513 = vpop.f32.mrf.mxu0
      %v3514 = vadd.f32 %v2160, %v3513
      %v3515 = vpop.f32.mrf.mxu0
      %v3516 = vadd.f32 %v2160, %v3515
      %3517 = vmatmul.bf16.gmra.mxu0 %v2057
      %v3518 = vpop.f32.mrf.mxu0
      %v3519 = vadd.f32 %v2160, %v3518
      %v3520 = vpop.f32.mrf.mxu0
      %v3521 = vadd.f32 %v2160, %v3520
      %3522 = vmatmul.bf16.gmra.mxu0 %v2058
      %v3523 = vpop.f32.mrf.mxu0
      %v3524 = vadd.f32 %v2160, %v3523
      %v3525 = vpop.f32.mrf.mxu0
      %v3526 = vadd.f32 %v2160, %v3525
      %3527 = vmatmul.bf16.gmra.mxu0 %v2059
      %v3528 = vpop.f32.mrf.mxu0
      %v3529 = vadd.f32 %v2160, %v3528
      %v3530 = vpop.f32.mrf.mxu0
      %v3531 = vadd.f32 %v2160, %v3530
      %3532 = vmatmul.bf16.gmra.mxu0 %v2060
      %v3533 = vpop.f32.mrf.mxu0
      %v3534 = vadd.f32 %v2160, %v3533
      %v3535 = vpop.f32.mrf.mxu0
      %v3536 = vadd.f32 %v2160, %v3535
      %3537 = vmatmul.bf16.gmra.mxu0 %v2061
      %v3538 = vpop.f32.mrf.mxu0
      %v3539 = vadd.f32 %v2160, %v3538
      %v3540 = vpop.f32.mrf.mxu0
      %v3541 = vadd.f32 %v2160, %v3540
      %3542 = vmatmul.bf16.gmra.mxu0 %v2062
      %v3543 = vpop.f32.mrf.mxu0
      %v3544 = vadd.f32 %v2160, %v3543
      %v3545 = vpop.f32.mrf.mxu0
      %v3546 = vadd.f32 %v2160, %v3545
      %3547 = vmatmul.bf16.gmra.mxu0 %v2063
      %v3548 = vpop.f32.mrf.mxu0
      %v3549 = vadd.f32 %v2160, %v3548
      %v3550 = vpop.f32.mrf.mxu0
      %v3551 = vadd.f32 %v2160, %v3550
      %3552 = vmatmul.bf16.gmra.mxu0 %v2064
      %v3553 = vpop.f32.mrf.mxu0
      %v3554 = vadd.f32 %v2160, %v3553
      %v3555 = vpop.f32.mrf.mxu0
      %v3556 = vadd.f32 %v2160, %v3555
      %3557 = vmatmul.bf16.gmra.mxu0 %v2065
      %v3558 = vpop.f32.mrf.mxu0
      %v3559 = vadd.f32 %v2160, %v3558
      %v3560 = vpop.f32.mrf.mxu0
      %v3561 = vadd.f32 %v2160, %v3560
      %3562 = vmatmul.bf16.gmra.mxu0 %v2066
      %v3563 = vpop.f32.mrf.mxu0
      %v3564 = vadd.f32 %v2160, %v3563
      %v3565 = vpop.f32.mrf.mxu0
      %v3566 = vadd.f32 %v2160, %v3565
      %3567 = vmatmul.bf16.gmra.mxu0 %v2067
      %v3568 = vpop.f32.mrf.mxu0
      %v3569 = vadd.f32 %v2160, %v3568
      %v3570 = vpop.f32.mrf.mxu0
      %v3571 = vadd.f32 %v2160, %v3570
      %3572 = vmatmul.bf16.gmra.mxu0 %v2068
      %v3573 = vpop.f32.mrf.mxu0
      %v3574 = vadd.f32 %v2160, %v3573
      %v3575 = vpop.f32.mrf.mxu0
      %v3576 = vadd.f32 %v2160, %v3575
      %3577 = vmatmul.bf16.gmra.mxu0 %v2069
      %v3578 = vpop.f32.mrf.mxu0
      %v3579 = vadd.f32 %v2160, %v3578
      %v3580 = vpop.f32.mrf.mxu0
      %v3581 = vadd.f32 %v2160, %v3580
      %3582 = vmatmul.bf16.gmra.mxu0 %v2070
      %v3583 = vpop.f32.mrf.mxu0
      %v3584 = vadd.f32 %v2160, %v3583
      %v3585 = vpop.f32.mrf.mxu0
      %v3586 = vadd.f32 %v2160, %v3585
      %3587 = vmatmul.bf16.gmra.mxu0 %v2071
      %v3588 = vpop.f32.mrf.mxu0
      %v3589 = vadd.f32 %v2160, %v3588
      %v3590 = vpop.f32.mrf.mxu0
      %v3591 = vadd.f32 %v2160, %v3590
      %3592 = vmatmul.bf16.gmra.mxu0 %v2072
      %v3593 = vpop.f32.mrf.mxu0
      %v3594 = vadd.f32 %v2160, %v3593
      %v3595 = vpop.f32.mrf.mxu0
      %v3596 = vadd.f32 %v2160, %v3595
      %3597 = vmatmul.bf16.gmra.mxu0 %v2073
      %v3598 = vpop.f32.mrf.mxu0
      %v3599 = vadd.f32 %v2160, %v3598
      %v3600 = vpop.f32.mrf.mxu0
      %v3601 = vadd.f32 %v2160, %v3600
      %3602 = vmatmul.bf16.gmra.mxu0 %v2074
      %v3603 = vpop.f32.mrf.mxu0
      %v3604 = vadd.f32 %v2160, %v3603
      %v3605 = vpop.f32.mrf.mxu0
      %v3606 = vadd.f32 %v2160, %v3605
      %3607 = vmatmul.bf16.gmra.mxu0 %v2075
      %v3608 = vpop.f32.mrf.mxu0
      %v3609 = vadd.f32 %v2160, %v3608
      %v3610 = vpop.f32.mrf.mxu0
      %v3611 = vadd.f32 %v2160, %v3610
      %3612 = vmatmul.bf16.gmra.mxu0 %v2076
      %v3613 = vpop.f32.mrf.mxu0
      %v3614 = vadd.f32 %v2160, %v3613
      %v3615 = vpop.f32.mrf.mxu0
      %v3616 = vadd.f32 %v2160, %v3615
      %3617 = vmatmul.bf16.gmra.mxu0 %v2077
      %v3618 = vpop.f32.mrf.mxu0
      %v3619 = vadd.f32 %v2160, %v3618
      %v3620 = vpop.f32.mrf.mxu0
      %v3621 = vadd.f32 %v2160, %v3620
      %3622 = vmatmul.bf16.gmra.mxu0 %v2078
      %v3623 = vpop.f32.mrf.mxu0
      %v3624 = vadd.f32 %v2160, %v3623
      %v3625 = vpop.f32.mrf.mxu0
      %v3626 = vadd.f32 %v2160, %v3625
      %3627 = vmatmul.bf16.gmra.mxu0 %v2079
      %v3628 = vpop.f32.mrf.mxu0
      %v3629 = vadd.f32 %v2160, %v3628
      %v3630 = vpop.f32.mrf.mxu0
      %v3631 = vadd.f32 %v2160, %v3630
      %3632 = vmatmul.bf16.gmra.mxu0 %v2080
      %v3633 = vpop.f32.mrf.mxu0
      %v3634 = vadd.f32 %v2160, %v3633
      %v3635 = vpop.f32.mrf.mxu0
      %v3636 = vadd.f32 %v2160, %v3635
      %3637 = vmatmul.bf16.gmra.mxu0 %v2081
      %v3638 = vpop.f32.mrf.mxu0
      %v3639 = vadd.f32 %v2160, %v3638
      %v3640 = vpop.f32.mrf.mxu0
      %v3641 = vadd.f32 %v2160, %v3640
      %3642 = vmatmul.bf16.gmra.mxu0 %v2082
      %v3643 = vpop.f32.mrf.mxu0
      %v3644 = vadd.f32 %v2160, %v3643
      %v3645 = vpop.f32.mrf.mxu0
      %v3646 = vadd.f32 %v2160, %v3645
      %3647 = vmatmul.bf16.gmra.mxu0 %v2083
      %v3648 = vpop.f32.mrf.mxu0
      %v3649 = vadd.f32 %v2160, %v3648
      %v3650 = vpop.f32.mrf.mxu0
      %v3651 = vadd.f32 %v2160, %v3650
      %3652 = vmatmul.bf16.gmra.mxu0 %v2084
      %v3653 = vpop.f32.mrf.mxu0
      %v3654 = vadd.f32 %v2160, %v3653
      %v3655 = vpop.f32.mrf.mxu0
      %v3656 = vadd.f32 %v2160, %v3655
      %3657 = vmatmul.bf16.gmra.mxu0 %v2085
      %v3658 = vpop.f32.mrf.mxu0
      %v3659 = vadd.f32 %v2160, %v3658
      %v3660 = vpop.f32.mrf.mxu0
      %v3661 = vadd.f32 %v2160, %v3660
      %3662 = vmatmul.bf16.gmra.mxu0 %v2086
      %v3663 = vpop.f32.mrf.mxu0
      %v3664 = vadd.f32 %v2160, %v3663
      %v3665 = vpop.f32.mrf.mxu0
      %v3666 = vadd.f32 %v2160, %v3665
      %3667 = vmatmul.bf16.gmra.mxu0 %v2087
      %v3668 = vpop.f32.mrf.mxu0
      %v3669 = vadd.f32 %v2160, %v3668
      %v3670 = vpop.f32.mrf.mxu0
      %v3671 = vadd.f32 %v2160, %v3670
      %3672 = vdwg.mxu0
      %3673 = vmatpush.bf16.msra.mxu0 %v2425
      %3674 = vmatpush.bf16.msra.mxu0 %v2417
      %3675 = vmatpush.bf16.msra.mxu0 %v2409
      %3676 = vmatpush.bf16.msra.mxu0 %v2401
      %3677 = vmatpush.bf16.msra.mxu0 %v2393
      %3678 = vmatpush.bf16.msra.mxu0 %v2385
      %3679 = vmatpush.bf16.msra.mxu0 %v2377
      %3680 = vmatpush.bf16.msra.mxu0 %v2369
      %3681 = vmatmul.bf16.gmra.mxu0 %v2056
      %v3682 = vpop.f32.mrf.mxu0
      %v3683 = vadd.f32 %v2161, %v3682
      %v3684 = vpop.f32.mrf.mxu0
      %v3685 = vadd.f32 %v2161, %v3684
      %3686 = vmatmul.bf16.gmra.mxu0 %v2057
      %v3687 = vpop.f32.mrf.mxu0
      %v3688 = vadd.f32 %v2161, %v3687
      %v3689 = vpop.f32.mrf.mxu0
      %v3690 = vadd.f32 %v2161, %v3689
      %3691 = vmatmul.bf16.gmra.mxu0 %v2058
      %v3692 = vpop.f32.mrf.mxu0
      %v3693 = vadd.f32 %v2161, %v3692
      %v3694 = vpop.f32.mrf.mxu0
      %v3695 = vadd.f32 %v2161, %v3694
      %3696 = vmatmul.bf16.gmra.mxu0 %v2059
      %v3697 = vpop.f32.mrf.mxu0
      %v3698 = vadd.f32 %v2161, %v3697
      %v3699 = vpop.f32.mrf.mxu0
      %v3700 = vadd.f32 %v2161, %v3699
      %3701 = vmatmul.bf16.gmra.mxu0 %v2060
      %v3702 = vpop.f32.mrf.mxu0
      %v3703 = vadd.f32 %v2161, %v3702
      %v3704 = vpop.f32.mrf.mxu0
      %v3705 = vadd.f32 %v2161, %v3704
      %3706 = vmatmul.bf16.gmra.mxu0 %v2061
      %v3707 = vpop.f32.mrf.mxu0
      %v3708 = vadd.f32 %v2161, %v3707
      %v3709 = vpop.f32.mrf.mxu0
      %v3710 = vadd.f32 %v2161, %v3709
      %3711 = vmatmul.bf16.gmra.mxu0 %v2062
      %v3712 = vpop.f32.mrf.mxu0
      %v3713 = vadd.f32 %v2161, %v3712
      %v3714 = vpop.f32.mrf.mxu0
      %v3715 = vadd.f32 %v2161, %v3714
      %3716 = vmatmul.bf16.gmra.mxu0 %v2063
      %v3717 = vpop.f32.mrf.mxu0
      %v3718 = vadd.f32 %v2161, %v3717
      %v3719 = vpop.f32.mrf.mxu0
      %v3720 = vadd.f32 %v2161, %v3719
      %3721 = vmatmul.bf16.gmra.mxu0 %v2064
      %v3722 = vpop.f32.mrf.mxu0
      %v3723 = vadd.f32 %v2161, %v3722
      %v3724 = vpop.f32.mrf.mxu0
      %v3725 = vadd.f32 %v2161, %v3724
      %3726 = vmatmul.bf16.gmra.mxu0 %v2065
      %v3727 = vpop.f32.mrf.mxu0
      %v3728 = vadd.f32 %v2161, %v3727
      %v3729 = vpop.f32.mrf.mxu0
      %v3730 = vadd.f32 %v2161, %v3729
      %3731 = vmatmul.bf16.gmra.mxu0 %v2066
      %v3732 = vpop.f32.mrf.mxu0
      %v3733 = vadd.f32 %v2161, %v3732
      %v3734 = vpop.f32.mrf.mxu0
      %v3735 = vadd.f32 %v2161, %v3734
      %3736 = vmatmul.bf16.gmra.mxu0 %v2067
      %v3737 = vpop.f32.mrf.mxu0
      %v3738 = vadd.f32 %v2161, %v3737
      %v3739 = vpop.f32.mrf.mxu0
      %v3740 = vadd.f32 %v2161, %v3739
      %3741 = vmatmul.bf16.gmra.mxu0 %v2068
      %v3742 = vpop.f32.mrf.mxu0
      %v3743 = vadd.f32 %v2161, %v3742
      %v3744 = vpop.f32.mrf.mxu0
      %v3745 = vadd.f32 %v2161, %v3744
      %3746 = vmatmul.bf16.gmra.mxu0 %v2069
      %v3747 = vpop.f32.mrf.mxu0
      %v3748 = vadd.f32 %v2161, %v3747
      %v3749 = vpop.f32.mrf.mxu0
      %v3750 = vadd.f32 %v2161, %v3749
      %3751 = vmatmul.bf16.gmra.mxu0 %v2070
      %v3752 = vpop.f32.mrf.mxu0
      %v3753 = vadd.f32 %v2161, %v3752
      %v3754 = vpop.f32.mrf.mxu0
      %v3755 = vadd.f32 %v2161, %v3754
      %3756 = vmatmul.bf16.gmra.mxu0 %v2071
      %v3757 = vpop.f32.mrf.mxu0
      %v3758 = vadd.f32 %v2161, %v3757
      %v3759 = vpop.f32.mrf.mxu0
      %v3760 = vadd.f32 %v2161, %v3759
      %3761 = vmatmul.bf16.gmra.mxu0 %v2072
      %v3762 = vpop.f32.mrf.mxu0
      %v3763 = vadd.f32 %v2161, %v3762
      %v3764 = vpop.f32.mrf.mxu0
      %v3765 = vadd.f32 %v2161, %v3764
      %3766 = vmatmul.bf16.gmra.mxu0 %v2073
      %v3767 = vpop.f32.mrf.mxu0
      %v3768 = vadd.f32 %v2161, %v3767
      %v3769 = vpop.f32.mrf.mxu0
      %v3770 = vadd.f32 %v2161, %v3769
      %3771 = vmatmul.bf16.gmra.mxu0 %v2074
      %v3772 = vpop.f32.mrf.mxu0
      %v3773 = vadd.f32 %v2161, %v3772
      %v3774 = vpop.f32.mrf.mxu0
      %v3775 = vadd.f32 %v2161, %v3774
      %3776 = vmatmul.bf16.gmra.mxu0 %v2075
      %v3777 = vpop.f32.mrf.mxu0
      %v3778 = vadd.f32 %v2161, %v3777
      %v3779 = vpop.f32.mrf.mxu0
      %v3780 = vadd.f32 %v2161, %v3779
      %3781 = vmatmul.bf16.gmra.mxu0 %v2076
      %v3782 = vpop.f32.mrf.mxu0
      %v3783 = vadd.f32 %v2161, %v3782
      %v3784 = vpop.f32.mrf.mxu0
      %v3785 = vadd.f32 %v2161, %v3784
      %3786 = vmatmul.bf16.gmra.mxu0 %v2077
      %v3787 = vpop.f32.mrf.mxu0
      %v3788 = vadd.f32 %v2161, %v3787
      %v3789 = vpop.f32.mrf.mxu0
      %v3790 = vadd.f32 %v2161, %v3789
      %3791 = vmatmul.bf16.gmra.mxu0 %v2078
      %v3792 = vpop.f32.mrf.mxu0
      %v3793 = vadd.f32 %v2161, %v3792
      %v3794 = vpop.f32.mrf.mxu0
      %v3795 = vadd.f32 %v2161, %v3794
      %3796 = vmatmul.bf16.gmra.mxu0 %v2079
      %v3797 = vpop.f32.mrf.mxu0
      %v3798 = vadd.f32 %v2161, %v3797
      %v3799 = vpop.f32.mrf.mxu0
      %v3800 = vadd.f32 %v2161, %v3799
      %3801 = vmatmul.bf16.gmra.mxu0 %v2080
      %v3802 = vpop.f32.mrf.mxu0
      %v3803 = vadd.f32 %v2161, %v3802
      %v3804 = vpop.f32.mrf.mxu0
      %v3805 = vadd.f32 %v2161, %v3804
      %3806 = vmatmul.bf16.gmra.mxu0 %v2081
      %v3807 = vpop.f32.mrf.mxu0
      %v3808 = vadd.f32 %v2161, %v3807
      %v3809 = vpop.f32.mrf.mxu0
      %v3810 = vadd.f32 %v2161, %v3809
      %3811 = vmatmul.bf16.gmra.mxu0 %v2082
      %v3812 = vpop.f32.mrf.mxu0
      %v3813 = vadd.f32 %v2161, %v3812
      %v3814 = vpop.f32.mrf.mxu0
      %v3815 = vadd.f32 %v2161, %v3814
      %3816 = vmatmul.bf16.gmra.mxu0 %v2083
      %v3817 = vpop.f32.mrf.mxu0
      %v3818 = vadd.f32 %v2161, %v3817
      %v3819 = vpop.f32.mrf.mxu0
      %v3820 = vadd.f32 %v2161, %v3819
      %3821 = vmatmul.bf16.gmra.mxu0 %v2084
      %v3822 = vpop.f32.mrf.mxu0
      %v3823 = vadd.f32 %v2161, %v3822
      %v3824 = vpop.f32.mrf.mxu0
      %v3825 = vadd.f32 %v2161, %v3824
      %3826 = vmatmul.bf16.gmra.mxu0 %v2085
      %v3827 = vpop.f32.mrf.mxu0
      %v3828 = vadd.f32 %v2161, %v3827
      %v3829 = vpop.f32.mrf.mxu0
      %v3830 = vadd.f32 %v2161, %v3829
      %3831 = vmatmul.bf16.gmra.mxu0 %v2086
      %v3832 = vpop.f32.mrf.mxu0
      %v3833 = vadd.f32 %v2161, %v3832
      %v3834 = vpop.f32.mrf.mxu0
      %v3835 = vadd.f32 %v2161, %v3834
      %3836 = vmatmul.bf16.gmra.mxu0 %v2087
      %v3837 = vpop.f32.mrf.mxu0
      %v3838 = vadd.f32 %v2161, %v3837
      %v3839 = vpop.f32.mrf.mxu0
      %v3840 = vadd.f32 %v2161, %v3839
      %3841 = vdwg.mxu0
      %v3842 = vmax.f32 %v2500, %v2502
      %v3843 = vmax.f32 %v3842, %v2505
      %v3844 = vmax.f32 %v3843, %v2507
      %v3845 = vmax.f32 %v3844, %v2510
      %v3846 = vmax.f32 %v3845, %v2512
      %v3847 = vmax.f32 %v3846, %v2515
      %v3848 = vmax.f32 %v3847, %v2517
      %v3849 = vmax.f32 %v3848, %v2520
      %v3850 = vmax.f32 %v3849, %v2522
      %v3851 = vmax.f32 %v3850, %v2525
      %v3852 = vmax.f32 %v3851, %v2527
      %v3853 = vmax.f32 %v3852, %v2530
      %v3854 = vmax.f32 %v3853, %v2532
      %v3855 = vmax.f32 %v3854, %v2535
      %v3856 = vmax.f32 %v3855, %v2537
      %v3857 = vmax.f32 %v3856, %v2540
      %v3858 = vmax.f32 %v3857, %v2542
      %v3859 = vmax.f32 %v3858, %v2545
      %v3860 = vmax.f32 %v3859, %v2547
      %v3861 = vmax.f32 %v3860, %v2550
      %v3862 = vmax.f32 %v3861, %v2552
      %v3863 = vmax.f32 %v3862, %v2555
      %v3864 = vmax.f32 %v3863, %v2557
      %v3865 = vmax.f32 %v3864, %v2560
      %v3866 = vmax.f32 %v3865, %v2562
      %v3867 = vmax.f32 %v3866, %v2565
      %v3868 = vmax.f32 %v3867, %v2567
      %v3869 = vmax.f32 %v3868, %v2570
      %v3870 = vmax.f32 %v3869, %v2572
      %v3871 = vmax.f32 %v3870, %v2575
      %v3872 = vmax.f32 %v3871, %v2577
      %v3873 = vmax.f32 %v3872, %v2580
      %v3874 = vmax.f32 %v3873, %v2582
      %v3875 = vmax.f32 %v3874, %v2585
      %v3876 = vmax.f32 %v3875, %v2587
      %v3877 = vmax.f32 %v3876, %v2590
      %v3878 = vmax.f32 %v3877, %v2592
      %v3879 = vmax.f32 %v3878, %v2595
      %v3880 = vmax.f32 %v3879, %v2597
      %v3881 = vmax.f32 %v3880, %v2600
      %v3882 = vmax.f32 %v3881, %v2602
      %v3883 = vmax.f32 %v3882, %v2605
      %v3884 = vmax.f32 %v3883, %v2607
      %v3885 = vmax.f32 %v3884, %v2610
      %v3886 = vmax.f32 %v3885, %v2612
      %v3887 = vmax.f32 %v3886, %v2615
      %v3888 = vmax.f32 %v3887, %v2617
      %v3889 = vmax.f32 %v3888, %v2620
      %v3890 = vmax.f32 %v3889, %v2622
      %v3891 = vmax.f32 %v3890, %v2625
      %v3892 = vmax.f32 %v3891, %v2627
      %v3893 = vmax.f32 %v3892, %v2630
      %v3894 = vmax.f32 %v3893, %v2632
      %v3895 = vmax.f32 %v3894, %v2635
      %v3896 = vmax.f32 %v3895, %v2637
      %v3897 = vmax.f32 %v3896, %v2640
      %v3898 = vmax.f32 %v3897, %v2642
      %v3899 = vmax.f32 %v3898, %v2645
      %v3900 = vmax.f32 %v3899, %v2647
      %v3901 = vmax.f32 %v3900, %v2650
      %v3902 = vmax.f32 %v3901, %v2652
      %v3903 = vmax.f32 %v3902, %v2655
      %v3904 = vmax.f32 %v3903, %v2657
      %v3905 = vrot.slane %v3904, 4
      %v3906 = vmax.f32 %v3904, %v3905
      %v3907 = vrot.slane %v3906, 2
      %v3908 = vmax.f32 %v3906, %v3907
      %v3909 = vrot.slane %v3908, 1
      %v3910 = vmax.f32 %v3908, %v3909
      %v3911 = vmax.f32 %v2669, %v2671
      %v3912 = vmax.f32 %v3911, %v2674
      %v3913 = vmax.f32 %v3912, %v2676
      %v3914 = vmax.f32 %v3913, %v2679
      %v3915 = vmax.f32 %v3914, %v2681
      %v3916 = vmax.f32 %v3915, %v2684
      %v3917 = vmax.f32 %v3916, %v2686
      %v3918 = vmax.f32 %v3917, %v2689
      %v3919 = vmax.f32 %v3918, %v2691
      %v3920 = vmax.f32 %v3919, %v2694
      %v3921 = vmax.f32 %v3920, %v2696
      %v3922 = vmax.f32 %v3921, %v2699
      %v3923 = vmax.f32 %v3922, %v2701
      %v3924 = vmax.f32 %v3923, %v2704
      %v3925 = vmax.f32 %v3924, %v2706
      %v3926 = vmax.f32 %v3925, %v2709
      %v3927 = vmax.f32 %v3926, %v2711
      %v3928 = vmax.f32 %v3927, %v2714
      %v3929 = vmax.f32 %v3928, %v2716
      %v3930 = vmax.f32 %v3929, %v2719
      %v3931 = vmax.f32 %v3930, %v2721
      %v3932 = vmax.f32 %v3931, %v2724
      %v3933 = vmax.f32 %v3932, %v2726
      %v3934 = vmax.f32 %v3933, %v2729
      %v3935 = vmax.f32 %v3934, %v2731
      %v3936 = vmax.f32 %v3935, %v2734
      %v3937 = vmax.f32 %v3936, %v2736
      %v3938 = vmax.f32 %v3937, %v2739
      %v3939 = vmax.f32 %v3938, %v2741
      %v3940 = vmax.f32 %v3939, %v2744
      %v3941 = vmax.f32 %v3940, %v2746
      %v3942 = vmax.f32 %v3941, %v2749
      %v3943 = vmax.f32 %v3942, %v2751
      %v3944 = vmax.f32 %v3943, %v2754
      %v3945 = vmax.f32 %v3944, %v2756
      %v3946 = vmax.f32 %v3945, %v2759
      %v3947 = vmax.f32 %v3946, %v2761
      %v3948 = vmax.f32 %v3947, %v2764
      %v3949 = vmax.f32 %v3948, %v2766
      %v3950 = vmax.f32 %v3949, %v2769
      %v3951 = vmax.f32 %v3950, %v2771
      %v3952 = vmax.f32 %v3951, %v2774
      %v3953 = vmax.f32 %v3952, %v2776
      %v3954 = vmax.f32 %v3953, %v2779
      %v3955 = vmax.f32 %v3954, %v2781
      %v3956 = vmax.f32 %v3955, %v2784
      %v3957 = vmax.f32 %v3956, %v2786
      %v3958 = vmax.f32 %v3957, %v2789
      %v3959 = vmax.f32 %v3958, %v2791
      %v3960 = vmax.f32 %v3959, %v2794
      %v3961 = vmax.f32 %v3960, %v2796
      %v3962 = vmax.f32 %v3961, %v2799
      %v3963 = vmax.f32 %v3962, %v2801
      %v3964 = vmax.f32 %v3963, %v2804
      %v3965 = vmax.f32 %v3964, %v2806
      %v3966 = vmax.f32 %v3965, %v2809
      %v3967 = vmax.f32 %v3966, %v2811
      %v3968 = vmax.f32 %v3967, %v2814
      %v3969 = vmax.f32 %v3968, %v2816
      %v3970 = vmax.f32 %v3969, %v2819
      %v3971 = vmax.f32 %v3970, %v2821
      %v3972 = vmax.f32 %v3971, %v2824
      %v3973 = vmax.f32 %v3972, %v2826
      %v3974 = vrot.slane %v3973, 4
      %v3975 = vmax.f32 %v3973, %v3974
      %v3976 = vrot.slane %v3975, 2
      %v3977 = vmax.f32 %v3975, %v3976
      %v3978 = vrot.slane %v3977, 1
      %v3979 = vmax.f32 %v3977, %v3978
      %v3980 = vmax.f32 %v2838, %v2840
      %v3981 = vmax.f32 %v3980, %v2843
      %v3982 = vmax.f32 %v3981, %v2845
      %v3983 = vmax.f32 %v3982, %v2848
      %v3984 = vmax.f32 %v3983, %v2850
      %v3985 = vmax.f32 %v3984, %v2853
      %v3986 = vmax.f32 %v3985, %v2855
      %v3987 = vmax.f32 %v3986, %v2858
      %v3988 = vmax.f32 %v3987, %v2860
      %v3989 = vmax.f32 %v3988, %v2863
      %v3990 = vmax.f32 %v3989, %v2865
      %v3991 = vmax.f32 %v3990, %v2868
      %v3992 = vmax.f32 %v3991, %v2870
      %v3993 = vmax.f32 %v3992, %v2873
      %v3994 = vmax.f32 %v3993, %v2875
      %v3995 = vmax.f32 %v3994, %v2878
      %v3996 = vmax.f32 %v3995, %v2880
      %v3997 = vmax.f32 %v3996, %v2883
      %v3998 = vmax.f32 %v3997, %v2885
      %v3999 = vmax.f32 %v3998, %v2888
      %v4000 = vmax.f32 %v3999, %v2890
      %v4001 = vmax.f32 %v4000, %v2893
      %v4002 = vmax.f32 %v4001, %v2895
      %v4003 = vmax.f32 %v4002, %v2898
      %v4004 = vmax.f32 %v4003, %v2900
      %v4005 = vmax.f32 %v4004, %v2903
      %v4006 = vmax.f32 %v4005, %v2905
      %v4007 = vmax.f32 %v4006, %v2908
      %v4008 = vmax.f32 %v4007, %v2910
      %v4009 = vmax.f32 %v4008, %v2913
      %v4010 = vmax.f32 %v4009, %v2915
      %v4011 = vmax.f32 %v4010, %v2918
      %v4012 = vmax.f32 %v4011, %v2920
      %v4013 = vmax.f32 %v4012, %v2923
      %v4014 = vmax.f32 %v4013, %v2925
      %v4015 = vmax.f32 %v4014, %v2928
      %v4016 = vmax.f32 %v4015, %v2930
      %v4017 = vmax.f32 %v4016, %v2933
      %v4018 = vmax.f32 %v4017, %v2935
      %v4019 = vmax.f32 %v4018, %v2938
      %v4020 = vmax.f32 %v4019, %v2940
      %v4021 = vmax.f32 %v4020, %v2943
      %v4022 = vmax.f32 %v4021, %v2945
      %v4023 = vmax.f32 %v4022, %v2948
      %v4024 = vmax.f32 %v4023, %v2950
      %v4025 = vmax.f32 %v4024, %v2953
      %v4026 = vmax.f32 %v4025, %v2955
      %v4027 = vmax.f32 %v4026, %v2958
      %v4028 = vmax.f32 %v4027, %v2960
      %v4029 = vmax.f32 %v4028, %v2963
      %v4030 = vmax.f32 %v4029, %v2965
      %v4031 = vmax.f32 %v4030, %v2968
      %v4032 = vmax.f32 %v4031, %v2970
      %v4033 = vmax.f32 %v4032, %v2973
      %v4034 = vmax.f32 %v4033, %v2975
      %v4035 = vmax.f32 %v4034, %v2978
      %v4036 = vmax.f32 %v4035, %v2980
      %v4037 = vmax.f32 %v4036, %v2983
      %v4038 = vmax.f32 %v4037, %v2985
      %v4039 = vmax.f32 %v4038, %v2988
      %v4040 = vmax.f32 %v4039, %v2990
      %v4041 = vmax.f32 %v4040, %v2993
      %v4042 = vmax.f32 %v4041, %v2995
      %v4043 = vrot.slane %v4042, 4
      %v4044 = vmax.f32 %v4042, %v4043
      %v4045 = vrot.slane %v4044, 2
      %v4046 = vmax.f32 %v4044, %v4045
      %v4047 = vrot.slane %v4046, 1
      %v4048 = vmax.f32 %v4046, %v4047
      %v4049 = vmax.f32 %v3007, %v3009
      %v4050 = vmax.f32 %v4049, %v3012
      %v4051 = vmax.f32 %v4050, %v3014
      %v4052 = vmax.f32 %v4051, %v3017
      %v4053 = vmax.f32 %v4052, %v3019
      %v4054 = vmax.f32 %v4053, %v3022
      %v4055 = vmax.f32 %v4054, %v3024
      %v4056 = vmax.f32 %v4055, %v3027
      %v4057 = vmax.f32 %v4056, %v3029
      %v4058 = vmax.f32 %v4057, %v3032
      %v4059 = vmax.f32 %v4058, %v3034
      %v4060 = vmax.f32 %v4059, %v3037
      %v4061 = vmax.f32 %v4060, %v3039
      %v4062 = vmax.f32 %v4061, %v3042
      %v4063 = vmax.f32 %v4062, %v3044
      %v4064 = vmax.f32 %v4063, %v3047
      %v4065 = vmax.f32 %v4064, %v3049
      %v4066 = vmax.f32 %v4065, %v3052
      %v4067 = vmax.f32 %v4066, %v3054
      %v4068 = vmax.f32 %v4067, %v3057
      %v4069 = vmax.f32 %v4068, %v3059
      %v4070 = vmax.f32 %v4069, %v3062
      %v4071 = vmax.f32 %v4070, %v3064
      %v4072 = vmax.f32 %v4071, %v3067
      %v4073 = vmax.f32 %v4072, %v3069
      %v4074 = vmax.f32 %v4073, %v3072
      %v4075 = vmax.f32 %v4074, %v3074
      %v4076 = vmax.f32 %v4075, %v3077
      %v4077 = vmax.f32 %v4076, %v3079
      %v4078 = vmax.f32 %v4077, %v3082
      %v4079 = vmax.f32 %v4078, %v3084
      %v4080 = vmax.f32 %v4079, %v3087
      %v4081 = vmax.f32 %v4080, %v3089
      %v4082 = vmax.f32 %v4081, %v3092
      %v4083 = vmax.f32 %v4082, %v3094
      %v4084 = vmax.f32 %v4083, %v3097
      %v4085 = vmax.f32 %v4084, %v3099
      %v4086 = vmax.f32 %v4085, %v3102
      %v4087 = vmax.f32 %v4086, %v3104
      %v4088 = vmax.f32 %v4087, %v3107
      %v4089 = vmax.f32 %v4088, %v3109
      %v4090 = vmax.f32 %v4089, %v3112
      %v4091 = vmax.f32 %v4090, %v3114
      %v4092 = vmax.f32 %v4091, %v3117
      %v4093 = vmax.f32 %v4092, %v3119
      %v4094 = vmax.f32 %v4093, %v3122
      %v4095 = vmax.f32 %v4094, %v3124
      %v4096 = vmax.f32 %v4095, %v3127
      %v4097 = vmax.f32 %v4096, %v3129
      %v4098 = vmax.f32 %v4097, %v3132
      %v4099 = vmax.f32 %v4098, %v3134
      %v4100 = vmax.f32 %v4099, %v3137
      %v4101 = vmax.f32 %v4100, %v3139
      %v4102 = vmax.f32 %v4101, %v3142
      %v4103 = vmax.f32 %v4102, %v3144
      %v4104 = vmax.f32 %v4103, %v3147
      %v4105 = vmax.f32 %v4104, %v3149
      %v4106 = vmax.f32 %v4105, %v3152
      %v4107 = vmax.f32 %v4106, %v3154
      %v4108 = vmax.f32 %v4107, %v3157
      %v4109 = vmax.f32 %v4108, %v3159
      %v4110 = vmax.f32 %v4109, %v3162
      %v4111 = vmax.f32 %v4110, %v3164
      %v4112 = vrot.slane %v4111, 4
      %v4113 = vmax.f32 %v4111, %v4112
      %v4114 = vrot.slane %v4113, 2
      %v4115 = vmax.f32 %v4113, %v4114
      %v4116 = vrot.slane %v4115, 1
      %v4117 = vmax.f32 %v4115, %v4116
      %v4118 = vmax.f32 %v3176, %v3178
      %v4119 = vmax.f32 %v4118, %v3181
      %v4120 = vmax.f32 %v4119, %v3183
      %v4121 = vmax.f32 %v4120, %v3186
      %v4122 = vmax.f32 %v4121, %v3188
      %v4123 = vmax.f32 %v4122, %v3191
      %v4124 = vmax.f32 %v4123, %v3193
      %v4125 = vmax.f32 %v4124, %v3196
      %v4126 = vmax.f32 %v4125, %v3198
      %v4127 = vmax.f32 %v4126, %v3201
      %v4128 = vmax.f32 %v4127, %v3203
      %v4129 = vmax.f32 %v4128, %v3206
      %v4130 = vmax.f32 %v4129, %v3208
      %v4131 = vmax.f32 %v4130, %v3211
      %v4132 = vmax.f32 %v4131, %v3213
      %v4133 = vmax.f32 %v4132, %v3216
      %v4134 = vmax.f32 %v4133, %v3218
      %v4135 = vmax.f32 %v4134, %v3221
      %v4136 = vmax.f32 %v4135, %v3223
      %v4137 = vmax.f32 %v4136, %v3226
      %v4138 = vmax.f32 %v4137, %v3228
      %v4139 = vmax.f32 %v4138, %v3231
      %v4140 = vmax.f32 %v4139, %v3233
      %v4141 = vmax.f32 %v4140, %v3236
      %v4142 = vmax.f32 %v4141, %v3238
      %v4143 = vmax.f32 %v4142, %v3241
      %v4144 = vmax.f32 %v4143, %v3243
      %v4145 = vmax.f32 %v4144, %v3246
      %v4146 = vmax.f32 %v4145, %v3248
      %v4147 = vmax.f32 %v4146, %v3251
      %v4148 = vmax.f32 %v4147, %v3253
      %v4149 = vmax.f32 %v4148, %v3256
      %v4150 = vmax.f32 %v4149, %v3258
      %v4151 = vmax.f32 %v4150, %v3261
      %v4152 = vmax.f32 %v4151, %v3263
      %v4153 = vmax.f32 %v4152, %v3266
      %v4154 = vmax.f32 %v4153, %v3268
      %v4155 = vmax.f32 %v4154, %v3271
      %v4156 = vmax.f32 %v4155, %v3273
      %v4157 = vmax.f32 %v4156, %v3276
      %v4158 = vmax.f32 %v4157, %v3278
      %v4159 = vmax.f32 %v4158, %v3281
      %v4160 = vmax.f32 %v4159, %v3283
      %v4161 = vmax.f32 %v4160, %v3286
      %v4162 = vmax.f32 %v4161, %v3288
      %v4163 = vmax.f32 %v4162, %v3291
      %v4164 = vmax.f32 %v4163, %v3293
      %v4165 = vmax.f32 %v4164, %v3296
      %v4166 = vmax.f32 %v4165, %v3298
      %v4167 = vmax.f32 %v4166, %v3301
      %v4168 = vmax.f32 %v4167, %v3303
      %v4169 = vmax.f32 %v4168, %v3306
      %v4170 = vmax.f32 %v4169, %v3308
      %v4171 = vmax.f32 %v4170, %v3311
      %v4172 = vmax.f32 %v4171, %v3313
      %v4173 = vmax.f32 %v4172, %v3316
      %v4174 = vmax.f32 %v4173, %v3318
      %v4175 = vmax.f32 %v4174, %v3321
      %v4176 = vmax.f32 %v4175, %v3323
      %v4177 = vmax.f32 %v4176, %v3326
      %v4178 = vmax.f32 %v4177, %v3328
      %v4179 = vmax.f32 %v4178, %v3331
      %v4180 = vmax.f32 %v4179, %v3333
      %v4181 = vrot.slane %v4180, 4
      %v4182 = vmax.f32 %v4180, %v4181
      %v4183 = vrot.slane %v4182, 2
      %v4184 = vmax.f32 %v4182, %v4183
      %v4185 = vrot.slane %v4184, 1
      %v4186 = vmax.f32 %v4184, %v4185
      %v4187 = vmax.f32 %v3345, %v3347
      %v4188 = vmax.f32 %v4187, %v3350
      %v4189 = vmax.f32 %v4188, %v3352
      %v4190 = vmax.f32 %v4189, %v3355
      %v4191 = vmax.f32 %v4190, %v3357
      %v4192 = vmax.f32 %v4191, %v3360
      %v4193 = vmax.f32 %v4192, %v3362
      %v4194 = vmax.f32 %v4193, %v3365
      %v4195 = vmax.f32 %v4194, %v3367
      %v4196 = vmax.f32 %v4195, %v3370
      %v4197 = vmax.f32 %v4196, %v3372
      %v4198 = vmax.f32 %v4197, %v3375
      %v4199 = vmax.f32 %v4198, %v3377
      %v4200 = vmax.f32 %v4199, %v3380
      %v4201 = vmax.f32 %v4200, %v3382
      %v4202 = vmax.f32 %v4201, %v3385
      %v4203 = vmax.f32 %v4202, %v3387
      %v4204 = vmax.f32 %v4203, %v3390
      %v4205 = vmax.f32 %v4204, %v3392
      %v4206 = vmax.f32 %v4205, %v3395
      %v4207 = vmax.f32 %v4206, %v3397
      %v4208 = vmax.f32 %v4207, %v3400
      %v4209 = vmax.f32 %v4208, %v3402
      %v4210 = vmax.f32 %v4209, %v3405
      %v4211 = vmax.f32 %v4210, %v3407
      %v4212 = vmax.f32 %v4211, %v3410
      %v4213 = vmax.f32 %v4212, %v3412
      %v4214 = vmax.f32 %v4213, %v3415
      %v4215 = vmax.f32 %v4214, %v3417
      %v4216 = vmax.f32 %v4215, %v3420
      %v4217 = vmax.f32 %v4216, %v3422
      %v4218 = vmax.f32 %v4217, %v3425
      %v4219 = vmax.f32 %v4218, %v3427
      %v4220 = vmax.f32 %v4219, %v3430
      %v4221 = vmax.f32 %v4220, %v3432
      %v4222 = vmax.f32 %v4221, %v3435
      %v4223 = vmax.f32 %v4222, %v3437
      %v4224 = vmax.f32 %v4223, %v3440
      %v4225 = vmax.f32 %v4224, %v3442
      %v4226 = vmax.f32 %v4225, %v3445
      %v4227 = vmax.f32 %v4226, %v3447
      %v4228 = vmax.f32 %v4227, %v3450
      %v4229 = vmax.f32 %v4228, %v3452
      %v4230 = vmax.f32 %v4229, %v3455
      %v4231 = vmax.f32 %v4230, %v3457
      %v4232 = vmax.f32 %v4231, %v3460
      %v4233 = vmax.f32 %v4232, %v3462
      %v4234 = vmax.f32 %v4233, %v3465
      %v4235 = vmax.f32 %v4234, %v3467
      %v4236 = vmax.f32 %v4235, %v3470
      %v4237 = vmax.f32 %v4236, %v3472
      %v4238 = vmax.f32 %v4237, %v3475
      %v4239 = vmax.f32 %v4238, %v3477
      %v4240 = vmax.f32 %v4239, %v3480
      %v4241 = vmax.f32 %v4240, %v3482
      %v4242 = vmax.f32 %v4241, %v3485
      %v4243 = vmax.f32 %v4242, %v3487
      %v4244 = vmax.f32 %v4243, %v3490
      %v4245 = vmax.f32 %v4244, %v3492
      %v4246 = vmax.f32 %v4245, %v3495
      %v4247 = vmax.f32 %v4246, %v3497
      %v4248 = vmax.f32 %v4247, %v3500
      %v4249 = vmax.f32 %v4248, %v3502
      %v4250 = vrot.slane %v4249, 4
      %v4251 = vmax.f32 %v4249, %v4250
      %v4252 = vrot.slane %v4251, 2
      %v4253 = vmax.f32 %v4251, %v4252
      %v4254 = vrot.slane %v4253, 1
      %v4255 = vmax.f32 %v4253, %v4254
      %v4256 = vmax.f32 %v3514, %v3516
      %v4257 = vmax.f32 %v4256, %v3519
      %v4258 = vmax.f32 %v4257, %v3521
      %v4259 = vmax.f32 %v4258, %v3524
      %v4260 = vmax.f32 %v4259, %v3526
      %v4261 = vmax.f32 %v4260, %v3529
      %v4262 = vmax.f32 %v4261, %v3531
      %v4263 = vmax.f32 %v4262, %v3534
      %v4264 = vmax.f32 %v4263, %v3536
      %v4265 = vmax.f32 %v4264, %v3539
      %v4266 = vmax.f32 %v4265, %v3541
      %v4267 = vmax.f32 %v4266, %v3544
      %v4268 = vmax.f32 %v4267, %v3546
      %v4269 = vmax.f32 %v4268, %v3549
      %v4270 = vmax.f32 %v4269, %v3551
      %v4271 = vmax.f32 %v4270, %v3554
      %v4272 = vmax.f32 %v4271, %v3556
      %v4273 = vmax.f32 %v4272, %v3559
      %v4274 = vmax.f32 %v4273, %v3561
      %v4275 = vmax.f32 %v4274, %v3564
      %v4276 = vmax.f32 %v4275, %v3566
      %v4277 = vmax.f32 %v4276, %v3569
      %v4278 = vmax.f32 %v4277, %v3571
      %v4279 = vmax.f32 %v4278, %v3574
      %v4280 = vmax.f32 %v4279, %v3576
      %v4281 = vmax.f32 %v4280, %v3579
      %v4282 = vmax.f32 %v4281, %v3581
      %v4283 = vmax.f32 %v4282, %v3584
      %v4284 = vmax.f32 %v4283, %v3586
      %v4285 = vmax.f32 %v4284, %v3589
      %v4286 = vmax.f32 %v4285, %v3591
      %v4287 = vmax.f32 %v4286, %v3594
      %v4288 = vmax.f32 %v4287, %v3596
      %v4289 = vmax.f32 %v4288, %v3599
      %v4290 = vmax.f32 %v4289, %v3601
      %v4291 = vmax.f32 %v4290, %v3604
      %v4292 = vmax.f32 %v4291, %v3606
      %v4293 = vmax.f32 %v4292, %v3609
      %v4294 = vmax.f32 %v4293, %v3611
      %v4295 = vmax.f32 %v4294, %v3614
      %v4296 = vmax.f32 %v4295, %v3616
      %v4297 = vmax.f32 %v4296, %v3619
      %v4298 = vmax.f32 %v4297, %v3621
      %v4299 = vmax.f32 %v4298, %v3624
      %v4300 = vmax.f32 %v4299, %v3626
      %v4301 = vmax.f32 %v4300, %v3629
      %v4302 = vmax.f32 %v4301, %v3631
      %v4303 = vmax.f32 %v4302, %v3634
      %v4304 = vmax.f32 %v4303, %v3636
      %v4305 = vmax.f32 %v4304, %v3639
      %v4306 = vmax.f32 %v4305, %v3641
      %v4307 = vmax.f32 %v4306, %v3644
      %v4308 = vmax.f32 %v4307, %v3646
      %v4309 = vmax.f32 %v4308, %v3649
      %v4310 = vmax.f32 %v4309, %v3651
      %v4311 = vmax.f32 %v4310, %v3654
      %v4312 = vmax.f32 %v4311, %v3656
      %v4313 = vmax.f32 %v4312, %v3659
      %v4314 = vmax.f32 %v4313, %v3661
      %v4315 = vmax.f32 %v4314, %v3664
      %v4316 = vmax.f32 %v4315, %v3666
      %v4317 = vmax.f32 %v4316, %v3669
      %v4318 = vmax.f32 %v4317, %v3671
      %v4319 = vrot.slane %v4318, 4
      %v4320 = vmax.f32 %v4318, %v4319
      %v4321 = vrot.slane %v4320, 2
      %v4322 = vmax.f32 %v4320, %v4321
      %v4323 = vrot.slane %v4322, 1
      %v4324 = vmax.f32 %v4322, %v4323
      %v4325 = vmax.f32 %v3683, %v3685
      %v4326 = vmax.f32 %v4325, %v3688
      %v4327 = vmax.f32 %v4326, %v3690
      %v4328 = vmax.f32 %v4327, %v3693
      %v4329 = vmax.f32 %v4328, %v3695
      %v4330 = vmax.f32 %v4329, %v3698
      %v4331 = vmax.f32 %v4330, %v3700
      %v4332 = vmax.f32 %v4331, %v3703
      %v4333 = vmax.f32 %v4332, %v3705
      %v4334 = vmax.f32 %v4333, %v3708
      %v4335 = vmax.f32 %v4334, %v3710
      %v4336 = vmax.f32 %v4335, %v3713
      %v4337 = vmax.f32 %v4336, %v3715
      %v4338 = vmax.f32 %v4337, %v3718
      %v4339 = vmax.f32 %v4338, %v3720
      %v4340 = vmax.f32 %v4339, %v3723
      %v4341 = vmax.f32 %v4340, %v3725
      %v4342 = vmax.f32 %v4341, %v3728
      %v4343 = vmax.f32 %v4342, %v3730
      %v4344 = vmax.f32 %v4343, %v3733
      %v4345 = vmax.f32 %v4344, %v3735
      %v4346 = vmax.f32 %v4345, %v3738
      %v4347 = vmax.f32 %v4346, %v3740
      %v4348 = vmax.f32 %v4347, %v3743
      %v4349 = vmax.f32 %v4348, %v3745
      %v4350 = vmax.f32 %v4349, %v3748
      %v4351 = vmax.f32 %v4350, %v3750
      %v4352 = vmax.f32 %v4351, %v3753
      %v4353 = vmax.f32 %v4352, %v3755
      %v4354 = vmax.f32 %v4353, %v3758
      %v4355 = vmax.f32 %v4354, %v3760
      %v4356 = vmax.f32 %v4355, %v3763
      %v4357 = vmax.f32 %v4356, %v3765
      %v4358 = vmax.f32 %v4357, %v3768
      %v4359 = vmax.f32 %v4358, %v3770
      %v4360 = vmax.f32 %v4359, %v3773
      %v4361 = vmax.f32 %v4360, %v3775
      %v4362 = vmax.f32 %v4361, %v3778
      %v4363 = vmax.f32 %v4362, %v3780
      %v4364 = vmax.f32 %v4363, %v3783
      %v4365 = vmax.f32 %v4364, %v3785
      %v4366 = vmax.f32 %v4365, %v3788
      %v4367 = vmax.f32 %v4366, %v3790
      %v4368 = vmax.f32 %v4367, %v3793
      %v4369 = vmax.f32 %v4368, %v3795
      %v4370 = vmax.f32 %v4369, %v3798
      %v4371 = vmax.f32 %v4370, %v3800
      %v4372 = vmax.f32 %v4371, %v3803
      %v4373 = vmax.f32 %v4372, %v3805
      %v4374 = vmax.f32 %v4373, %v3808
      %v4375 = vmax.f32 %v4374, %v3810
      %v4376 = vmax.f32 %v4375, %v3813
      %v4377 = vmax.f32 %v4376, %v3815
      %v4378 = vmax.f32 %v4377, %v3818
      %v4379 = vmax.f32 %v4378, %v3820
      %v4380 = vmax.f32 %v4379, %v3823
      %v4381 = vmax.f32 %v4380, %v3825
      %v4382 = vmax.f32 %v4381, %v3828
      %v4383 = vmax.f32 %v4382, %v3830
      %v4384 = vmax.f32 %v4383, %v3833
      %v4385 = vmax.f32 %v4384, %v3835
      %v4386 = vmax.f32 %v4385, %v3838
      %v4387 = vmax.f32 %v4386, %v3840
      %v4388 = vrot.slane %v4387, 4
      %v4389 = vmax.f32 %v4387, %v4388
      %v4390 = vrot.slane %v4389, 2
      %v4391 = vmax.f32 %v4389, %v4390
      %v4392 = vrot.slane %v4391, 1
      %v4393 = vmax.f32 %v4391, %v4392
      %p4394 = scmp.eq.s32.totalorder %s23, 0
      // Predicated region
      $region49: #{pointnet_autoencoder.2} parent=47 // pred_check
        %p4395 = pneg %p4394
      $region50: #{pointnet_autoencoder.2} parent=47 // pred_check_branch
        %4397 = sbr.rel (%p4395) target = $region52
      $region51: #{pointnet_autoencoder.2} parent=47 // pred_region
        %4398 = vst [vmem:[%s304] sm:$0xff] -inf
      $region52: #{pointnet_autoencoder.2} parent=47 // pred_fallthru
        _
      %v4399 = vld [vmem:[%s304] sm:$0xff]
      %v4408 = vrot.slane %v3979, 7
      %v4409 = vrot.slane %v4048, 6
      %v4410 = vrot.slane %v4117, 5
      %v4411 = vrot.slane %v4186, 4
      %v4412 = vrot.slane %v4255, 3
      %v4413 = vrot.slane %v4324, 2
      %v4414 = vrot.slane %v4393, 1
      %vm4415 = vcmask 1040384
      %v4416 = vsel %vm4415, %v3910, %v4408
      %vm4417 = vcmask 1042434
      %v4418 = vsel %vm4417, %v4409, %v4410
      %vm4419 = vcmask 1041408
      %v4420 = vsel %vm4419, %v4416, %v4418
      %vm4421 = vcmask 1044484
      %v4422 = vsel %vm4421, %v4411, %v4412
      %vm4423 = vcmask 1046534
      %v4424 = vsel %vm4423, %v4413, %v4414
      %vm4425 = vcmask 1045508
      %v4426 = vsel %vm4425, %v4422, %v4424
      %vm4427 = vcmask 1043456
      %v4428 = vsel %vm4427, %v4420, %v4426
      %v4430 = vmax.f32 %v4399, %v4428
      %4431 = vst [vmem:[%s304] sm:$0xff] %v4430
      %p4432 = scmp.lt.s32.totalorder %s22, 1
      %s4433 = scalar_select %p4432, %s22, 1
      %s4434 = smul.addr %s4433, 8
      %s4435 = scalar_lea.vmem %s7, %s4434
      // Predicated region
      $region53: #{pointnet_autoencoder.2} parent=47 // pred_check
        %p4436 = pneg %p202
      $region54: #{pointnet_autoencoder.2} parent=47 // pred_check_branch
        %4438 = sbr.rel (%p4436) target = $region56
      $region55: #{pointnet_autoencoder.2} parent=47 // pred_region
        _
      $region56: #{pointnet_autoencoder.2} parent=47 // pred_fallthru
        _
    $region48: #{pointnet_autoencoder.2} parent=5 // pred_fallthru
      _
    %p4439 = scmp.le.s32.totalorder 2, %s13
    // Predicated region
    $region57: #{pointnet_autoencoder.2} parent=5 // pred_check
      %p4440 = pneg %p4439
    $region58: #{pointnet_autoencoder.2} parent=5 // pred_check_branch
      %4442 = sbr.rel (%p4440) target = $region60
    $region59: #{pointnet_autoencoder.2} parent=5 // pred_region
      %s4443 = ssub.s32 %s13, 2
      // Predicated region
      $region61: #{pointnet_autoencoder.2} parent=59 // pred_check
        %p4444 = pneg %p208
      $region62: #{pointnet_autoencoder.2} parent=59 // pred_check_branch
        %4446 = sbr.rel (%p4444) target = $region64
      $region63: #{pointnet_autoencoder.2} parent=59 // pred_region
        %p4447 = scmp.lt.s32.totalorder %s24, 1
        %s4448 = scalar_select %p4447, %s24, 1
        %s4449 = smul.addr %s4448, 8
        %s4450 = scalar_lea.vmem %s7, %s4449
      $region64: #{pointnet_autoencoder.2} parent=59 // pred_fallthru
        _
    $region60: #{pointnet_autoencoder.2} parent=5 // pred_fallthru
      _
  $region6: #{pointnet_autoencoder.2} parent=0 // loop_footer
    %s17 = sadd.s32 1, %s13
  $region7: #{pointnet_autoencoder.2} parent=0 // loop_footer_branch
    %12 = sbr.rel target = $region3
  $region8: #{pointnet_autoencoder.2} parent=0 // loop_exit
    _

// kernel: pointnet_autoencoder.3
$region0: #{pointnet_autoencoder.3}
  #allocation0 [shape = 'u32[]', space=smem, size = 0x4, offset = 0x4, fixed_abs, tag = 'smem constant byte address 0x4 - core index']
  #allocation1 [shape = 'u32[72,128]{1,0:T(1,128)}', space=vmem, size = 0x9000, scoped, tag = 'internal scratch']
  #allocation2 [shape = 'bf16[2,512]{1,0:T(2,128)(2,1)}', space=vmem, size = 0x800, scoped, tag = 'scratch operand']
  %s0 = inlined_call_operand.vmem [shape: f32[2,1024], index: 0, kind: input, shape index: {}]
  %s1 = inlined_call_operand.vmem [shape: bf16[1024,128], index: 1, kind: input, shape index: {}]
  %s2 = inlined_call_operand.vmem [shape: f32[1,128], index: 2, kind: input, shape index: {}]
  %s3 = inlined_call_operand.vmem [shape: bf16[128,256], index: 3, kind: input, shape index: {}]
  %s4 = inlined_call_operand.vmem [shape: f32[1,256], index: 4, kind: input, shape index: {}]
  %s5 = inlined_call_operand.vmem [shape: bf16[256,512], index: 5, kind: input, shape index: {}]
  %s6 = inlined_call_operand.vmem [shape: f32[1,512], index: 6, kind: input, shape index: {}]
  %s7 = inlined_call_operand.vmem [shape: bf16[512,1536], index: 7, kind: input, shape index: {}]
  %s8 = inlined_call_operand.vmem [shape: f32[1,1536], index: 8, kind: input, shape index: {}]
  %s9 = inlined_call_operand.vmem [shape: f32[2,1536], index: 9, kind: output, shape index: {}]
  %s10 = sld [smem:[#allocation0]]
  $region96: #{pointnet_autoencoder.3} parent=0
    _
  %s12 = ssub.s32 1, %s10
  %s13 = scalar_select 0, %s12, %s10
  $region1: #{pointnet_autoencoder.3} parent=0
    #allocation3 [shape = 'u8[1572864]{0}', space=vmem, size = 0x180000, scoped, tag = 'input window, operand 7']
    loop: start=0, step=1, limit=4
    $region2: #{pointnet_autoencoder.3} parent=1 // loop_pre_header
      _
    $region3: #{pointnet_autoencoder.3} parent=1 // loop_header
      %s15 = sphi 0, %s19
      %p16 = scmp.ge.s32.totalorder %s15, 4
      %s23 = sphi 0, %s23
      %s25 = sphi 0, %s23
      %s26 = sphi 0, %s25
      %s40 = sphi 0, %s26
      %s44 = sphi 0, %s44
      %s46 = sphi 0, %s44
      %s47 = sphi 0, %s46
      %s61 = sphi 0, %s47
      %s65 = sphi 0, %s65
      %s67 = sphi 0, %s65
      %s68 = sphi 0, %s67
      %s82 = sphi 0, %s68
      %s86 = sphi 0, %s86
      %s88 = sphi 0, %s86
      %s89 = sphi 0, %s88
      %s103 = sphi 0, %s89
      %s107 = sphi 0, %s107
      %s109 = sphi 0, %s107
      %s110 = sphi 0, %s109
      %s124 = sphi 0, %s110
      %s128 = sphi 0, %s128
      %s130 = sphi 0, %s128
      %s131 = sphi 0, %s130
      %s145 = sphi 0, %s131
      %s149 = sphi 0, %s149
      %s151 = sphi 0, %s149
      %s152 = sphi 0, %s151
      %s166 = sphi 0, %s152
      %s172 = sphi 0, %s174
      %s175 = sphi 0, %s172
      %s176 = sphi 0, %s175
      %s192 = sphi 0, %s176
      %s198 = sphi 0, %s200
      %s201 = sphi 0, %s198
      %s202 = sphi 0, %s201
      %s218 = sphi 0, %s202
      %s224 = sphi 0, %s226
      %s227 = sphi 0, %s224
      %s228 = sphi 0, %s227
      %s244 = sphi 0, %s228
    $region4: #{pointnet_autoencoder.3} parent=1 // loop_header_branch
      %18 = sbr.rel (%p16) target = $region8
    $region5: #{pointnet_autoencoder.3} parent=1 // loop_body
      %s20 = ssub.s32 %s15, 1
      %s21 = ssub.s32 %s15, 2
      %s22 = sadd.s32 %s15, 1
      %s24 = sadd.s32 %s23, 1
      %p27 = scmp.eq.s32.totalorder %s15, 1
      %p28 = scmp.ne.s32.totalorder %s23, %s25
      %p29 = scmp.eq.s32.totalorder %s15, 0
      %p30 = por %p28, %p29
      %p31 = scmp.ne.s32.totalorder %s23, %s25
      %p32 = scmp.eq.s32.totalorder %s20, 1
      %p33 = por %p31, %p32
      %p34 = scmp.ne.s32.totalorder %s25, %s26
      %p35 = scmp.eq.s32.totalorder %s20, 0
      %p36 = por %p34, %p35
      %p37 = scmp.ne.s32.totalorder %s25, %s26
      %p38 = scmp.eq.s32.totalorder %s21, 1
      %p39 = por %p37, %p38
      %p41 = scmp.ne.s32.totalorder %s26, %s40
      %p42 = scmp.eq.s32.totalorder %s21, 0
      %p43 = por %p41, %p42
      %s45 = sadd.s32 %s44, 1
      %p48 = scmp.eq.s32.totalorder %s15, 1
      %p49 = scmp.ne.s32.totalorder %s44, %s46
      %p50 = scmp.eq.s32.totalorder %s15, 0
      %p51 = por %p49, %p50
      %p52 = scmp.ne.s32.totalorder %s44, %s46
      %p53 = scmp.eq.s32.totalorder %s20, 1
      %p54 = por %p52, %p53
      %p55 = scmp.ne.s32.totalorder %s46, %s47
      %p56 = scmp.eq.s32.totalorder %s20, 0
      %p57 = por %p55, %p56
      %p58 = scmp.ne.s32.totalorder %s46, %s47
      %p59 = scmp.eq.s32.totalorder %s21, 1
      %p60 = por %p58, %p59
      %p62 = scmp.ne.s32.totalorder %s47, %s61
      %p63 = scmp.eq.s32.totalorder %s21, 0
      %p64 = por %p62, %p63
      %s66 = sadd.s32 %s65, 1
      %p69 = scmp.eq.s32.totalorder %s15, 1
      %p70 = scmp.ne.s32.totalorder %s65, %s67
      %p71 = scmp.eq.s32.totalorder %s15, 0
      %p72 = por %p70, %p71
      %p73 = scmp.ne.s32.totalorder %s65, %s67
      %p74 = scmp.eq.s32.totalorder %s20, 1
      %p75 = por %p73, %p74
      %p76 = scmp.ne.s32.totalorder %s67, %s68
      %p77 = scmp.eq.s32.totalorder %s20, 0
      %p78 = por %p76, %p77
      %p79 = scmp.ne.s32.totalorder %s67, %s68
      %p80 = scmp.eq.s32.totalorder %s21, 1
      %p81 = por %p79, %p80
      %p83 = scmp.ne.s32.totalorder %s68, %s82
      %p84 = scmp.eq.s32.totalorder %s21, 0
      %p85 = por %p83, %p84
      %s87 = sadd.s32 %s86, 1
      %p90 = scmp.eq.s32.totalorder %s15, 1
      %p91 = scmp.ne.s32.totalorder %s86, %s88
      %p92 = scmp.eq.s32.totalorder %s15, 0
      %p93 = por %p91, %p92
      %p94 = scmp.ne.s32.totalorder %s86, %s88
      %p95 = scmp.eq.s32.totalorder %s20, 1
      %p96 = por %p94, %p95
      %p97 = scmp.ne.s32.totalorder %s88, %s89
      %p98 = scmp.eq.s32.totalorder %s20, 0
      %p99 = por %p97, %p98
      %p100 = scmp.ne.s32.totalorder %s88, %s89
      %p101 = scmp.eq.s32.totalorder %s21, 1
      %p102 = por %p100, %p101
      %p104 = scmp.ne.s32.totalorder %s89, %s103
      %p105 = scmp.eq.s32.totalorder %s21, 0
      %p106 = por %p104, %p105
      %s108 = sadd.s32 %s107, 1
      %p111 = scmp.eq.s32.totalorder %s15, 1
      %p112 = scmp.ne.s32.totalorder %s107, %s109
      %p113 = scmp.eq.s32.totalorder %s15, 0
      %p114 = por %p112, %p113
      %p115 = scmp.ne.s32.totalorder %s107, %s109
      %p116 = scmp.eq.s32.totalorder %s20, 1
      %p117 = por %p115, %p116
      %p118 = scmp.ne.s32.totalorder %s109, %s110
      %p119 = scmp.eq.s32.totalorder %s20, 0
      %p120 = por %p118, %p119
      %p121 = scmp.ne.s32.totalorder %s109, %s110
      %p122 = scmp.eq.s32.totalorder %s21, 1
      %p123 = por %p121, %p122
      %p125 = scmp.ne.s32.totalorder %s110, %s124
      %p126 = scmp.eq.s32.totalorder %s21, 0
      %p127 = por %p125, %p126
      %s129 = sadd.s32 %s128, 1
      %p132 = scmp.eq.s32.totalorder %s15, 1
      %p133 = scmp.ne.s32.totalorder %s128, %s130
      %p134 = scmp.eq.s32.totalorder %s15, 0
      %p135 = por %p133, %p134
      %p136 = scmp.ne.s32.totalorder %s128, %s130
      %p137 = scmp.eq.s32.totalorder %s20, 1
      %p138 = por %p136, %p137
      %p139 = scmp.ne.s32.totalorder %s130, %s131
      %p140 = scmp.eq.s32.totalorder %s20, 0
      %p141 = por %p139, %p140
      %p142 = scmp.ne.s32.totalorder %s130, %s131
      %p143 = scmp.eq.s32.totalorder %s21, 1
      %p144 = por %p142, %p143
      %p146 = scmp.ne.s32.totalorder %s131, %s145
      %p147 = scmp.eq.s32.totalorder %s21, 0
      %p148 = por %p146, %p147
      %s150 = sadd.s32 %s149, 1
      %p153 = scmp.eq.s32.totalorder %s15, 1
      %p154 = scmp.ne.s32.totalorder %s149, %s151
      %p155 = scmp.eq.s32.totalorder %s15, 0
      %p156 = por %p154, %p155
      %p157 = scmp.ne.s32.totalorder %s149, %s151
      %p158 = scmp.eq.s32.totalorder %s20, 1
      %p159 = por %p157, %p158
      %p160 = scmp.ne.s32.totalorder %s151, %s152
      %p161 = scmp.eq.s32.totalorder %s20, 0
      %p162 = por %p160, %p161
      %p163 = scmp.ne.s32.totalorder %s151, %s152
      %p164 = scmp.eq.s32.totalorder %s21, 1
      %p165 = por %p163, %p164
      %p167 = scmp.ne.s32.totalorder %s152, %s166
      %p168 = scmp.eq.s32.totalorder %s21, 0
      %p169 = por %p167, %p168
      %s170 = ssub.s32 %s15, %s22
      %p171 = scmp.eq.s32.totalorder %s170, 0
      %s173 = sadd.s32 %s172, 1
      %s174 = scalar_select %p171, %s172, %s173
      %p177 = pneg %p171
      %p178 = scmp.eq.s32.totalorder %s15, 1
      %p179 = por %p177, %p178
      %p180 = scmp.ne.s32.totalorder %s172, %s175
      %p181 = scmp.eq.s32.totalorder %s15, 0
      %p182 = por %p180, %p181
      %p183 = scmp.ne.s32.totalorder %s172, %s175
      %p184 = scmp.eq.s32.totalorder %s20, 1
      %p185 = por %p183, %p184
      %p186 = scmp.ne.s32.totalorder %s175, %s176
      %p187 = scmp.eq.s32.totalorder %s20, 0
      %p188 = por %p186, %p187
      %p189 = scmp.ne.s32.totalorder %s175, %s176
      %p190 = scmp.eq.s32.totalorder %s21, 1
      %p191 = por %p189, %p190
      %p193 = scmp.ne.s32.totalorder %s176, %s192
      %p194 = scmp.eq.s32.totalorder %s21, 0
      %p195 = por %p193, %p194
      %s196 = ssub.s32 %s15, %s22
      %p197 = scmp.eq.s32.totalorder %s196, 0
      %s199 = sadd.s32 %s198, 1
      %s200 = scalar_select %p197, %s198, %s199
      %p203 = pneg %p197
      %p204 = scmp.eq.s32.totalorder %s15, 1
      %p205 = por %p203, %p204
      %p206 = scmp.ne.s32.totalorder %s198, %s201
      %p207 = scmp.eq.s32.totalorder %s15, 0
      %p208 = por %p206, %p207
      %p209 = scmp.ne.s32.totalorder %s198, %s201
      %p210 = scmp.eq.s32.totalorder %s20, 1
      %p211 = por %p209, %p210
      %p212 = scmp.ne.s32.totalorder %s201, %s202
      %p213 = scmp.eq.s32.totalorder %s20, 0
      %p214 = por %p212, %p213
      %p215 = scmp.ne.s32.totalorder %s201, %s202
      %p216 = scmp.eq.s32.totalorder %s21, 1
      %p217 = por %p215, %p216
      %p219 = scmp.ne.s32.totalorder %s202, %s218
      %p220 = scmp.eq.s32.totalorder %s21, 0
      %p221 = por %p219, %p220
      %s222 = ssub.s32 %s15, %s22
      %p223 = scmp.eq.s32.totalorder %s222, 0
      %s225 = sadd.s32 %s224, 1
      %s226 = scalar_select %p223, %s224, %s225
      %p229 = pneg %p223
      %p230 = scmp.eq.s32.totalorder %s15, 1
      %p231 = por %p229, %p230
      %p232 = scmp.ne.s32.totalorder %s224, %s227
      %p233 = scmp.eq.s32.totalorder %s15, 0
      %p234 = por %p232, %p233
      %p235 = scmp.ne.s32.totalorder %s224, %s227
      %p236 = scmp.eq.s32.totalorder %s20, 1
      %p237 = por %p235, %p236
      %p238 = scmp.ne.s32.totalorder %s227, %s228
      %p239 = scmp.eq.s32.totalorder %s20, 0
      %p240 = por %p238, %p239
      %p241 = scmp.ne.s32.totalorder %s227, %s228
      %p242 = scmp.eq.s32.totalorder %s21, 1
      %p243 = por %p241, %p242
      %p245 = scmp.ne.s32.totalorder %s228, %s244
      %p246 = scmp.eq.s32.totalorder %s21, 0
      %p247 = por %p245, %p246
      %p248 = scmp.le.s32.totalorder 1, %s15
      %p249 = scmp.lt.s32.totalorder %s15, 3
      %p250 = pnand %p248, %p249
      %p251 = pneg %p250
      // Predicated region
      $region9: #{pointnet_autoencoder.3} parent=5 // pred_check
        _
      $region10: #{pointnet_autoencoder.3} parent=5 // pred_check_branch
        %253 = sbr.rel (%p250) target = $region12
      $region11: #{pointnet_autoencoder.3} parent=5 // pred_region
        %s254 = ssub.s32 %s15, 1
        // Predicated region
        $region13: #{pointnet_autoencoder.3} parent=11 // pred_check
          %p255 = pneg %p36
        $region14: #{pointnet_autoencoder.3} parent=11 // pred_check_branch
          %257 = sbr.rel (%p255) target = $region16
        $region15: #{pointnet_autoencoder.3} parent=11 // pred_region
          _
        $region16: #{pointnet_autoencoder.3} parent=11 // pred_fallthru
          _
        // Predicated region
        $region17: #{pointnet_autoencoder.3} parent=11 // pred_check
          %p258 = pneg %p57
        $region18: #{pointnet_autoencoder.3} parent=11 // pred_check_branch
          %260 = sbr.rel (%p258) target = $region20
        $region19: #{pointnet_autoencoder.3} parent=11 // pred_region
          _
        $region20: #{pointnet_autoencoder.3} parent=11 // pred_fallthru
          _
        // Predicated region
        $region21: #{pointnet_autoencoder.3} parent=11 // pred_check
          %p261 = pneg %p78
        $region22: #{pointnet_autoencoder.3} parent=11 // pred_check_branch
          %263 = sbr.rel (%p261) target = $region24
        $region23: #{pointnet_autoencoder.3} parent=11 // pred_region
          _
        $region24: #{pointnet_autoencoder.3} parent=11 // pred_fallthru
          _
        // Predicated region
        $region25: #{pointnet_autoencoder.3} parent=11 // pred_check
          %p264 = pneg %p99
        $region26: #{pointnet_autoencoder.3} parent=11 // pred_check_branch
          %266 = sbr.rel (%p264) target = $region28
        $region27: #{pointnet_autoencoder.3} parent=11 // pred_region
          _
        $region28: #{pointnet_autoencoder.3} parent=11 // pred_fallthru
          _
        // Predicated region
        $region29: #{pointnet_autoencoder.3} parent=11 // pred_check
          %p267 = pneg %p120
        $region30: #{pointnet_autoencoder.3} parent=11 // pred_check_branch
          %269 = sbr.rel (%p267) target = $region32
        $region31: #{pointnet_autoencoder.3} parent=11 // pred_region
          _
        $region32: #{pointnet_autoencoder.3} parent=11 // pred_fallthru
          _
        // Predicated region
        $region33: #{pointnet_autoencoder.3} parent=11 // pred_check
          %p270 = pneg %p141
        $region34: #{pointnet_autoencoder.3} parent=11 // pred_check_branch
          %272 = sbr.rel (%p270) target = $region36
        $region35: #{pointnet_autoencoder.3} parent=11 // pred_region
          _
        $region36: #{pointnet_autoencoder.3} parent=11 // pred_fallthru
          _
        // Predicated region
        $region37: #{pointnet_autoencoder.3} parent=11 // pred_check
          %p273 = pneg %p162
        $region38: #{pointnet_autoencoder.3} parent=11 // pred_check_branch
          %275 = sbr.rel (%p273) target = $region40
        $region39: #{pointnet_autoencoder.3} parent=11 // pred_region
          _
        $region40: #{pointnet_autoencoder.3} parent=11 // pred_fallthru
          _
      $region12: #{pointnet_autoencoder.3} parent=5 // pred_fallthru
        _
      %p276 = scmp.lt.s32.totalorder %s15, 2
      // Predicated region
      $region41: #{pointnet_autoencoder.3} parent=5 // pred_check
        %p277 = pneg %p276
      $region42: #{pointnet_autoencoder.3} parent=5 // pred_check_branch
        %279 = sbr.rel (%p277) target = $region44
      $region43: #{pointnet_autoencoder.3} parent=5 // pred_region
        // Predicated region
        $region45: #{pointnet_autoencoder.3} parent=43 // pred_check
          %p280 = pneg %p182
        $region46: #{pointnet_autoencoder.3} parent=43 // pred_check_branch
          %282 = sbr.rel (%p280) target = $region48
        $region47: #{pointnet_autoencoder.3} parent=43 // pred_region
          %s283 = sand.u32 %s172, 1
          %s284 = sand.u32 %s172, 1
          %s285 = smul.addr %s284, 1536
          %s286 = scalar_lea.vmem [#allocation3], %s285
          %s287 = smul.u32 6, %s15
          %s288 = smul.addr %s287, 4
          %s289 = scalar_lea.vmem %s7, %s288
          // Predicated region
          $region49: #{pointnet_autoencoder.3} parent=47 // pred_check
            _
          $region50: #{pointnet_autoencoder.3} parent=47 // pred_check_branch
            %291 = sbr.rel (0) target = $region52
          $region51: #{pointnet_autoencoder.3} parent=47 // pred_region
            // Predicated region
            $region53: #{pointnet_autoencoder.3} parent=51 // pred_check
              _
            $region54: #{pointnet_autoencoder.3} parent=51 // pred_check_branch
              %293 = sbr.rel (0) target = $region56
            $region55: #{pointnet_autoencoder.3} parent=51 // pred_region
              loop: start=0, step=1, limit=1
              $region57: #{pointnet_autoencoder.3} parent=55 // loop_pre_header
                _
              $region58: #{pointnet_autoencoder.3} parent=55 // loop_header
                %s295 = sphi 0, %s299
                %p296 = scmp.ge.s32.totalorder %s295, 1
                %s300 = sphi %s289, %s289
                %s301 = sphi %s286, %s286
              $region59: #{pointnet_autoencoder.3} parent=55 // loop_header_branch
                %298 = sbr.rel (%p296) target = $region63
              $region60: #{pointnet_autoencoder.3} parent=55 // loop_body
                %v302 = vld [vmem:[%s300] sm:$0xff]
                %303 = vst [vmem:[%s301] sm:$0xff] %v302
                %v304 = vld [vmem:[%s300 + $0x8] sm:$0xff]
                %305 = vst [vmem:[%s301 + $0x8] sm:$0xff] %v304
                %v306 = vld [vmem:[%s300 + $0x10] sm:$0xff]
                %307 = vst [vmem:[%s301 + $0x10] sm:$0xff] %v306
                %v308 = vld [vmem:[%s300 + $0x30] sm:$0xff]
                %309 = vst [vmem:[%s301 + $0x18] sm:$0xff] %v308
                %v310 = vld [vmem:[%s300 + $0x38] sm:$0xff]
                %311 = vst [vmem:[%s301 + $0x20] sm:$0xff] %v310
                %v312 = vld [vmem:[%s300 + $0x40] sm:$0xff]
                %313 = vst [vmem:[%s301 + $0x28] sm:$0xff] %v312
                %v314 = vld [vmem:[%s300 + $0x60] sm:$0xff]
                %315 = vst [vmem:[%s301 + $0x30] sm:$0xff] %v314
                %v316 = vld [vmem:[%s300 + $0x68] sm:$0xff]
                %317 = vst [vmem:[%s301 + $0x38] sm:$0xff] %v316
                %v318 = vld [vmem:[%s300 + $0x70] sm:$0xff]
                %319 = vst [vmem:[%s301 + $0x40] sm:$0xff] %v318
                %v320 = vld [vmem:[%s300 + $0x90] sm:$0xff]
                %321 = vst [vmem:[%s301 + $0x48] sm:$0xff] %v320
                %v322 = vld [vmem:[%s300 + $0x98] sm:$0xff]
                %323 = vst [vmem:[%s301 + $0x50] sm:$0xff] %v322
                %v324 = vld [vmem:[%s300 + $0xa0] sm:$0xff]
                %325 = vst [vmem:[%s301 + $0x58] sm:$0xff] %v324
                %v326 = vld [vmem:[%s300 + $0xc0] sm:$0xff]
                %327 = vst [vmem:[%s301 + $0x60] sm:$0xff] %v326
                %v328 = vld [vmem:[%s300 + $0xc8] sm:$0xff]
                %329 = vst [vmem:[%s301 + $0x68] sm:$0xff] %v328
                %v330 = vld [vmem:[%s300 + $0xd0] sm:$0xff]
                %331 = vst [vmem:[%s301 + $0x70] sm:$0xff] %v330
                %v332 = vld [vmem:[%s300 + $0xf0] sm:$0xff]
                %333 = vst [vmem:[%s301 + $0x78] sm:$0xff] %v332
                %v334 = vld [vmem:[%s300 + $0xf8] sm:$0xff]
                %335 = vst [vmem:[%s301 + $0x80] sm:$0xff] %v334
                %v336 = vld [vmem:[%s300 + $0x100] sm:$0xff]
                %337 = vst [vmem:[%s301 + $0x88] sm:$0xff] %v336
                %v338 = vld [vmem:[%s300 + $0x120] sm:$0xff]
                %339 = vst [vmem:[%s301 + $0x90] sm:$0xff] %v338
                %v340 = vld [vmem:[%s300 + $0x128] sm:$0xff]
                %341 = vst [vmem:[%s301 + $0x98] sm:$0xff] %v340
                %v342 = vld [vmem:[%s300 + $0x130] sm:$0xff]
                %343 = vst [vmem:[%s301 + $0xa0] sm:$0xff] %v342
                %v344 = vld [vmem:[%s300 + $0x150] sm:$0xff]
                %345 = vst [vmem:[%s301 + $0xa8] sm:$0xff] %v344
                %v346 = vld [vmem:[%s300 + $0x158] sm:$0xff]
                %347 = vst [vmem:[%s301 + $0xb0] sm:$0xff] %v346
                %v348 = vld [vmem:[%s300 + $0x160] sm:$0xff]
                %349 = vst [vmem:[%s301 + $0xb8] sm:$0xff] %v348
                %v350 = vld [vmem:[%s300 + $0x180] sm:$0xff]
                %351 = vst [vmem:[%s301 + $0xc0] sm:$0xff] %v350
                %v352 = vld [vmem:[%s300 + $0x188] sm:$0xff]
                %353 = vst [vmem:[%s301 + $0xc8] sm:$0xff] %v352
                %v354 = vld [vmem:[%s300 + $0x190] sm:$0xff]
                %355 = vst [vmem:[%s301 + $0xd0] sm:$0xff] %v354
                %v356 = vld [vmem:[%s300 + $0x1b0] sm:$0xff]
                %357 = vst [vmem:[%s301 + $0xd8] sm:$0xff] %v356
                %v358 = vld [vmem:[%s300 + $0x1b8] sm:$0xff]
                %359 = vst [vmem:[%s301 + $0xe0] sm:$0xff] %v358
                %v360 = vld [vmem:[%s300 + $0x1c0] sm:$0xff]
                %361 = vst [vmem:[%s301 + $0xe8] sm:$0xff] %v360
                %v362 = vld [vmem:[%s300 + $0x1e0] sm:$0xff]
                %363 = vst [vmem:[%s301 + $0xf0] sm:$0xff] %v362
                %v364 = vld [vmem:[%s300 + $0x1e8] sm:$0xff]
                %365 = vst [vmem:[%s301 + $0xf8] sm:$0xff] %v364
                %v366 = vld [vmem:[%s300 + $0x1f0] sm:$0xff]
                %367 = vst [vmem:[%s301 + $0x100] sm:$0xff] %v366
                %v368 = vld [vmem:[%s300 + $0x210] sm:$0xff]
                %369 = vst [vmem:[%s301 + $0x108] sm:$0xff] %v368
                %v370 = vld [vmem:[%s300 + $0x218] sm:$0xff]
                %371 = vst [vmem:[%s301 + $0x110] sm:$0xff] %v370
                %v372 = vld [vmem:[%s300 + $0x220] sm:$0xff]
                %373 = vst [vmem:[%s301 + $0x118] sm:$0xff] %v372
                %v374 = vld [vmem:[%s300 + $0x240] sm:$0xff]
                %375 = vst [vmem:[%s301 + $0x120] sm:$0xff] %v374
                %v376 = vld [vmem:[%s300 + $0x248] sm:$0xff]
                %377 = vst [vmem:[%s301 + $0x128] sm:$0xff] %v376
                %v378 = vld [vmem:[%s300 + $0x250] sm:$0xff]
                %379 = vst [vmem:[%s301 + $0x130] sm:$0xff] %v378
                %v380 = vld [vmem:[%s300 + $0x270] sm:$0xff]
                %381 = vst [vmem:[%s301 + $0x138] sm:$0xff] %v380
                %v382 = vld [vmem:[%s300 + $0x278] sm:$0xff]
                %383 = vst [vmem:[%s301 + $0x140] sm:$0xff] %v382
                %v384 = vld [vmem:[%s300 + $0x280] sm:$0xff]
                %385 = vst [vmem:[%s301 + $0x148] sm:$0xff] %v384
                %v386 = vld [vmem:[%s300 + $0x2a0] sm:$0xff]
                %387 = vst [vmem:[%s301 + $0x150] sm:$0xff] %v386
                %v388 = vld [vmem:[%s300 + $0x2a8] sm:$0xff]
                %389 = vst [vmem:[%s301 + $0x158] sm:$0xff] %v388
                %v390 = vld [vmem:[%s300 + $0x2b0] sm:$0xff]
                %391 = vst [vmem:[%s301 + $0x160] sm:$0xff] %v390
                %v392 = vld [vmem:[%s300 + $0x2d0] sm:$0xff]
                %393 = vst [vmem:[%s301 + $0x168] sm:$0xff] %v392
                %v394 = vld [vmem:[%s300 + $0x2d8] sm:$0xff]
                %395 = vst [vmem:[%s301 + $0x170] sm:$0xff] %v394
                %v396 = vld [vmem:[%s300 + $0x2e0] sm:$0xff]
                %397 = vst [vmem:[%s301 + $0x178] sm:$0xff] %v396
                %v398 = vld [vmem:[%s300 + $0x300] sm:$0xff]
                %399 = vst [vmem:[%s301 + $0x180] sm:$0xff] %v398
                %v400 = vld [vmem:[%s300 + $0x308] sm:$0xff]
                %401 = vst [vmem:[%s301 + $0x188] sm:$0xff] %v400
                %v402 = vld [vmem:[%s300 + $0x310] sm:$0xff]
                %403 = vst [vmem:[%s301 + $0x190] sm:$0xff] %v402
                %v404 = vld [vmem:[%s300 + $0x330] sm:$0xff]
                %405 = vst [vmem:[%s301 + $0x198] sm:$0xff] %v404
                %v406 = vld [vmem:[%s300 + $0x338] sm:$0xff]
                %407 = vst [vmem:[%s301 + $0x1a0] sm:$0xff] %v406
                %v408 = vld [vmem:[%s300 + $0x340] sm:$0xff]
                %409 = vst [vmem:[%s301 + $0x1a8] sm:$0xff] %v408
                %v410 = vld [vmem:[%s300 + $0x360] sm:$0xff]
                %411 = vst [vmem:[%s301 + $0x1b0] sm:$0xff] %v410
                %v412 = vld [vmem:[%s300 + $0x368] sm:$0xff]
                %413 = vst [vmem:[%s301 + $0x1b8] sm:$0xff] %v412
                %v414 = vld [vmem:[%s300 + $0x370] sm:$0xff]
                %415 = vst [vmem:[%s301 + $0x1c0] sm:$0xff] %v414
                %v416 = vld [vmem:[%s300 + $0x390] sm:$0xff]
                %417 = vst [vmem:[%s301 + $0x1c8] sm:$0xff] %v416
                %v418 = vld [vmem:[%s300 + $0x398] sm:$0xff]
                %419 = vst [vmem:[%s301 + $0x1d0] sm:$0xff] %v418
                %v420 = vld [vmem:[%s300 + $0x3a0] sm:$0xff]
                %421 = vst [vmem:[%s301 + $0x1d8] sm:$0xff] %v420
                %v422 = vld [vmem:[%s300 + $0x3c0] sm:$0xff]
                %423 = vst [vmem:[%s301 + $0x1e0] sm:$0xff] %v422
                %v424 = vld [vmem:[%s300 + $0x3c8] sm:$0xff]
                %425 = vst [vmem:[%s301 + $0x1e8] sm:$0xff] %v424
                %v426 = vld [vmem:[%s300 + $0x3d0] sm:$0xff]
                %427 = vst [vmem:[%s301 + $0x1f0] sm:$0xff] %v426
                %v428 = vld [vmem:[%s300 + $0x3f0] sm:$0xff]
                %429 = vst [vmem:[%s301 + $0x1f8] sm:$0xff] %v428
                %v430 = vld [vmem:[%s300 + $0x3f8] sm:$0xff]
                %431 = vst [vmem:[%s301 + $0x200] sm:$0xff] %v430
                %v432 = vld [vmem:[%s300 + $0x400] sm:$0xff]
                %433 = vst [vmem:[%s301 + $0x208] sm:$0xff] %v432
                %v434 = vld [vmem:[%s300 + $0x420] sm:$0xff]
                %435 = vst [vmem:[%s301 + $0x210] sm:$0xff] %v434
                %v436 = vld [vmem:[%s300 + $0x428] sm:$0xff]
                %437 = vst [vmem:[%s301 + $0x218] sm:$0xff] %v436
                %v438 = vld [vmem:[%s300 + $0x430] sm:$0xff]
                %439 = vst [vmem:[%s301 + $0x220] sm:$0xff] %v438
                %v440 = vld [vmem:[%s300 + $0x450] sm:$0xff]
                %441 = vst [vmem:[%s301 + $0x228] sm:$0xff] %v440
                %v442 = vld [vmem:[%s300 + $0x458] sm:$0xff]
                %443 = vst [vmem:[%s301 + $0x230] sm:$0xff] %v442
                %v444 = vld [vmem:[%s300 + $0x460] sm:$0xff]
                %445 = vst [vmem:[%s301 + $0x238] sm:$0xff] %v444
                %v446 = vld [vmem:[%s300 + $0x480] sm:$0xff]
                %447 = vst [vmem:[%s301 + $0x240] sm:$0xff] %v446
                %v448 = vld [vmem:[%s300 + $0x488] sm:$0xff]
                %449 = vst [vmem:[%s301 + $0x248] sm:$0xff] %v448
                %v450 = vld [vmem:[%s300 + $0x490] sm:$0xff]
                %451 = vst [vmem:[%s301 + $0x250] sm:$0xff] %v450
                %v452 = vld [vmem:[%s300 + $0x4b0] sm:$0xff]
                %453 = vst [vmem:[%s301 + $0x258] sm:$0xff] %v452
                %v454 = vld [vmem:[%s300 + $0x4b8] sm:$0xff]
                %455 = vst [vmem:[%s301 + $0x260] sm:$0xff] %v454
                %v456 = vld [vmem:[%s300 + $0x4c0] sm:$0xff]
                %457 = vst [vmem:[%s301 + $0x268] sm:$0xff] %v456
                %v458 = vld [vmem:[%s300 + $0x4e0] sm:$0xff]
                %459 = vst [vmem:[%s301 + $0x270] sm:$0xff] %v458
                %v460 = vld [vmem:[%s300 + $0x4e8] sm:$0xff]
                %461 = vst [vmem:[%s301 + $0x278] sm:$0xff] %v460
                %v462 = vld [vmem:[%s300 + $0x4f0] sm:$0xff]
                %463 = vst [vmem:[%s301 + $0x280] sm:$0xff] %v462
                %v464 = vld [vmem:[%s300 + $0x510] sm:$0xff]
                %465 = vst [vmem:[%s301 + $0x288] sm:$0xff] %v464
                %v466 = vld [vmem:[%s300 + $0x518] sm:$0xff]
                %467 = vst [vmem:[%s301 + $0x290] sm:$0xff] %v466
                %v468 = vld [vmem:[%s300 + $0x520] sm:$0xff]
                %469 = vst [vmem:[%s301 + $0x298] sm:$0xff] %v468
                %v470 = vld [vmem:[%s300 + $0x540] sm:$0xff]
                %471 = vst [vmem:[%s301 + $0x2a0] sm:$0xff] %v470
                %v472 = vld [vmem:[%s300 + $0x548] sm:$0xff]
                %473 = vst [vmem:[%s301 + $0x2a8] sm:$0xff] %v472
                %v474 = vld [vmem:[%s300 + $0x550] sm:$0xff]
                %475 = vst [vmem:[%s301 + $0x2b0] sm:$0xff] %v474
                %v476 = vld [vmem:[%s300 + $0x570] sm:$0xff]
                %477 = vst [vmem:[%s301 + $0x2b8] sm:$0xff] %v476
                %v478 = vld [vmem:[%s300 + $0x578] sm:$0xff]
                %479 = vst [vmem:[%s301 + $0x2c0] sm:$0xff] %v478
                %v480 = vld [vmem:[%s300 + $0x580] sm:$0xff]
                %481 = vst [vmem:[%s301 + $0x2c8] sm:$0xff] %v480
                %v482 = vld [vmem:[%s300 + $0x5a0] sm:$0xff]
                %483 = vst [vmem:[%s301 + $0x2d0] sm:$0xff] %v482
                %v484 = vld [vmem:[%s300 + $0x5a8] sm:$0xff]
                %485 = vst [vmem:[%s301 + $0x2d8] sm:$0xff] %v484
                %v486 = vld [vmem:[%s300 + $0x5b0] sm:$0xff]
                %487 = vst [vmem:[%s301 + $0x2e0] sm:$0xff] %v486
                %v488 = vld [vmem:[%s300 + $0x5d0] sm:$0xff]
                %489 = vst [vmem:[%s301 + $0x2e8] sm:$0xff] %v488
                %v490 = vld [vmem:[%s300 + $0x5d8] sm:$0xff]
                %491 = vst [vmem:[%s301 + $0x2f0] sm:$0xff] %v490
                %v492 = vld [vmem:[%s300 + $0x5e0] sm:$0xff]
                %493 = vst [vmem:[%s301 + $0x2f8] sm:$0xff] %v492
                %v494 = vld [vmem:[%s300 + $0x600] sm:$0xff]
                %495 = vst [vmem:[%s301 + $0x300] sm:$0xff] %v494
                %v496 = vld [vmem:[%s300 + $0x608] sm:$0xff]
                %497 = vst [vmem:[%s301 + $0x308] sm:$0xff] %v496
                %v498 = vld [vmem:[%s300 + $0x610] sm:$0xff]
                %499 = vst [vmem:[%s301 + $0x310] sm:$0xff] %v498
                %v500 = vld [vmem:[%s300 + $0x630] sm:$0xff]
                %501 = vst [vmem:[%s301 + $0x318] sm:$0xff] %v500
                %v502 = vld [vmem:[%s300 + $0x638] sm:$0xff]
                %503 = vst [vmem:[%s301 + $0x320] sm:$0xff] %v502
                %v504 = vld [vmem:[%s300 + $0x640] sm:$0xff]
                %505 = vst [vmem:[%s301 + $0x328] sm:$0xff] %v504
                %v506 = vld [vmem:[%s300 + $0x660] sm:$0xff]
                %507 = vst [vmem:[%s301 + $0x330] sm:$0xff] %v506
                %v508 = vld [vmem:[%s300 + $0x668] sm:$0xff]
                %509 = vst [vmem:[%s301 + $0x338] sm:$0xff] %v508
                %v510 = vld [vmem:[%s300 + $0x670] sm:$0xff]
                %511 = vst [vmem:[%s301 + $0x340] sm:$0xff] %v510
                %v512 = vld [vmem:[%s300 + $0x690] sm:$0xff]
                %513 = vst [vmem:[%s301 + $0x348] sm:$0xff] %v512
                %v514 = vld [vmem:[%s300 + $0x698] sm:$0xff]
                %515 = vst [vmem:[%s301 + $0x350] sm:$0xff] %v514
                %v516 = vld [vmem:[%s300 + $0x6a0] sm:$0xff]
                %517 = vst [vmem:[%s301 + $0x358] sm:$0xff] %v516
                %v518 = vld [vmem:[%s300 + $0x6c0] sm:$0xff]
                %519 = vst [vmem:[%s301 + $0x360] sm:$0xff] %v518
                %v520 = vld [vmem:[%s300 + $0x6c8] sm:$0xff]
                %521 = vst [vmem:[%s301 + $0x368] sm:$0xff] %v520
                %v522 = vld [vmem:[%s300 + $0x6d0] sm:$0xff]
                %523 = vst [vmem:[%s301 + $0x370] sm:$0xff] %v522
                %v524 = vld [vmem:[%s300 + $0x6f0] sm:$0xff]
                %525 = vst [vmem:[%s301 + $0x378] sm:$0xff] %v524
                %v526 = vld [vmem:[%s300 + $0x6f8] sm:$0xff]
                %527 = vst [vmem:[%s301 + $0x380] sm:$0xff] %v526
                %v528 = vld [vmem:[%s300 + $0x700] sm:$0xff]
                %529 = vst [vmem:[%s301 + $0x388] sm:$0xff] %v528
                %v530 = vld [vmem:[%s300 + $0x720] sm:$0xff]
                %531 = vst [vmem:[%s301 + $0x390] sm:$0xff] %v530
                %v532 = vld [vmem:[%s300 + $0x728] sm:$0xff]
                %533 = vst [vmem:[%s301 + $0x398] sm:$0xff] %v532
                %v534 = vld [vmem:[%s300 + $0x730] sm:$0xff]
                %535 = vst [vmem:[%s301 + $0x3a0] sm:$0xff] %v534
                %v536 = vld [vmem:[%s300 + $0x750] sm:$0xff]
                %537 = vst [vmem:[%s301 + $0x3a8] sm:$0xff] %v536
                %v538 = vld [vmem:[%s300 + $0x758] sm:$0xff]
                %539 = vst [vmem:[%s301 + $0x3b0] sm:$0xff] %v538
                %v540 = vld [vmem:[%s300 + $0x760] sm:$0xff]
                %541 = vst [vmem:[%s301 + $0x3b8] sm:$0xff] %v540
                %v542 = vld [vmem:[%s300 + $0x780] sm:$0xff]
                %543 = vst [vmem:[%s301 + $0x3c0] sm:$0xff] %v542
                %v544 = vld [vmem:[%s300 + $0x788] sm:$0xff]
                %545 = vst [vmem:[%s301 + $0x3c8] sm:$0xff] %v544
                %v546 = vld [vmem:[%s300 + $0x790] sm:$0xff]
                %547 = vst [vmem:[%s301 + $0x3d0] sm:$0xff] %v546
                %v548 = vld [vmem:[%s300 + $0x7b0] sm:$0xff]
                %549 = vst [vmem:[%s301 + $0x3d8] sm:$0xff] %v548
                %v550 = vld [vmem:[%s300 + $0x7b8] sm:$0xff]
                %551 = vst [vmem:[%s301 + $0x3e0] sm:$0xff] %v550
                %v552 = vld [vmem:[%s300 + $0x7c0] sm:$0xff]
                %553 = vst [vmem:[%s301 + $0x3e8] sm:$0xff] %v552
                %v554 = vld [vmem:[%s300 + $0x7e0] sm:$0xff]
                %555 = vst [vmem:[%s301 + $0x3f0] sm:$0xff] %v554
                %v556 = vld [vmem:[%s300 + $0x7e8] sm:$0xff]
                %557 = vst [vmem:[%s301 + $0x3f8] sm:$0xff] %v556
                %v558 = vld [vmem:[%s300 + $0x7f0] sm:$0xff]
                %559 = vst [vmem:[%s301 + $0x400] sm:$0xff] %v558
                %v560 = vld [vmem:[%s300 + $0x810] sm:$0xff]
                %561 = vst [vmem:[%s301 + $0x408] sm:$0xff] %v560
                %v562 = vld [vmem:[%s300 + $0x818] sm:$0xff]
                %563 = vst [vmem:[%s301 + $0x410] sm:$0xff] %v562
                %v564 = vld [vmem:[%s300 + $0x820] sm:$0xff]
                %565 = vst [vmem:[%s301 + $0x418] sm:$0xff] %v564
                %v566 = vld [vmem:[%s300 + $0x840] sm:$0xff]
                %567 = vst [vmem:[%s301 + $0x420] sm:$0xff] %v566
                %v568 = vld [vmem:[%s300 + $0x848] sm:$0xff]
                %569 = vst [vmem:[%s301 + $0x428] sm:$0xff] %v568
                %v570 = vld [vmem:[%s300 + $0x850] sm:$0xff]
                %571 = vst [vmem:[%s301 + $0x430] sm:$0xff] %v570
                %v572 = vld [vmem:[%s300 + $0x870] sm:$0xff]
                %573 = vst [vmem:[%s301 + $0x438] sm:$0xff] %v572
                %v574 = vld [vmem:[%s300 + $0x878] sm:$0xff]
                %575 = vst [vmem:[%s301 + $0x440] sm:$0xff] %v574
                %v576 = vld [vmem:[%s300 + $0x880] sm:$0xff]
                %577 = vst [vmem:[%s301 + $0x448] sm:$0xff] %v576
                %v578 = vld [vmem:[%s300 + $0x8a0] sm:$0xff]
                %579 = vst [vmem:[%s301 + $0x450] sm:$0xff] %v578
                %v580 = vld [vmem:[%s300 + $0x8a8] sm:$0xff]
                %581 = vst [vmem:[%s301 + $0x458] sm:$0xff] %v580
                %v582 = vld [vmem:[%s300 + $0x8b0] sm:$0xff]
                %583 = vst [vmem:[%s301 + $0x460] sm:$0xff] %v582
                %v584 = vld [vmem:[%s300 + $0x8d0] sm:$0xff]
                %585 = vst [vmem:[%s301 + $0x468] sm:$0xff] %v584
                %v586 = vld [vmem:[%s300 + $0x8d8] sm:$0xff]
                %587 = vst [vmem:[%s301 + $0x470] sm:$0xff] %v586
                %v588 = vld [vmem:[%s300 + $0x8e0] sm:$0xff]
                %589 = vst [vmem:[%s301 + $0x478] sm:$0xff] %v588
                %v590 = vld [vmem:[%s300 + $0x900] sm:$0xff]
                %591 = vst [vmem:[%s301 + $0x480] sm:$0xff] %v590
                %v592 = vld [vmem:[%s300 + $0x908] sm:$0xff]
                %593 = vst [vmem:[%s301 + $0x488] sm:$0xff] %v592
                %v594 = vld [vmem:[%s300 + $0x910] sm:$0xff]
                %595 = vst [vmem:[%s301 + $0x490] sm:$0xff] %v594
                %v596 = vld [vmem:[%s300 + $0x930] sm:$0xff]
                %597 = vst [vmem:[%s301 + $0x498] sm:$0xff] %v596
                %v598 = vld [vmem:[%s300 + $0x938] sm:$0xff]
                %599 = vst [vmem:[%s301 + $0x4a0] sm:$0xff] %v598
                %v600 = vld [vmem:[%s300 + $0x940] sm:$0xff]
                %601 = vst [vmem:[%s301 + $0x4a8] sm:$0xff] %v600
                %v602 = vld [vmem:[%s300 + $0x960] sm:$0xff]
                %603 = vst [vmem:[%s301 + $0x4b0] sm:$0xff] %v602
                %v604 = vld [vmem:[%s300 + $0x968] sm:$0xff]
                %605 = vst [vmem:[%s301 + $0x4b8] sm:$0xff] %v604
                %v606 = vld [vmem:[%s300 + $0x970] sm:$0xff]
                %607 = vst [vmem:[%s301 + $0x4c0] sm:$0xff] %v606
                %v608 = vld [vmem:[%s300 + $0x990] sm:$0xff]
                %609 = vst [vmem:[%s301 + $0x4c8] sm:$0xff] %v608
                %v610 = vld [vmem:[%s300 + $0x998] sm:$0xff]
                %611 = vst [vmem:[%s301 + $0x4d0] sm:$0xff] %v610
                %v612 = vld [vmem:[%s300 + $0x9a0] sm:$0xff]
                %613 = vst [vmem:[%s301 + $0x4d8] sm:$0xff] %v612
                %v614 = vld [vmem:[%s300 + $0x9c0] sm:$0xff]
                %615 = vst [vmem:[%s301 + $0x4e0] sm:$0xff] %v614
                %v616 = vld [vmem:[%s300 + $0x9c8] sm:$0xff]
                %617 = vst [vmem:[%s301 + $0x4e8] sm:$0xff] %v616
                %v618 = vld [vmem:[%s300 + $0x9d0] sm:$0xff]
                %619 = vst [vmem:[%s301 + $0x4f0] sm:$0xff] %v618
                %v620 = vld [vmem:[%s300 + $0x9f0] sm:$0xff]
                %621 = vst [vmem:[%s301 + $0x4f8] sm:$0xff] %v620
                %v622 = vld [vmem:[%s300 + $0x9f8] sm:$0xff]
                %623 = vst [vmem:[%s301 + $0x500] sm:$0xff] %v622
                %v624 = vld [vmem:[%s300 + $0xa00] sm:$0xff]
                %625 = vst [vmem:[%s301 + $0x508] sm:$0xff] %v624
                %v626 = vld [vmem:[%s300 + $0xa20] sm:$0xff]
                %627 = vst [vmem:[%s301 + $0x510] sm:$0xff] %v626
                %v628 = vld [vmem:[%s300 + $0xa28] sm:$0xff]
                %629 = vst [vmem:[%s301 + $0x518] sm:$0xff] %v628
                %v630 = vld [vmem:[%s300 + $0xa30] sm:$0xff]
                %631 = vst [vmem:[%s301 + $0x520] sm:$0xff] %v630
                %v632 = vld [vmem:[%s300 + $0xa50] sm:$0xff]
                %633 = vst [vmem:[%s301 + $0x528] sm:$0xff] %v632
                %v634 = vld [vmem:[%s300 + $0xa58] sm:$0xff]
                %635 = vst [vmem:[%s301 + $0x530] sm:$0xff] %v634
                %v636 = vld [vmem:[%s300 + $0xa60] sm:$0xff]
                %637 = vst [vmem:[%s301 + $0x538] sm:$0xff] %v636
                %v638 = vld [vmem:[%s300 + $0xa80] sm:$0xff]
                %639 = vst [vmem:[%s301 + $0x540] sm:$0xff] %v638
                %v640 = vld [vmem:[%s300 + $0xa88] sm:$0xff]
                %641 = vst [vmem:[%s301 + $0x548] sm:$0xff] %v640
                %v642 = vld [vmem:[%s300 + $0xa90] sm:$0xff]
                %643 = vst [vmem:[%s301 + $0x550] sm:$0xff] %v642
                %v644 = vld [vmem:[%s300 + $0xab0] sm:$0xff]
                %645 = vst [vmem:[%s301 + $0x558] sm:$0xff] %v644
                %v646 = vld [vmem:[%s300 + $0xab8] sm:$0xff]
                %647 = vst [vmem:[%s301 + $0x560] sm:$0xff] %v646
                %v648 = vld [vmem:[%s300 + $0xac0] sm:$0xff]
                %649 = vst [vmem:[%s301 + $0x568] sm:$0xff] %v648
                %v650 = vld [vmem:[%s300 + $0xae0] sm:$0xff]
                %651 = vst [vmem:[%s301 + $0x570] sm:$0xff] %v650
                %v652 = vld [vmem:[%s300 + $0xae8] sm:$0xff]
                %653 = vst [vmem:[%s301 + $0x578] sm:$0xff] %v652
                %v654 = vld [vmem:[%s300 + $0xaf0] sm:$0xff]
                %655 = vst [vmem:[%s301 + $0x580] sm:$0xff] %v654
                %v656 = vld [vmem:[%s300 + $0xb10] sm:$0xff]
                %657 = vst [vmem:[%s301 + $0x588] sm:$0xff] %v656
                %v658 = vld [vmem:[%s300 + $0xb18] sm:$0xff]
                %659 = vst [vmem:[%s301 + $0x590] sm:$0xff] %v658
                %v660 = vld [vmem:[%s300 + $0xb20] sm:$0xff]
                %661 = vst [vmem:[%s301 + $0x598] sm:$0xff] %v660
                %v662 = vld [vmem:[%s300 + $0xb40] sm:$0xff]
                %663 = vst [vmem:[%s301 + $0x5a0] sm:$0xff] %v662
                %v664 = vld [vmem:[%s300 + $0xb48] sm:$0xff]
                %665 = vst [vmem:[%s301 + $0x5a8] sm:$0xff] %v664
                %v666 = vld [vmem:[%s300 + $0xb50] sm:$0xff]
                %667 = vst [vmem:[%s301 + $0x5b0] sm:$0xff] %v666
                %v668 = vld [vmem:[%s300 + $0xb70] sm:$0xff]
                %669 = vst [vmem:[%s301 + $0x5b8] sm:$0xff] %v668
                %v670 = vld [vmem:[%s300 + $0xb78] sm:$0xff]
                %671 = vst [vmem:[%s301 + $0x5c0] sm:$0xff] %v670
                %v672 = vld [vmem:[%s300 + $0xb80] sm:$0xff]
                %673 = vst [vmem:[%s301 + $0x5c8] sm:$0xff] %v672
                %v674 = vld [vmem:[%s300 + $0xba0] sm:$0xff]
                %675 = vst [vmem:[%s301 + $0x5d0] sm:$0xff] %v674
                %v676 = vld [vmem:[%s300 + $0xba8] sm:$0xff]
                %677 = vst [vmem:[%s301 + $0x5d8] sm:$0xff] %v676
                %v678 = vld [vmem:[%s300 + $0xbb0] sm:$0xff]
                %679 = vst [vmem:[%s301 + $0x5e0] sm:$0xff] %v678
                %v680 = vld [vmem:[%s300 + $0xbd0] sm:$0xff]
                %681 = vst [vmem:[%s301 + $0x5e8] sm:$0xff] %v680
                %v682 = vld [vmem:[%s300 + $0xbd8] sm:$0xff]
                %683 = vst [vmem:[%s301 + $0x5f0] sm:$0xff] %v682
                %v684 = vld [vmem:[%s300 + $0xbe0] sm:$0xff]
                %685 = vst [vmem:[%s301 + $0x5f8] sm:$0xff] %v684
              $region61: #{pointnet_autoencoder.3} parent=55 // loop_footer
                %s299 = sadd.s32 1, %s295
              $region62: #{pointnet_autoencoder.3} parent=55 // loop_footer_branch
                %294 = sbr.rel target = $region58
              $region63: #{pointnet_autoencoder.3} parent=55 // loop_exit
                _
            $region56: #{pointnet_autoencoder.3} parent=51 // pred_fallthru
              _
            // Predicated region
            $region64: #{pointnet_autoencoder.3} parent=51 // pred_check
              _
            $region65: #{pointnet_autoencoder.3} parent=51 // pred_check_branch
              %687 = sbr.rel target = $region67
            $region66: #{pointnet_autoencoder.3} parent=51 // pred_region
              _
            $region67: #{pointnet_autoencoder.3} parent=51 // pred_fallthru
              _
          $region52: #{pointnet_autoencoder.3} parent=47 // pred_fallthru
            _
          %688 = vnop
        $region48: #{pointnet_autoencoder.3} parent=43 // pred_fallthru
          _
        // Predicated region
        $region68: #{pointnet_autoencoder.3} parent=43 // pred_check
          %p689 = pneg %p208
        $region69: #{pointnet_autoencoder.3} parent=43 // pred_check_branch
          %691 = sbr.rel (%p689) target = $region71
        $region70: #{pointnet_autoencoder.3} parent=43 // pred_region
          %s692 = smul.u32 6, %s15
          %p693 = scmp.lt.s32.totalorder %s692, 11
          %s694 = scalar_select %p693, %s692, 11
          %s695 = scalar_lea.vmem %s8, %s694
          %s696 = smul.u32 6, %s15
        $region71: #{pointnet_autoencoder.3} parent=43 // pred_fallthru
          _
      $region44: #{pointnet_autoencoder.3} parent=5 // pred_fallthru
        _
      %p697 = scmp.le.s32.totalorder 1, %s15
      %p698 = scmp.lt.s32.totalorder %s15, 3
      %p699 = pnand %p697, %p698
      %p700 = pneg %p699
      // Predicated region
      $region72: #{pointnet_autoencoder.3} parent=5 // pred_check
        _
      $region73: #{pointnet_autoencoder.3} parent=5 // pred_check_branch
        %702 = sbr.rel (%p699) target = $region75
      $region74: #{pointnet_autoencoder.3} parent=5 // pred_region
        %s703 = ssub.s32 %s15, 1
        %s704 = sand.u32 %s175, 1
        %s705 = sand.u32 %s175, 1
        %s706 = smul.addr %s705, 1536
        %s707 = scalar_lea.vmem [#allocation3], %s706
        // Predicated region
        $region76: #{pointnet_autoencoder.3} parent=74 // pred_check
          %p708 = pneg %p188
        $region77: #{pointnet_autoencoder.3} parent=74 // pred_check_branch
          %710 = sbr.rel (%p708) target = $region79
        $region78: #{pointnet_autoencoder.3} parent=74 // pred_region
          _
        $region79: #{pointnet_autoencoder.3} parent=74 // pred_fallthru
          _
        %p711 = pneg %p36
        %p712 = pneg %p33
        %p713 = pneg %p57
        %p714 = pneg %p54
        %p715 = pneg %p78
        %p716 = pneg %p75
        %p717 = pneg %p99
        %p718 = pneg %p96
        %p719 = pneg %p120
        %p720 = pneg %p117
        %p721 = pneg %p141
        %p722 = pneg %p138
        %p723 = pneg %p162
        %p724 = pneg %p159
        %s725 = sand.u32 %s175, 1
        %s726 = sand.u32 %s175, 1
        %s727 = smul.addr %s726, 1536
        %s728 = scalar_lea.vmem [#allocation3], %s727
        %p729 = pneg %p188
        %p730 = pneg %p185
        %s731 = smul.u32 6, %s20
        %p732 = scmp.lt.s32.totalorder %s731, 11
        %s733 = scalar_select %p732, %s731, 11
        %s734 = scalar_lea.vmem %s8, %s733
        %p735 = pneg %p214
        %p736 = pneg %p211
        %p737 = pneg %p240
        %p738 = pneg %p237
        %s739 = smul.u32 6, %s20
        %p740 = scmp.lt.s32.totalorder %s739, 11
        %s741 = scalar_select %p740, %s739, 11
        %s742 = smul.addr %s741, 2
        %s743 = scalar_lea.vmem %s9, %s742
        %s744 = smul.u32 6, %s20
        %s745 = smul.u32 6, %s20
        %p746 = scmp.lt.s32.totalorder %s745, 11
        %s747 = scalar_select %p746, %s745, 11
        %s748 = scalar_lea.vmem %s8, %s747
        %s749 = smul.u32 6, %s20
        %s750 = smul.u32 6, %s20
        %p751 = scmp.lt.s32.totalorder %s750, 11
        %s752 = scalar_select %p751, %s750, 11
        %s753 = smul.addr %s752, 2
        %s754 = scalar_lea.vmem %s9, %s753
        %s755 = smul.u32 6, %s20
        %p756 = scmp.eq.s32.totalorder %s20, 0
        // Predicated region
        $region80: #{pointnet_autoencoder.3} parent=74 // pred_check
          %p757 = pneg %p756
        $region81: #{pointnet_autoencoder.3} parent=74 // pred_check_branch
          %759 = sbr.rel (%p757) target = $region83
        $region82: #{pointnet_autoencoder.3} parent=74 // pred_region
          %v760 = vld [vmem:[%s0] sm:$0xff]
          %v761 = vld [vmem:[%s0 + $0x8] sm:$0xff]
          %764 = vst [vmem:[#allocation1] ss:$4 sm:$0xff] %v760
          %s765 = scalar_lea.vmem [#allocation1], 32
          %766 = vst [vmem:[%s765] ss:$4 sm:$0xff] %v761
          %v767 = vld.sshfl [vmem:[#allocation1] sm:$0xff pattern:$0x73625140]
          %v768 = vld.sshfl [vmem:[#allocation1 + $0x8] sm:$0xff pattern:$0x73625140]
          %v769 = vld.sshfl [vmem:[#allocation1 + $0x10] sm:$0xff pattern:$0x73625140]
          %v770 = vld.sshfl [vmem:[#allocation1 + $0x18] sm:$0xff pattern:$0x73625140]
          %v771 = vld.sshfl [vmem:[#allocation1 + $0x20] sm:$0xff pattern:$0x73625140]
          %v772 = vld.sshfl [vmem:[#allocation1 + $0x28] sm:$0xff pattern:$0x73625140]
          %v773 = vld.sshfl [vmem:[#allocation1 + $0x30] sm:$0xff pattern:$0x73625140]
          %v774 = vld.sshfl [vmem:[#allocation1 + $0x38] sm:$0xff pattern:$0x73625140]
          %v783 = vpack.c.bf16 %v767, %v767
          %v784 = vpack.c.bf16 %v768, %v768
          %v785 = vpack.c.bf16 %v769, %v769
          %v786 = vpack.c.bf16 %v770, %v770
          %v787 = vpack.c.bf16 %v771, %v771
          %v788 = vpack.c.bf16 %v772, %v772
          %v789 = vpack.c.bf16 %v773, %v773
          %v790 = vpack.c.bf16 %v774, %v774
          %v791 = vld [vmem:[%s1] sm:$0xf]
          %v792 = vld [vmem:[%s1 + $0x4] sm:$0xf]
          %v793 = vld [vmem:[%s1 + $0x8] sm:$0xf]
          %v794 = vld [vmem:[%s1 + $0xc] sm:$0xf]
          %v795 = vld [vmem:[%s1 + $0x10] sm:$0xf]
          %v796 = vld [vmem:[%s1 + $0x14] sm:$0xf]
          %v797 = vld [vmem:[%s1 + $0x18] sm:$0xf]
          %v798 = vld [vmem:[%s1 + $0x1c] sm:$0xf]
          %v799 = vld [vmem:[%s1 + $0x20] sm:$0xf]
          %v800 = vld [vmem:[%s1 + $0x24] sm:$0xf]
          %v801 = vld [vmem:[%s1 + $0x28] sm:$0xf]
          %v802 = vld [vmem:[%s1 + $0x2c] sm:$0xf]
          %v803 = vld [vmem:[%s1 + $0x30] sm:$0xf]
          %v804 = vld [vmem:[%s1 + $0x34] sm:$0xf]
          %v805 = vld [vmem:[%s1 + $0x38] sm:$0xf]
          %v806 = vld [vmem:[%s1 + $0x3c] sm:$0xf]
          %v807 = vld [vmem:[%s1 + $0x40] sm:$0xf]
          %v808 = vld [vmem:[%s1 + $0x44] sm:$0xf]
          %v809 = vld [vmem:[%s1 + $0x48] sm:$0xf]
          %v810 = vld [vmem:[%s1 + $0x4c] sm:$0xf]
          %v811 = vld [vmem:[%s1 + $0x50] sm:$0xf]
          %v812 = vld [vmem:[%s1 + $0x54] sm:$0xf]
          %v813 = vld [vmem:[%s1 + $0x58] sm:$0xf]
          %v814 = vld [vmem:[%s1 + $0x5c] sm:$0xf]
          %v815 = vld [vmem:[%s1 + $0x60] sm:$0xf]
          %v816 = vld [vmem:[%s1 + $0x64] sm:$0xf]
          %v817 = vld [vmem:[%s1 + $0x68] sm:$0xf]
          %v818 = vld [vmem:[%s1 + $0x6c] sm:$0xf]
          %v819 = vld [vmem:[%s1 + $0x70] sm:$0xf]
          %v820 = vld [vmem:[%s1 + $0x74] sm:$0xf]
          %v821 = vld [vmem:[%s1 + $0x78] sm:$0xf]
          %v822 = vld [vmem:[%s1 + $0x7c] sm:$0xf]
          %v823 = vld [vmem:[%s1 + $0x80] sm:$0xf]
          %v824 = vld [vmem:[%s1 + $0x84] sm:$0xf]
          %v825 = vld [vmem:[%s1 + $0x88] sm:$0xf]
          %v826 = vld [vmem:[%s1 + $0x8c] sm:$0xf]
          %v827 = vld [vmem:[%s1 + $0x90] sm:$0xf]
          %v828 = vld [vmem:[%s1 + $0x94] sm:$0xf]
          %v829 = vld [vmem:[%s1 + $0x98] sm:$0xf]
          %v830 = vld [vmem:[%s1 + $0x9c] sm:$0xf]
          %v831 = vld [vmem:[%s1 + $0xa0] sm:$0xf]
          %v832 = vld [vmem:[%s1 + $0xa4] sm:$0xf]
          %v833 = vld [vmem:[%s1 + $0xa8] sm:$0xf]
          %v834 = vld [vmem:[%s1 + $0xac] sm:$0xf]
          %v835 = vld [vmem:[%s1 + $0xb0] sm:$0xf]
          %v836 = vld [vmem:[%s1 + $0xb4] sm:$0xf]
          %v837 = vld [vmem:[%s1 + $0xb8] sm:$0xf]
          %v838 = vld [vmem:[%s1 + $0xbc] sm:$0xf]
          %v839 = vld [vmem:[%s1 + $0xc0] sm:$0xf]
          %v840 = vld [vmem:[%s1 + $0xc4] sm:$0xf]
          %v841 = vld [vmem:[%s1 + $0xc8] sm:$0xf]
          %v842 = vld [vmem:[%s1 + $0xcc] sm:$0xf]
          %v843 = vld [vmem:[%s1 + $0xd0] sm:$0xf]
          %v844 = vld [vmem:[%s1 + $0xd4] sm:$0xf]
          %v845 = vld [vmem:[%s1 + $0xd8] sm:$0xf]
          %v846 = vld [vmem:[%s1 + $0xdc] sm:$0xf]
          %v847 = vld [vmem:[%s1 + $0xe0] sm:$0xf]
          %v848 = vld [vmem:[%s1 + $0xe4] sm:$0xf]
          %v849 = vld [vmem:[%s1 + $0xe8] sm:$0xf]
          %v850 = vld [vmem:[%s1 + $0xec] sm:$0xf]
          %v851 = vld [vmem:[%s1 + $0xf0] sm:$0xf]
          %v852 = vld [vmem:[%s1 + $0xf4] sm:$0xf]
          %v853 = vld [vmem:[%s1 + $0xf8] sm:$0xf]
          %v854 = vld [vmem:[%s1 + $0xfc] sm:$0xf]
          %v855 = vld [vmem:[%s1 + $0x100] sm:$0xf]
          %v856 = vld [vmem:[%s1 + $0x104] sm:$0xf]
          %v857 = vld [vmem:[%s1 + $0x108] sm:$0xf]
          %v858 = vld [vmem:[%s1 + $0x10c] sm:$0xf]
          %v859 = vld [vmem:[%s1 + $0x110] sm:$0xf]
          %v860 = vld [vmem:[%s1 + $0x114] sm:$0xf]
          %v861 = vld [vmem:[%s1 + $0x118] sm:$0xf]
          %v862 = vld [vmem:[%s1 + $0x11c] sm:$0xf]
          %v863 = vld [vmem:[%s1 + $0x120] sm:$0xf]
          %v864 = vld [vmem:[%s1 + $0x124] sm:$0xf]
          %v865 = vld [vmem:[%s1 + $0x128] sm:$0xf]
          %v866 = vld [vmem:[%s1 + $0x12c] sm:$0xf]
          %v867 = vld [vmem:[%s1 + $0x130] sm:$0xf]
          %v868 = vld [vmem:[%s1 + $0x134] sm:$0xf]
          %v869 = vld [vmem:[%s1 + $0x138] sm:$0xf]
          %v870 = vld [vmem:[%s1 + $0x13c] sm:$0xf]
          %v871 = vld [vmem:[%s1 + $0x140] sm:$0xf]
          %v872 = vld [vmem:[%s1 + $0x144] sm:$0xf]
          %v873 = vld [vmem:[%s1 + $0x148] sm:$0xf]
          %v874 = vld [vmem:[%s1 + $0x14c] sm:$0xf]
          %v875 = vld [vmem:[%s1 + $0x150] sm:$0xf]
          %v876 = vld [vmem:[%s1 + $0x154] sm:$0xf]
          %v877 = vld [vmem:[%s1 + $0x158] sm:$0xf]
          %v878 = vld [vmem:[%s1 + $0x15c] sm:$0xf]
          %v879 = vld [vmem:[%s1 + $0x160] sm:$0xf]
          %v880 = vld [vmem:[%s1 + $0x164] sm:$0xf]
          %v881 = vld [vmem:[%s1 + $0x168] sm:$0xf]
          %v882 = vld [vmem:[%s1 + $0x16c] sm:$0xf]
          %v883 = vld [vmem:[%s1 + $0x170] sm:$0xf]
          %v884 = vld [vmem:[%s1 + $0x174] sm:$0xf]
          %v885 = vld [vmem:[%s1 + $0x178] sm:$0xf]
          %v886 = vld [vmem:[%s1 + $0x17c] sm:$0xf]
          %v887 = vld [vmem:[%s1 + $0x180] sm:$0xf]
          %v888 = vld [vmem:[%s1 + $0x184] sm:$0xf]
          %v889 = vld [vmem:[%s1 + $0x188] sm:$0xf]
          %v890 = vld [vmem:[%s1 + $0x18c] sm:$0xf]
          %v891 = vld [vmem:[%s1 + $0x190] sm:$0xf]
          %v892 = vld [vmem:[%s1 + $0x194] sm:$0xf]
          %v893 = vld [vmem:[%s1 + $0x198] sm:$0xf]
          %v894 = vld [vmem:[%s1 + $0x19c] sm:$0xf]
          %v895 = vld [vmem:[%s1 + $0x1a0] sm:$0xf]
          %v896 = vld [vmem:[%s1 + $0x1a4] sm:$0xf]
          %v897 = vld [vmem:[%s1 + $0x1a8] sm:$0xf]
          %v898 = vld [vmem:[%s1 + $0x1ac] sm:$0xf]
          %v899 = vld [vmem:[%s1 + $0x1b0] sm:$0xf]
          %v900 = vld [vmem:[%s1 + $0x1b4] sm:$0xf]
          %v901 = vld [vmem:[%s1 + $0x1b8] sm:$0xf]
          %v902 = vld [vmem:[%s1 + $0x1bc] sm:$0xf]
          %v903 = vld [vmem:[%s1 + $0x1c0] sm:$0xf]
          %v904 = vld [vmem:[%s1 + $0x1c4] sm:$0xf]
          %v905 = vld [vmem:[%s1 + $0x1c8] sm:$0xf]
          %v906 = vld [vmem:[%s1 + $0x1cc] sm:$0xf]
          %v907 = vld [vmem:[%s1 + $0x1d0] sm:$0xf]
          %v908 = vld [vmem:[%s1 + $0x1d4] sm:$0xf]
          %v909 = vld [vmem:[%s1 + $0x1d8] sm:$0xf]
          %v910 = vld [vmem:[%s1 + $0x1dc] sm:$0xf]
          %v911 = vld [vmem:[%s1 + $0x1e0] sm:$0xf]
          %v912 = vld [vmem:[%s1 + $0x1e4] sm:$0xf]
          %v913 = vld [vmem:[%s1 + $0x1e8] sm:$0xf]
          %v914 = vld [vmem:[%s1 + $0x1ec] sm:$0xf]
          %v915 = vld [vmem:[%s1 + $0x1f0] sm:$0xf]
          %v916 = vld [vmem:[%s1 + $0x1f4] sm:$0xf]
          %v917 = vld [vmem:[%s1 + $0x1f8] sm:$0xf]
          %v918 = vld [vmem:[%s1 + $0x1fc] sm:$0xf]
          %v919 = vld [vmem:[%s2] sm:$0x1]
          %v921 = vperm.slane %v919, 0
          %v1051 = vunpack.c.l.b16 %v791
          %v1052 = vunpack.c.l.b16 %v792
          %v1053 = vunpack.c.l.b16 %v793
          %v1054 = vunpack.c.l.b16 %v794
          %v1055 = vunpack.c.l.b16 %v795
          %v1056 = vunpack.c.l.b16 %v796
          %v1057 = vunpack.c.l.b16 %v797
          %v1058 = vunpack.c.l.b16 %v798
          %v1059 = vunpack.c.l.b16 %v799
          %v1060 = vunpack.c.l.b16 %v800
          %v1061 = vunpack.c.l.b16 %v801
          %v1062 = vunpack.c.l.b16 %v802
          %v1063 = vunpack.c.l.b16 %v803
          %v1064 = vunpack.c.l.b16 %v804
          %v1065 = vunpack.c.l.b16 %v805
          %v1066 = vunpack.c.l.b16 %v806
          %v1067 = vunpack.c.l.b16 %v807
          %v1068 = vunpack.c.l.b16 %v808
          %v1069 = vunpack.c.l.b16 %v809
          %v1070 = vunpack.c.l.b16 %v810
          %v1071 = vunpack.c.l.b16 %v811
          %v1072 = vunpack.c.l.b16 %v812
          %v1073 = vunpack.c.l.b16 %v813
          %v1074 = vunpack.c.l.b16 %v814
          %v1075 = vunpack.c.l.b16 %v815
          %v1076 = vunpack.c.l.b16 %v816
          %v1077 = vunpack.c.l.b16 %v817
          %v1078 = vunpack.c.l.b16 %v818
          %v1079 = vunpack.c.l.b16 %v819
          %v1080 = vunpack.c.l.b16 %v820
          %v1081 = vunpack.c.l.b16 %v821
          %v1082 = vunpack.c.l.b16 %v822
          %v1083 = vunpack.c.l.b16 %v823
          %v1084 = vunpack.c.l.b16 %v824
          %v1085 = vunpack.c.l.b16 %v825
          %v1086 = vunpack.c.l.b16 %v826
          %v1087 = vunpack.c.l.b16 %v827
          %v1088 = vunpack.c.l.b16 %v828
          %v1089 = vunpack.c.l.b16 %v829
          %v1090 = vunpack.c.l.b16 %v830
          %v1091 = vunpack.c.l.b16 %v831
          %v1092 = vunpack.c.l.b16 %v832
          %v1093 = vunpack.c.l.b16 %v833
          %v1094 = vunpack.c.l.b16 %v834
          %v1095 = vunpack.c.l.b16 %v835
          %v1096 = vunpack.c.l.b16 %v836
          %v1097 = vunpack.c.l.b16 %v837
          %v1098 = vunpack.c.l.b16 %v838
          %v1099 = vunpack.c.l.b16 %v839
          %v1100 = vunpack.c.l.b16 %v840
          %v1101 = vunpack.c.l.b16 %v841
          %v1102 = vunpack.c.l.b16 %v842
          %v1103 = vunpack.c.l.b16 %v843
          %v1104 = vunpack.c.l.b16 %v844
          %v1105 = vunpack.c.l.b16 %v845
          %v1106 = vunpack.c.l.b16 %v846
          %v1107 = vunpack.c.l.b16 %v847
          %v1108 = vunpack.c.l.b16 %v848
          %v1109 = vunpack.c.l.b16 %v849
          %v1110 = vunpack.c.l.b16 %v850
          %v1111 = vunpack.c.l.b16 %v851
          %v1112 = vunpack.c.l.b16 %v852
          %v1113 = vunpack.c.l.b16 %v853
          %v1114 = vunpack.c.l.b16 %v854
          %v1115 = vunpack.c.l.b16 %v855
          %v1116 = vunpack.c.l.b16 %v856
          %v1117 = vunpack.c.l.b16 %v857
          %v1118 = vunpack.c.l.b16 %v858
          %v1119 = vunpack.c.l.b16 %v859
          %v1120 = vunpack.c.l.b16 %v860
          %v1121 = vunpack.c.l.b16 %v861
          %v1122 = vunpack.c.l.b16 %v862
          %v1123 = vunpack.c.l.b16 %v863
          %v1124 = vunpack.c.l.b16 %v864
          %v1125 = vunpack.c.l.b16 %v865
          %v1126 = vunpack.c.l.b16 %v866
          %v1127 = vunpack.c.l.b16 %v867
          %v1128 = vunpack.c.l.b16 %v868
          %v1129 = vunpack.c.l.b16 %v869
          %v1130 = vunpack.c.l.b16 %v870
          %v1131 = vunpack.c.l.b16 %v871
          %v1132 = vunpack.c.l.b16 %v872
          %v1133 = vunpack.c.l.b16 %v873
          %v1134 = vunpack.c.l.b16 %v874
          %v1135 = vunpack.c.l.b16 %v875
          %v1136 = vunpack.c.l.b16 %v876
          %v1137 = vunpack.c.l.b16 %v877
          %v1138 = vunpack.c.l.b16 %v878
          %v1139 = vunpack.c.l.b16 %v879
          %v1140 = vunpack.c.l.b16 %v880
          %v1141 = vunpack.c.l.b16 %v881
          %v1142 = vunpack.c.l.b16 %v882
          %v1143 = vunpack.c.l.b16 %v883
          %v1144 = vunpack.c.l.b16 %v884
          %v1145 = vunpack.c.l.b16 %v885
          %v1146 = vunpack.c.l.b16 %v886
          %v1147 = vunpack.c.l.b16 %v887
          %v1148 = vunpack.c.l.b16 %v888
          %v1149 = vunpack.c.l.b16 %v889
          %v1150 = vunpack.c.l.b16 %v890
          %v1151 = vunpack.c.l.b16 %v891
          %v1152 = vunpack.c.l.b16 %v892
          %v1153 = vunpack.c.l.b16 %v893
          %v1154 = vunpack.c.l.b16 %v894
          %v1155 = vunpack.c.l.b16 %v895
          %v1156 = vunpack.c.l.b16 %v896
          %v1157 = vunpack.c.l.b16 %v897
          %v1158 = vunpack.c.l.b16 %v898
          %v1159 = vunpack.c.l.b16 %v899
          %v1160 = vunpack.c.l.b16 %v900
          %v1161 = vunpack.c.l.b16 %v901
          %v1162 = vunpack.c.l.b16 %v902
          %v1163 = vunpack.c.l.b16 %v903
          %v1164 = vunpack.c.l.b16 %v904
          %v1165 = vunpack.c.l.b16 %v905
          %v1166 = vunpack.c.l.b16 %v906
          %v1167 = vunpack.c.l.b16 %v907
          %v1168 = vunpack.c.l.b16 %v908
          %v1169 = vunpack.c.l.b16 %v909
          %v1170 = vunpack.c.l.b16 %v910
          %v1171 = vunpack.c.l.b16 %v911
          %v1172 = vunpack.c.l.b16 %v912
          %v1173 = vunpack.c.l.b16 %v913
          %v1174 = vunpack.c.l.b16 %v914
          %v1175 = vunpack.c.l.b16 %v915
          %v1176 = vunpack.c.l.b16 %v916
          %v1177 = vunpack.c.l.b16 %v917
          %v1178 = vunpack.c.l.b16 %v918
          %v1179 = vpack.c.b16 %v1052, %v1051
          %v1180 = vpack.c.b16 %v1054, %v1053
          %v1181 = vpack.c.b16 %v1056, %v1055
          %v1182 = vpack.c.b16 %v1058, %v1057
          %v1183 = vpack.c.b16 %v1060, %v1059
          %v1184 = vpack.c.b16 %v1062, %v1061
          %v1185 = vpack.c.b16 %v1064, %v1063
          %v1186 = vpack.c.b16 %v1066, %v1065
          %v1187 = vpack.c.b16 %v1068, %v1067
          %v1188 = vpack.c.b16 %v1070, %v1069
          %v1189 = vpack.c.b16 %v1072, %v1071
          %v1190 = vpack.c.b16 %v1074, %v1073
          %v1191 = vpack.c.b16 %v1076, %v1075
          %v1192 = vpack.c.b16 %v1078, %v1077
          %v1193 = vpack.c.b16 %v1080, %v1079
          %v1194 = vpack.c.b16 %v1082, %v1081
          %v1195 = vpack.c.b16 %v1084, %v1083
          %v1196 = vpack.c.b16 %v1086, %v1085
          %v1197 = vpack.c.b16 %v1088, %v1087
          %v1198 = vpack.c.b16 %v1090, %v1089
          %v1199 = vpack.c.b16 %v1092, %v1091
          %v1200 = vpack.c.b16 %v1094, %v1093
          %v1201 = vpack.c.b16 %v1096, %v1095
          %v1202 = vpack.c.b16 %v1098, %v1097
          %v1203 = vpack.c.b16 %v1100, %v1099
          %v1204 = vpack.c.b16 %v1102, %v1101
          %v1205 = vpack.c.b16 %v1104, %v1103
          %v1206 = vpack.c.b16 %v1106, %v1105
          %v1207 = vpack.c.b16 %v1108, %v1107
          %v1208 = vpack.c.b16 %v1110, %v1109
          %v1209 = vpack.c.b16 %v1112, %v1111
          %v1210 = vpack.c.b16 %v1114, %v1113
          %v1211 = vpack.c.b16 %v1116, %v1115
          %v1212 = vpack.c.b16 %v1118, %v1117
          %v1213 = vpack.c.b16 %v1120, %v1119
          %v1214 = vpack.c.b16 %v1122, %v1121
          %v1215 = vpack.c.b16 %v1124, %v1123
          %v1216 = vpack.c.b16 %v1126, %v1125
          %v1217 = vpack.c.b16 %v1128, %v1127
          %v1218 = vpack.c.b16 %v1130, %v1129
          %v1219 = vpack.c.b16 %v1132, %v1131
          %v1220 = vpack.c.b16 %v1134, %v1133
          %v1221 = vpack.c.b16 %v1136, %v1135
          %v1222 = vpack.c.b16 %v1138, %v1137
          %v1223 = vpack.c.b16 %v1140, %v1139
          %v1224 = vpack.c.b16 %v1142, %v1141
          %v1225 = vpack.c.b16 %v1144, %v1143
          %v1226 = vpack.c.b16 %v1146, %v1145
          %v1227 = vpack.c.b16 %v1148, %v1147
          %v1228 = vpack.c.b16 %v1150, %v1149
          %v1229 = vpack.c.b16 %v1152, %v1151
          %v1230 = vpack.c.b16 %v1154, %v1153
          %v1231 = vpack.c.b16 %v1156, %v1155
          %v1232 = vpack.c.b16 %v1158, %v1157
          %v1233 = vpack.c.b16 %v1160, %v1159
          %v1234 = vpack.c.b16 %v1162, %v1161
          %v1235 = vpack.c.b16 %v1164, %v1163
          %v1236 = vpack.c.b16 %v1166, %v1165
          %v1237 = vpack.c.b16 %v1168, %v1167
          %v1238 = vpack.c.b16 %v1170, %v1169
          %v1239 = vpack.c.b16 %v1172, %v1171
          %v1240 = vpack.c.b16 %v1174, %v1173
          %v1241 = vpack.c.b16 %v1176, %v1175
          %v1242 = vpack.c.b16 %v1178, %v1177
          %1307 = vmatpush.bf16.msra.mxu0 %v1186
          %1308 = vmatpush.bf16.msra.mxu0 %v1185
          %1309 = vmatpush.bf16.msra.mxu0 %v1184
          %1310 = vmatpush.bf16.msra.mxu0 %v1183
          %1311 = vmatpush.bf16.msra.mxu0 %v1182
          %1312 = vmatpush.bf16.msra.mxu0 %v1181
          %1313 = vmatpush.bf16.msra.mxu0 %v1180
          %1314 = vmatpush.bf16.msra.mxu0 %v1179
          %1315 = vmatmul.bf16.gmra.mxu0 %v783
          %v1316 = vpop.f32.mrf.mxu0
          %v1317 = vadd.f32 %v921, %v1316
          %v1318 = vpop.f32.mrf.mxu0
          %1319 = vdwg.mxu0
          %1320 = vmatpush.bf16.msra.mxu0 %v1194
          %1321 = vmatpush.bf16.msra.mxu0 %v1193
          %1322 = vmatpush.bf16.msra.mxu0 %v1192
          %1323 = vmatpush.bf16.msra.mxu0 %v1191
          %1324 = vmatpush.bf16.msra.mxu0 %v1190
          %1325 = vmatpush.bf16.msra.mxu0 %v1189
          %1326 = vmatpush.bf16.msra.mxu0 %v1188
          %1327 = vmatpush.bf16.msra.mxu0 %v1187
          %1328 = vmatmul.bf16.gmra.mxu0 %v784
          %v1329 = vpop.f32.mrf.mxu0
          %v1330 = vadd.f32 %v1317, %v1329
          %v1331 = vpop.f32.mrf.mxu0
          %1332 = vdwg.mxu0
          %1333 = vmatpush.bf16.msra.mxu0 %v1202
          %1334 = vmatpush.bf16.msra.mxu0 %v1201
          %1335 = vmatpush.bf16.msra.mxu0 %v1200
          %1336 = vmatpush.bf16.msra.mxu0 %v1199
          %1337 = vmatpush.bf16.msra.mxu0 %v1198
          %1338 = vmatpush.bf16.msra.mxu0 %v1197
          %1339 = vmatpush.bf16.msra.mxu0 %v1196
          %1340 = vmatpush.bf16.msra.mxu0 %v1195
          %1341 = vmatmul.bf16.gmra.mxu0 %v785
          %v1342 = vpop.f32.mrf.mxu0
          %v1343 = vadd.f32 %v1330, %v1342
          %v1344 = vpop.f32.mrf.mxu0
          %1345 = vdwg.mxu0
          %1346 = vmatpush.bf16.msra.mxu0 %v1210
          %1347 = vmatpush.bf16.msra.mxu0 %v1209
          %1348 = vmatpush.bf16.msra.mxu0 %v1208
          %1349 = vmatpush.bf16.msra.mxu0 %v1207
          %1350 = vmatpush.bf16.msra.mxu0 %v1206
          %1351 = vmatpush.bf16.msra.mxu0 %v1205
          %1352 = vmatpush.bf16.msra.mxu0 %v1204
          %1353 = vmatpush.bf16.msra.mxu0 %v1203
          %1354 = vmatmul.bf16.gmra.mxu0 %v786
          %v1355 = vpop.f32.mrf.mxu0
          %v1356 = vadd.f32 %v1343, %v1355
          %v1357 = vpop.f32.mrf.mxu0
          %1358 = vdwg.mxu0
          %1359 = vmatpush.bf16.msra.mxu0 %v1218
          %1360 = vmatpush.bf16.msra.mxu0 %v1217
          %1361 = vmatpush.bf16.msra.mxu0 %v1216
          %1362 = vmatpush.bf16.msra.mxu0 %v1215
          %1363 = vmatpush.bf16.msra.mxu0 %v1214
          %1364 = vmatpush.bf16.msra.mxu0 %v1213
          %1365 = vmatpush.bf16.msra.mxu0 %v1212
          %1366 = vmatpush.bf16.msra.mxu0 %v1211
          %1367 = vmatmul.bf16.gmra.mxu0 %v787
          %v1368 = vpop.f32.mrf.mxu0
          %v1369 = vadd.f32 %v1356, %v1368
          %v1370 = vpop.f32.mrf.mxu0
          %1371 = vdwg.mxu0
          %1372 = vmatpush.bf16.msra.mxu0 %v1226
          %1373 = vmatpush.bf16.msra.mxu0 %v1225
          %1374 = vmatpush.bf16.msra.mxu0 %v1224
          %1375 = vmatpush.bf16.msra.mxu0 %v1223
          %1376 = vmatpush.bf16.msra.mxu0 %v1222
          %1377 = vmatpush.bf16.msra.mxu0 %v1221
          %1378 = vmatpush.bf16.msra.mxu0 %v1220
          %1379 = vmatpush.bf16.msra.mxu0 %v1219
          %1380 = vmatmul.bf16.gmra.mxu0 %v788
          %v1381 = vpop.f32.mrf.mxu0
          %v1382 = vadd.f32 %v1369, %v1381
          %v1383 = vpop.f32.mrf.mxu0
          %1384 = vdwg.mxu0
          %1385 = vmatpush.bf16.msra.mxu0 %v1234
          %1386 = vmatpush.bf16.msra.mxu0 %v1233
          %1387 = vmatpush.bf16.msra.mxu0 %v1232
          %1388 = vmatpush.bf16.msra.mxu0 %v1231
          %1389 = vmatpush.bf16.msra.mxu0 %v1230
          %1390 = vmatpush.bf16.msra.mxu0 %v1229
          %1391 = vmatpush.bf16.msra.mxu0 %v1228
          %1392 = vmatpush.bf16.msra.mxu0 %v1227
          %1393 = vmatmul.bf16.gmra.mxu0 %v789
          %v1394 = vpop.f32.mrf.mxu0
          %v1395 = vadd.f32 %v1382, %v1394
          %v1396 = vpop.f32.mrf.mxu0
          %1397 = vdwg.mxu0
          %1398 = vmatpush.bf16.msra.mxu0 %v1242
          %1399 = vmatpush.bf16.msra.mxu0 %v1241
          %1400 = vmatpush.bf16.msra.mxu0 %v1240
          %1401 = vmatpush.bf16.msra.mxu0 %v1239
          %1402 = vmatpush.bf16.msra.mxu0 %v1238
          %1403 = vmatpush.bf16.msra.mxu0 %v1237
          %1404 = vmatpush.bf16.msra.mxu0 %v1236
          %1405 = vmatpush.bf16.msra.mxu0 %v1235
          %1406 = vmatmul.bf16.gmra.mxu0 %v790
          %v1407 = vpop.f32.mrf.mxu0
          %v1408 = vadd.f32 %v1395, %v1407
          %v1409 = vpop.f32.mrf.mxu0
          %1410 = vdwg.mxu0
          %v1411 = vmax.f32 %v1408, 0.0
          %v1412 = vpack.c.bf16 %v1411, %v1411
          %v1413 = vld [vmem:[%s3] sm:$0xff]
          %v1414 = vld [vmem:[%s3 + $0x8] sm:$0xff]
          %v1415 = vld [vmem:[%s3 + $0x10] sm:$0xff]
          %v1416 = vld [vmem:[%s3 + $0x18] sm:$0xff]
          %v1417 = vld [vmem:[%s3 + $0x20] sm:$0xff]
          %v1418 = vld [vmem:[%s3 + $0x28] sm:$0xff]
          %v1419 = vld [vmem:[%s3 + $0x30] sm:$0xff]
          %v1420 = vld [vmem:[%s3 + $0x38] sm:$0xff]
          %v1421 = vld [vmem:[%s3 + $0x40] sm:$0xff]
          %v1422 = vld [vmem:[%s3 + $0x48] sm:$0xff]
          %v1423 = vld [vmem:[%s3 + $0x50] sm:$0xff]
          %v1424 = vld [vmem:[%s3 + $0x58] sm:$0xff]
          %v1425 = vld [vmem:[%s3 + $0x60] sm:$0xff]
          %v1426 = vld [vmem:[%s3 + $0x68] sm:$0xff]
          %v1427 = vld [vmem:[%s3 + $0x70] sm:$0xff]
          %v1428 = vld [vmem:[%s3 + $0x78] sm:$0xff]
          %v1429 = vld [vmem:[%s4] sm:$0x3]
          %v1431 = vperm.slane %v1429, 0
          %v1432 = vperm.slane %v1429, 1
          %v1451 = vunpack.c.l.b16 %v1413
          %v1452 = vunpack.c.h.b16 %v1413
          %v1453 = vunpack.c.l.b16 %v1414
          %v1454 = vunpack.c.h.b16 %v1414
          %v1455 = vunpack.c.l.b16 %v1415
          %v1456 = vunpack.c.h.b16 %v1415
          %v1457 = vunpack.c.l.b16 %v1416
          %v1458 = vunpack.c.h.b16 %v1416
          %v1459 = vunpack.c.l.b16 %v1417
          %v1460 = vunpack.c.h.b16 %v1417
          %v1461 = vunpack.c.l.b16 %v1418
          %v1462 = vunpack.c.h.b16 %v1418
          %v1463 = vunpack.c.l.b16 %v1419
          %v1464 = vunpack.c.h.b16 %v1419
          %v1465 = vunpack.c.l.b16 %v1420
          %v1466 = vunpack.c.h.b16 %v1420
          %v1467 = vunpack.c.l.b16 %v1421
          %v1468 = vunpack.c.h.b16 %v1421
          %v1469 = vunpack.c.l.b16 %v1422
          %v1470 = vunpack.c.h.b16 %v1422
          %v1471 = vunpack.c.l.b16 %v1423
          %v1472 = vunpack.c.h.b16 %v1423
          %v1473 = vunpack.c.l.b16 %v1424
          %v1474 = vunpack.c.h.b16 %v1424
          %v1475 = vunpack.c.l.b16 %v1425
          %v1476 = vunpack.c.h.b16 %v1425
          %v1477 = vunpack.c.l.b16 %v1426
          %v1478 = vunpack.c.h.b16 %v1426
          %v1479 = vunpack.c.l.b16 %v1427
          %v1480 = vunpack.c.h.b16 %v1427
          %v1481 = vunpack.c.l.b16 %v1428
          %v1482 = vunpack.c.h.b16 %v1428
          %v1483 = vpack.c.b16 %v1453, %v1451
          %v1484 = vpack.c.b16 %v1454, %v1452
          %v1485 = vpack.c.b16 %v1457, %v1455
          %v1486 = vpack.c.b16 %v1458, %v1456
          %v1487 = vpack.c.b16 %v1461, %v1459
          %v1488 = vpack.c.b16 %v1462, %v1460
          %v1489 = vpack.c.b16 %v1465, %v1463
          %v1490 = vpack.c.b16 %v1466, %v1464
          %v1491 = vpack.c.b16 %v1469, %v1467
          %v1492 = vpack.c.b16 %v1470, %v1468
          %v1493 = vpack.c.b16 %v1473, %v1471
          %v1494 = vpack.c.b16 %v1474, %v1472
          %v1495 = vpack.c.b16 %v1477, %v1475
          %v1496 = vpack.c.b16 %v1478, %v1476
          %v1497 = vpack.c.b16 %v1481, %v1479
          %v1498 = vpack.c.b16 %v1482, %v1480
          %1515 = vmatpush.bf16.msra.mxu0 %v1497
          %1516 = vmatpush.bf16.msra.mxu0 %v1495
          %1517 = vmatpush.bf16.msra.mxu0 %v1493
          %1518 = vmatpush.bf16.msra.mxu0 %v1491
          %1519 = vmatpush.bf16.msra.mxu0 %v1489
          %1520 = vmatpush.bf16.msra.mxu0 %v1487
          %1521 = vmatpush.bf16.msra.mxu0 %v1485
          %1522 = vmatpush.bf16.msra.mxu0 %v1483
          %1523 = vmatmul.bf16.gmra.mxu0 %v1412
          %v1524 = vpop.f32.mrf.mxu0
          %v1525 = vadd.f32 %v1431, %v1524
          %v1526 = vpop.f32.mrf.mxu0
          %1527 = vdwg.mxu0
          %1528 = vmatpush.bf16.msra.mxu0 %v1498
          %1529 = vmatpush.bf16.msra.mxu0 %v1496
          %1530 = vmatpush.bf16.msra.mxu0 %v1494
          %1531 = vmatpush.bf16.msra.mxu0 %v1492
          %1532 = vmatpush.bf16.msra.mxu0 %v1490
          %1533 = vmatpush.bf16.msra.mxu0 %v1488
          %1534 = vmatpush.bf16.msra.mxu0 %v1486
          %1535 = vmatpush.bf16.msra.mxu0 %v1484
          %1536 = vmatmul.bf16.gmra.mxu0 %v1412
          %v1537 = vpop.f32.mrf.mxu0
          %v1538 = vadd.f32 %v1432, %v1537
          %v1539 = vpop.f32.mrf.mxu0
          %1540 = vdwg.mxu0
          %v1541 = vmax.f32 %v1525, 0.0
          %v1542 = vmax.f32 %v1538, 0.0
          %v1543 = vpack.c.bf16 %v1541, %v1541
          %v1544 = vpack.c.bf16 %v1542, %v1542
          %v1545 = vld [vmem:[%s5] sm:$0xff]
          %v1546 = vld [vmem:[%s5 + $0x8] sm:$0xff]
          %v1547 = vld [vmem:[%s5 + $0x10] sm:$0xff]
          %v1548 = vld [vmem:[%s5 + $0x18] sm:$0xff]
          %v1549 = vld [vmem:[%s5 + $0x20] sm:$0xff]
          %v1550 = vld [vmem:[%s5 + $0x28] sm:$0xff]
          %v1551 = vld [vmem:[%s5 + $0x30] sm:$0xff]
          %v1552 = vld [vmem:[%s5 + $0x38] sm:$0xff]
          %v1553 = vld [vmem:[%s5 + $0x40] sm:$0xff]
          %v1554 = vld [vmem:[%s5 + $0x48] sm:$0xff]
          %v1555 = vld [vmem:[%s5 + $0x50] sm:$0xff]
          %v1556 = vld [vmem:[%s5 + $0x58] sm:$0xff]
          %v1557 = vld [vmem:[%s5 + $0x60] sm:$0xff]
          %v1558 = vld [vmem:[%s5 + $0x68] sm:$0xff]
          %v1559 = vld [vmem:[%s5 + $0x70] sm:$0xff]
          %v1560 = vld [vmem:[%s5 + $0x78] sm:$0xff]
          %v1561 = vld [vmem:[%s5 + $0x80] sm:$0xff]
          %v1562 = vld [vmem:[%s5 + $0x88] sm:$0xff]
          %v1563 = vld [vmem:[%s5 + $0x90] sm:$0xff]
          %v1564 = vld [vmem:[%s5 + $0x98] sm:$0xff]
          %v1565 = vld [vmem:[%s5 + $0xa0] sm:$0xff]
          %v1566 = vld [vmem:[%s5 + $0xa8] sm:$0xff]
          %v1567 = vld [vmem:[%s5 + $0xb0] sm:$0xff]
          %v1568 = vld [vmem:[%s5 + $0xb8] sm:$0xff]
          %v1569 = vld [vmem:[%s5 + $0xc0] sm:$0xff]
          %v1570 = vld [vmem:[%s5 + $0xc8] sm:$0xff]
          %v1571 = vld [vmem:[%s5 + $0xd0] sm:$0xff]
          %v1572 = vld [vmem:[%s5 + $0xd8] sm:$0xff]
          %v1573 = vld [vmem:[%s5 + $0xe0] sm:$0xff]
          %v1574 = vld [vmem:[%s5 + $0xe8] sm:$0xff]
          %v1575 = vld [vmem:[%s5 + $0xf0] sm:$0xff]
          %v1576 = vld [vmem:[%s5 + $0xf8] sm:$0xff]
          %v1577 = vld [vmem:[%s5 + $0x100] sm:$0xff]
          %v1578 = vld [vmem:[%s5 + $0x108] sm:$0xff]
          %v1579 = vld [vmem:[%s5 + $0x110] sm:$0xff]
          %v1580 = vld [vmem:[%s5 + $0x118] sm:$0xff]
          %v1581 = vld [vmem:[%s5 + $0x120] sm:$0xff]
          %v1582 = vld [vmem:[%s5 + $0x128] sm:$0xff]
          %v1583 = vld [vmem:[%s5 + $0x130] sm:$0xff]
          %v1584 = vld [vmem:[%s5 + $0x138] sm:$0xff]
          %v1585 = vld [vmem:[%s5 + $0x140] sm:$0xff]
          %v1586 = vld [vmem:[%s5 + $0x148] sm:$0xff]
          %v1587 = vld [vmem:[%s5 + $0x150] sm:$0xff]
          %v1588 = vld [vmem:[%s5 + $0x158] sm:$0xff]
          %v1589 = vld [vmem:[%s5 + $0x160] sm:$0xff]
          %v1590 = vld [vmem:[%s5 + $0x168] sm:$0xff]
          %v1591 = vld [vmem:[%s5 + $0x170] sm:$0xff]
          %v1592 = vld [vmem:[%s5 + $0x178] sm:$0xff]
          %v1593 = vld [vmem:[%s5 + $0x180] sm:$0xff]
          %v1594 = vld [vmem:[%s5 + $0x188] sm:$0xff]
          %v1595 = vld [vmem:[%s5 + $0x190] sm:$0xff]
          %v1596 = vld [vmem:[%s5 + $0x198] sm:$0xff]
          %v1597 = vld [vmem:[%s5 + $0x1a0] sm:$0xff]
          %v1598 = vld [vmem:[%s5 + $0x1a8] sm:$0xff]
          %v1599 = vld [vmem:[%s5 + $0x1b0] sm:$0xff]
          %v1600 = vld [vmem:[%s5 + $0x1b8] sm:$0xff]
          %v1601 = vld [vmem:[%s5 + $0x1c0] sm:$0xff]
          %v1602 = vld [vmem:[%s5 + $0x1c8] sm:$0xff]
          %v1603 = vld [vmem:[%s5 + $0x1d0] sm:$0xff]
          %v1604 = vld [vmem:[%s5 + $0x1d8] sm:$0xff]
          %v1605 = vld [vmem:[%s5 + $0x1e0] sm:$0xff]
          %v1606 = vld [vmem:[%s5 + $0x1e8] sm:$0xff]
          %v1607 = vld [vmem:[%s5 + $0x1f0] sm:$0xff]
          %v1608 = vld [vmem:[%s5 + $0x1f8] sm:$0xff]
          %v1609 = vld [vmem:[%s6] sm:$0xf]
          %v1611 = vperm.slane %v1609, 0
          %v1612 = vperm.slane %v1609, 1
          %v1613 = vperm.slane %v1609, 2
          %v1614 = vperm.slane %v1609, 3
          %v1683 = vunpack.c.l.b16 %v1545
          %v1684 = vunpack.c.h.b16 %v1545
          %v1685 = vunpack.c.l.b16 %v1546
          %v1686 = vunpack.c.h.b16 %v1546
          %v1687 = vunpack.c.l.b16 %v1547
          %v1688 = vunpack.c.h.b16 %v1547
          %v1689 = vunpack.c.l.b16 %v1548
          %v1690 = vunpack.c.h.b16 %v1548
          %v1691 = vunpack.c.l.b16 %v1549
          %v1692 = vunpack.c.h.b16 %v1549
          %v1693 = vunpack.c.l.b16 %v1550
          %v1694 = vunpack.c.h.b16 %v1550
          %v1695 = vunpack.c.l.b16 %v1551
          %v1696 = vunpack.c.h.b16 %v1551
          %v1697 = vunpack.c.l.b16 %v1552
          %v1698 = vunpack.c.h.b16 %v1552
          %v1699 = vunpack.c.l.b16 %v1553
          %v1700 = vunpack.c.h.b16 %v1553
          %v1701 = vunpack.c.l.b16 %v1554
          %v1702 = vunpack.c.h.b16 %v1554
          %v1703 = vunpack.c.l.b16 %v1555
          %v1704 = vunpack.c.h.b16 %v1555
          %v1705 = vunpack.c.l.b16 %v1556
          %v1706 = vunpack.c.h.b16 %v1556
          %v1707 = vunpack.c.l.b16 %v1557
          %v1708 = vunpack.c.h.b16 %v1557
          %v1709 = vunpack.c.l.b16 %v1558
          %v1710 = vunpack.c.h.b16 %v1558
          %v1711 = vunpack.c.l.b16 %v1559
          %v1712 = vunpack.c.h.b16 %v1559
          %v1713 = vunpack.c.l.b16 %v1560
          %v1714 = vunpack.c.h.b16 %v1560
          %v1715 = vunpack.c.l.b16 %v1561
          %v1716 = vunpack.c.h.b16 %v1561
          %v1717 = vunpack.c.l.b16 %v1562
          %v1718 = vunpack.c.h.b16 %v1562
          %v1719 = vunpack.c.l.b16 %v1563
          %v1720 = vunpack.c.h.b16 %v1563
          %v1721 = vunpack.c.l.b16 %v1564
          %v1722 = vunpack.c.h.b16 %v1564
          %v1723 = vunpack.c.l.b16 %v1565
          %v1724 = vunpack.c.h.b16 %v1565
          %v1725 = vunpack.c.l.b16 %v1566
          %v1726 = vunpack.c.h.b16 %v1566
          %v1727 = vunpack.c.l.b16 %v1567
          %v1728 = vunpack.c.h.b16 %v1567
          %v1729 = vunpack.c.l.b16 %v1568
          %v1730 = vunpack.c.h.b16 %v1568
          %v1731 = vunpack.c.l.b16 %v1569
          %v1732 = vunpack.c.h.b16 %v1569
          %v1733 = vunpack.c.l.b16 %v1570
          %v1734 = vunpack.c.h.b16 %v1570
          %v1735 = vunpack.c.l.b16 %v1571
          %v1736 = vunpack.c.h.b16 %v1571
          %v1737 = vunpack.c.l.b16 %v1572
          %v1738 = vunpack.c.h.b16 %v1572
          %v1739 = vunpack.c.l.b16 %v1573
          %v1740 = vunpack.c.h.b16 %v1573
          %v1741 = vunpack.c.l.b16 %v1574
          %v1742 = vunpack.c.h.b16 %v1574
          %v1743 = vunpack.c.l.b16 %v1575
          %v1744 = vunpack.c.h.b16 %v1575
          %v1745 = vunpack.c.l.b16 %v1576
          %v1746 = vunpack.c.h.b16 %v1576
          %v1747 = vunpack.c.l.b16 %v1577
          %v1748 = vunpack.c.h.b16 %v1577
          %v1749 = vunpack.c.l.b16 %v1578
          %v1750 = vunpack.c.h.b16 %v1578
          %v1751 = vunpack.c.l.b16 %v1579
          %v1752 = vunpack.c.h.b16 %v1579
          %v1753 = vunpack.c.l.b16 %v1580
          %v1754 = vunpack.c.h.b16 %v1580
          %v1755 = vunpack.c.l.b16 %v1581
          %v1756 = vunpack.c.h.b16 %v1581
          %v1757 = vunpack.c.l.b16 %v1582
          %v1758 = vunpack.c.h.b16 %v1582
          %v1759 = vunpack.c.l.b16 %v1583
          %v1760 = vunpack.c.h.b16 %v1583
          %v1761 = vunpack.c.l.b16 %v1584
          %v1762 = vunpack.c.h.b16 %v1584
          %v1763 = vunpack.c.l.b16 %v1585
          %v1764 = vunpack.c.h.b16 %v1585
          %v1765 = vunpack.c.l.b16 %v1586
          %v1766 = vunpack.c.h.b16 %v1586
          %v1767 = vunpack.c.l.b16 %v1587
          %v1768 = vunpack.c.h.b16 %v1587
          %v1769 = vunpack.c.l.b16 %v1588
          %v1770 = vunpack.c.h.b16 %v1588
          %v1771 = vunpack.c.l.b16 %v1589
          %v1772 = vunpack.c.h.b16 %v1589
          %v1773 = vunpack.c.l.b16 %v1590
          %v1774 = vunpack.c.h.b16 %v1590
          %v1775 = vunpack.c.l.b16 %v1591
          %v1776 = vunpack.c.h.b16 %v1591
          %v1777 = vunpack.c.l.b16 %v1592
          %v1778 = vunpack.c.h.b16 %v1592
          %v1779 = vunpack.c.l.b16 %v1593
          %v1780 = vunpack.c.h.b16 %v1593
          %v1781 = vunpack.c.l.b16 %v1594
          %v1782 = vunpack.c.h.b16 %v1594
          %v1783 = vunpack.c.l.b16 %v1595
          %v1784 = vunpack.c.h.b16 %v1595
          %v1785 = vunpack.c.l.b16 %v1596
          %v1786 = vunpack.c.h.b16 %v1596
          %v1787 = vunpack.c.l.b16 %v1597
          %v1788 = vunpack.c.h.b16 %v1597
          %v1789 = vunpack.c.l.b16 %v1598
          %v1790 = vunpack.c.h.b16 %v1598
          %v1791 = vunpack.c.l.b16 %v1599
          %v1792 = vunpack.c.h.b16 %v1599
          %v1793 = vunpack.c.l.b16 %v1600
          %v1794 = vunpack.c.h.b16 %v1600
          %v1795 = vunpack.c.l.b16 %v1601
          %v1796 = vunpack.c.h.b16 %v1601
          %v1797 = vunpack.c.l.b16 %v1602
          %v1798 = vunpack.c.h.b16 %v1602
          %v1799 = vunpack.c.l.b16 %v1603
          %v1800 = vunpack.c.h.b16 %v1603
          %v1801 = vunpack.c.l.b16 %v1604
          %v1802 = vunpack.c.h.b16 %v1604
          %v1803 = vunpack.c.l.b16 %v1605
          %v1804 = vunpack.c.h.b16 %v1605
          %v1805 = vunpack.c.l.b16 %v1606
          %v1806 = vunpack.c.h.b16 %v1606
          %v1807 = vunpack.c.l.b16 %v1607
          %v1808 = vunpack.c.h.b16 %v1607
          %v1809 = vunpack.c.l.b16 %v1608
          %v1810 = vunpack.c.h.b16 %v1608
          %v1811 = vpack.c.b16 %v1687, %v1683
          %v1812 = vpack.c.b16 %v1688, %v1684
          %v1813 = vpack.c.b16 %v1689, %v1685
          %v1814 = vpack.c.b16 %v1690, %v1686
          %v1815 = vpack.c.b16 %v1695, %v1691
          %v1816 = vpack.c.b16 %v1696, %v1692
          %v1817 = vpack.c.b16 %v1697, %v1693
          %v1818 = vpack.c.b16 %v1698, %v1694
          %v1819 = vpack.c.b16 %v1703, %v1699
          %v1820 = vpack.c.b16 %v1704, %v1700
          %v1821 = vpack.c.b16 %v1705, %v1701
          %v1822 = vpack.c.b16 %v1706, %v1702
          %v1823 = vpack.c.b16 %v1711, %v1707
          %v1824 = vpack.c.b16 %v1712, %v1708
          %v1825 = vpack.c.b16 %v1713, %v1709
          %v1826 = vpack.c.b16 %v1714, %v1710
          %v1827 = vpack.c.b16 %v1719, %v1715
          %v1828 = vpack.c.b16 %v1720, %v1716
          %v1829 = vpack.c.b16 %v1721, %v1717
          %v1830 = vpack.c.b16 %v1722, %v1718
          %v1831 = vpack.c.b16 %v1727, %v1723
          %v1832 = vpack.c.b16 %v1728, %v1724
          %v1833 = vpack.c.b16 %v1729, %v1725
          %v1834 = vpack.c.b16 %v1730, %v1726
          %v1835 = vpack.c.b16 %v1735, %v1731
          %v1836 = vpack.c.b16 %v1736, %v1732
          %v1837 = vpack.c.b16 %v1737, %v1733
          %v1838 = vpack.c.b16 %v1738, %v1734
          %v1839 = vpack.c.b16 %v1743, %v1739
          %v1840 = vpack.c.b16 %v1744, %v1740
          %v1841 = vpack.c.b16 %v1745, %v1741
          %v1842 = vpack.c.b16 %v1746, %v1742
          %v1843 = vpack.c.b16 %v1751, %v1747
          %v1844 = vpack.c.b16 %v1752, %v1748
          %v1845 = vpack.c.b16 %v1753, %v1749
          %v1846 = vpack.c.b16 %v1754, %v1750
          %v1847 = vpack.c.b16 %v1759, %v1755
          %v1848 = vpack.c.b16 %v1760, %v1756
          %v1849 = vpack.c.b16 %v1761, %v1757
          %v1850 = vpack.c.b16 %v1762, %v1758
          %v1851 = vpack.c.b16 %v1767, %v1763
          %v1852 = vpack.c.b16 %v1768, %v1764
          %v1853 = vpack.c.b16 %v1769, %v1765
          %v1854 = vpack.c.b16 %v1770, %v1766
          %v1855 = vpack.c.b16 %v1775, %v1771
          %v1856 = vpack.c.b16 %v1776, %v1772
          %v1857 = vpack.c.b16 %v1777, %v1773
          %v1858 = vpack.c.b16 %v1778, %v1774
          %v1859 = vpack.c.b16 %v1783, %v1779
          %v1860 = vpack.c.b16 %v1784, %v1780
          %v1861 = vpack.c.b16 %v1785, %v1781
          %v1862 = vpack.c.b16 %v1786, %v1782
          %v1863 = vpack.c.b16 %v1791, %v1787
          %v1864 = vpack.c.b16 %v1792, %v1788
          %v1865 = vpack.c.b16 %v1793, %v1789
          %v1866 = vpack.c.b16 %v1794, %v1790
          %v1867 = vpack.c.b16 %v1799, %v1795
          %v1868 = vpack.c.b16 %v1800, %v1796
          %v1869 = vpack.c.b16 %v1801, %v1797
          %v1870 = vpack.c.b16 %v1802, %v1798
          %v1871 = vpack.c.b16 %v1807, %v1803
          %v1872 = vpack.c.b16 %v1808, %v1804
          %v1873 = vpack.c.b16 %v1809, %v1805
          %v1874 = vpack.c.b16 %v1810, %v1806
          %1939 = vmatpush.bf16.msra.mxu0 %v1839
          %1940 = vmatpush.bf16.msra.mxu0 %v1835
          %1941 = vmatpush.bf16.msra.mxu0 %v1831
          %1942 = vmatpush.bf16.msra.mxu0 %v1827
          %1943 = vmatpush.bf16.msra.mxu0 %v1823
          %1944 = vmatpush.bf16.msra.mxu0 %v1819
          %1945 = vmatpush.bf16.msra.mxu0 %v1815
          %1946 = vmatpush.bf16.msra.mxu0 %v1811
          %1947 = vmatmul.bf16.gmra.mxu0 %v1543
          %v1948 = vpop.f32.mrf.mxu0
          %v1949 = vadd.f32 %v1611, %v1948
          %v1950 = vpop.f32.mrf.mxu0
          %1951 = vdwg.mxu0
          %1952 = vmatpush.bf16.msra.mxu0 %v1871
          %1953 = vmatpush.bf16.msra.mxu0 %v1867
          %1954 = vmatpush.bf16.msra.mxu0 %v1863
          %1955 = vmatpush.bf16.msra.mxu0 %v1859
          %1956 = vmatpush.bf16.msra.mxu0 %v1855
          %1957 = vmatpush.bf16.msra.mxu0 %v1851
          %1958 = vmatpush.bf16.msra.mxu0 %v1847
          %1959 = vmatpush.bf16.msra.mxu0 %v1843
          %1960 = vmatmul.bf16.gmra.mxu0 %v1544
          %v1961 = vpop.f32.mrf.mxu0
          %v1962 = vadd.f32 %v1949, %v1961
          %v1963 = vpop.f32.mrf.mxu0
          %1964 = vdwg.mxu0
          %1965 = vmatpush.bf16.msra.mxu0 %v1840
          %1966 = vmatpush.bf16.msra.mxu0 %v1836
          %1967 = vmatpush.bf16.msra.mxu0 %v1832
          %1968 = vmatpush.bf16.msra.mxu0 %v1828
          %1969 = vmatpush.bf16.msra.mxu0 %v1824
          %1970 = vmatpush.bf16.msra.mxu0 %v1820
          %1971 = vmatpush.bf16.msra.mxu0 %v1816
          %1972 = vmatpush.bf16.msra.mxu0 %v1812
          %1973 = vmatmul.bf16.gmra.mxu0 %v1543
          %v1974 = vpop.f32.mrf.mxu0
          %v1975 = vadd.f32 %v1612, %v1974
          %v1976 = vpop.f32.mrf.mxu0
          %1977 = vdwg.mxu0
          %1978 = vmatpush.bf16.msra.mxu0 %v1872
          %1979 = vmatpush.bf16.msra.mxu0 %v1868
          %1980 = vmatpush.bf16.msra.mxu0 %v1864
          %1981 = vmatpush.bf16.msra.mxu0 %v1860
          %1982 = vmatpush.bf16.msra.mxu0 %v1856
          %1983 = vmatpush.bf16.msra.mxu0 %v1852
          %1984 = vmatpush.bf16.msra.mxu0 %v1848
          %1985 = vmatpush.bf16.msra.mxu0 %v1844
          %1986 = vmatmul.bf16.gmra.mxu0 %v1544
          %v1987 = vpop.f32.mrf.mxu0
          %v1988 = vadd.f32 %v1975, %v1987
          %v1989 = vpop.f32.mrf.mxu0
          %1990 = vdwg.mxu0
          %1991 = vmatpush.bf16.msra.mxu0 %v1841
          %1992 = vmatpush.bf16.msra.mxu0 %v1837
          %1993 = vmatpush.bf16.msra.mxu0 %v1833
          %1994 = vmatpush.bf16.msra.mxu0 %v1829
          %1995 = vmatpush.bf16.msra.mxu0 %v1825
          %1996 = vmatpush.bf16.msra.mxu0 %v1821
          %1997 = vmatpush.bf16.msra.mxu0 %v1817
          %1998 = vmatpush.bf16.msra.mxu0 %v1813
          %1999 = vmatmul.bf16.gmra.mxu0 %v1543
          %v2000 = vpop.f32.mrf.mxu0
          %v2001 = vadd.f32 %v1613, %v2000
          %v2002 = vpop.f32.mrf.mxu0
          %2003 = vdwg.mxu0
          %2004 = vmatpush.bf16.msra.mxu0 %v1873
          %2005 = vmatpush.bf16.msra.mxu0 %v1869
          %2006 = vmatpush.bf16.msra.mxu0 %v1865
          %2007 = vmatpush.bf16.msra.mxu0 %v1861
          %2008 = vmatpush.bf16.msra.mxu0 %v1857
          %2009 = vmatpush.bf16.msra.mxu0 %v1853
          %2010 = vmatpush.bf16.msra.mxu0 %v1849
          %2011 = vmatpush.bf16.msra.mxu0 %v1845
          %2012 = vmatmul.bf16.gmra.mxu0 %v1544
          %v2013 = vpop.f32.mrf.mxu0
          %v2014 = vadd.f32 %v2001, %v2013
          %v2015 = vpop.f32.mrf.mxu0
          %2016 = vdwg.mxu0
          %2017 = vmatpush.bf16.msra.mxu0 %v1842
          %2018 = vmatpush.bf16.msra.mxu0 %v1838
          %2019 = vmatpush.bf16.msra.mxu0 %v1834
          %2020 = vmatpush.bf16.msra.mxu0 %v1830
          %2021 = vmatpush.bf16.msra.mxu0 %v1826
          %2022 = vmatpush.bf16.msra.mxu0 %v1822
          %2023 = vmatpush.bf16.msra.mxu0 %v1818
          %2024 = vmatpush.bf16.msra.mxu0 %v1814
          %2025 = vmatmul.bf16.gmra.mxu0 %v1543
          %v2026 = vpop.f32.mrf.mxu0
          %v2027 = vadd.f32 %v1614, %v2026
          %v2028 = vpop.f32.mrf.mxu0
          %2029 = vdwg.mxu0
          %2030 = vmatpush.bf16.msra.mxu0 %v1874
          %2031 = vmatpush.bf16.msra.mxu0 %v1870
          %2032 = vmatpush.bf16.msra.mxu0 %v1866
          %2033 = vmatpush.bf16.msra.mxu0 %v1862
          %2034 = vmatpush.bf16.msra.mxu0 %v1858
          %2035 = vmatpush.bf16.msra.mxu0 %v1854
          %2036 = vmatpush.bf16.msra.mxu0 %v1850
          %2037 = vmatpush.bf16.msra.mxu0 %v1846
          %2038 = vmatmul.bf16.gmra.mxu0 %v1544
          %v2039 = vpop.f32.mrf.mxu0
          %v2040 = vadd.f32 %v2027, %v2039
          %v2041 = vpop.f32.mrf.mxu0
          %2042 = vdwg.mxu0
          %v2043 = vmax.f32 %v1962, 0.0
          %v2044 = vmax.f32 %v1988, 0.0
          %v2045 = vmax.f32 %v2014, 0.0
          %v2046 = vmax.f32 %v2040, 0.0
          %v2047 = vpack.c.bf16 %v2044, %v2043
          %v2048 = vpack.c.bf16 %v2046, %v2045
          %v2051 = vrot.slane %v2047, 3
          %v2052 = vrot.slane %v2048, 6
          %v2053 = vrot.slane %v2048, 1
          %vm2054 = vcmask 1040384
          %v2057 = vsel %vm2054, %v2047, %v2051
          %vm2058 = vcmask 1042434
          %v2061 = vsel %vm2058, %v2052, %v2053
          %vm2062 = vcmask 1041408
          %v2063 = vsel %vm2062, %v2057, %v2061
          %2065 = vst [vmem:[#allocation2] sm:$0xf] %v2063
        $region83: #{pointnet_autoencoder.3} parent=74 // pred_fallthru
          _
        %v2066 = vld [vmem:[#allocation2] sm:$0xf]
        %v2067 = vld [vmem:[%s707] sm:$0xff]
        %v2068 = vld [vmem:[%s707 + $0x8] sm:$0xff]
        %v2069 = vld [vmem:[%s707 + $0x10] sm:$0xff]
        %v2070 = vld [vmem:[%s707 + $0x18] sm:$0xff]
        %v2071 = vld [vmem:[%s707 + $0x20] sm:$0xff]
        %v2072 = vld [vmem:[%s707 + $0x28] sm:$0xff]
        %v2073 = vld [vmem:[%s707 + $0x30] sm:$0xff]
        %v2074 = vld [vmem:[%s707 + $0x38] sm:$0xff]
        %v2075 = vld [vmem:[%s707 + $0x40] sm:$0xff]
        %v2076 = vld [vmem:[%s707 + $0x48] sm:$0xff]
        %v2077 = vld [vmem:[%s707 + $0x50] sm:$0xff]
        %v2078 = vld [vmem:[%s707 + $0x58] sm:$0xff]
        %v2079 = vld [vmem:[%s707 + $0x60] sm:$0xff]
        %v2080 = vld [vmem:[%s707 + $0x68] sm:$0xff]
        %v2081 = vld [vmem:[%s707 + $0x70] sm:$0xff]
        %v2082 = vld [vmem:[%s707 + $0x78] sm:$0xff]
        %v2083 = vld [vmem:[%s707 + $0x80] sm:$0xff]
        %v2084 = vld [vmem:[%s707 + $0x88] sm:$0xff]
        %v2085 = vld [vmem:[%s707 + $0x90] sm:$0xff]
        %v2086 = vld [vmem:[%s707 + $0x98] sm:$0xff]
        %v2087 = vld [vmem:[%s707 + $0xa0] sm:$0xff]
        %v2088 = vld [vmem:[%s707 + $0xa8] sm:$0xff]
        %v2089 = vld [vmem:[%s707 + $0xb0] sm:$0xff]
        %v2090 = vld [vmem:[%s707 + $0xb8] sm:$0xff]
        %v2091 = vld [vmem:[%s707 + $0xc0] sm:$0xff]
        %v2092 = vld [vmem:[%s707 + $0xc8] sm:$0xff]
        %v2093 = vld [vmem:[%s707 + $0xd0] sm:$0xff]
        %v2094 = vld [vmem:[%s707 + $0xd8] sm:$0xff]
        %v2095 = vld [vmem:[%s707 + $0xe0] sm:$0xff]
        %v2096 = vld [vmem:[%s707 + $0xe8] sm:$0xff]
        %v2097 = vld [vmem:[%s707 + $0xf0] sm:$0xff]
        %v2098 = vld [vmem:[%s707 + $0xf8] sm:$0xff]
        %v2099 = vld [vmem:[%s707 + $0x100] sm:$0xff]
        %v2100 = vld [vmem:[%s707 + $0x108] sm:$0xff]
        %v2101 = vld [vmem:[%s707 + $0x110] sm:$0xff]
        %v2102 = vld [vmem:[%s707 + $0x118] sm:$0xff]
        %v2103 = vld [vmem:[%s707 + $0x120] sm:$0xff]
        %v2104 = vld [vmem:[%s707 + $0x128] sm:$0xff]
        %v2105 = vld [vmem:[%s707 + $0x130] sm:$0xff]
        %v2106 = vld [vmem:[%s707 + $0x138] sm:$0xff]
        %v2107 = vld [vmem:[%s707 + $0x140] sm:$0xff]
        %v2108 = vld [vmem:[%s707 + $0x148] sm:$0xff]
        %v2109 = vld [vmem:[%s707 + $0x150] sm:$0xff]
        %v2110 = vld [vmem:[%s707 + $0x158] sm:$0xff]
        %v2111 = vld [vmem:[%s707 + $0x160] sm:$0xff]
        %v2112 = vld [vmem:[%s707 + $0x168] sm:$0xff]
        %v2113 = vld [vmem:[%s707 + $0x170] sm:$0xff]
        %v2114 = vld [vmem:[%s707 + $0x178] sm:$0xff]
        %v2115 = vld [vmem:[%s707 + $0x180] sm:$0xff]
        %v2116 = vld [vmem:[%s707 + $0x188] sm:$0xff]
        %v2117 = vld [vmem:[%s707 + $0x190] sm:$0xff]
        %v2118 = vld [vmem:[%s707 + $0x198] sm:$0xff]
        %v2119 = vld [vmem:[%s707 + $0x1a0] sm:$0xff]
        %v2120 = vld [vmem:[%s707 + $0x1a8] sm:$0xff]
        %v2121 = vld [vmem:[%s707 + $0x1b0] sm:$0xff]
        %v2122 = vld [vmem:[%s707 + $0x1b8] sm:$0xff]
        %v2123 = vld [vmem:[%s707 + $0x1c0] sm:$0xff]
        %v2124 = vld [vmem:[%s707 + $0x1c8] sm:$0xff]
        %v2125 = vld [vmem:[%s707 + $0x1d0] sm:$0xff]
        %v2126 = vld [vmem:[%s707 + $0x1d8] sm:$0xff]
        %v2127 = vld [vmem:[%s707 + $0x1e0] sm:$0xff]
        %v2128 = vld [vmem:[%s707 + $0x1e8] sm:$0xff]
        %v2129 = vld [vmem:[%s707 + $0x1f0] sm:$0xff]
        %v2130 = vld [vmem:[%s707 + $0x1f8] sm:$0xff]
        %v2131 = vld [vmem:[%s707 + $0x200] sm:$0xff]
        %v2132 = vld [vmem:[%s707 + $0x208] sm:$0xff]
        %v2133 = vld [vmem:[%s707 + $0x210] sm:$0xff]
        %v2134 = vld [vmem:[%s707 + $0x218] sm:$0xff]
        %v2135 = vld [vmem:[%s707 + $0x220] sm:$0xff]
        %v2136 = vld [vmem:[%s707 + $0x228] sm:$0xff]
        %v2137 = vld [vmem:[%s707 + $0x230] sm:$0xff]
        %v2138 = vld [vmem:[%s707 + $0x238] sm:$0xff]
        %v2139 = vld [vmem:[%s707 + $0x240] sm:$0xff]
        %v2140 = vld [vmem:[%s707 + $0x248] sm:$0xff]
        %v2141 = vld [vmem:[%s707 + $0x250] sm:$0xff]
        %v2142 = vld [vmem:[%s707 + $0x258] sm:$0xff]
        %v2143 = vld [vmem:[%s707 + $0x260] sm:$0xff]
        %v2144 = vld [vmem:[%s707 + $0x268] sm:$0xff]
        %v2145 = vld [vmem:[%s707 + $0x270] sm:$0xff]
        %v2146 = vld [vmem:[%s707 + $0x278] sm:$0xff]
        %v2147 = vld [vmem:[%s707 + $0x280] sm:$0xff]
        %v2148 = vld [vmem:[%s707 + $0x288] sm:$0xff]
        %v2149 = vld [vmem:[%s707 + $0x290] sm:$0xff]
        %v2150 = vld [vmem:[%s707 + $0x298] sm:$0xff]
        %v2151 = vld [vmem:[%s707 + $0x2a0] sm:$0xff]
        %v2152 = vld [vmem:[%s707 + $0x2a8] sm:$0xff]
        %v2153 = vld [vmem:[%s707 + $0x2b0] sm:$0xff]
        %v2154 = vld [vmem:[%s707 + $0x2b8] sm:$0xff]
        %v2155 = vld [vmem:[%s707 + $0x2c0] sm:$0xff]
        %v2156 = vld [vmem:[%s707 + $0x2c8] sm:$0xff]
        %v2157 = vld [vmem:[%s707 + $0x2d0] sm:$0xff]
        %v2158 = vld [vmem:[%s707 + $0x2d8] sm:$0xff]
        %v2159 = vld [vmem:[%s707 + $0x2e0] sm:$0xff]
        %v2160 = vld [vmem:[%s707 + $0x2e8] sm:$0xff]
        %v2161 = vld [vmem:[%s707 + $0x2f0] sm:$0xff]
        %v2162 = vld [vmem:[%s707 + $0x2f8] sm:$0xff]
        %v2163 = vld [vmem:[%s707 + $0x300] sm:$0xff]
        %v2164 = vld [vmem:[%s707 + $0x308] sm:$0xff]
        %v2165 = vld [vmem:[%s707 + $0x310] sm:$0xff]
        %v2166 = vld [vmem:[%s707 + $0x318] sm:$0xff]
        %v2167 = vld [vmem:[%s707 + $0x320] sm:$0xff]
        %v2168 = vld [vmem:[%s707 + $0x328] sm:$0xff]
        %v2169 = vld [vmem:[%s707 + $0x330] sm:$0xff]
        %v2170 = vld [vmem:[%s707 + $0x338] sm:$0xff]
        %v2171 = vld [vmem:[%s707 + $0x340] sm:$0xff]
        %v2172 = vld [vmem:[%s707 + $0x348] sm:$0xff]
        %v2173 = vld [vmem:[%s707 + $0x350] sm:$0xff]
        %v2174 = vld [vmem:[%s707 + $0x358] sm:$0xff]
        %v2175 = vld [vmem:[%s707 + $0x360] sm:$0xff]
        %v2176 = vld [vmem:[%s707 + $0x368] sm:$0xff]
        %v2177 = vld [vmem:[%s707 + $0x370] sm:$0xff]
        %v2178 = vld [vmem:[%s707 + $0x378] sm:$0xff]
        %v2179 = vld [vmem:[%s707 + $0x380] sm:$0xff]
        %v2180 = vld [vmem:[%s707 + $0x388] sm:$0xff]
        %v2181 = vld [vmem:[%s707 + $0x390] sm:$0xff]
        %v2182 = vld [vmem:[%s707 + $0x398] sm:$0xff]
        %v2183 = vld [vmem:[%s707 + $0x3a0] sm:$0xff]
        %v2184 = vld [vmem:[%s707 + $0x3a8] sm:$0xff]
        %v2185 = vld [vmem:[%s707 + $0x3b0] sm:$0xff]
        %v2186 = vld [vmem:[%s707 + $0x3b8] sm:$0xff]
        %v2187 = vld [vmem:[%s707 + $0x3c0] sm:$0xff]
        %v2188 = vld [vmem:[%s707 + $0x3c8] sm:$0xff]
        %v2189 = vld [vmem:[%s707 + $0x3d0] sm:$0xff]
        %v2190 = vld [vmem:[%s707 + $0x3d8] sm:$0xff]
        %v2191 = vld [vmem:[%s707 + $0x3e0] sm:$0xff]
        %v2192 = vld [vmem:[%s707 + $0x3e8] sm:$0xff]
        %v2193 = vld [vmem:[%s707 + $0x3f0] sm:$0xff]
        %v2194 = vld [vmem:[%s707 + $0x3f8] sm:$0xff]
        %v2195 = vld [vmem:[%s707 + $0x400] sm:$0xff]
        %v2196 = vld [vmem:[%s707 + $0x408] sm:$0xff]
        %v2197 = vld [vmem:[%s707 + $0x410] sm:$0xff]
        %v2198 = vld [vmem:[%s707 + $0x418] sm:$0xff]
        %v2199 = vld [vmem:[%s707 + $0x420] sm:$0xff]
        %v2200 = vld [vmem:[%s707 + $0x428] sm:$0xff]
        %v2201 = vld [vmem:[%s707 + $0x430] sm:$0xff]
        %v2202 = vld [vmem:[%s707 + $0x438] sm:$0xff]
        %v2203 = vld [vmem:[%s707 + $0x440] sm:$0xff]
        %v2204 = vld [vmem:[%s707 + $0x448] sm:$0xff]
        %v2205 = vld [vmem:[%s707 + $0x450] sm:$0xff]
        %v2206 = vld [vmem:[%s707 + $0x458] sm:$0xff]
        %v2207 = vld [vmem:[%s707 + $0x460] sm:$0xff]
        %v2208 = vld [vmem:[%s707 + $0x468] sm:$0xff]
        %v2209 = vld [vmem:[%s707 + $0x470] sm:$0xff]
        %v2210 = vld [vmem:[%s707 + $0x478] sm:$0xff]
        %v2211 = vld [vmem:[%s707 + $0x480] sm:$0xff]
        %v2212 = vld [vmem:[%s707 + $0x488] sm:$0xff]
        %v2213 = vld [vmem:[%s707 + $0x490] sm:$0xff]
        %v2214 = vld [vmem:[%s707 + $0x498] sm:$0xff]
        %v2215 = vld [vmem:[%s707 + $0x4a0] sm:$0xff]
        %v2216 = vld [vmem:[%s707 + $0x4a8] sm:$0xff]
        %v2217 = vld [vmem:[%s707 + $0x4b0] sm:$0xff]
        %v2218 = vld [vmem:[%s707 + $0x4b8] sm:$0xff]
        %v2219 = vld [vmem:[%s707 + $0x4c0] sm:$0xff]
        %v2220 = vld [vmem:[%s707 + $0x4c8] sm:$0xff]
        %v2221 = vld [vmem:[%s707 + $0x4d0] sm:$0xff]
        %v2222 = vld [vmem:[%s707 + $0x4d8] sm:$0xff]
        %v2223 = vld [vmem:[%s707 + $0x4e0] sm:$0xff]
        %v2224 = vld [vmem:[%s707 + $0x4e8] sm:$0xff]
        %v2225 = vld [vmem:[%s707 + $0x4f0] sm:$0xff]
        %v2226 = vld [vmem:[%s707 + $0x4f8] sm:$0xff]
        %v2227 = vld [vmem:[%s707 + $0x500] sm:$0xff]
        %v2228 = vld [vmem:[%s707 + $0x508] sm:$0xff]
        %v2229 = vld [vmem:[%s707 + $0x510] sm:$0xff]
        %v2230 = vld [vmem:[%s707 + $0x518] sm:$0xff]
        %v2231 = vld [vmem:[%s707 + $0x520] sm:$0xff]
        %v2232 = vld [vmem:[%s707 + $0x528] sm:$0xff]
        %v2233 = vld [vmem:[%s707 + $0x530] sm:$0xff]
        %v2234 = vld [vmem:[%s707 + $0x538] sm:$0xff]
        %v2235 = vld [vmem:[%s707 + $0x540] sm:$0xff]
        %v2236 = vld [vmem:[%s707 + $0x548] sm:$0xff]
        %v2237 = vld [vmem:[%s707 + $0x550] sm:$0xff]
        %v2238 = vld [vmem:[%s707 + $0x558] sm:$0xff]
        %v2239 = vld [vmem:[%s707 + $0x560] sm:$0xff]
        %v2240 = vld [vmem:[%s707 + $0x568] sm:$0xff]
        %v2241 = vld [vmem:[%s707 + $0x570] sm:$0xff]
        %v2242 = vld [vmem:[%s707 + $0x578] sm:$0xff]
        %v2243 = vld [vmem:[%s707 + $0x580] sm:$0xff]
        %v2244 = vld [vmem:[%s707 + $0x588] sm:$0xff]
        %v2245 = vld [vmem:[%s707 + $0x590] sm:$0xff]
        %v2246 = vld [vmem:[%s707 + $0x598] sm:$0xff]
        %v2247 = vld [vmem:[%s707 + $0x5a0] sm:$0xff]
        %v2248 = vld [vmem:[%s707 + $0x5a8] sm:$0xff]
        %v2249 = vld [vmem:[%s707 + $0x5b0] sm:$0xff]
        %v2250 = vld [vmem:[%s707 + $0x5b8] sm:$0xff]
        %v2251 = vld [vmem:[%s707 + $0x5c0] sm:$0xff]
        %v2252 = vld [vmem:[%s707 + $0x5c8] sm:$0xff]
        %v2253 = vld [vmem:[%s707 + $0x5d0] sm:$0xff]
        %v2254 = vld [vmem:[%s707 + $0x5d8] sm:$0xff]
        %v2255 = vld [vmem:[%s707 + $0x5e0] sm:$0xff]
        %v2256 = vld [vmem:[%s707 + $0x5e8] sm:$0xff]
        %v2257 = vld [vmem:[%s707 + $0x5f0] sm:$0xff]
        %v2258 = vld [vmem:[%s707 + $0x5f8] sm:$0xff]
        %v2259 = vld [vmem:[%s748] sm:$0x3f]
        %v2261 = vperm.slane %v2259, 0
        %v2262 = vperm.slane %v2259, 1
        %v2263 = vperm.slane %v2259, 2
        %v2264 = vperm.slane %v2259, 3
        %v2265 = vperm.slane %v2259, 4
        %v2266 = vperm.slane %v2259, 5
        %2274 = vst [vmem:[#allocation1] ss:$9 sm:$0xff] %v2066
        %v2275 = vld [vmem:[#allocation1] sm:$0xff]
        %v2276 = vld [vmem:[#allocation1 + $0x9] sm:$0xff]
        %v2277 = vld [vmem:[#allocation1 + $0x12] sm:$0xff]
        %v2278 = vld [vmem:[#allocation1 + $0x1b] sm:$0xff]
        %v2475 = vunpack.c.l.b16 %v2067
        %v2476 = vunpack.c.h.b16 %v2067
        %v2477 = vunpack.c.l.b16 %v2068
        %v2478 = vunpack.c.h.b16 %v2068
        %v2479 = vunpack.c.l.b16 %v2069
        %v2480 = vunpack.c.h.b16 %v2069
        %v2481 = vunpack.c.l.b16 %v2070
        %v2482 = vunpack.c.h.b16 %v2070
        %v2483 = vunpack.c.l.b16 %v2071
        %v2484 = vunpack.c.h.b16 %v2071
        %v2485 = vunpack.c.l.b16 %v2072
        %v2486 = vunpack.c.h.b16 %v2072
        %v2487 = vunpack.c.l.b16 %v2073
        %v2488 = vunpack.c.h.b16 %v2073
        %v2489 = vunpack.c.l.b16 %v2074
        %v2490 = vunpack.c.h.b16 %v2074
        %v2491 = vunpack.c.l.b16 %v2075
        %v2492 = vunpack.c.h.b16 %v2075
        %v2493 = vunpack.c.l.b16 %v2076
        %v2494 = vunpack.c.h.b16 %v2076
        %v2495 = vunpack.c.l.b16 %v2077
        %v2496 = vunpack.c.h.b16 %v2077
        %v2497 = vunpack.c.l.b16 %v2078
        %v2498 = vunpack.c.h.b16 %v2078
        %v2499 = vunpack.c.l.b16 %v2079
        %v2500 = vunpack.c.h.b16 %v2079
        %v2501 = vunpack.c.l.b16 %v2080
        %v2502 = vunpack.c.h.b16 %v2080
        %v2503 = vunpack.c.l.b16 %v2081
        %v2504 = vunpack.c.h.b16 %v2081
        %v2505 = vunpack.c.l.b16 %v2082
        %v2506 = vunpack.c.h.b16 %v2082
        %v2507 = vunpack.c.l.b16 %v2083
        %v2508 = vunpack.c.h.b16 %v2083
        %v2509 = vunpack.c.l.b16 %v2084
        %v2510 = vunpack.c.h.b16 %v2084
        %v2511 = vunpack.c.l.b16 %v2085
        %v2512 = vunpack.c.h.b16 %v2085
        %v2513 = vunpack.c.l.b16 %v2086
        %v2514 = vunpack.c.h.b16 %v2086
        %v2515 = vunpack.c.l.b16 %v2087
        %v2516 = vunpack.c.h.b16 %v2087
        %v2517 = vunpack.c.l.b16 %v2088
        %v2518 = vunpack.c.h.b16 %v2088
        %v2519 = vunpack.c.l.b16 %v2089
        %v2520 = vunpack.c.h.b16 %v2089
        %v2521 = vunpack.c.l.b16 %v2090
        %v2522 = vunpack.c.h.b16 %v2090
        %v2523 = vunpack.c.l.b16 %v2091
        %v2524 = vunpack.c.h.b16 %v2091
        %v2525 = vunpack.c.l.b16 %v2092
        %v2526 = vunpack.c.h.b16 %v2092
        %v2527 = vunpack.c.l.b16 %v2093
        %v2528 = vunpack.c.h.b16 %v2093
        %v2529 = vunpack.c.l.b16 %v2094
        %v2530 = vunpack.c.h.b16 %v2094
        %v2531 = vunpack.c.l.b16 %v2095
        %v2532 = vunpack.c.h.b16 %v2095
        %v2533 = vunpack.c.l.b16 %v2096
        %v2534 = vunpack.c.h.b16 %v2096
        %v2535 = vunpack.c.l.b16 %v2097
        %v2536 = vunpack.c.h.b16 %v2097
        %v2537 = vunpack.c.l.b16 %v2098
        %v2538 = vunpack.c.h.b16 %v2098
        %v2539 = vunpack.c.l.b16 %v2099
        %v2540 = vunpack.c.h.b16 %v2099
        %v2541 = vunpack.c.l.b16 %v2100
        %v2542 = vunpack.c.h.b16 %v2100
        %v2543 = vunpack.c.l.b16 %v2101
        %v2544 = vunpack.c.h.b16 %v2101
        %v2545 = vunpack.c.l.b16 %v2102
        %v2546 = vunpack.c.h.b16 %v2102
        %v2547 = vunpack.c.l.b16 %v2103
        %v2548 = vunpack.c.h.b16 %v2103
        %v2549 = vunpack.c.l.b16 %v2104
        %v2550 = vunpack.c.h.b16 %v2104
        %v2551 = vunpack.c.l.b16 %v2105
        %v2552 = vunpack.c.h.b16 %v2105
        %v2553 = vunpack.c.l.b16 %v2106
        %v2554 = vunpack.c.h.b16 %v2106
        %v2555 = vunpack.c.l.b16 %v2107
        %v2556 = vunpack.c.h.b16 %v2107
        %v2557 = vunpack.c.l.b16 %v2108
        %v2558 = vunpack.c.h.b16 %v2108
        %v2559 = vunpack.c.l.b16 %v2109
        %v2560 = vunpack.c.h.b16 %v2109
        %v2561 = vunpack.c.l.b16 %v2110
        %v2562 = vunpack.c.h.b16 %v2110
        %v2563 = vunpack.c.l.b16 %v2111
        %v2564 = vunpack.c.h.b16 %v2111
        %v2565 = vunpack.c.l.b16 %v2112
        %v2566 = vunpack.c.h.b16 %v2112
        %v2567 = vunpack.c.l.b16 %v2113
        %v2568 = vunpack.c.h.b16 %v2113
        %v2569 = vunpack.c.l.b16 %v2114
        %v2570 = vunpack.c.h.b16 %v2114
        %v2571 = vunpack.c.l.b16 %v2115
        %v2572 = vunpack.c.h.b16 %v2115
        %v2573 = vunpack.c.l.b16 %v2116
        %v2574 = vunpack.c.h.b16 %v2116
        %v2575 = vunpack.c.l.b16 %v2117
        %v2576 = vunpack.c.h.b16 %v2117
        %v2577 = vunpack.c.l.b16 %v2118
        %v2578 = vunpack.c.h.b16 %v2118
        %v2579 = vunpack.c.l.b16 %v2119
        %v2580 = vunpack.c.h.b16 %v2119
        %v2581 = vunpack.c.l.b16 %v2120
        %v2582 = vunpack.c.h.b16 %v2120
        %v2583 = vunpack.c.l.b16 %v2121
        %v2584 = vunpack.c.h.b16 %v2121
        %v2585 = vunpack.c.l.b16 %v2122
        %v2586 = vunpack.c.h.b16 %v2122
        %v2587 = vunpack.c.l.b16 %v2123
        %v2588 = vunpack.c.h.b16 %v2123
        %v2589 = vunpack.c.l.b16 %v2124
        %v2590 = vunpack.c.h.b16 %v2124
        %v2591 = vunpack.c.l.b16 %v2125
        %v2592 = vunpack.c.h.b16 %v2125
        %v2593 = vunpack.c.l.b16 %v2126
        %v2594 = vunpack.c.h.b16 %v2126
        %v2595 = vunpack.c.l.b16 %v2127
        %v2596 = vunpack.c.h.b16 %v2127
        %v2597 = vunpack.c.l.b16 %v2128
        %v2598 = vunpack.c.h.b16 %v2128
        %v2599 = vunpack.c.l.b16 %v2129
        %v2600 = vunpack.c.h.b16 %v2129
        %v2601 = vunpack.c.l.b16 %v2130
        %v2602 = vunpack.c.h.b16 %v2130
        %v2603 = vunpack.c.l.b16 %v2131
        %v2604 = vunpack.c.h.b16 %v2131
        %v2605 = vunpack.c.l.b16 %v2132
        %v2606 = vunpack.c.h.b16 %v2132
        %v2607 = vunpack.c.l.b16 %v2133
        %v2608 = vunpack.c.h.b16 %v2133
        %v2609 = vunpack.c.l.b16 %v2134
        %v2610 = vunpack.c.h.b16 %v2134
        %v2611 = vunpack.c.l.b16 %v2135
        %v2612 = vunpack.c.h.b16 %v2135
        %v2613 = vunpack.c.l.b16 %v2136
        %v2614 = vunpack.c.h.b16 %v2136
        %v2615 = vunpack.c.l.b16 %v2137
        %v2616 = vunpack.c.h.b16 %v2137
        %v2617 = vunpack.c.l.b16 %v2138
        %v2618 = vunpack.c.h.b16 %v2138
        %v2619 = vunpack.c.l.b16 %v2139
        %v2620 = vunpack.c.h.b16 %v2139
        %v2621 = vunpack.c.l.b16 %v2140
        %v2622 = vunpack.c.h.b16 %v2140
        %v2623 = vunpack.c.l.b16 %v2141
        %v2624 = vunpack.c.h.b16 %v2141
        %v2625 = vunpack.c.l.b16 %v2142
        %v2626 = vunpack.c.h.b16 %v2142
        %v2627 = vunpack.c.l.b16 %v2143
        %v2628 = vunpack.c.h.b16 %v2143
        %v2629 = vunpack.c.l.b16 %v2144
        %v2630 = vunpack.c.h.b16 %v2144
        %v2631 = vunpack.c.l.b16 %v2145
        %v2632 = vunpack.c.h.b16 %v2145
        %v2633 = vunpack.c.l.b16 %v2146
        %v2634 = vunpack.c.h.b16 %v2146
        %v2635 = vunpack.c.l.b16 %v2147
        %v2636 = vunpack.c.h.b16 %v2147
        %v2637 = vunpack.c.l.b16 %v2148
        %v2638 = vunpack.c.h.b16 %v2148
        %v2639 = vunpack.c.l.b16 %v2149
        %v2640 = vunpack.c.h.b16 %v2149
        %v2641 = vunpack.c.l.b16 %v2150
        %v2642 = vunpack.c.h.b16 %v2150
        %v2643 = vunpack.c.l.b16 %v2151
        %v2644 = vunpack.c.h.b16 %v2151
        %v2645 = vunpack.c.l.b16 %v2152
        %v2646 = vunpack.c.h.b16 %v2152
        %v2647 = vunpack.c.l.b16 %v2153
        %v2648 = vunpack.c.h.b16 %v2153
        %v2649 = vunpack.c.l.b16 %v2154
        %v2650 = vunpack.c.h.b16 %v2154
        %v2651 = vunpack.c.l.b16 %v2155
        %v2652 = vunpack.c.h.b16 %v2155
        %v2653 = vunpack.c.l.b16 %v2156
        %v2654 = vunpack.c.h.b16 %v2156
        %v2655 = vunpack.c.l.b16 %v2157
        %v2656 = vunpack.c.h.b16 %v2157
        %v2657 = vunpack.c.l.b16 %v2158
        %v2658 = vunpack.c.h.b16 %v2158
        %v2659 = vunpack.c.l.b16 %v2159
        %v2660 = vunpack.c.h.b16 %v2159
        %v2661 = vunpack.c.l.b16 %v2160
        %v2662 = vunpack.c.h.b16 %v2160
        %v2663 = vunpack.c.l.b16 %v2161
        %v2664 = vunpack.c.h.b16 %v2161
        %v2665 = vunpack.c.l.b16 %v2162
        %v2666 = vunpack.c.h.b16 %v2162
        %v2667 = vunpack.c.l.b16 %v2163
        %v2668 = vunpack.c.h.b16 %v2163
        %v2669 = vunpack.c.l.b16 %v2164
        %v2670 = vunpack.c.h.b16 %v2164
        %v2671 = vunpack.c.l.b16 %v2165
        %v2672 = vunpack.c.h.b16 %v2165
        %v2673 = vunpack.c.l.b16 %v2166
        %v2674 = vunpack.c.h.b16 %v2166
        %v2675 = vunpack.c.l.b16 %v2167
        %v2676 = vunpack.c.h.b16 %v2167
        %v2677 = vunpack.c.l.b16 %v2168
        %v2678 = vunpack.c.h.b16 %v2168
        %v2679 = vunpack.c.l.b16 %v2169
        %v2680 = vunpack.c.h.b16 %v2169
        %v2681 = vunpack.c.l.b16 %v2170
        %v2682 = vunpack.c.h.b16 %v2170
        %v2683 = vunpack.c.l.b16 %v2171
        %v2684 = vunpack.c.h.b16 %v2171
        %v2685 = vunpack.c.l.b16 %v2172
        %v2686 = vunpack.c.h.b16 %v2172
        %v2687 = vunpack.c.l.b16 %v2173
        %v2688 = vunpack.c.h.b16 %v2173
        %v2689 = vunpack.c.l.b16 %v2174
        %v2690 = vunpack.c.h.b16 %v2174
        %v2691 = vunpack.c.l.b16 %v2175
        %v2692 = vunpack.c.h.b16 %v2175
        %v2693 = vunpack.c.l.b16 %v2176
        %v2694 = vunpack.c.h.b16 %v2176
        %v2695 = vunpack.c.l.b16 %v2177
        %v2696 = vunpack.c.h.b16 %v2177
        %v2697 = vunpack.c.l.b16 %v2178
        %v2698 = vunpack.c.h.b16 %v2178
        %v2699 = vunpack.c.l.b16 %v2179
        %v2700 = vunpack.c.h.b16 %v2179
        %v2701 = vunpack.c.l.b16 %v2180
        %v2702 = vunpack.c.h.b16 %v2180
        %v2703 = vunpack.c.l.b16 %v2181
        %v2704 = vunpack.c.h.b16 %v2181
        %v2705 = vunpack.c.l.b16 %v2182
        %v2706 = vunpack.c.h.b16 %v2182
        %v2707 = vunpack.c.l.b16 %v2183
        %v2708 = vunpack.c.h.b16 %v2183
        %v2709 = vunpack.c.l.b16 %v2184
        %v2710 = vunpack.c.h.b16 %v2184
        %v2711 = vunpack.c.l.b16 %v2185
        %v2712 = vunpack.c.h.b16 %v2185
        %v2713 = vunpack.c.l.b16 %v2186
        %v2714 = vunpack.c.h.b16 %v2186
        %v2715 = vunpack.c.l.b16 %v2187
        %v2716 = vunpack.c.h.b16 %v2187
        %v2717 = vunpack.c.l.b16 %v2188
        %v2718 = vunpack.c.h.b16 %v2188
        %v2719 = vunpack.c.l.b16 %v2189
        %v2720 = vunpack.c.h.b16 %v2189
        %v2721 = vunpack.c.l.b16 %v2190
        %v2722 = vunpack.c.h.b16 %v2190
        %v2723 = vunpack.c.l.b16 %v2191
        %v2724 = vunpack.c.h.b16 %v2191
        %v2725 = vunpack.c.l.b16 %v2192
        %v2726 = vunpack.c.h.b16 %v2192
        %v2727 = vunpack.c.l.b16 %v2193
        %v2728 = vunpack.c.h.b16 %v2193
        %v2729 = vunpack.c.l.b16 %v2194
        %v2730 = vunpack.c.h.b16 %v2194
        %v2731 = vunpack.c.l.b16 %v2195
        %v2732 = vunpack.c.h.b16 %v2195
        %v2733 = vunpack.c.l.b16 %v2196
        %v2734 = vunpack.c.h.b16 %v2196
        %v2735 = vunpack.c.l.b16 %v2197
        %v2736 = vunpack.c.h.b16 %v2197
        %v2737 = vunpack.c.l.b16 %v2198
        %v2738 = vunpack.c.h.b16 %v2198
        %v2739 = vunpack.c.l.b16 %v2199
        %v2740 = vunpack.c.h.b16 %v2199
        %v2741 = vunpack.c.l.b16 %v2200
        %v2742 = vunpack.c.h.b16 %v2200
        %v2743 = vunpack.c.l.b16 %v2201
        %v2744 = vunpack.c.h.b16 %v2201
        %v2745 = vunpack.c.l.b16 %v2202
        %v2746 = vunpack.c.h.b16 %v2202
        %v2747 = vunpack.c.l.b16 %v2203
        %v2748 = vunpack.c.h.b16 %v2203
        %v2749 = vunpack.c.l.b16 %v2204
        %v2750 = vunpack.c.h.b16 %v2204
        %v2751 = vunpack.c.l.b16 %v2205
        %v2752 = vunpack.c.h.b16 %v2205
        %v2753 = vunpack.c.l.b16 %v2206
        %v2754 = vunpack.c.h.b16 %v2206
        %v2755 = vunpack.c.l.b16 %v2207
        %v2756 = vunpack.c.h.b16 %v2207
        %v2757 = vunpack.c.l.b16 %v2208
        %v2758 = vunpack.c.h.b16 %v2208
        %v2759 = vunpack.c.l.b16 %v2209
        %v2760 = vunpack.c.h.b16 %v2209
        %v2761 = vunpack.c.l.b16 %v2210
        %v2762 = vunpack.c.h.b16 %v2210
        %v2763 = vunpack.c.l.b16 %v2211
        %v2764 = vunpack.c.h.b16 %v2211
        %v2765 = vunpack.c.l.b16 %v2212
        %v2766 = vunpack.c.h.b16 %v2212
        %v2767 = vunpack.c.l.b16 %v2213
        %v2768 = vunpack.c.h.b16 %v2213
        %v2769 = vunpack.c.l.b16 %v2214
        %v2770 = vunpack.c.h.b16 %v2214
        %v2771 = vunpack.c.l.b16 %v2215
        %v2772 = vunpack.c.h.b16 %v2215
        %v2773 = vunpack.c.l.b16 %v2216
        %v2774 = vunpack.c.h.b16 %v2216
        %v2775 = vunpack.c.l.b16 %v2217
        %v2776 = vunpack.c.h.b16 %v2217
        %v2777 = vunpack.c.l.b16 %v2218
        %v2778 = vunpack.c.h.b16 %v2218
        %v2779 = vunpack.c.l.b16 %v2219
        %v2780 = vunpack.c.h.b16 %v2219
        %v2781 = vunpack.c.l.b16 %v2220
        %v2782 = vunpack.c.h.b16 %v2220
        %v2783 = vunpack.c.l.b16 %v2221
        %v2784 = vunpack.c.h.b16 %v2221
        %v2785 = vunpack.c.l.b16 %v2222
        %v2786 = vunpack.c.h.b16 %v2222
        %v2787 = vunpack.c.l.b16 %v2223
        %v2788 = vunpack.c.h.b16 %v2223
        %v2789 = vunpack.c.l.b16 %v2224
        %v2790 = vunpack.c.h.b16 %v2224
        %v2791 = vunpack.c.l.b16 %v2225
        %v2792 = vunpack.c.h.b16 %v2225
        %v2793 = vunpack.c.l.b16 %v2226
        %v2794 = vunpack.c.h.b16 %v2226
        %v2795 = vunpack.c.l.b16 %v2227
        %v2796 = vunpack.c.h.b16 %v2227
        %v2797 = vunpack.c.l.b16 %v2228
        %v2798 = vunpack.c.h.b16 %v2228
        %v2799 = vunpack.c.l.b16 %v2229
        %v2800 = vunpack.c.h.b16 %v2229
        %v2801 = vunpack.c.l.b16 %v2230
        %v2802 = vunpack.c.h.b16 %v2230
        %v2803 = vunpack.c.l.b16 %v2231
        %v2804 = vunpack.c.h.b16 %v2231
        %v2805 = vunpack.c.l.b16 %v2232
        %v2806 = vunpack.c.h.b16 %v2232
        %v2807 = vunpack.c.l.b16 %v2233
        %v2808 = vunpack.c.h.b16 %v2233
        %v2809 = vunpack.c.l.b16 %v2234
        %v2810 = vunpack.c.h.b16 %v2234
        %v2811 = vunpack.c.l.b16 %v2235
        %v2812 = vunpack.c.h.b16 %v2235
        %v2813 = vunpack.c.l.b16 %v2236
        %v2814 = vunpack.c.h.b16 %v2236
        %v2815 = vunpack.c.l.b16 %v2237
        %v2816 = vunpack.c.h.b16 %v2237
        %v2817 = vunpack.c.l.b16 %v2238
        %v2818 = vunpack.c.h.b16 %v2238
        %v2819 = vunpack.c.l.b16 %v2239
        %v2820 = vunpack.c.h.b16 %v2239
        %v2821 = vunpack.c.l.b16 %v2240
        %v2822 = vunpack.c.h.b16 %v2240
        %v2823 = vunpack.c.l.b16 %v2241
        %v2824 = vunpack.c.h.b16 %v2241
        %v2825 = vunpack.c.l.b16 %v2242
        %v2826 = vunpack.c.h.b16 %v2242
        %v2827 = vunpack.c.l.b16 %v2243
        %v2828 = vunpack.c.h.b16 %v2243
        %v2829 = vunpack.c.l.b16 %v2244
        %v2830 = vunpack.c.h.b16 %v2244
        %v2831 = vunpack.c.l.b16 %v2245
        %v2832 = vunpack.c.h.b16 %v2245
        %v2833 = vunpack.c.l.b16 %v2246
        %v2834 = vunpack.c.h.b16 %v2246
        %v2835 = vunpack.c.l.b16 %v2247
        %v2836 = vunpack.c.h.b16 %v2247
        %v2837 = vunpack.c.l.b16 %v2248
        %v2838 = vunpack.c.h.b16 %v2248
        %v2839 = vunpack.c.l.b16 %v2249
        %v2840 = vunpack.c.h.b16 %v2249
        %v2841 = vunpack.c.l.b16 %v2250
        %v2842 = vunpack.c.h.b16 %v2250
        %v2843 = vunpack.c.l.b16 %v2251
        %v2844 = vunpack.c.h.b16 %v2251
        %v2845 = vunpack.c.l.b16 %v2252
        %v2846 = vunpack.c.h.b16 %v2252
        %v2847 = vunpack.c.l.b16 %v2253
        %v2848 = vunpack.c.h.b16 %v2253
        %v2849 = vunpack.c.l.b16 %v2254
        %v2850 = vunpack.c.h.b16 %v2254
        %v2851 = vunpack.c.l.b16 %v2255
        %v2852 = vunpack.c.h.b16 %v2255
        %v2853 = vunpack.c.l.b16 %v2256
        %v2854 = vunpack.c.h.b16 %v2256
        %v2855 = vunpack.c.l.b16 %v2257
        %v2856 = vunpack.c.h.b16 %v2257
        %v2857 = vunpack.c.l.b16 %v2258
        %v2858 = vunpack.c.h.b16 %v2258
        %v2859 = vpack.c.b16 %v2481, %v2475
        %v2860 = vpack.c.b16 %v2482, %v2476
        %v2861 = vpack.c.b16 %v2483, %v2477
        %v2862 = vpack.c.b16 %v2484, %v2478
        %v2863 = vpack.c.b16 %v2485, %v2479
        %v2864 = vpack.c.b16 %v2486, %v2480
        %v2865 = vpack.c.b16 %v2493, %v2487
        %v2866 = vpack.c.b16 %v2494, %v2488
        %v2867 = vpack.c.b16 %v2495, %v2489
        %v2868 = vpack.c.b16 %v2496, %v2490
        %v2869 = vpack.c.b16 %v2497, %v2491
        %v2870 = vpack.c.b16 %v2498, %v2492
        %v2871 = vpack.c.b16 %v2505, %v2499
        %v2872 = vpack.c.b16 %v2506, %v2500
        %v2873 = vpack.c.b16 %v2507, %v2501
        %v2874 = vpack.c.b16 %v2508, %v2502
        %v2875 = vpack.c.b16 %v2509, %v2503
        %v2876 = vpack.c.b16 %v2510, %v2504
        %v2877 = vpack.c.b16 %v2517, %v2511
        %v2878 = vpack.c.b16 %v2518, %v2512
        %v2879 = vpack.c.b16 %v2519, %v2513
        %v2880 = vpack.c.b16 %v2520, %v2514
        %v2881 = vpack.c.b16 %v2521, %v2515
        %v2882 = vpack.c.b16 %v2522, %v2516
        %v2883 = vpack.c.b16 %v2529, %v2523
        %v2884 = vpack.c.b16 %v2530, %v2524
        %v2885 = vpack.c.b16 %v2531, %v2525
        %v2886 = vpack.c.b16 %v2532, %v2526
        %v2887 = vpack.c.b16 %v2533, %v2527
        %v2888 = vpack.c.b16 %v2534, %v2528
        %v2889 = vpack.c.b16 %v2541, %v2535
        %v2890 = vpack.c.b16 %v2542, %v2536
        %v2891 = vpack.c.b16 %v2543, %v2537
        %v2892 = vpack.c.b16 %v2544, %v2538
        %v2893 = vpack.c.b16 %v2545, %v2539
        %v2894 = vpack.c.b16 %v2546, %v2540
        %v2895 = vpack.c.b16 %v2553, %v2547
        %v2896 = vpack.c.b16 %v2554, %v2548
        %v2897 = vpack.c.b16 %v2555, %v2549
        %v2898 = vpack.c.b16 %v2556, %v2550
        %v2899 = vpack.c.b16 %v2557, %v2551
        %v2900 = vpack.c.b16 %v2558, %v2552
        %v2901 = vpack.c.b16 %v2565, %v2559
        %v2902 = vpack.c.b16 %v2566, %v2560
        %v2903 = vpack.c.b16 %v2567, %v2561
        %v2904 = vpack.c.b16 %v2568, %v2562
        %v2905 = vpack.c.b16 %v2569, %v2563
        %v2906 = vpack.c.b16 %v2570, %v2564
        %v2907 = vpack.c.b16 %v2577, %v2571
        %v2908 = vpack.c.b16 %v2578, %v2572
        %v2909 = vpack.c.b16 %v2579, %v2573
        %v2910 = vpack.c.b16 %v2580, %v2574
        %v2911 = vpack.c.b16 %v2581, %v2575
        %v2912 = vpack.c.b16 %v2582, %v2576
        %v2913 = vpack.c.b16 %v2589, %v2583
        %v2914 = vpack.c.b16 %v2590, %v2584
        %v2915 = vpack.c.b16 %v2591, %v2585
        %v2916 = vpack.c.b16 %v2592, %v2586
        %v2917 = vpack.c.b16 %v2593, %v2587
        %v2918 = vpack.c.b16 %v2594, %v2588
        %v2919 = vpack.c.b16 %v2601, %v2595
        %v2920 = vpack.c.b16 %v2602, %v2596
        %v2921 = vpack.c.b16 %v2603, %v2597
        %v2922 = vpack.c.b16 %v2604, %v2598
        %v2923 = vpack.c.b16 %v2605, %v2599
        %v2924 = vpack.c.b16 %v2606, %v2600
        %v2925 = vpack.c.b16 %v2613, %v2607
        %v2926 = vpack.c.b16 %v2614, %v2608
        %v2927 = vpack.c.b16 %v2615, %v2609
        %v2928 = vpack.c.b16 %v2616, %v2610
        %v2929 = vpack.c.b16 %v2617, %v2611
        %v2930 = vpack.c.b16 %v2618, %v2612
        %v2931 = vpack.c.b16 %v2625, %v2619
        %v2932 = vpack.c.b16 %v2626, %v2620
        %v2933 = vpack.c.b16 %v2627, %v2621
        %v2934 = vpack.c.b16 %v2628, %v2622
        %v2935 = vpack.c.b16 %v2629, %v2623
        %v2936 = vpack.c.b16 %v2630, %v2624
        %v2937 = vpack.c.b16 %v2637, %v2631
        %v2938 = vpack.c.b16 %v2638, %v2632
        %v2939 = vpack.c.b16 %v2639, %v2633
        %v2940 = vpack.c.b16 %v2640, %v2634
        %v2941 = vpack.c.b16 %v2641, %v2635
        %v2942 = vpack.c.b16 %v2642, %v2636
        %v2943 = vpack.c.b16 %v2649, %v2643
        %v2944 = vpack.c.b16 %v2650, %v2644
        %v2945 = vpack.c.b16 %v2651, %v2645
        %v2946 = vpack.c.b16 %v2652, %v2646
        %v2947 = vpack.c.b16 %v2653, %v2647
        %v2948 = vpack.c.b16 %v2654, %v2648
        %v2949 = vpack.c.b16 %v2661, %v2655
        %v2950 = vpack.c.b16 %v2662, %v2656
        %v2951 = vpack.c.b16 %v2663, %v2657
        %v2952 = vpack.c.b16 %v2664, %v2658
        %v2953 = vpack.c.b16 %v2665, %v2659
        %v2954 = vpack.c.b16 %v2666, %v2660
        %v2955 = vpack.c.b16 %v2673, %v2667
        %v2956 = vpack.c.b16 %v2674, %v2668
        %v2957 = vpack.c.b16 %v2675, %v2669
        %v2958 = vpack.c.b16 %v2676, %v2670
        %v2959 = vpack.c.b16 %v2677, %v2671
        %v2960 = vpack.c.b16 %v2678, %v2672
        %v2961 = vpack.c.b16 %v2685, %v2679
        %v2962 = vpack.c.b16 %v2686, %v2680
        %v2963 = vpack.c.b16 %v2687, %v2681
        %v2964 = vpack.c.b16 %v2688, %v2682
        %v2965 = vpack.c.b16 %v2689, %v2683
        %v2966 = vpack.c.b16 %v2690, %v2684
        %v2967 = vpack.c.b16 %v2697, %v2691
        %v2968 = vpack.c.b16 %v2698, %v2692
        %v2969 = vpack.c.b16 %v2699, %v2693
        %v2970 = vpack.c.b16 %v2700, %v2694
        %v2971 = vpack.c.b16 %v2701, %v2695
        %v2972 = vpack.c.b16 %v2702, %v2696
        %v2973 = vpack.c.b16 %v2709, %v2703
        %v2974 = vpack.c.b16 %v2710, %v2704
        %v2975 = vpack.c.b16 %v2711, %v2705
        %v2976 = vpack.c.b16 %v2712, %v2706
        %v2977 = vpack.c.b16 %v2713, %v2707
        %v2978 = vpack.c.b16 %v2714, %v2708
        %v2979 = vpack.c.b16 %v2721, %v2715
        %v2980 = vpack.c.b16 %v2722, %v2716
        %v2981 = vpack.c.b16 %v2723, %v2717
        %v2982 = vpack.c.b16 %v2724, %v2718
        %v2983 = vpack.c.b16 %v2725, %v2719
        %v2984 = vpack.c.b16 %v2726, %v2720
        %v2985 = vpack.c.b16 %v2733, %v2727
        %v2986 = vpack.c.b16 %v2734, %v2728
        %v2987 = vpack.c.b16 %v2735, %v2729
        %v2988 = vpack.c.b16 %v2736, %v2730
        %v2989 = vpack.c.b16 %v2737, %v2731
        %v2990 = vpack.c.b16 %v2738, %v2732
        %v2991 = vpack.c.b16 %v2745, %v2739
        %v2992 = vpack.c.b16 %v2746, %v2740
        %v2993 = vpack.c.b16 %v2747, %v2741
        %v2994 = vpack.c.b16 %v2748, %v2742
        %v2995 = vpack.c.b16 %v2749, %v2743
        %v2996 = vpack.c.b16 %v2750, %v2744
        %v2997 = vpack.c.b16 %v2757, %v2751
        %v2998 = vpack.c.b16 %v2758, %v2752
        %v2999 = vpack.c.b16 %v2759, %v2753
        %v3000 = vpack.c.b16 %v2760, %v2754
        %v3001 = vpack.c.b16 %v2761, %v2755
        %v3002 = vpack.c.b16 %v2762, %v2756
        %v3003 = vpack.c.b16 %v2769, %v2763
        %v3004 = vpack.c.b16 %v2770, %v2764
        %v3005 = vpack.c.b16 %v2771, %v2765
        %v3006 = vpack.c.b16 %v2772, %v2766
        %v3007 = vpack.c.b16 %v2773, %v2767
        %v3008 = vpack.c.b16 %v2774, %v2768
        %v3009 = vpack.c.b16 %v2781, %v2775
        %v3010 = vpack.c.b16 %v2782, %v2776
        %v3011 = vpack.c.b16 %v2783, %v2777
        %v3012 = vpack.c.b16 %v2784, %v2778
        %v3013 = vpack.c.b16 %v2785, %v2779
        %v3014 = vpack.c.b16 %v2786, %v2780
        %v3015 = vpack.c.b16 %v2793, %v2787
        %v3016 = vpack.c.b16 %v2794, %v2788
        %v3017 = vpack.c.b16 %v2795, %v2789
        %v3018 = vpack.c.b16 %v2796, %v2790
        %v3019 = vpack.c.b16 %v2797, %v2791
        %v3020 = vpack.c.b16 %v2798, %v2792
        %v3021 = vpack.c.b16 %v2805, %v2799
        %v3022 = vpack.c.b16 %v2806, %v2800
        %v3023 = vpack.c.b16 %v2807, %v2801
        %v3024 = vpack.c.b16 %v2808, %v2802
        %v3025 = vpack.c.b16 %v2809, %v2803
        %v3026 = vpack.c.b16 %v2810, %v2804
        %v3027 = vpack.c.b16 %v2817, %v2811
        %v3028 = vpack.c.b16 %v2818, %v2812
        %v3029 = vpack.c.b16 %v2819, %v2813
        %v3030 = vpack.c.b16 %v2820, %v2814
        %v3031 = vpack.c.b16 %v2821, %v2815
        %v3032 = vpack.c.b16 %v2822, %v2816
        %v3033 = vpack.c.b16 %v2829, %v2823
        %v3034 = vpack.c.b16 %v2830, %v2824
        %v3035 = vpack.c.b16 %v2831, %v2825
        %v3036 = vpack.c.b16 %v2832, %v2826
        %v3037 = vpack.c.b16 %v2833, %v2827
        %v3038 = vpack.c.b16 %v2834, %v2828
        %v3039 = vpack.c.b16 %v2841, %v2835
        %v3040 = vpack.c.b16 %v2842, %v2836
        %v3041 = vpack.c.b16 %v2843, %v2837
        %v3042 = vpack.c.b16 %v2844, %v2838
        %v3043 = vpack.c.b16 %v2845, %v2839
        %v3044 = vpack.c.b16 %v2846, %v2840
        %v3045 = vpack.c.b16 %v2853, %v2847
        %v3046 = vpack.c.b16 %v2854, %v2848
        %v3047 = vpack.c.b16 %v2855, %v2849
        %v3048 = vpack.c.b16 %v2856, %v2850
        %v3049 = vpack.c.b16 %v2857, %v2851
        %v3050 = vpack.c.b16 %v2858, %v2852
        %3243 = vmatpush.bf16.msra.mxu0 %v2901
        %3244 = vmatpush.bf16.msra.mxu0 %v2895
        %3245 = vmatpush.bf16.msra.mxu0 %v2889
        %3246 = vmatpush.bf16.msra.mxu0 %v2883
        %3247 = vmatpush.bf16.msra.mxu0 %v2877
        %3248 = vmatpush.bf16.msra.mxu0 %v2871
        %3249 = vmatpush.bf16.msra.mxu0 %v2865
        %3250 = vmatpush.bf16.msra.mxu0 %v2859
        %3251 = vmatmul.bf16.gmra.mxu0 %v2275
        %v3252 = vpop.f32.mrf.mxu0
        %v3253 = vadd.f32 %v2261, %v3252
        %v3254 = vpop.f32.mrf.mxu0
        %3255 = vdwg.mxu0
        %3256 = vmatpush.bf16.msra.mxu0 %v2949
        %3257 = vmatpush.bf16.msra.mxu0 %v2943
        %3258 = vmatpush.bf16.msra.mxu0 %v2937
        %3259 = vmatpush.bf16.msra.mxu0 %v2931
        %3260 = vmatpush.bf16.msra.mxu0 %v2925
        %3261 = vmatpush.bf16.msra.mxu0 %v2919
        %3262 = vmatpush.bf16.msra.mxu0 %v2913
        %3263 = vmatpush.bf16.msra.mxu0 %v2907
        %3264 = vmatmul.bf16.gmra.mxu0 %v2276
        %v3265 = vpop.f32.mrf.mxu0
        %v3266 = vadd.f32 %v3253, %v3265
        %v3267 = vpop.f32.mrf.mxu0
        %3268 = vdwg.mxu0
        %3269 = vmatpush.bf16.msra.mxu0 %v2997
        %3270 = vmatpush.bf16.msra.mxu0 %v2991
        %3271 = vmatpush.bf16.msra.mxu0 %v2985
        %3272 = vmatpush.bf16.msra.mxu0 %v2979
        %3273 = vmatpush.bf16.msra.mxu0 %v2973
        %3274 = vmatpush.bf16.msra.mxu0 %v2967
        %3275 = vmatpush.bf16.msra.mxu0 %v2961
        %3276 = vmatpush.bf16.msra.mxu0 %v2955
        %3277 = vmatmul.bf16.gmra.mxu0 %v2277
        %v3278 = vpop.f32.mrf.mxu0
        %v3279 = vadd.f32 %v3266, %v3278
        %v3280 = vpop.f32.mrf.mxu0
        %3281 = vdwg.mxu0
        %3282 = vmatpush.bf16.msra.mxu0 %v3045
        %3283 = vmatpush.bf16.msra.mxu0 %v3039
        %3284 = vmatpush.bf16.msra.mxu0 %v3033
        %3285 = vmatpush.bf16.msra.mxu0 %v3027
        %3286 = vmatpush.bf16.msra.mxu0 %v3021
        %3287 = vmatpush.bf16.msra.mxu0 %v3015
        %3288 = vmatpush.bf16.msra.mxu0 %v3009
        %3289 = vmatpush.bf16.msra.mxu0 %v3003
        %3290 = vmatmul.bf16.gmra.mxu0 %v2278
        %v3291 = vpop.f32.mrf.mxu0
        %v3292 = vadd.f32 %v3279, %v3291
        %v3293 = vpop.f32.mrf.mxu0
        %3294 = vdwg.mxu0
        %3295 = vmatpush.bf16.msra.mxu0 %v2902
        %3296 = vmatpush.bf16.msra.mxu0 %v2896
        %3297 = vmatpush.bf16.msra.mxu0 %v2890
        %3298 = vmatpush.bf16.msra.mxu0 %v2884
        %3299 = vmatpush.bf16.msra.mxu0 %v2878
        %3300 = vmatpush.bf16.msra.mxu0 %v2872
        %3301 = vmatpush.bf16.msra.mxu0 %v2866
        %3302 = vmatpush.bf16.msra.mxu0 %v2860
        %3303 = vmatmul.bf16.gmra.mxu0 %v2275
        %v3304 = vpop.f32.mrf.mxu0
        %v3305 = vadd.f32 %v2262, %v3304
        %v3306 = vpop.f32.mrf.mxu0
        %3307 = vdwg.mxu0
        %3308 = vmatpush.bf16.msra.mxu0 %v2950
        %3309 = vmatpush.bf16.msra.mxu0 %v2944
        %3310 = vmatpush.bf16.msra.mxu0 %v2938
        %3311 = vmatpush.bf16.msra.mxu0 %v2932
        %3312 = vmatpush.bf16.msra.mxu0 %v2926
        %3313 = vmatpush.bf16.msra.mxu0 %v2920
        %3314 = vmatpush.bf16.msra.mxu0 %v2914
        %3315 = vmatpush.bf16.msra.mxu0 %v2908
        %3316 = vmatmul.bf16.gmra.mxu0 %v2276
        %v3317 = vpop.f32.mrf.mxu0
        %v3318 = vadd.f32 %v3305, %v3317
        %v3319 = vpop.f32.mrf.mxu0
        %3320 = vdwg.mxu0
        %3321 = vmatpush.bf16.msra.mxu0 %v2998
        %3322 = vmatpush.bf16.msra.mxu0 %v2992
        %3323 = vmatpush.bf16.msra.mxu0 %v2986
        %3324 = vmatpush.bf16.msra.mxu0 %v2980
        %3325 = vmatpush.bf16.msra.mxu0 %v2974
        %3326 = vmatpush.bf16.msra.mxu0 %v2968
        %3327 = vmatpush.bf16.msra.mxu0 %v2962
        %3328 = vmatpush.bf16.msra.mxu0 %v2956
        %3329 = vmatmul.bf16.gmra.mxu0 %v2277
        %v3330 = vpop.f32.mrf.mxu0
        %v3331 = vadd.f32 %v3318, %v3330
        %v3332 = vpop.f32.mrf.mxu0
        %3333 = vdwg.mxu0
        %3334 = vmatpush.bf16.msra.mxu0 %v3046
        %3335 = vmatpush.bf16.msra.mxu0 %v3040
        %3336 = vmatpush.bf16.msra.mxu0 %v3034
        %3337 = vmatpush.bf16.msra.mxu0 %v3028
        %3338 = vmatpush.bf16.msra.mxu0 %v3022
        %3339 = vmatpush.bf16.msra.mxu0 %v3016
        %3340 = vmatpush.bf16.msra.mxu0 %v3010
        %3341 = vmatpush.bf16.msra.mxu0 %v3004
        %3342 = vmatmul.bf16.gmra.mxu0 %v2278
        %v3343 = vpop.f32.mrf.mxu0
        %v3344 = vadd.f32 %v3331, %v3343
        %v3345 = vpop.f32.mrf.mxu0
        %3346 = vdwg.mxu0
        %3347 = vmatpush.bf16.msra.mxu0 %v2903
        %3348 = vmatpush.bf16.msra.mxu0 %v2897
        %3349 = vmatpush.bf16.msra.mxu0 %v2891
        %3350 = vmatpush.bf16.msra.mxu0 %v2885
        %3351 = vmatpush.bf16.msra.mxu0 %v2879
        %3352 = vmatpush.bf16.msra.mxu0 %v2873
        %3353 = vmatpush.bf16.msra.mxu0 %v2867
        %3354 = vmatpush.bf16.msra.mxu0 %v2861
        %3355 = vmatmul.bf16.gmra.mxu0 %v2275
        %v3356 = vpop.f32.mrf.mxu0
        %v3357 = vadd.f32 %v2263, %v3356
        %v3358 = vpop.f32.mrf.mxu0
        %3359 = vdwg.mxu0
        %3360 = vmatpush.bf16.msra.mxu0 %v2951
        %3361 = vmatpush.bf16.msra.mxu0 %v2945
        %3362 = vmatpush.bf16.msra.mxu0 %v2939
        %3363 = vmatpush.bf16.msra.mxu0 %v2933
        %3364 = vmatpush.bf16.msra.mxu0 %v2927
        %3365 = vmatpush.bf16.msra.mxu0 %v2921
        %3366 = vmatpush.bf16.msra.mxu0 %v2915
        %3367 = vmatpush.bf16.msra.mxu0 %v2909
        %3368 = vmatmul.bf16.gmra.mxu0 %v2276
        %v3369 = vpop.f32.mrf.mxu0
        %v3370 = vadd.f32 %v3357, %v3369
        %v3371 = vpop.f32.mrf.mxu0
        %3372 = vdwg.mxu0
        %3373 = vmatpush.bf16.msra.mxu0 %v2999
        %3374 = vmatpush.bf16.msra.mxu0 %v2993
        %3375 = vmatpush.bf16.msra.mxu0 %v2987
        %3376 = vmatpush.bf16.msra.mxu0 %v2981
        %3377 = vmatpush.bf16.msra.mxu0 %v2975
        %3378 = vmatpush.bf16.msra.mxu0 %v2969
        %3379 = vmatpush.bf16.msra.mxu0 %v2963
        %3380 = vmatpush.bf16.msra.mxu0 %v2957
        %3381 = vmatmul.bf16.gmra.mxu0 %v2277
        %v3382 = vpop.f32.mrf.mxu0
        %v3383 = vadd.f32 %v3370, %v3382
        %v3384 = vpop.f32.mrf.mxu0
        %3385 = vdwg.mxu0
        %3386 = vmatpush.bf16.msra.mxu0 %v3047
        %3387 = vmatpush.bf16.msra.mxu0 %v3041
        %3388 = vmatpush.bf16.msra.mxu0 %v3035
        %3389 = vmatpush.bf16.msra.mxu0 %v3029
        %3390 = vmatpush.bf16.msra.mxu0 %v3023
        %3391 = vmatpush.bf16.msra.mxu0 %v3017
        %3392 = vmatpush.bf16.msra.mxu0 %v3011
        %3393 = vmatpush.bf16.msra.mxu0 %v3005
        %3394 = vmatmul.bf16.gmra.mxu0 %v2278
        %v3395 = vpop.f32.mrf.mxu0
        %v3396 = vadd.f32 %v3383, %v3395
        %v3397 = vpop.f32.mrf.mxu0
        %3398 = vdwg.mxu0
        %3399 = vmatpush.bf16.msra.mxu0 %v2904
        %3400 = vmatpush.bf16.msra.mxu0 %v2898
        %3401 = vmatpush.bf16.msra.mxu0 %v2892
        %3402 = vmatpush.bf16.msra.mxu0 %v2886
        %3403 = vmatpush.bf16.msra.mxu0 %v2880
        %3404 = vmatpush.bf16.msra.mxu0 %v2874
        %3405 = vmatpush.bf16.msra.mxu0 %v2868
        %3406 = vmatpush.bf16.msra.mxu0 %v2862
        %3407 = vmatmul.bf16.gmra.mxu0 %v2275
        %v3408 = vpop.f32.mrf.mxu0
        %v3409 = vadd.f32 %v2264, %v3408
        %v3410 = vpop.f32.mrf.mxu0
        %3411 = vdwg.mxu0
        %3412 = vmatpush.bf16.msra.mxu0 %v2952
        %3413 = vmatpush.bf16.msra.mxu0 %v2946
        %3414 = vmatpush.bf16.msra.mxu0 %v2940
        %3415 = vmatpush.bf16.msra.mxu0 %v2934
        %3416 = vmatpush.bf16.msra.mxu0 %v2928
        %3417 = vmatpush.bf16.msra.mxu0 %v2922
        %3418 = vmatpush.bf16.msra.mxu0 %v2916
        %3419 = vmatpush.bf16.msra.mxu0 %v2910
        %3420 = vmatmul.bf16.gmra.mxu0 %v2276
        %v3421 = vpop.f32.mrf.mxu0
        %v3422 = vadd.f32 %v3409, %v3421
        %v3423 = vpop.f32.mrf.mxu0
        %3424 = vdwg.mxu0
        %3425 = vmatpush.bf16.msra.mxu0 %v3000
        %3426 = vmatpush.bf16.msra.mxu0 %v2994
        %3427 = vmatpush.bf16.msra.mxu0 %v2988
        %3428 = vmatpush.bf16.msra.mxu0 %v2982
        %3429 = vmatpush.bf16.msra.mxu0 %v2976
        %3430 = vmatpush.bf16.msra.mxu0 %v2970
        %3431 = vmatpush.bf16.msra.mxu0 %v2964
        %3432 = vmatpush.bf16.msra.mxu0 %v2958
        %3433 = vmatmul.bf16.gmra.mxu0 %v2277
        %v3434 = vpop.f32.mrf.mxu0
        %v3435 = vadd.f32 %v3422, %v3434
        %v3436 = vpop.f32.mrf.mxu0
        %3437 = vdwg.mxu0
        %3438 = vmatpush.bf16.msra.mxu0 %v3048
        %3439 = vmatpush.bf16.msra.mxu0 %v3042
        %3440 = vmatpush.bf16.msra.mxu0 %v3036
        %3441 = vmatpush.bf16.msra.mxu0 %v3030
        %3442 = vmatpush.bf16.msra.mxu0 %v3024
        %3443 = vmatpush.bf16.msra.mxu0 %v3018
        %3444 = vmatpush.bf16.msra.mxu0 %v3012
        %3445 = vmatpush.bf16.msra.mxu0 %v3006
        %3446 = vmatmul.bf16.gmra.mxu0 %v2278
        %v3447 = vpop.f32.mrf.mxu0
        %v3448 = vadd.f32 %v3435, %v3447
        %v3449 = vpop.f32.mrf.mxu0
        %3450 = vdwg.mxu0
        %3451 = vmatpush.bf16.msra.mxu0 %v2905
        %3452 = vmatpush.bf16.msra.mxu0 %v2899
        %3453 = vmatpush.bf16.msra.mxu0 %v2893
        %3454 = vmatpush.bf16.msra.mxu0 %v2887
        %3455 = vmatpush.bf16.msra.mxu0 %v2881
        %3456 = vmatpush.bf16.msra.mxu0 %v2875
        %3457 = vmatpush.bf16.msra.mxu0 %v2869
        %3458 = vmatpush.bf16.msra.mxu0 %v2863
        %3459 = vmatmul.bf16.gmra.mxu0 %v2275
        %v3460 = vpop.f32.mrf.mxu0
        %v3461 = vadd.f32 %v2265, %v3460
        %v3462 = vpop.f32.mrf.mxu0
        %3463 = vdwg.mxu0
        %3464 = vmatpush.bf16.msra.mxu0 %v2953
        %3465 = vmatpush.bf16.msra.mxu0 %v2947
        %3466 = vmatpush.bf16.msra.mxu0 %v2941
        %3467 = vmatpush.bf16.msra.mxu0 %v2935
        %3468 = vmatpush.bf16.msra.mxu0 %v2929
        %3469 = vmatpush.bf16.msra.mxu0 %v2923
        %3470 = vmatpush.bf16.msra.mxu0 %v2917
        %3471 = vmatpush.bf16.msra.mxu0 %v2911
        %3472 = vmatmul.bf16.gmra.mxu0 %v2276
        %v3473 = vpop.f32.mrf.mxu0
        %v3474 = vadd.f32 %v3461, %v3473
        %v3475 = vpop.f32.mrf.mxu0
        %3476 = vdwg.mxu0
        %3477 = vmatpush.bf16.msra.mxu0 %v3001
        %3478 = vmatpush.bf16.msra.mxu0 %v2995
        %3479 = vmatpush.bf16.msra.mxu0 %v2989
        %3480 = vmatpush.bf16.msra.mxu0 %v2983
        %3481 = vmatpush.bf16.msra.mxu0 %v2977
        %3482 = vmatpush.bf16.msra.mxu0 %v2971
        %3483 = vmatpush.bf16.msra.mxu0 %v2965
        %3484 = vmatpush.bf16.msra.mxu0 %v2959
        %3485 = vmatmul.bf16.gmra.mxu0 %v2277
        %v3486 = vpop.f32.mrf.mxu0
        %v3487 = vadd.f32 %v3474, %v3486
        %v3488 = vpop.f32.mrf.mxu0
        %3489 = vdwg.mxu0
        %3490 = vmatpush.bf16.msra.mxu0 %v3049
        %3491 = vmatpush.bf16.msra.mxu0 %v3043
        %3492 = vmatpush.bf16.msra.mxu0 %v3037
        %3493 = vmatpush.bf16.msra.mxu0 %v3031
        %3494 = vmatpush.bf16.msra.mxu0 %v3025
        %3495 = vmatpush.bf16.msra.mxu0 %v3019
        %3496 = vmatpush.bf16.msra.mxu0 %v3013
        %3497 = vmatpush.bf16.msra.mxu0 %v3007
        %3498 = vmatmul.bf16.gmra.mxu0 %v2278
        %v3499 = vpop.f32.mrf.mxu0
        %v3500 = vadd.f32 %v3487, %v3499
        %v3501 = vpop.f32.mrf.mxu0
        %3502 = vdwg.mxu0
        %3503 = vmatpush.bf16.msra.mxu0 %v2906
        %3504 = vmatpush.bf16.msra.mxu0 %v2900
        %3505 = vmatpush.bf16.msra.mxu0 %v2894
        %3506 = vmatpush.bf16.msra.mxu0 %v2888
        %3507 = vmatpush.bf16.msra.mxu0 %v2882
        %3508 = vmatpush.bf16.msra.mxu0 %v2876
        %3509 = vmatpush.bf16.msra.mxu0 %v2870
        %3510 = vmatpush.bf16.msra.mxu0 %v2864
        %3511 = vmatmul.bf16.gmra.mxu0 %v2275
        %v3512 = vpop.f32.mrf.mxu0
        %v3513 = vadd.f32 %v2266, %v3512
        %v3514 = vpop.f32.mrf.mxu0
        %3515 = vdwg.mxu0
        %3516 = vmatpush.bf16.msra.mxu0 %v2954
        %3517 = vmatpush.bf16.msra.mxu0 %v2948
        %3518 = vmatpush.bf16.msra.mxu0 %v2942
        %3519 = vmatpush.bf16.msra.mxu0 %v2936
        %3520 = vmatpush.bf16.msra.mxu0 %v2930
        %3521 = vmatpush.bf16.msra.mxu0 %v2924
        %3522 = vmatpush.bf16.msra.mxu0 %v2918
        %3523 = vmatpush.bf16.msra.mxu0 %v2912
        %3524 = vmatmul.bf16.gmra.mxu0 %v2276
        %v3525 = vpop.f32.mrf.mxu0
        %v3526 = vadd.f32 %v3513, %v3525
        %v3527 = vpop.f32.mrf.mxu0
        %3528 = vdwg.mxu0
        %3529 = vmatpush.bf16.msra.mxu0 %v3002
        %3530 = vmatpush.bf16.msra.mxu0 %v2996
        %3531 = vmatpush.bf16.msra.mxu0 %v2990
        %3532 = vmatpush.bf16.msra.mxu0 %v2984
        %3533 = vmatpush.bf16.msra.mxu0 %v2978
        %3534 = vmatpush.bf16.msra.mxu0 %v2972
        %3535 = vmatpush.bf16.msra.mxu0 %v2966
        %3536 = vmatpush.bf16.msra.mxu0 %v2960
        %3537 = vmatmul.bf16.gmra.mxu0 %v2277
        %v3538 = vpop.f32.mrf.mxu0
        %v3539 = vadd.f32 %v3526, %v3538
        %v3540 = vpop.f32.mrf.mxu0
        %3541 = vdwg.mxu0
        %3542 = vmatpush.bf16.msra.mxu0 %v3050
        %3543 = vmatpush.bf16.msra.mxu0 %v3044
        %3544 = vmatpush.bf16.msra.mxu0 %v3038
        %3545 = vmatpush.bf16.msra.mxu0 %v3032
        %3546 = vmatpush.bf16.msra.mxu0 %v3026
        %3547 = vmatpush.bf16.msra.mxu0 %v3020
        %3548 = vmatpush.bf16.msra.mxu0 %v3014
        %3549 = vmatpush.bf16.msra.mxu0 %v3008
        %3550 = vmatmul.bf16.gmra.mxu0 %v2278
        %v3551 = vpop.f32.mrf.mxu0
        %v3552 = vadd.f32 %v3539, %v3551
        %v3553 = vpop.f32.mrf.mxu0
        %3554 = vdwg.mxu0
        %v3561 = vrot.slane %v3344, 6
        %v3562 = vrot.slane %v3396, 4
        %v3563 = vrot.slane %v3448, 2
        %v3564 = vrot.slane %v3552, 6
        %vm3565 = vcmask 1041408
        %v3566 = vsel %vm3565, %v3292, %v3561
        %vm3567 = vcmask 1045508
        %v3568 = vsel %vm3567, %v3562, %v3563
        %vm3569 = vcmask 1043456
        %v3570 = vsel %vm3569, %v3566, %v3568
        %v3571 = vsel %vm3565, %v3500, %v3564
        %3574 = vst [vmem:[%s754] sm:$0xff] %v3570
        %3575 = vst [vmem:[%s754 + $0x8] sm:$0xf] %v3571
        %s3576 = smul.u32 6, %s20
        %p3577 = scmp.lt.s32.totalorder %s3576, 11
        %s3578 = scalar_select %p3577, %s3576, 11
        %s3579 = smul.addr %s3578, 2
        %s3580 = scalar_lea.vmem %s9, %s3579
        // Predicated region
        $region84: #{pointnet_autoencoder.3} parent=74 // pred_check
          %p3581 = pneg %p237
        $region85: #{pointnet_autoencoder.3} parent=74 // pred_check_branch
          %3583 = sbr.rel (%p3581) target = $region87
        $region86: #{pointnet_autoencoder.3} parent=74 // pred_region
          %s3584 = smul.u32 6, %s20
        $region87: #{pointnet_autoencoder.3} parent=74 // pred_fallthru
          _
      $region75: #{pointnet_autoencoder.3} parent=5 // pred_fallthru
        _
      %p3585 = scmp.le.s32.totalorder 2, %s15
      // Predicated region
      $region88: #{pointnet_autoencoder.3} parent=5 // pred_check
        %p3586 = pneg %p3585
      $region89: #{pointnet_autoencoder.3} parent=5 // pred_check_branch
        %3588 = sbr.rel (%p3586) target = $region91
      $region90: #{pointnet_autoencoder.3} parent=5 // pred_region
        %s3589 = ssub.s32 %s15, 2
        // Predicated region
        $region92: #{pointnet_autoencoder.3} parent=90 // pred_check
          %p3590 = pneg %p243
        $region93: #{pointnet_autoencoder.3} parent=90 // pred_check_branch
          %3592 = sbr.rel (%p3590) target = $region95
        $region94: #{pointnet_autoencoder.3} parent=90 // pred_region
          %s3593 = smul.u32 6, %s21
          %p3594 = scmp.lt.s32.totalorder %s3593, 11
          %s3595 = scalar_select %p3594, %s3593, 11
          %s3596 = smul.addr %s3595, 2
          %s3597 = scalar_lea.vmem %s9, %s3596
        $region95: #{pointnet_autoencoder.3} parent=90 // pred_fallthru
          _
      $region91: #{pointnet_autoencoder.3} parent=5 // pred_fallthru
        _
    $region6: #{pointnet_autoencoder.3} parent=1 // loop_footer
      %s19 = sadd.s32 1, %s15
    $region7: #{pointnet_autoencoder.3} parent=1 // loop_footer_branch
      %14 = sbr.rel target = $region3
    $region8: #{pointnet_autoencoder.3} parent=1 // loop_exit
      _

</llo_original>
